<compile_context>
chip_gen: v7x
topology: tpu7x:2x2x1
jax: 0.10.0
libtpu: 0.0.40
codegen_flags: <defaults>
</compile_context>

<pallas_src>
import functools

import jax
import jax.numpy as jnp
from jax import lax
from jax.experimental import pallas as pl
from jax.experimental.pallas import tpu as pltpu


# ----------------------------- in-kernel helpers -----------------------------

def _ln(x, g, b, eps):
    """LayerNorm over the last dim in f32.  x: (M, H) f32, g/b: (1, H) f32."""
    mu = jnp.mean(x, axis=-1, keepdims=True)
    var = jnp.mean(jnp.square(x - mu), axis=-1, keepdims=True)
    return (x - mu) * lax.rsqrt(var + eps) * g + b


def _dense(x_f32, w_bf16, b_f32, activation=None):
    """bf16 MXU matmul with f32 accumulation.  x: (M, K) f32, w: (K, N) bf16, b: (1, N) f32."""
    y = jnp.dot(x_f32.astype(jnp.bfloat16), w_bf16,
                preferred_element_type=jnp.float32) + b_f32
    if activation == "gelu":
        # TODO(synk): HF BLIP/BERT use exact (erf) GELU; tanh approximation used here.
        y = jax.nn.gelu(y, approximate=True)
    return y


def _mha(q, k, v, mask, num_heads):
    """Multi-head attention on SSA values (no scratch stores).
    q: (Sq, H) f32 (scale already folded into the Q weights), k/v: (Sk, H) f32,
    mask: (1, Sk) additive or None.  Per-head outputs are concatenated once (lane-dense).
    TODO(synk): at real BLIP sizes batch heads into one (nh,Sq,D)x(nh,Sk,D) dot_general."""
    H = q.shape[-1]
    D = H // num_heads
    outs = []
    for h in range(num_heads):
        qh = q[:, h * D:(h + 1) * D].astype(jnp.bfloat16)
        kh = k[:, h * D:(h + 1) * D].astype(jnp.bfloat16)
        vh = v[:, h * D:(h + 1) * D].astype(jnp.bfloat16)
        # q @ k^T without materializing a transpose: contract the last dims of both operands.
        s = lax.dot_general(qh, kh, (((1,), (1,)), ((), ())),
                            preferred_element_type=jnp.float32)
        if mask is not None:
            s = s + mask
        m = jnp.max(s, axis=-1, keepdims=True)
        p = jnp.exp(s - m)
        p = p * pl.reciprocal(jnp.sum(p, axis=-1, keepdims=True), approx=True)
        outs.append(jnp.dot(p.astype(jnp.bfloat16), vh,
                            preferred_element_type=jnp.float32))
    return jnp.concatenate(outs, axis=-1)          # (Sq, H) lane-dense value


# ----------------------------- fused encoder-stack kernel -----------------------------

def _encoder_stack_kernel(*args, num_heads, has_mask, has_cross, has_final_ln,
                          ln_eps, final_eps):
    x_s = args[-1]                                  # (S, H) f32 residual-carry scratch
    o_ref = args[-2]
    it = iter(args[:-2])

    x_ref = next(it)
    mask_ref = next(it) if has_mask else None
    ctx_ref = next(it) if has_cross else None
    ln1_g, ln1_b, w_qkv, b_qkv, w_o, b_o = [next(it) for _ in range(6)]
    if has_cross:
        lnx_g, lnx_b, wq_x, bq_x, w_kv_x, b_kv_x, wo_x, bo_x = [next(it) for _ in range(8)]
    ln2_g, ln2_b, w_fc1, b_fc1, w_fc2, b_fc2 = [next(it) for _ in range(6)]
    if has_final_ln:
        fln_g, fln_b = next(it), next(it)

    l = pl.program_id(1)
    H = x_ref.shape[-1]

    @pl.when(l == 0)
    def _():
        x_s[...] = x_ref[0].astype(jnp.float32)

    x = x_s[...]                                    # (S, H) f32 residual stream
    mask = mask_ref[0] if has_mask else None        # (1, S) additive key mask

    # ---- self-attention with fused QKV projection (Q-scale folded into w_qkv) ----
    h = _ln(x, ln1_g[0], ln1_b[0], ln_eps)
    qkv = _dense(h, w_qkv[0], b_qkv[0])             # (S, 3H) SSA value: [Q | K | V]
    attn = _mha(qkv[:, :H], qkv[:, H:2 * H], qkv[:, 2 * H:], mask, num_heads)
    x = x + _dense(attn, w_o[0], b_o[0])

    # ---- cross-attention over image tokens (text encoder only) ----
    if has_cross:
        h = _ln(x, lnx_g[0], lnx_b[0], ln_eps)
        q = _dense(h, wq_x[0], bq_x[0])             # (S, H)
        ctx = ctx_ref[0].astype(jnp.float32)        # (Sv, H) resident across layers
        kv = _dense(ctx, w_kv_x[0], b_kv_x[0])      # (Sv, 2H): [K | V]
        attn = _mha(q, kv[:, :H], kv[:, H:], None, num_heads)
        x = x + _dense(attn, wo_x[0], bo_x[0])

    # ---- MLP ----
    h = _ln(x, ln2_g[0], ln2_b[0], ln_eps)
    h = _dense(h, w_fc1[0], b_fc1[0], activation="gelu")
    x = x + _dense(h, w_fc2[0], b_fc2[0])

    x_s[...] = x                                    # carry residual to next layer

    @pl.when(l == pl.num_programs(1) - 1)
    def _():
        y = _ln(x, fln_g[...], fln_b[...], final_eps) if has_final_ln else x
        o_ref[0] = y.astype(o_ref.dtype)


def encoder_stack(x, stacked, *, num_heads, ln_eps, mask=None, context=None,
                  final_ln=None, final_eps=1e-6):
    """Run the whole stack of L transformer blocks in one pallas_call.

    x: (B, S, H) f32; mask: (B, 1, S) additive or None; context: (B, Sv, H) f32 or None.
    `stacked` holds per-layer weights stacked along a leading L axis.
    """
    B, S, H = x.shape
    L = stacked["w_qkv"].shape[0]

    inputs = [x]
    in_specs = [pl.BlockSpec((1, S, H), lambda b, l: (b, 0, 0))]
    if mask is not None:
        inputs.append(mask)
        in_specs.append(pl.BlockSpec((1, 1, S), lambda b, l: (b, 0, 0)))
    if context is not None:
        Sv = context.shape[1]
        inputs.append(context)
        in_specs.append(pl.BlockSpec((1, Sv, H), lambda b, l: (b, 0, 0)))

    weight_keys = ["ln1_g", "ln1_b", "w_qkv", "b_qkv", "w_o", "b_o"]
    if context is not None:
        weight_keys += ["lnx_g", "lnx_b", "wq_x", "bq_x", "w_kv_x", "b_kv_x", "wo_x", "bo_x"]
    weight_keys += ["ln2_g", "ln2_b", "w_fc1", "b_fc1", "w_fc2", "b_fc2"]
    for key in weight_keys:                          # layer-stacked: new slice DMA'd per layer
        w = stacked[key]
        inputs.append(w)
        in_specs.append(pl.BlockSpec((1,) + w.shape[1:], lambda b, l: (l, 0, 0)))
    if final_ln is not None:                         # grid-invariant final LN params
        for w in final_ln:
            inputs.append(w)
            in_specs.append(pl.BlockSpec(w.shape, lambda b, l: (0, 0)))

    kernel = functools.partial(
        _encoder_stack_kernel, num_heads=num_heads,
        has_mask=mask is not None, has_cross=context is not None,
        has_final_ln=final_ln is not None, ln_eps=ln_eps, final_eps=final_eps)

    return pl.pallas_call(
        kernel,
        grid=(B, L),
        in_specs=in_specs,
        out_specs=pl.BlockSpec((1, S, H), lambda b, l: (b, 0, 0)),
        out_shape=jax.ShapeDtypeStruct((B, S, H), jnp.float32),
        scratch_shapes=[pltpu.VMEM((S, H), jnp.float32)],   # residual carried across layers
        compiler_params=pltpu.CompilerParams(
            dimension_semantics=("parallel", "arbitrary")),
    )(*inputs)


# ----------------------------- model (plain-XLA glue around the fused kernel) -------------

def vision_encoder(params, images, cfg):
    # layout: NCHW -> unfold to (B, num_patches, C*P*P) patch rows
    B, C, Hh, Ww = images.shape
    P, Hd = cfg["patch"], cfg["hidden"]
    gh, gw = Hh // P, Ww // P
    n_patches = gh * gw
    patches = (images.reshape(B, C, gh, P, gw, P)
               .transpose(0, 2, 4, 1, 3, 5)
               .reshape(B, n_patches, C * P * P))
    # Patch embed / cls / pos-add left to XLA: one tiny matmul, not worth a pallas_call here.
    emb = jnp.einsum("bpk,kh->bph", patches,
                     params["patch_w"].astype(jnp.float32)) + params["patch_b"]
    cls = jnp.broadcast_to(params["cls_token"], (B, 1, Hd))
    x = jnp.concatenate([cls, emb], axis=1) + params["vis_pos"]          # (B, Sv, H)
    return encoder_stack(x, params["vision_stack"], num_heads=cfg["heads"], ln_eps=1e-6,
                         final_ln=(params["vis_ln_g"], params["vis_ln_b"]), final_eps=1e-6)


def text_encoder(params, token_ids, img_ctx, cfg):
    B, S = token_ids.shape
    # TODO(synk): token-embedding gather stays in XLA (no clean tiny-shape Pallas gather).
    x = jnp.take(params["tok_emb"], token_ids, axis=0) + params["txt_pos"]   # (B, S, H)
    # additive key mask: pad-id 0 tokens are excluded from self-attention keys
    mask = jnp.where(token_ids != 0, 0.0, -1e9).astype(jnp.float32)[:, None, :]  # (B, 1, S)
    return encoder_stack(x, params["text_stack"], num_heads=cfg["heads"], ln_eps=1e-12,
                         mask=mask, context=img_ctx)


def blip_zero_shot(params, images, token_ids, cfg):
    """mode='zero-shot': ITM logits on the text CLS token, softmax over the 2 ITM classes."""
    img = vision_encoder(params, images, cfg)
    txt = text_encoder(params, token_ids, img, cfg)
    cls = txt[:, 0, :]
    # Final text LN + ITM linear + EXACT softmax left to XLA (N=2 output: a pallas_call
    # would be all overhead / fully masked stores; approx reciprocal avoided on model output).
    mu = jnp.mean(cls, axis=-1, keepdims=True)
    var = jnp.mean(jnp.square(cls - mu), axis=-1, keepdims=True)
    cls_n = (cls - mu) * lax.rsqrt(var + 1e-12) * params["txt_ln_g"] + params["txt_ln_b"]
    logits = cls_n @ params["itm_w"].astype(jnp.float32) + params["itm_b"]
    return jax.nn.softmax(logits, axis=-1)                                # (B, 2)


def blip_finetune(params, images, cfg):
    """mode='fine-tune': Linear classifier on last_hidden_state[:, 0, :] (vision CLS)."""
    img = vision_encoder(params, images, cfg)
    cls = img[:, 0, :]
    return cls @ params["cls_w"].astype(jnp.float32) + params["cls_b"]    # (B, num_classes)


# ----------------------------- deterministic parameter init -----------------------------

def _stack_blocks(key, num_layers, h, mlp, heads, cross):
    """Layer-stacked block parameters; attention Q-scale folded into wq / wq_x at init."""
    D = h // heads
    scale = 1.0 / float(D) ** 0.5

    def norm(k, shape, s=0.02):
        return jax.random.normal(k, shape, jnp.float32) * s

    ks = jax.random.split(key, 12)
    wq = norm(ks[0], (num_layers, h, h)) * scale           # scale folded in
    wk = norm(ks[1], (num_layers, h, h))
    wv = norm(ks[2], (num_layers, h, h))
    p = {
        "ln1_g": jnp.ones((num_layers, 1, h), jnp.float32),
        "ln1_b": jnp.zeros((num_layers, 1, h), jnp.float32),
        "ln2_g": jnp.ones((num_layers, 1, h), jnp.float32),
        "ln2_b": jnp.zeros((num_layers, 1, h), jnp.float32),
        "w_qkv": jnp.concatenate([wq, wk, wv], axis=-1).astype(jnp.bfloat16),
        "b_qkv": jnp.zeros((num_layers, 1, 3 * h), jnp.float32),
        "w_o": norm(ks[3], (num_layers, h, h)).astype(jnp.bfloat16),
        "b_o": jnp.zeros((num_layers, 1, h), jnp.float32),
        "w_fc1": norm(ks[4], (num_layers, h, mlp)).astype(jnp.bfloat16),
        "b_fc1": jnp.zeros((num_layers, 1, mlp), jnp.float32),
        "w_fc2": norm(ks[5], (num_layers, mlp, h)).astype(jnp.bfloat16),
        "b_fc2": jnp.zeros((num_layers, 1, h), jnp.float32),
    }
    if cross:
        wkx = norm(ks[7], (num_layers, h, h))
        wvx = norm(ks[8], (num_layers, h, h))
        p.update({
            "lnx_g": jnp.ones((num_layers, 1, h), jnp.float32),
            "lnx_b": jnp.zeros((num_layers, 1, h), jnp.float32),
            "wq_x": (norm(ks[6], (num_layers, h, h)) * scale).astype(jnp.bfloat16),
            "bq_x": jnp.zeros((num_layers, 1, h), jnp.float32),
            "w_kv_x": jnp.concatenate([wkx, wvx], axis=-1).astype(jnp.bfloat16),
            "b_kv_x": jnp.zeros((num_layers, 1, 2 * h), jnp.float32),
            "wo_x": norm(ks[9], (num_layers, h, h)).astype(jnp.bfloat16),
            "bo_x": jnp.zeros((num_layers, 1, h), jnp.float32),
        })
    return p


def init_params(key, cfg):
    H, mlp = cfg["hidden"], cfg["mlp"]
    C, P = cfg["channels"], cfg["patch"]
    n_patches = (cfg["image"] // P) ** 2
    ks = iter(jax.random.split(key, 12))
    params = {}
    params["patch_w"] = (jax.random.normal(next(ks), (C * P * P, H), jnp.float32) * 0.02
                         ).astype(jnp.bfloat16)
    params["patch_b"] = jnp.zeros((1, H), jnp.float32)
    params["cls_token"] = jax.random.normal(next(ks), (1, 1, H), jnp.float32) * 0.02
    params["vis_pos"] = jax.random.normal(next(ks), (1, n_patches + 1, H), jnp.float32) * 0.02
    params["vision_stack"] = _stack_blocks(next(ks), cfg["vision_layers"], H, mlp,
                                           cfg["heads"], cross=False)
    params["vis_ln_g"] = jnp.ones((1, H), jnp.float32)
    params["vis_ln_b"] = jnp.zeros((1, H), jnp.float32)
    params["tok_emb"] = jax.random.normal(next(ks), (cfg["vocab"], H), jnp.float32) * 0.02
    params["txt_pos"] = jax.random.normal(next(ks), (1, cfg["seq_len"], H), jnp.float32) * 0.02
    params["text_stack"] = _stack_blocks(next(ks), cfg["text_layers"], H, mlp,
                                         cfg["heads"], cross=True)
    params["txt_ln_g"] = jnp.ones((1, H), jnp.float32)
    params["txt_ln_b"] = jnp.zeros((1, H), jnp.float32)
    params["itm_w"] = (jax.random.normal(next(ks), (H, 2), jnp.float32) * 0.02
                       ).astype(jnp.bfloat16)
    params["itm_b"] = jnp.zeros((1, 2), jnp.float32)
    params["cls_w"] = (jax.random.normal(next(ks), (H, cfg["num_classes"]), jnp.float32) * 0.02
                       ).astype(jnp.bfloat16)
    params["cls_b"] = jnp.zeros((1, cfg["num_classes"]), jnp.float32)
    return params


# TODO(synk): BlipProcessor (HF tokenizer + image resize/normalize) has no Pallas equivalent;
#             a simple deterministic char-level tokenizer stands in for it.
def tokenize(prompts, seq_len, vocab):
    ids = []
    for p in prompts:
        toks = [1] + [(ord(c) % (vocab - 2)) + 2 for c in p][: seq_len - 1]
        toks = toks + [0] * (seq_len - len(toks))
        ids.append(toks)
    return jnp.array(ids, dtype=jnp.int32)


# ----------------------------- main -----------------------------

if __name__ == "__main__":
    cfg = dict(
        hidden=128, heads=4, mlp=256,            # lane-dense (128-multiple) activations
        vision_layers=2, text_layers=2,
        channels=3, image=16, patch=8,
        vocab=64, seq_len=8, num_classes=2,
    )
    key = jax.random.PRNGKey(0)
    params = init_params(key, cfg)

    images = jax.random.normal(jax.random.fold_in(key, 123),
                               (2, cfg["channels"], cfg["image"], cfg["image"]),
                               dtype=jnp.float32)   # layout: NCHW, like the PyTorch module
    text_prompts = ["a real photograph", "an AI-generated image"]
    token_ids = tokenize(text_prompts, cfg["seq_len"], cfg["vocab"])

    zero_shot_fn = jax.jit(lambda p, im, tk: blip_zero_shot(p, im, tk, cfg))
    finetune_fn = jax.jit(lambda p, im: blip_finetune(p, im, cfg))

    # zero-shot path (default mode of the wrapper): softmaxed ITM similarity per image/text pair
    similarity = jax.block_until_ready(zero_shot_fn(params, images, token_ids))
    assert similarity.shape == (2, 2)

    # fine-tune path: Linear classifier on the CLS hidden state
    logits = jax.block_until_ready(finetune_fn(params, images))
    assert logits.shape == (2, cfg["num_classes"])

    print("KERNEL_OK")
</pallas_src>

<mosaic_0001>
module attributes {stable_mosaic.version = 11 : i64} {
  func.func @_encoder_stack_kernel(%arg0: i32, %arg1: i32, %arg2: memref<1x5x128xf32, #tpu.memory_space<vmem>>, %arg3: memref<1x1x128xf32, #tpu.memory_space<vmem>>, %arg4: memref<1x1x128xf32, #tpu.memory_space<vmem>>, %arg5: memref<1x128x384xbf16, #tpu.memory_space<vmem>>, %arg6: memref<1x1x384xf32, #tpu.memory_space<vmem>>, %arg7: memref<1x128x128xbf16, #tpu.memory_space<vmem>>, %arg8: memref<1x1x128xf32, #tpu.memory_space<vmem>>, %arg9: memref<1x1x128xf32, #tpu.memory_space<vmem>>, %arg10: memref<1x1x128xf32, #tpu.memory_space<vmem>>, %arg11: memref<1x128x256xbf16, #tpu.memory_space<vmem>>, %arg12: memref<1x1x256xf32, #tpu.memory_space<vmem>>, %arg13: memref<1x256x128xbf16, #tpu.memory_space<vmem>>, %arg14: memref<1x1x128xf32, #tpu.memory_space<vmem>>, %arg15: memref<1x128xf32, #tpu.memory_space<vmem>>, %arg16: memref<1x128xf32, #tpu.memory_space<vmem>>, %arg17: memref<1x5x128xf32, #tpu.memory_space<vmem>>, %arg18: memref<5x128xf32, #tpu.memory_space<vmem>>) attributes {dimension_semantics = [#tpu.dimension_semantics<parallel>, #tpu.dimension_semantics<arbitrary>], iteration_bounds = array<i64: 2, 2>, scalar_prefetch = 0 : i64, scratch_operands = 1 : i64, tpu.core_type = #tpu.core_type<tc>, window_params = [{transform_indices = @transform_0, window_bounds = array<i64: 1, 5, 128>}, {transform_indices = @transform_1, window_bounds = array<i64: 1, 1, 128>}, {transform_indices = @transform_2, window_bounds = array<i64: 1, 1, 128>}, {transform_indices = @transform_3, window_bounds = array<i64: 1, 128, 384>}, {transform_indices = @transform_4, window_bounds = array<i64: 1, 1, 384>}, {transform_indices = @transform_5, window_bounds = array<i64: 1, 128, 128>}, {transform_indices = @transform_6, window_bounds = array<i64: 1, 1, 128>}, {transform_indices = @transform_7, window_bounds = array<i64: 1, 1, 128>}, {transform_indices = @transform_8, window_bounds = array<i64: 1, 1, 128>}, {transform_indices = @transform_9, window_bounds = array<i64: 1, 128, 256>}, {transform_indices = @transform_10, window_bounds = array<i64: 1, 1, 256>}, {transform_indices = @transform_11, window_bounds = array<i64: 1, 256, 128>}, {transform_indices = @transform_12, window_bounds = array<i64: 1, 1, 128>}, {pipeline_mode = #tpu.pipeline_mode<synchronous>, transform_indices = @transform_13, window_bounds = array<i64: 1, 128>}, {pipeline_mode = #tpu.pipeline_mode<synchronous>, transform_indices = @transform_14, window_bounds = array<i64: 1, 128>}, {transform_indices = @transform_15, window_bounds = array<i64: 1, 5, 128>}]} {
    %c0_i32 = arith.constant 0 : i32
    %0 = arith.cmpi eq, %arg1, %c0_i32 : i32
    %1 = arith.extui %0 : i1 to i32
    %c0_i32_0 = arith.constant 0 : i32
    %2 = arith.cmpi ne, %1, %c0_i32_0 : i32
    scf.if %2 {
      %c0_74 = arith.constant 0 : index
      %c0_75 = arith.constant 0 : index
      %c0_76 = arith.constant 0 : index
      %187 = vector.load %arg2[%c0_74, %c0_75, %c0_76] : memref<1x5x128xf32, #tpu.memory_space<vmem>>, vector<1x5x128xf32>
      %188 = vector.shape_cast %187 : vector<1x5x128xf32> to vector<5x128xf32>
      %c0_77 = arith.constant 0 : index
      %c0_78 = arith.constant 0 : index
      %189 = vector.load %arg18[%c0_77, %c0_78] : memref<5x128xf32, #tpu.memory_space<vmem>>, vector<5x128xf32>
      tpu.vector_store %arg18[%c0_77, %c0_78], %188 {strides = array<i32>} : memref<5x128xf32, #tpu.memory_space<vmem>>, vector<5x128xf32>,
    } else {
    }
    %c0 = arith.constant 0 : index
    %c0_1 = arith.constant 0 : index
    %3 = vector.load %arg18[%c0, %c0_1] : memref<5x128xf32, #tpu.memory_space<vmem>>, vector<5x128xf32>
    %c0_2 = arith.constant 0 : index
    %c0_3 = arith.constant 0 : index
    %c0_4 = arith.constant 0 : index
    %4 = vector.load %arg3[%c0_2, %c0_3, %c0_4] : memref<1x1x128xf32, #tpu.memory_space<vmem>>, vector<1x1x128xf32>
    %5 = vector.shape_cast %4 : vector<1x1x128xf32> to vector<1x128xf32>
    %c0_5 = arith.constant 0 : index
    %c0_6 = arith.constant 0 : index
    %c0_7 = arith.constant 0 : index
    %6 = vector.load %arg4[%c0_5, %c0_6, %c0_7] : memref<1x1x128xf32, #tpu.memory_space<vmem>>, vector<1x1x128xf32>
    %7 = vector.shape_cast %6 : vector<1x1x128xf32> to vector<1x128xf32>
    %cst = arith.constant dense<0.000000e+00> : vector<5xf32>
    %8 = vector.multi_reduction <add>, %3, %cst [1] : vector<5x128xf32> to vector<5xf32>
    %9 = vector.shape_cast %8 : vector<5xf32> to vector<5x1xf32>
    %cst_8 = arith.constant 1.280000e+02 : f32
    %10 = vector.broadcast %cst_8 : f32 to vector<5x1xf32>
    %11 = arith.divf %9, %10 : vector<5x1xf32>
    %12 = vector.broadcast %11 : vector<5x1xf32> to vector<5x128xf32>
    %13 = arith.subf %3, %12 : vector<5x128xf32>
    %14 = arith.mulf %13, %13 : vector<5x128xf32>
    %cst_9 = arith.constant dense<0.000000e+00> : vector<5xf32>
    %15 = vector.multi_reduction <add>, %14, %cst_9 [1] : vector<5x128xf32> to vector<5xf32>
    %16 = vector.shape_cast %15 : vector<5xf32> to vector<5x1xf32>
    %cst_10 = arith.constant 1.280000e+02 : f32
    %17 = vector.broadcast %cst_10 : f32 to vector<5x1xf32>
    %18 = arith.divf %16, %17 : vector<5x1xf32>
    %19 = vector.broadcast %11 : vector<5x1xf32> to vector<5x128xf32>
    %20 = arith.subf %3, %19 : vector<5x128xf32>
    %cst_11 = arith.constant 9.99999997E-7 : f32
    %21 = vector.broadcast %cst_11 : f32 to vector<5x1xf32>
    %22 = arith.addf %18, %21 : vector<5x1xf32>
    %23 = math.rsqrt %22 : vector<5x1xf32>
    %24 = vector.broadcast %23 : vector<5x1xf32> to vector<5x128xf32>
    %25 = arith.mulf %20, %24 : vector<5x128xf32>
    %26 = vector.broadcast %5 : vector<1x128xf32> to vector<5x128xf32>
    %27 = arith.mulf %25, %26 : vector<5x128xf32>
    %28 = vector.broadcast %7 : vector<1x128xf32> to vector<5x128xf32>
    %29 = arith.addf %27, %28 : vector<5x128xf32>
    %c0_12 = arith.constant 0 : index
    %c0_13 = arith.constant 0 : index
    %c0_14 = arith.constant 0 : index
    %30 = vector.load %arg5[%c0_12, %c0_13, %c0_14] : memref<1x128x384xbf16, #tpu.memory_space<vmem>>, vector<1x128x384xbf16>
    %31 = vector.shape_cast %30 : vector<1x128x384xbf16> to vector<128x384xbf16>
    %c0_15 = arith.constant 0 : index
    %c0_16 = arith.constant 0 : index
    %c0_17 = arith.constant 0 : index
    %32 = vector.load %arg6[%c0_15, %c0_16, %c0_17] : memref<1x1x384xf32, #tpu.memory_space<vmem>>, vector<1x1x384xf32>
    %33 = vector.shape_cast %32 : vector<1x1x384xf32> to vector<1x384xf32>
    %34 = arith.truncf %29 : vector<5x128xf32> to vector<5x128xbf16>
    %cst_18 = arith.constant dense<0.000000e+00> : vector<5x384xf32>
    %35 = tpu.matmul %34, %31, %cst_18 {dimension_numbers = #tpu.dot_dimension_numbers<[1], [0], [0], [1], [0, 0, 1, 1], [], []>} : vector<5x128xbf16>, vector<128x384xbf16>, vector<5x384xf32> -> vector<5x384xf32>
    %36 = vector.broadcast %33 : vector<1x384xf32> to vector<5x384xf32>
    %37 = arith.addf %35, %36 : vector<5x384xf32>
    %38 = vector.extract_strided_slice %37 {offsets = [0, 0], sizes = [5, 128], strides = [1, 1]} : vector<5x384xf32> to vector<5x128xf32>
    %39 = vector.extract_strided_slice %37 {offsets = [0, 128], sizes = [5, 128], strides = [1, 1]} : vector<5x384xf32> to vector<5x128xf32>
    %40 = vector.extract_strided_slice %37 {offsets = [0, 256], sizes = [5, 128], strides = [1, 1]} : vector<5x384xf32> to vector<5x128xf32>
    %41 = vector.extract_strided_slice %38 {offsets = [0, 0], sizes = [5, 32], strides = [1, 1]} : vector<5x128xf32> to vector<5x32xf32>
    %42 = arith.truncf %41 : vector<5x32xf32> to vector<5x32xbf16>
    %43 = vector.extract_strided_slice %39 {offsets = [0, 0], sizes = [5, 32], strides = [1, 1]} : vector<5x128xf32> to vector<5x32xf32>
    %44 = arith.truncf %43 : vector<5x32xf32> to vector<5x32xbf16>
    %45 = vector.extract_strided_slice %40 {offsets = [0, 0], sizes = [5, 32], strides = [1, 1]} : vector<5x128xf32> to vector<5x32xf32>
    %46 = arith.truncf %45 : vector<5x32xf32> to vector<5x32xbf16>
    %cst_19 = arith.constant dense<0.000000e+00> : vector<5x5xf32>
    %47 = tpu.matmul %42, %44, %cst_19 {dimension_numbers = #tpu.dot_dimension_numbers<[1], [1], [0], [0], [0, 0, 1, 0], [], []>} : vector<5x32xbf16>, vector<5x32xbf16>, vector<5x5xf32> -> vector<5x5xf32>
    %cst_20 = arith.constant dense<0xFF800000> : vector<5xf32>
    %48 = vector.multi_reduction <maximumf>, %47, %cst_20 [1] : vector<5x5xf32> to vector<5xf32>
    %49 = vector.shape_cast %48 : vector<5xf32> to vector<5x1xf32>
    %50 = vector.broadcast %49 : vector<5x1xf32> to vector<5x5xf32>
    %51 = arith.subf %47, %50 : vector<5x5xf32>
    %52 = math.exp %51 : vector<5x5xf32>
    %cst_21 = arith.constant dense<0.000000e+00> : vector<5xf32>
    %53 = vector.multi_reduction <add>, %52, %cst_21 [1] : vector<5x5xf32> to vector<5xf32>
    %54 = vector.shape_cast %53 : vector<5xf32> to vector<5x1xf32>
    %55 = tpu.reciprocal %54 {approx = true} : vector<5x1xf32> -> vector<5x1xf32>
    %56 = vector.broadcast %55 : vector<5x1xf32> to vector<5x5xf32>
    %57 = arith.mulf %52, %56 : vector<5x5xf32>
    %58 = arith.truncf %57 : vector<5x5xf32> to vector<5x5xbf16>
    %cst_22 = arith.constant dense<0.000000e+00> : vector<5x32xf32>
    %59 = tpu.matmul %58, %46, %cst_22 {dimension_numbers = #tpu.dot_dimension_numbers<[1], [0], [0], [1], [0, 0, 1, 1], [], []>} : vector<5x5xbf16>, vector<5x32xbf16>, vector<5x32xf32> -> vector<5x32xf32>
    %60 = vector.extract_strided_slice %38 {offsets = [0, 32], sizes = [5, 32], strides = [1, 1]} : vector<5x128xf32> to vector<5x32xf32>
    %61 = arith.truncf %60 : vector<5x32xf32> to vector<5x32xbf16>
    %62 = vector.extract_strided_slice %39 {offsets = [0, 32], sizes = [5, 32], strides = [1, 1]} : vector<5x128xf32> to vector<5x32xf32>
    %63 = arith.truncf %62 : vector<5x32xf32> to vector<5x32xbf16>
    %64 = vector.extract_strided_slice %40 {offsets = [0, 32], sizes = [5, 32], strides = [1, 1]} : vector<5x128xf32> to vector<5x32xf32>
    %65 = arith.truncf %64 : vector<5x32xf32> to vector<5x32xbf16>
    %cst_23 = arith.constant dense<0.000000e+00> : vector<5x5xf32>
    %66 = tpu.matmul %61, %63, %cst_23 {dimension_numbers = #tpu.dot_dimension_numbers<[1], [1], [0], [0], [0, 0, 1, 0], [], []>} : vector<5x32xbf16>, vector<5x32xbf16>, vector<5x5xf32> -> vector<5x5xf32>
    %cst_24 = arith.constant dense<0xFF800000> : vector<5xf32>
    %67 = vector.multi_reduction <maximumf>, %66, %cst_24 [1] : vector<5x5xf32> to vector<5xf32>
    %68 = vector.shape_cast %67 : vector<5xf32> to vector<5x1xf32>
    %69 = vector.broadcast %68 : vector<5x1xf32> to vector<5x5xf32>
    %70 = arith.subf %66, %69 : vector<5x5xf32>
    %71 = math.exp %70 : vector<5x5xf32>
    %cst_25 = arith.constant dense<0.000000e+00> : vector<5xf32>
    %72 = vector.multi_reduction <add>, %71, %cst_25 [1] : vector<5x5xf32> to vector<5xf32>
    %73 = vector.shape_cast %72 : vector<5xf32> to vector<5x1xf32>
    %74 = tpu.reciprocal %73 {approx = true} : vector<5x1xf32> -> vector<5x1xf32>
    %75 = vector.broadcast %74 : vector<5x1xf32> to vector<5x5xf32>
    %76 = arith.mulf %71, %75 : vector<5x5xf32>
    %77 = arith.truncf %76 : vector<5x5xf32> to vector<5x5xbf16>
    %cst_26 = arith.constant dense<0.000000e+00> : vector<5x32xf32>
    %78 = tpu.matmul %77, %65, %cst_26 {dimension_numbers = #tpu.dot_dimension_numbers<[1], [0], [0], [1], [0, 0, 1, 1], [], []>} : vector<5x5xbf16>, vector<5x32xbf16>, vector<5x32xf32> -> vector<5x32xf32>
    %79 = vector.extract_strided_slice %38 {offsets = [0, 64], sizes = [5, 32], strides = [1, 1]} : vector<5x128xf32> to vector<5x32xf32>
    %80 = arith.truncf %79 : vector<5x32xf32> to vector<5x32xbf16>
    %81 = vector.extract_strided_slice %39 {offsets = [0, 64], sizes = [5, 32], strides = [1, 1]} : vector<5x128xf32> to vector<5x32xf32>
    %82 = arith.truncf %81 : vector<5x32xf32> to vector<5x32xbf16>
    %83 = vector.extract_strided_slice %40 {offsets = [0, 64], sizes = [5, 32], strides = [1, 1]} : vector<5x128xf32> to vector<5x32xf32>
    %84 = arith.truncf %83 : vector<5x32xf32> to vector<5x32xbf16>
    %cst_27 = arith.constant dense<0.000000e+00> : vector<5x5xf32>
    %85 = tpu.matmul %80, %82, %cst_27 {dimension_numbers = #tpu.dot_dimension_numbers<[1], [1], [0], [0], [0, 0, 1, 0], [], []>} : vector<5x32xbf16>, vector<5x32xbf16>, vector<5x5xf32> -> vector<5x5xf32>
    %cst_28 = arith.constant dense<0xFF800000> : vector<5xf32>
    %86 = vector.multi_reduction <maximumf>, %85, %cst_28 [1] : vector<5x5xf32> to vector<5xf32>
    %87 = vector.shape_cast %86 : vector<5xf32> to vector<5x1xf32>
    %88 = vector.broadcast %87 : vector<5x1xf32> to vector<5x5xf32>
    %89 = arith.subf %85, %88 : vector<5x5xf32>
    %90 = math.exp %89 : vector<5x5xf32>
    %cst_29 = arith.constant dense<0.000000e+00> : vector<5xf32>
    %91 = vector.multi_reduction <add>, %90, %cst_29 [1] : vector<5x5xf32> to vector<5xf32>
    %92 = vector.shape_cast %91 : vector<5xf32> to vector<5x1xf32>
    %93 = tpu.reciprocal %92 {approx = true} : vector<5x1xf32> -> vector<5x1xf32>
    %94 = vector.broadcast %93 : vector<5x1xf32> to vector<5x5xf32>
    %95 = arith.mulf %90, %94 : vector<5x5xf32>
    %96 = arith.truncf %95 : vector<5x5xf32> to vector<5x5xbf16>
    %cst_30 = arith.constant dense<0.000000e+00> : vector<5x32xf32>
    %97 = tpu.matmul %96, %84, %cst_30 {dimension_numbers = #tpu.dot_dimension_numbers<[1], [0], [0], [1], [0, 0, 1, 1], [], []>} : vector<5x5xbf16>, vector<5x32xbf16>, vector<5x32xf32> -> vector<5x32xf32>
    %98 = vector.extract_strided_slice %38 {offsets = [0, 96], sizes = [5, 32], strides = [1, 1]} : vector<5x128xf32> to vector<5x32xf32>
    %99 = arith.truncf %98 : vector<5x32xf32> to vector<5x32xbf16>
    %100 = vector.extract_strided_slice %39 {offsets = [0, 96], sizes = [5, 32], strides = [1, 1]} : vector<5x128xf32> to vector<5x32xf32>
    %101 = arith.truncf %100 : vector<5x32xf32> to vector<5x32xbf16>
    %102 = vector.extract_strided_slice %40 {offsets = [0, 96], sizes = [5, 32], strides = [1, 1]} : vector<5x128xf32> to vector<5x32xf32>
    %103 = arith.truncf %102 : vector<5x32xf32> to vector<5x32xbf16>
    %cst_31 = arith.constant dense<0.000000e+00> : vector<5x5xf32>
    %104 = tpu.matmul %99, %101, %cst_31 {dimension_numbers = #tpu.dot_dimension_numbers<[1], [1], [0], [0], [0, 0, 1, 0], [], []>} : vector<5x32xbf16>, vector<5x32xbf16>, vector<5x5xf32> -> vector<5x5xf32>
    %cst_32 = arith.constant dense<0xFF800000> : vector<5xf32>
    %105 = vector.multi_reduction <maximumf>, %104, %cst_32 [1] : vector<5x5xf32> to vector<5xf32>
    %106 = vector.shape_cast %105 : vector<5xf32> to vector<5x1xf32>
    %107 = vector.broadcast %106 : vector<5x1xf32> to vector<5x5xf32>
    %108 = arith.subf %104, %107 : vector<5x5xf32>
    %109 = math.exp %108 : vector<5x5xf32>
    %cst_33 = arith.constant dense<0.000000e+00> : vector<5xf32>
    %110 = vector.multi_reduction <add>, %109, %cst_33 [1] : vector<5x5xf32> to vector<5xf32>
    %111 = vector.shape_cast %110 : vector<5xf32> to vector<5x1xf32>
    %112 = tpu.reciprocal %111 {approx = true} : vector<5x1xf32> -> vector<5x1xf32>
    %113 = vector.broadcast %112 : vector<5x1xf32> to vector<5x5xf32>
    %114 = arith.mulf %109, %113 : vector<5x5xf32>
    %115 = arith.truncf %114 : vector<5x5xf32> to vector<5x5xbf16>
    %cst_34 = arith.constant dense<0.000000e+00> : vector<5x32xf32>
    %116 = tpu.matmul %115, %103, %cst_34 {dimension_numbers = #tpu.dot_dimension_numbers<[1], [0], [0], [1], [0, 0, 1, 1], [], []>} : vector<5x5xbf16>, vector<5x32xbf16>, vector<5x32xf32> -> vector<5x32xf32>
    %117 = tpu.concatenate %59, %78, %97, %116 in 1 : vector<5x32xf32>, vector<5x32xf32>, vector<5x32xf32>, vector<5x32xf32> -> vector<5x128xf32>
    %c0_35 = arith.constant 0 : index
    %c0_36 = arith.constant 0 : index
    %c0_37 = arith.constant 0 : index
    %118 = vector.load %arg7[%c0_35, %c0_36, %c0_37] : memref<1x128x128xbf16, #tpu.memory_space<vmem>>, vector<1x128x128xbf16>
    %119 = vector.shape_cast %118 : vector<1x128x128xbf16> to vector<128x128xbf16>
    %c0_38 = arith.constant 0 : index
    %c0_39 = arith.constant 0 : index
    %c0_40 = arith.constant 0 : index
    %120 = vector.load %arg8[%c0_38, %c0_39, %c0_40] : memref<1x1x128xf32, #tpu.memory_space<vmem>>, vector<1x1x128xf32>
    %121 = vector.shape_cast %120 : vector<1x1x128xf32> to vector<1x128xf32>
    %122 = arith.truncf %117 : vector<5x128xf32> to vector<5x128xbf16>
    %cst_41 = arith.constant dense<0.000000e+00> : vector<5x128xf32>
    %123 = tpu.matmul %122, %119, %cst_41 {dimension_numbers = #tpu.dot_dimension_numbers<[1], [0], [0], [1], [0, 0, 1, 1], [], []>} : vector<5x128xbf16>, vector<128x128xbf16>, vector<5x128xf32> -> vector<5x128xf32>
    %124 = vector.broadcast %121 : vector<1x128xf32> to vector<5x128xf32>
    %125 = arith.addf %123, %124 : vector<5x128xf32>
    %126 = arith.addf %3, %125 : vector<5x128xf32>
    %c0_42 = arith.constant 0 : index
    %c0_43 = arith.constant 0 : index
    %c0_44 = arith.constant 0 : index
    %127 = vector.load %arg9[%c0_42, %c0_43, %c0_44] : memref<1x1x128xf32, #tpu.memory_space<vmem>>, vector<1x1x128xf32>
    %128 = vector.shape_cast %127 : vector<1x1x128xf32> to vector<1x128xf32>
    %c0_45 = arith.constant 0 : index
    %c0_46 = arith.constant 0 : index
    %c0_47 = arith.constant 0 : index
    %129 = vector.load %arg10[%c0_45, %c0_46, %c0_47] : memref<1x1x128xf32, #tpu.memory_space<vmem>>, vector<1x1x128xf32>
    %130 = vector.shape_cast %129 : vector<1x1x128xf32> to vector<1x128xf32>
    %cst_48 = arith.constant dense<0.000000e+00> : vector<5xf32>
    %131 = vector.multi_reduction <add>, %126, %cst_48 [1] : vector<5x128xf32> to vector<5xf32>
    %132 = vector.shape_cast %131 : vector<5xf32> to vector<5x1xf32>
    %cst_49 = arith.constant 1.280000e+02 : f32
    %133 = vector.broadcast %cst_49 : f32 to vector<5x1xf32>
    %134 = arith.divf %132, %133 : vector<5x1xf32>
    %135 = vector.broadcast %134 : vector<5x1xf32> to vector<5x128xf32>
    %136 = arith.subf %126, %135 : vector<5x128xf32>
    %137 = arith.mulf %136, %136 : vector<5x128xf32>
    %cst_50 = arith.constant dense<0.000000e+00> : vector<5xf32>
    %138 = vector.multi_reduction <add>, %137, %cst_50 [1] : vector<5x128xf32> to vector<5xf32>
    %139 = vector.shape_cast %138 : vector<5xf32> to vector<5x1xf32>
    %cst_51 = arith.constant 1.280000e+02 : f32
    %140 = vector.broadcast %cst_51 : f32 to vector<5x1xf32>
    %141 = arith.divf %139, %140 : vector<5x1xf32>
    %142 = vector.broadcast %134 : vector<5x1xf32> to vector<5x128xf32>
    %143 = arith.subf %126, %142 : vector<5x128xf32>
    %cst_52 = arith.constant 9.99999997E-7 : f32
    %144 = vector.broadcast %cst_52 : f32 to vector<5x1xf32>
    %145 = arith.addf %141, %144 : vector<5x1xf32>
    %146 = math.rsqrt %145 : vector<5x1xf32>
    %147 = vector.broadcast %146 : vector<5x1xf32> to vector<5x128xf32>
    %148 = arith.mulf %143, %147 : vector<5x128xf32>
    %149 = vector.broadcast %128 : vector<1x128xf32> to vector<5x128xf32>
    %150 = arith.mulf %148, %149 : vector<5x128xf32>
    %151 = vector.broadcast %130 : vector<1x128xf32> to vector<5x128xf32>
    %152 = arith.addf %150, %151 : vector<5x128xf32>
    %c0_53 = arith.constant 0 : index
    %c0_54 = arith.constant 0 : index
    %c0_55 = arith.constant 0 : index
    %153 = vector.load %arg11[%c0_53, %c0_54, %c0_55] : memref<1x128x256xbf16, #tpu.memory_space<vmem>>, vector<1x128x256xbf16>
    %154 = vector.shape_cast %153 : vector<1x128x256xbf16> to vector<128x256xbf16>
    %c0_56 = arith.constant 0 : index
    %c0_57 = arith.constant 0 : index
    %c0_58 = arith.constant 0 : index
    %155 = vector.load %arg12[%c0_56, %c0_57, %c0_58] : memref<1x1x256xf32, #tpu.memory_space<vmem>>, vector<1x1x256xf32>
    %156 = vector.shape_cast %155 : vector<1x1x256xf32> to vector<1x256xf32>
    %157 = arith.truncf %152 : vector<5x128xf32> to vector<5x128xbf16>
    %cst_59 = arith.constant dense<0.000000e+00> : vector<5x256xf32>
    %158 = tpu.matmul %157, %154, %cst_59 {dimension_numbers = #tpu.dot_dimension_numbers<[1], [0], [0], [1], [0, 0, 1, 1], [], []>} : vector<5x128xbf16>, vector<128x256xbf16>, vector<5x256xf32> -> vector<5x256xf32>
    %159 = vector.broadcast %156 : vector<1x256xf32> to vector<5x256xf32>
    %160 = arith.addf %158, %159 : vector<5x256xf32>
    %161 = arith.mulf %160, %160 : vector<5x256xf32>
    %162 = arith.mulf %160, %161 : vector<5x256xf32>
    %cst_60 = arith.constant 4.471500e-02 : f32
    %163 = vector.broadcast %cst_60 : f32 to vector<5x256xf32>
    %164 = arith.mulf %163, %162 : vector<5x256xf32>
    %165 = arith.addf %160, %164 : vector<5x256xf32>
    %cst_61 = arith.constant 0.797884583 : f32
    %166 = vector.broadcast %cst_61 : f32 to vector<5x256xf32>
    %167 = arith.mulf %166, %165 : vector<5x256xf32>
    %168 = math.tanh %167 : vector<5x256xf32>
    %cst_62 = arith.constant 1.000000e+00 : f32
    %169 = vector.broadcast %cst_62 : f32 to vector<5x256xf32>
    %170 = arith.addf %169, %168 : vector<5x256xf32>
    %cst_63 = arith.constant 5.000000e-01 : f32
    %171 = vector.broadcast %cst_63 : f32 to vector<5x256xf32>
    %172 = arith.mulf %171, %170 : vector<5x256xf32>
    %173 = arith.mulf %160, %172 : vector<5x256xf32>
    %c0_64 = arith.constant 0 : index
    %c0_65 = arith.constant 0 : index
    %c0_66 = arith.constant 0 : index
    %174 = vector.load %arg13[%c0_64, %c0_65, %c0_66] : memref<1x256x128xbf16, #tpu.memory_space<vmem>>, vector<1x256x128xbf16>
    %175 = vector.shape_cast %174 : vector<1x256x128xbf16> to vector<256x128xbf16>
    %c0_67 = arith.constant 0 : index
    %c0_68 = arith.constant 0 : index
    %c0_69 = arith.constant 0 : index
    %176 = vector.load %arg14[%c0_67, %c0_68, %c0_69] : memref<1x1x128xf32, #tpu.memory_space<vmem>>, vector<1x1x128xf32>
    %177 = vector.shape_cast %176 : vector<1x1x128xf32> to vector<1x128xf32>
    %178 = arith.truncf %173 : vector<5x256xf32> to vector<5x256xbf16>
    %cst_70 = arith.constant dense<0.000000e+00> : vector<5x128xf32>
    %179 = tpu.matmul %178, %175, %cst_70 {dimension_numbers = #tpu.dot_dimension_numbers<[1], [0], [0], [1], [0, 0, 1, 1], [], []>} : vector<5x256xbf16>, vector<256x128xbf16>, vector<5x128xf32> -> vector<5x128xf32>
    %180 = vector.broadcast %177 : vector<1x128xf32> to vector<5x128xf32>
    %181 = arith.addf %179, %180 : vector<5x128xf32>
    %182 = arith.addf %126, %181 : vector<5x128xf32>
    %c0_71 = arith.constant 0 : index
    %c0_72 = arith.constant 0 : index
    %183 = vector.load %arg18[%c0_71, %c0_72] : memref<5x128xf32, #tpu.memory_space<vmem>>, vector<5x128xf32>
    tpu.vector_store %arg18[%c0_71, %c0_72], %182 {strides = array<i32>} : memref<5x128xf32, #tpu.memory_space<vmem>>, vector<5x128xf32>,
    %c1_i32 = arith.constant 1 : i32
    %184 = arith.cmpi eq, %arg1, %c1_i32 : i32
    %185 = arith.extui %184 : i1 to i32
    %c0_i32_73 = arith.constant 0 : i32
    %186 = arith.cmpi ne, %185, %c0_i32_73 : i32
    scf.if %186 {
      %c0_74 = arith.constant 0 : index
      %c0_75 = arith.constant 0 : index
      %187 = vector.load %arg15[%c0_74, %c0_75] : memref<1x128xf32, #tpu.memory_space<vmem>>, vector<1x128xf32>
      %c0_76 = arith.constant 0 : index
      %c0_77 = arith.constant 0 : index
      %188 = vector.load %arg16[%c0_76, %c0_77] : memref<1x128xf32, #tpu.memory_space<vmem>>, vector<1x128xf32>
      %cst_78 = arith.constant dense<0.000000e+00> : vector<5xf32>
      %189 = vector.multi_reduction <add>, %182, %cst_78 [1] : vector<5x128xf32> to vector<5xf32>
      %190 = vector.shape_cast %189 : vector<5xf32> to vector<5x1xf32>
      %cst_79 = arith.constant 1.280000e+02 : f32
      %191 = vector.broadcast %cst_79 : f32 to vector<5x1xf32>
      %192 = arith.divf %190, %191 : vector<5x1xf32>
      %193 = vector.broadcast %192 : vector<5x1xf32> to vector<5x128xf32>
      %194 = arith.subf %182, %193 : vector<5x128xf32>
      %195 = arith.mulf %194, %194 : vector<5x128xf32>
      %cst_80 = arith.constant dense<0.000000e+00> : vector<5xf32>
      %196 = vector.multi_reduction <add>, %195, %cst_80 [1] : vector<5x128xf32> to vector<5xf32>
      %197 = vector.shape_cast %196 : vector<5xf32> to vector<5x1xf32>
      %cst_81 = arith.constant 1.280000e+02 : f32
      %198 = vector.broadcast %cst_81 : f32 to vector<5x1xf32>
      %199 = arith.divf %197, %198 : vector<5x1xf32>
      %200 = vector.broadcast %192 : vector<5x1xf32> to vector<5x128xf32>
      %201 = arith.subf %182, %200 : vector<5x128xf32>
      %cst_82 = arith.constant 9.99999997E-7 : f32
      %202 = vector.broadcast %cst_82 : f32 to vector<5x1xf32>
      %203 = arith.addf %199, %202 : vector<5x1xf32>
      %204 = math.rsqrt %203 : vector<5x1xf32>
      %205 = vector.broadcast %204 : vector<5x1xf32> to vector<5x128xf32>
      %206 = arith.mulf %201, %205 : vector<5x128xf32>
      %207 = vector.broadcast %187 : vector<1x128xf32> to vector<5x128xf32>
      %208 = arith.mulf %206, %207 : vector<5x128xf32>
      %209 = vector.broadcast %188 : vector<1x128xf32> to vector<5x128xf32>
      %210 = arith.addf %208, %209 : vector<5x128xf32>
      %c0_83 = arith.constant 0 : index
      %c0_84 = arith.constant 0 : index
      %c0_85 = arith.constant 0 : index
      %211 = vector.load %arg17[%c0_83, %c0_84, %c0_85] : memref<1x5x128xf32, #tpu.memory_space<vmem>>, vector<1x5x128xf32>
      %212 = vector.shape_cast %211 : vector<1x5x128xf32> to vector<5x128xf32>
      %213 = vector.shape_cast %210 : vector<5x128xf32> to vector<1x5x128xf32>
      tpu.vector_store %arg17[%c0_83, %c0_84, %c0_85], %213 {strides = array<i32>} : memref<1x5x128xf32, #tpu.memory_space<vmem>>, vector<1x5x128xf32>,
    } else {
    }
    return
  }
  func.func @transform_0(%arg0: i32, %arg1: i32) -> (i32, i32, i32) {
    %c0_i32 = arith.constant 0 : i32
    %c0_i32_0 = arith.constant 0 : i32
    %c0_i32_1 = arith.constant 0 : i32
    return %arg0, %c0_i32, %c0_i32_0 : i32, i32, i32
  }
  func.func @transform_1(%arg0: i32, %arg1: i32) -> (i32, i32, i32) {
    %c0_i32 = arith.constant 0 : i32
    %c0_i32_0 = arith.constant 0 : i32
    %c0_i32_1 = arith.constant 0 : i32
    return %arg1, %c0_i32, %c0_i32_0 : i32, i32, i32
  }
  func.func @transform_2(%arg0: i32, %arg1: i32) -> (i32, i32, i32) {
    %c0_i32 = arith.constant 0 : i32
    %c0_i32_0 = arith.constant 0 : i32
    %c0_i32_1 = arith.constant 0 : i32
    return %arg1, %c0_i32, %c0_i32_0 : i32, i32, i32
  }
  func.func @transform_3(%arg0: i32, %arg1: i32) -> (i32, i32, i32) {
    %c0_i32 = arith.constant 0 : i32
    %c0_i32_0 = arith.constant 0 : i32
    %c0_i32_1 = arith.constant 0 : i32
    return %arg1, %c0_i32, %c0_i32_0 : i32, i32, i32
  }
  func.func @transform_4(%arg0: i32, %arg1: i32) -> (i32, i32, i32) {
    %c0_i32 = arith.constant 0 : i32
    %c0_i32_0 = arith.constant 0 : i32
    %c0_i32_1 = arith.constant 0 : i32
    return %arg1, %c0_i32, %c0_i32_0 : i32, i32, i32
  }
  func.func @transform_5(%arg0: i32, %arg1: i32) -> (i32, i32, i32) {
    %c0_i32 = arith.constant 0 : i32
    %c0_i32_0 = arith.constant 0 : i32
    %c0_i32_1 = arith.constant 0 : i32
    return %arg1, %c0_i32, %c0_i32_0 : i32, i32, i32
  }
  func.func @transform_6(%arg0: i32, %arg1: i32) -> (i32, i32, i32) {
    %c0_i32 = arith.constant 0 : i32
    %c0_i32_0 = arith.constant 0 : i32
    %c0_i32_1 = arith.constant 0 : i32
    return %arg1, %c0_i32, %c0_i32_0 : i32, i32, i32
  }
  func.func @transform_7(%arg0: i32, %arg1: i32) -> (i32, i32, i32) {
    %c0_i32 = arith.constant 0 : i32
    %c0_i32_0 = arith.constant 0 : i32
    %c0_i32_1 = arith.constant 0 : i32
    return %arg1, %c0_i32, %c0_i32_0 : i32, i32, i32
  }
  func.func @transform_8(%arg0: i32, %arg1: i32) -> (i32, i32, i32) {
    %c0_i32 = arith.constant 0 : i32
    %c0_i32_0 = arith.constant 0 : i32
    %c0_i32_1 = arith.constant 0 : i32
    return %arg1, %c0_i32, %c0_i32_0 : i32, i32, i32
  }
  func.func @transform_9(%arg0: i32, %arg1: i32) -> (i32, i32, i32) {
    %c0_i32 = arith.constant 0 : i32
    %c0_i32_0 = arith.constant 0 : i32
    %c0_i32_1 = arith.constant 0 : i32
    return %arg1, %c0_i32, %c0_i32_0 : i32, i32, i32
  }
  func.func @transform_10(%arg0: i32, %arg1: i32) -> (i32, i32, i32) {
    %c0_i32 = arith.constant 0 : i32
    %c0_i32_0 = arith.constant 0 : i32
    %c0_i32_1 = arith.constant 0 : i32
    return %arg1, %c0_i32, %c0_i32_0 : i32, i32, i32
  }
  func.func @transform_11(%arg0: i32, %arg1: i32) -> (i32, i32, i32) {
    %c0_i32 = arith.constant 0 : i32
    %c0_i32_0 = arith.constant 0 : i32
    %c0_i32_1 = arith.constant 0 : i32
    return %arg1, %c0_i32, %c0_i32_0 : i32, i32, i32
  }
  func.func @transform_12(%arg0: i32, %arg1: i32) -> (i32, i32, i32) {
    %c0_i32 = arith.constant 0 : i32
    %c0_i32_0 = arith.constant 0 : i32
    %c0_i32_1 = arith.constant 0 : i32
    return %arg1, %c0_i32, %c0_i32_0 : i32, i32, i32
  }
  func.func @transform_13(%arg0: i32, %arg1: i32) -> (i32, i32) {
    %c0_i32 = arith.constant 0 : i32
    %c0_i32_0 = arith.constant 0 : i32
    %c0_i32_1 = arith.constant 0 : i32
    return %c0_i32, %c0_i32_0 : i32, i32
  }
  func.func @transform_14(%arg0: i32, %arg1: i32) -> (i32, i32) {
    %c0_i32 = arith.constant 0 : i32
    %c0_i32_0 = arith.constant 0 : i32
    %c0_i32_1 = arith.constant 0 : i32
    return %c0_i32, %c0_i32_0 : i32, i32
  }
  func.func @transform_15(%arg0: i32, %arg1: i32) -> (i32, i32, i32) {
    %c0_i32 = arith.constant 0 : i32
    %c0_i32_0 = arith.constant 0 : i32
    %c0_i32_1 = arith.constant 0 : i32
    return %arg0, %c0_i32, %c0_i32_0 : i32, i32, i32
  }
}

module attributes {stable_mosaic.version = 11 : i64} {
  func.func @_encoder_stack_kernel(%arg0: i32, %arg1: i32, %arg2: memref<1x8x128xf32, #tpu.memory_space<vmem>>, %arg3: memref<1x1x8xf32, #tpu.memory_space<vmem>>, %arg4: memref<1x5x128xf32, #tpu.memory_space<vmem>>, %arg5: memref<1x1x128xf32, #tpu.memory_space<vmem>>, %arg6: memref<1x1x128xf32, #tpu.memory_space<vmem>>, %arg7: memref<1x128x384xbf16, #tpu.memory_space<vmem>>, %arg8: memref<1x1x384xf32, #tpu.memory_space<vmem>>, %arg9: memref<1x128x128xbf16, #tpu.memory_space<vmem>>, %arg10: memref<1x1x128xf32, #tpu.memory_space<vmem>>, %arg11: memref<1x1x128xf32, #tpu.memory_space<vmem>>, %arg12: memref<1x1x128xf32, #tpu.memory_space<vmem>>, %arg13: memref<1x128x128xbf16, #tpu.memory_space<vmem>>, %arg14: memref<1x1x128xf32, #tpu.memory_space<vmem>>, %arg15: memref<1x128x256xbf16, #tpu.memory_space<vmem>>, %arg16: memref<1x1x256xf32, #tpu.memory_space<vmem>>, %arg17: memref<1x128x128xbf16, #tpu.memory_space<vmem>>, %arg18: memref<1x1x128xf32, #tpu.memory_space<vmem>>, %arg19: memref<1x1x128xf32, #tpu.memory_space<vmem>>, %arg20: memref<1x1x128xf32, #tpu.memory_space<vmem>>, %arg21: memref<1x128x256xbf16, #tpu.memory_space<vmem>>, %arg22: memref<1x1x256xf32, #tpu.memory_space<vmem>>, %arg23: memref<1x256x128xbf16, #tpu.memory_space<vmem>>, %arg24: memref<1x1x128xf32, #tpu.memory_space<vmem>>, %arg25: memref<1x8x128xf32, #tpu.memory_space<vmem>>, %arg26: memref<8x128xf32, #tpu.memory_space<vmem>>) attributes {dimension_semantics = [#tpu.dimension_semantics<parallel>, #tpu.dimension_semantics<arbitrary>], iteration_bounds = array<i64: 2, 2>, scalar_prefetch = 0 : i64, scratch_operands = 1 : i64, tpu.core_type = #tpu.core_type<tc>, window_params = [{transform_indices = @transform_0, window_bounds = array<i64: 1, 8, 128>}, {transform_indices = @transform_1, window_bounds = array<i64: 1, 1, 8>}, {transform_indices = @transform_2, window_bounds = array<i64: 1, 5, 128>}, {transform_indices = @transform_3, window_bounds = array<i64: 1, 1, 128>}, {transform_indices = @transform_4, window_bounds = array<i64: 1, 1, 128>}, {transform_indices = @transform_5, window_bounds = array<i64: 1, 128, 384>}, {transform_indices = @transform_6, window_bounds = array<i64: 1, 1, 384>}, {transform_indices = @transform_7, window_bounds = array<i64: 1, 128, 128>}, {transform_indices = @transform_8, window_bounds = array<i64: 1, 1, 128>}, {transform_indices = @transform_9, window_bounds = array<i64: 1, 1, 128>}, {transform_indices = @transform_10, window_bounds = array<i64: 1, 1, 128>}, {transform_indices = @transform_11, window_bounds = array<i64: 1, 128, 128>}, {transform_indices = @transform_12, window_bounds = array<i64: 1, 1, 128>}, {transform_indices = @transform_13, window_bounds = array<i64: 1, 128, 256>}, {transform_indices = @transform_14, window_bounds = array<i64: 1, 1, 256>}, {transform_indices = @transform_15, window_bounds = array<i64: 1, 128, 128>}, {transform_indices = @transform_16, window_bounds = array<i64: 1, 1, 128>}, {transform_indices = @transform_17, window_bounds = array<i64: 1, 1, 128>}, {transform_indices = @transform_18, window_bounds = array<i64: 1, 1, 128>}, {transform_indices = @transform_19, window_bounds = array<i64: 1, 128, 256>}, {transform_indices = @transform_20, window_bounds = array<i64: 1, 1, 256>}, {transform_indices = @transform_21, window_bounds = array<i64: 1, 256, 128>}, {transform_indices = @transform_22, window_bounds = array<i64: 1, 1, 128>}, {transform_indices = @transform_23, window_bounds = array<i64: 1, 8, 128>}]} {
    %c0_i32 = arith.constant 0 : i32
    %0 = arith.cmpi eq, %arg1, %c0_i32 : i32
    %1 = arith.extui %0 : i1 to i32
    %c0_i32_0 = arith.constant 0 : i32
    %2 = arith.cmpi ne, %1, %c0_i32_0 : i32
    scf.if %2 {
      %c0_128 = arith.constant 0 : index
      %c0_129 = arith.constant 0 : index
      %c0_130 = arith.constant 0 : index
      %329 = vector.load %arg2[%c0_128, %c0_129, %c0_130] : memref<1x8x128xf32, #tpu.memory_space<vmem>>, vector<1x8x128xf32>
      %330 = vector.shape_cast %329 : vector<1x8x128xf32> to vector<8x128xf32>
      %c0_131 = arith.constant 0 : index
      %c0_132 = arith.constant 0 : index
      %331 = vector.load %arg26[%c0_131, %c0_132] : memref<8x128xf32, #tpu.memory_space<vmem>>, vector<8x128xf32>
      tpu.vector_store %arg26[%c0_131, %c0_132], %330 {strides = array<i32>} : memref<8x128xf32, #tpu.memory_space<vmem>>, vector<8x128xf32>,
    } else {
    }
    %c0 = arith.constant 0 : index
    %c0_1 = arith.constant 0 : index
    %3 = vector.load %arg26[%c0, %c0_1] : memref<8x128xf32, #tpu.memory_space<vmem>>, vector<8x128xf32>
    %c0_2 = arith.constant 0 : index
    %c0_3 = arith.constant 0 : index
    %c0_4 = arith.constant 0 : index
    %4 = vector.load %arg3[%c0_2, %c0_3, %c0_4] : memref<1x1x8xf32, #tpu.memory_space<vmem>>, vector<1x1x8xf32>
    %5 = vector.shape_cast %4 : vector<1x1x8xf32> to vector<1x8xf32>
    %c0_5 = arith.constant 0 : index
    %c0_6 = arith.constant 0 : index
    %c0_7 = arith.constant 0 : index
    %6 = vector.load %arg5[%c0_5, %c0_6, %c0_7] : memref<1x1x128xf32, #tpu.memory_space<vmem>>, vector<1x1x128xf32>
    %7 = vector.shape_cast %6 : vector<1x1x128xf32> to vector<1x128xf32>
    %c0_8 = arith.constant 0 : index
    %c0_9 = arith.constant 0 : index
    %c0_10 = arith.constant 0 : index
    %8 = vector.load %arg6[%c0_8, %c0_9, %c0_10] : memref<1x1x128xf32, #tpu.memory_space<vmem>>, vector<1x1x128xf32>
    %9 = vector.shape_cast %8 : vector<1x1x128xf32> to vector<1x128xf32>
    %cst = arith.constant dense<0.000000e+00> : vector<8xf32>
    %10 = vector.multi_reduction <add>, %3, %cst [1] : vector<8x128xf32> to vector<8xf32>
    %11 = vector.shape_cast %10 : vector<8xf32> to vector<8x1xf32>
    %cst_11 = arith.constant 1.280000e+02 : f32
    %12 = vector.broadcast %cst_11 : f32 to vector<8x1xf32>
    %13 = arith.divf %11, %12 : vector<8x1xf32>
    %14 = vector.broadcast %13 : vector<8x1xf32> to vector<8x128xf32>
    %15 = arith.subf %3, %14 : vector<8x128xf32>
    %16 = arith.mulf %15, %15 : vector<8x128xf32>
    %cst_12 = arith.constant dense<0.000000e+00> : vector<8xf32>
    %17 = vector.multi_reduction <add>, %16, %cst_12 [1] : vector<8x128xf32> to vector<8xf32>
    %18 = vector.shape_cast %17 : vector<8xf32> to vector<8x1xf32>
    %cst_13 = arith.constant 1.280000e+02 : f32
    %19 = vector.broadcast %cst_13 : f32 to vector<8x1xf32>
    %20 = arith.divf %18, %19 : vector<8x1xf32>
    %21 = vector.broadcast %13 : vector<8x1xf32> to vector<8x128xf32>
    %22 = arith.subf %3, %21 : vector<8x128xf32>
    %cst_14 = arith.constant 9.99999996E-13 : f32
    %23 = vector.broadcast %cst_14 : f32 to vector<8x1xf32>
    %24 = arith.addf %20, %23 : vector<8x1xf32>
    %25 = math.rsqrt %24 : vector<8x1xf32>
    %26 = vector.broadcast %25 : vector<8x1xf32> to vector<8x128xf32>
    %27 = arith.mulf %22, %26 : vector<8x128xf32>
    %28 = vector.broadcast %7 : vector<1x128xf32> to vector<8x128xf32>
    %29 = arith.mulf %27, %28 : vector<8x128xf32>
    %30 = vector.broadcast %9 : vector<1x128xf32> to vector<8x128xf32>
    %31 = arith.addf %29, %30 : vector<8x128xf32>
    %c0_15 = arith.constant 0 : index
    %c0_16 = arith.constant 0 : index
    %c0_17 = arith.constant 0 : index
    %32 = vector.load %arg7[%c0_15, %c0_16, %c0_17] : memref<1x128x384xbf16, #tpu.memory_space<vmem>>, vector<1x128x384xbf16>
    %33 = vector.shape_cast %32 : vector<1x128x384xbf16> to vector<128x384xbf16>
    %c0_18 = arith.constant 0 : index
    %c0_19 = arith.constant 0 : index
    %c0_20 = arith.constant 0 : index
    %34 = vector.load %arg8[%c0_18, %c0_19, %c0_20] : memref<1x1x384xf32, #tpu.memory_space<vmem>>, vector<1x1x384xf32>
    %35 = vector.shape_cast %34 : vector<1x1x384xf32> to vector<1x384xf32>
    %36 = arith.truncf %31 : vector<8x128xf32> to vector<8x128xbf16>
    %cst_21 = arith.constant dense<0.000000e+00> : vector<8x384xf32>
    %37 = tpu.matmul %36, %33, %cst_21 {dimension_numbers = #tpu.dot_dimension_numbers<[1], [0], [0], [1], [0, 0, 1, 1], [], []>} : vector<8x128xbf16>, vector<128x384xbf16>, vector<8x384xf32> -> vector<8x384xf32>
    %38 = vector.broadcast %35 : vector<1x384xf32> to vector<8x384xf32>
    %39 = arith.addf %37, %38 : vector<8x384xf32>
    %40 = vector.extract_strided_slice %39 {offsets = [0, 0], sizes = [8, 128], strides = [1, 1]} : vector<8x384xf32> to vector<8x128xf32>
    %41 = vector.extract_strided_slice %39 {offsets = [0, 128], sizes = [8, 128], strides = [1, 1]} : vector<8x384xf32> to vector<8x128xf32>
    %42 = vector.extract_strided_slice %39 {offsets = [0, 256], sizes = [8, 128], strides = [1, 1]} : vector<8x384xf32> to vector<8x128xf32>
    %43 = vector.extract_strided_slice %40 {offsets = [0, 0], sizes = [8, 32], strides = [1, 1]} : vector<8x128xf32> to vector<8x32xf32>
    %44 = arith.truncf %43 : vector<8x32xf32> to vector<8x32xbf16>
    %45 = vector.extract_strided_slice %41 {offsets = [0, 0], sizes = [8, 32], strides = [1, 1]} : vector<8x128xf32> to vector<8x32xf32>
    %46 = arith.truncf %45 : vector<8x32xf32> to vector<8x32xbf16>
    %47 = vector.extract_strided_slice %42 {offsets = [0, 0], sizes = [8, 32], strides = [1, 1]} : vector<8x128xf32> to vector<8x32xf32>
    %48 = arith.truncf %47 : vector<8x32xf32> to vector<8x32xbf16>
    %cst_22 = arith.constant dense<0.000000e+00> : vector<8x8xf32>
    %49 = tpu.matmul %44, %46, %cst_22 {dimension_numbers = #tpu.dot_dimension_numbers<[1], [1], [0], [0], [0, 0, 1, 0], [], []>} : vector<8x32xbf16>, vector<8x32xbf16>, vector<8x8xf32> -> vector<8x8xf32>
    %50 = vector.broadcast %5 : vector<1x8xf32> to vector<8x8xf32>
    %51 = arith.addf %49, %50 : vector<8x8xf32>
    %cst_23 = arith.constant dense<0xFF800000> : vector<8xf32>
    %52 = vector.multi_reduction <maximumf>, %51, %cst_23 [1] : vector<8x8xf32> to vector<8xf32>
    %53 = vector.shape_cast %52 : vector<8xf32> to vector<8x1xf32>
    %54 = vector.broadcast %53 : vector<8x1xf32> to vector<8x8xf32>
    %55 = arith.subf %51, %54 : vector<8x8xf32>
    %56 = math.exp %55 : vector<8x8xf32>
    %cst_24 = arith.constant dense<0.000000e+00> : vector<8xf32>
    %57 = vector.multi_reduction <add>, %56, %cst_24 [1] : vector<8x8xf32> to vector<8xf32>
    %58 = vector.shape_cast %57 : vector<8xf32> to vector<8x1xf32>
    %59 = tpu.reciprocal %58 {approx = true} : vector<8x1xf32> -> vector<8x1xf32>
    %60 = vector.broadcast %59 : vector<8x1xf32> to vector<8x8xf32>
    %61 = arith.mulf %56, %60 : vector<8x8xf32>
    %62 = arith.truncf %61 : vector<8x8xf32> to vector<8x8xbf16>
    %cst_25 = arith.constant dense<0.000000e+00> : vector<8x32xf32>
    %63 = tpu.matmul %62, %48, %cst_25 {dimension_numbers = #tpu.dot_dimension_numbers<[1], [0], [0], [1], [0, 0, 1, 1], [], []>} : vector<8x8xbf16>, vector<8x32xbf16>, vector<8x32xf32> -> vector<8x32xf32>
    %64 = vector.extract_strided_slice %40 {offsets = [0, 32], sizes = [8, 32], strides = [1, 1]} : vector<8x128xf32> to vector<8x32xf32>
    %65 = arith.truncf %64 : vector<8x32xf32> to vector<8x32xbf16>
    %66 = vector.extract_strided_slice %41 {offsets = [0, 32], sizes = [8, 32], strides = [1, 1]} : vector<8x128xf32> to vector<8x32xf32>
    %67 = arith.truncf %66 : vector<8x32xf32> to vector<8x32xbf16>
    %68 = vector.extract_strided_slice %42 {offsets = [0, 32], sizes = [8, 32], strides = [1, 1]} : vector<8x128xf32> to vector<8x32xf32>
    %69 = arith.truncf %68 : vector<8x32xf32> to vector<8x32xbf16>
    %cst_26 = arith.constant dense<0.000000e+00> : vector<8x8xf32>
    %70 = tpu.matmul %65, %67, %cst_26 {dimension_numbers = #tpu.dot_dimension_numbers<[1], [1], [0], [0], [0, 0, 1, 0], [], []>} : vector<8x32xbf16>, vector<8x32xbf16>, vector<8x8xf32> -> vector<8x8xf32>
    %71 = vector.broadcast %5 : vector<1x8xf32> to vector<8x8xf32>
    %72 = arith.addf %70, %71 : vector<8x8xf32>
    %cst_27 = arith.constant dense<0xFF800000> : vector<8xf32>
    %73 = vector.multi_reduction <maximumf>, %72, %cst_27 [1] : vector<8x8xf32> to vector<8xf32>
    %74 = vector.shape_cast %73 : vector<8xf32> to vector<8x1xf32>
    %75 = vector.broadcast %74 : vector<8x1xf32> to vector<8x8xf32>
    %76 = arith.subf %72, %75 : vector<8x8xf32>
    %77 = math.exp %76 : vector<8x8xf32>
    %cst_28 = arith.constant dense<0.000000e+00> : vector<8xf32>
    %78 = vector.multi_reduction <add>, %77, %cst_28 [1] : vector<8x8xf32> to vector<8xf32>
    %79 = vector.shape_cast %78 : vector<8xf32> to vector<8x1xf32>
    %80 = tpu.reciprocal %79 {approx = true} : vector<8x1xf32> -> vector<8x1xf32>
    %81 = vector.broadcast %80 : vector<8x1xf32> to vector<8x8xf32>
    %82 = arith.mulf %77, %81 : vector<8x8xf32>
    %83 = arith.truncf %82 : vector<8x8xf32> to vector<8x8xbf16>
    %cst_29 = arith.constant dense<0.000000e+00> : vector<8x32xf32>
    %84 = tpu.matmul %83, %69, %cst_29 {dimension_numbers = #tpu.dot_dimension_numbers<[1], [0], [0], [1], [0, 0, 1, 1], [], []>} : vector<8x8xbf16>, vector<8x32xbf16>, vector<8x32xf32> -> vector<8x32xf32>
    %85 = vector.extract_strided_slice %40 {offsets = [0, 64], sizes = [8, 32], strides = [1, 1]} : vector<8x128xf32> to vector<8x32xf32>
    %86 = arith.truncf %85 : vector<8x32xf32> to vector<8x32xbf16>
    %87 = vector.extract_strided_slice %41 {offsets = [0, 64], sizes = [8, 32], strides = [1, 1]} : vector<8x128xf32> to vector<8x32xf32>
    %88 = arith.truncf %87 : vector<8x32xf32> to vector<8x32xbf16>
    %89 = vector.extract_strided_slice %42 {offsets = [0, 64], sizes = [8, 32], strides = [1, 1]} : vector<8x128xf32> to vector<8x32xf32>
    %90 = arith.truncf %89 : vector<8x32xf32> to vector<8x32xbf16>
    %cst_30 = arith.constant dense<0.000000e+00> : vector<8x8xf32>
    %91 = tpu.matmul %86, %88, %cst_30 {dimension_numbers = #tpu.dot_dimension_numbers<[1], [1], [0], [0], [0, 0, 1, 0], [], []>} : vector<8x32xbf16>, vector<8x32xbf16>, vector<8x8xf32> -> vector<8x8xf32>
    %92 = vector.broadcast %5 : vector<1x8xf32> to vector<8x8xf32>
    %93 = arith.addf %91, %92 : vector<8x8xf32>
    %cst_31 = arith.constant dense<0xFF800000> : vector<8xf32>
    %94 = vector.multi_reduction <maximumf>, %93, %cst_31 [1] : vector<8x8xf32> to vector<8xf32>
    %95 = vector.shape_cast %94 : vector<8xf32> to vector<8x1xf32>
    %96 = vector.broadcast %95 : vector<8x1xf32> to vector<8x8xf32>
    %97 = arith.subf %93, %96 : vector<8x8xf32>
    %98 = math.exp %97 : vector<8x8xf32>
    %cst_32 = arith.constant dense<0.000000e+00> : vector<8xf32>
    %99 = vector.multi_reduction <add>, %98, %cst_32 [1] : vector<8x8xf32> to vector<8xf32>
    %100 = vector.shape_cast %99 : vector<8xf32> to vector<8x1xf32>
    %101 = tpu.reciprocal %100 {approx = true} : vector<8x1xf32> -> vector<8x1xf32>
    %102 = vector.broadcast %101 : vector<8x1xf32> to vector<8x8xf32>
    %103 = arith.mulf %98, %102 : vector<8x8xf32>
    %104 = arith.truncf %103 : vector<8x8xf32> to vector<8x8xbf16>
    %cst_33 = arith.constant dense<0.000000e+00> : vector<8x32xf32>
    %105 = tpu.matmul %104, %90, %cst_33 {dimension_numbers = #tpu.dot_dimension_numbers<[1], [0], [0], [1], [0, 0, 1, 1], [], []>} : vector<8x8xbf16>, vector<8x32xbf16>, vector<8x32xf32> -> vector<8x32xf32>
    %106 = vector.extract_strided_slice %40 {offsets = [0, 96], sizes = [8, 32], strides = [1, 1]} : vector<8x128xf32> to vector<8x32xf32>
    %107 = arith.truncf %106 : vector<8x32xf32> to vector<8x32xbf16>
    %108 = vector.extract_strided_slice %41 {offsets = [0, 96], sizes = [8, 32], strides = [1, 1]} : vector<8x128xf32> to vector<8x32xf32>
    %109 = arith.truncf %108 : vector<8x32xf32> to vector<8x32xbf16>
    %110 = vector.extract_strided_slice %42 {offsets = [0, 96], sizes = [8, 32], strides = [1, 1]} : vector<8x128xf32> to vector<8x32xf32>
    %111 = arith.truncf %110 : vector<8x32xf32> to vector<8x32xbf16>
    %cst_34 = arith.constant dense<0.000000e+00> : vector<8x8xf32>
    %112 = tpu.matmul %107, %109, %cst_34 {dimension_numbers = #tpu.dot_dimension_numbers<[1], [1], [0], [0], [0, 0, 1, 0], [], []>} : vector<8x32xbf16>, vector<8x32xbf16>, vector<8x8xf32> -> vector<8x8xf32>
    %113 = vector.broadcast %5 : vector<1x8xf32> to vector<8x8xf32>
    %114 = arith.addf %112, %113 : vector<8x8xf32>
    %cst_35 = arith.constant dense<0xFF800000> : vector<8xf32>
    %115 = vector.multi_reduction <maximumf>, %114, %cst_35 [1] : vector<8x8xf32> to vector<8xf32>
    %116 = vector.shape_cast %115 : vector<8xf32> to vector<8x1xf32>
    %117 = vector.broadcast %116 : vector<8x1xf32> to vector<8x8xf32>
    %118 = arith.subf %114, %117 : vector<8x8xf32>
    %119 = math.exp %118 : vector<8x8xf32>
    %cst_36 = arith.constant dense<0.000000e+00> : vector<8xf32>
    %120 = vector.multi_reduction <add>, %119, %cst_36 [1] : vector<8x8xf32> to vector<8xf32>
    %121 = vector.shape_cast %120 : vector<8xf32> to vector<8x1xf32>
    %122 = tpu.reciprocal %121 {approx = true} : vector<8x1xf32> -> vector<8x1xf32>
    %123 = vector.broadcast %122 : vector<8x1xf32> to vector<8x8xf32>
    %124 = arith.mulf %119, %123 : vector<8x8xf32>
    %125 = arith.truncf %124 : vector<8x8xf32> to vector<8x8xbf16>
    %cst_37 = arith.constant dense<0.000000e+00> : vector<8x32xf32>
    %126 = tpu.matmul %125, %111, %cst_37 {dimension_numbers = #tpu.dot_dimension_numbers<[1], [0], [0], [1], [0, 0, 1, 1], [], []>} : vector<8x8xbf16>, vector<8x32xbf16>, vector<8x32xf32> -> vector<8x32xf32>
    %127 = tpu.concatenate %63, %84, %105, %126 in 1 : vector<8x32xf32>, vector<8x32xf32>, vector<8x32xf32>, vector<8x32xf32> -> vector<8x128xf32>
    %c0_38 = arith.constant 0 : index
    %c0_39 = arith.constant 0 : index
    %c0_40 = arith.constant 0 : index
    %128 = vector.load %arg9[%c0_38, %c0_39, %c0_40] : memref<1x128x128xbf16, #tpu.memory_space<vmem>>, vector<1x128x128xbf16>
    %129 = vector.shape_cast %128 : vector<1x128x128xbf16> to vector<128x128xbf16>
    %c0_41 = arith.constant 0 : index
    %c0_42 = arith.constant 0 : index
    %c0_43 = arith.constant 0 : index
    %130 = vector.load %arg10[%c0_41, %c0_42, %c0_43] : memref<1x1x128xf32, #tpu.memory_space<vmem>>, vector<1x1x128xf32>
    %131 = vector.shape_cast %130 : vector<1x1x128xf32> to vector<1x128xf32>
    %132 = arith.truncf %127 : vector<8x128xf32> to vector<8x128xbf16>
    %cst_44 = arith.constant dense<0.000000e+00> : vector<8x128xf32>
    %133 = tpu.matmul %132, %129, %cst_44 {dimension_numbers = #tpu.dot_dimension_numbers<[1], [0], [0], [1], [0, 0, 1, 1], [], []>} : vector<8x128xbf16>, vector<128x128xbf16>, vector<8x128xf32> -> vector<8x128xf32>
    %134 = vector.broadcast %131 : vector<1x128xf32> to vector<8x128xf32>
    %135 = arith.addf %133, %134 : vector<8x128xf32>
    %136 = arith.addf %3, %135 : vector<8x128xf32>
    %c0_45 = arith.constant 0 : index
    %c0_46 = arith.constant 0 : index
    %c0_47 = arith.constant 0 : index
    %137 = vector.load %arg11[%c0_45, %c0_46, %c0_47] : memref<1x1x128xf32, #tpu.memory_space<vmem>>, vector<1x1x128xf32>
    %138 = vector.shape_cast %137 : vector<1x1x128xf32> to vector<1x128xf32>
    %c0_48 = arith.constant 0 : index
    %c0_49 = arith.constant 0 : index
    %c0_50 = arith.constant 0 : index
    %139 = vector.load %arg12[%c0_48, %c0_49, %c0_50] : memref<1x1x128xf32, #tpu.memory_space<vmem>>, vector<1x1x128xf32>
    %140 = vector.shape_cast %139 : vector<1x1x128xf32> to vector<1x128xf32>
    %cst_51 = arith.constant dense<0.000000e+00> : vector<8xf32>
    %141 = vector.multi_reduction <add>, %136, %cst_51 [1] : vector<8x128xf32> to vector<8xf32>
    %142 = vector.shape_cast %141 : vector<8xf32> to vector<8x1xf32>
    %cst_52 = arith.constant 1.280000e+02 : f32
    %143 = vector.broadcast %cst_52 : f32 to vector<8x1xf32>
    %144 = arith.divf %142, %143 : vector<8x1xf32>
    %145 = vector.broadcast %144 : vector<8x1xf32> to vector<8x128xf32>
    %146 = arith.subf %136, %145 : vector<8x128xf32>
    %147 = arith.mulf %146, %146 : vector<8x128xf32>
    %cst_53 = arith.constant dense<0.000000e+00> : vector<8xf32>
    %148 = vector.multi_reduction <add>, %147, %cst_53 [1] : vector<8x128xf32> to vector<8xf32>
    %149 = vector.shape_cast %148 : vector<8xf32> to vector<8x1xf32>
    %cst_54 = arith.constant 1.280000e+02 : f32
    %150 = vector.broadcast %cst_54 : f32 to vector<8x1xf32>
    %151 = arith.divf %149, %150 : vector<8x1xf32>
    %152 = vector.broadcast %144 : vector<8x1xf32> to vector<8x128xf32>
    %153 = arith.subf %136, %152 : vector<8x128xf32>
    %cst_55 = arith.constant 9.99999996E-13 : f32
    %154 = vector.broadcast %cst_55 : f32 to vector<8x1xf32>
    %155 = arith.addf %151, %154 : vector<8x1xf32>
    %156 = math.rsqrt %155 : vector<8x1xf32>
    %157 = vector.broadcast %156 : vector<8x1xf32> to vector<8x128xf32>
    %158 = arith.mulf %153, %157 : vector<8x128xf32>
    %159 = vector.broadcast %138 : vector<1x128xf32> to vector<8x128xf32>
    %160 = arith.mulf %158, %159 : vector<8x128xf32>
    %161 = vector.broadcast %140 : vector<1x128xf32> to vector<8x128xf32>
    %162 = arith.addf %160, %161 : vector<8x128xf32>
    %c0_56 = arith.constant 0 : index
    %c0_57 = arith.constant 0 : index
    %c0_58 = arith.constant 0 : index
    %163 = vector.load %arg13[%c0_56, %c0_57, %c0_58] : memref<1x128x128xbf16, #tpu.memory_space<vmem>>, vector<1x128x128xbf16>
    %164 = vector.shape_cast %163 : vector<1x128x128xbf16> to vector<128x128xbf16>
    %c0_59 = arith.constant 0 : index
    %c0_60 = arith.constant 0 : index
    %c0_61 = arith.constant 0 : index
    %165 = vector.load %arg14[%c0_59, %c0_60, %c0_61] : memref<1x1x128xf32, #tpu.memory_space<vmem>>, vector<1x1x128xf32>
    %166 = vector.shape_cast %165 : vector<1x1x128xf32> to vector<1x128xf32>
    %167 = arith.truncf %162 : vector<8x128xf32> to vector<8x128xbf16>
    %cst_62 = arith.constant dense<0.000000e+00> : vector<8x128xf32>
    %168 = tpu.matmul %167, %164, %cst_62 {dimension_numbers = #tpu.dot_dimension_numbers<[1], [0], [0], [1], [0, 0, 1, 1], [], []>} : vector<8x128xbf16>, vector<128x128xbf16>, vector<8x128xf32> -> vector<8x128xf32>
    %169 = vector.broadcast %166 : vector<1x128xf32> to vector<8x128xf32>
    %170 = arith.addf %168, %169 : vector<8x128xf32>
    %c0_63 = arith.constant 0 : index
    %c0_64 = arith.constant 0 : index
    %c0_65 = arith.constant 0 : index
    %171 = vector.load %arg4[%c0_63, %c0_64, %c0_65] : memref<1x5x128xf32, #tpu.memory_space<vmem>>, vector<1x5x128xf32>
    %172 = vector.shape_cast %171 : vector<1x5x128xf32> to vector<5x128xf32>
    %c0_66 = arith.constant 0 : index
    %c0_67 = arith.constant 0 : index
    %c0_68 = arith.constant 0 : index
    %173 = vector.load %arg15[%c0_66, %c0_67, %c0_68] : memref<1x128x256xbf16, #tpu.memory_space<vmem>>, vector<1x128x256xbf16>
    %174 = vector.shape_cast %173 : vector<1x128x256xbf16> to vector<128x256xbf16>
    %c0_69 = arith.constant 0 : index
    %c0_70 = arith.constant 0 : index
    %c0_71 = arith.constant 0 : index
    %175 = vector.load %arg16[%c0_69, %c0_70, %c0_71] : memref<1x1x256xf32, #tpu.memory_space<vmem>>, vector<1x1x256xf32>
    %176 = vector.shape_cast %175 : vector<1x1x256xf32> to vector<1x256xf32>
    %177 = arith.truncf %172 : vector<5x128xf32> to vector<5x128xbf16>
    %cst_72 = arith.constant dense<0.000000e+00> : vector<5x256xf32>
    %178 = tpu.matmul %177, %174, %cst_72 {dimension_numbers = #tpu.dot_dimension_numbers<[1], [0], [0], [1], [0, 0, 1, 1], [], []>} : vector<5x128xbf16>, vector<128x256xbf16>, vector<5x256xf32> -> vector<5x256xf32>
    %179 = vector.broadcast %176 : vector<1x256xf32> to vector<5x256xf32>
    %180 = arith.addf %178, %179 : vector<5x256xf32>
    %181 = vector.extract_strided_slice %180 {offsets = [0, 0], sizes = [5, 128], strides = [1, 1]} : vector<5x256xf32> to vector<5x128xf32>
    %182 = vector.extract_strided_slice %180 {offsets = [0, 128], sizes = [5, 128], strides = [1, 1]} : vector<5x256xf32> to vector<5x128xf32>
    %183 = vector.extract_strided_slice %170 {offsets = [0, 0], sizes = [8, 32], strides = [1, 1]} : vector<8x128xf32> to vector<8x32xf32>
    %184 = arith.truncf %183 : vector<8x32xf32> to vector<8x32xbf16>
    %185 = vector.extract_strided_slice %181 {offsets = [0, 0], sizes = [5, 32], strides = [1, 1]} : vector<5x128xf32> to vector<5x32xf32>
    %186 = arith.truncf %185 : vector<5x32xf32> to vector<5x32xbf16>
    %187 = vector.extract_strided_slice %182 {offsets = [0, 0], sizes = [5, 32], strides = [1, 1]} : vector<5x128xf32> to vector<5x32xf32>
    %188 = arith.truncf %187 : vector<5x32xf32> to vector<5x32xbf16>
    %cst_73 = arith.constant dense<0.000000e+00> : vector<8x5xf32>
    %189 = tpu.matmul %184, %186, %cst_73 {dimension_numbers = #tpu.dot_dimension_numbers<[1], [1], [0], [0], [0, 0, 1, 0], [], []>} : vector<8x32xbf16>, vector<5x32xbf16>, vector<8x5xf32> -> vector<8x5xf32>
    %cst_74 = arith.constant dense<0xFF800000> : vector<8xf32>
    %190 = vector.multi_reduction <maximumf>, %189, %cst_74 [1] : vector<8x5xf32> to vector<8xf32>
    %191 = vector.shape_cast %190 : vector<8xf32> to vector<8x1xf32>
    %192 = vector.broadcast %191 : vector<8x1xf32> to vector<8x5xf32>
    %193 = arith.subf %189, %192 : vector<8x5xf32>
    %194 = math.exp %193 : vector<8x5xf32>
    %cst_75 = arith.constant dense<0.000000e+00> : vector<8xf32>
    %195 = vector.multi_reduction <add>, %194, %cst_75 [1] : vector<8x5xf32> to vector<8xf32>
    %196 = vector.shape_cast %195 : vector<8xf32> to vector<8x1xf32>
    %197 = tpu.reciprocal %196 {approx = true} : vector<8x1xf32> -> vector<8x1xf32>
    %198 = vector.broadcast %197 : vector<8x1xf32> to vector<8x5xf32>
    %199 = arith.mulf %194, %198 : vector<8x5xf32>
    %200 = arith.truncf %199 : vector<8x5xf32> to vector<8x5xbf16>
    %cst_76 = arith.constant dense<0.000000e+00> : vector<8x32xf32>
    %201 = tpu.matmul %200, %188, %cst_76 {dimension_numbers = #tpu.dot_dimension_numbers<[1], [0], [0], [1], [0, 0, 1, 1], [], []>} : vector<8x5xbf16>, vector<5x32xbf16>, vector<8x32xf32> -> vector<8x32xf32>
    %202 = vector.extract_strided_slice %170 {offsets = [0, 32], sizes = [8, 32], strides = [1, 1]} : vector<8x128xf32> to vector<8x32xf32>
    %203 = arith.truncf %202 : vector<8x32xf32> to vector<8x32xbf16>
    %204 = vector.extract_strided_slice %181 {offsets = [0, 32], sizes = [5, 32], strides = [1, 1]} : vector<5x128xf32> to vector<5x32xf32>
    %205 = arith.truncf %204 : vector<5x32xf32> to vector<5x32xbf16>
    %206 = vector.extract_strided_slice %182 {offsets = [0, 32], sizes = [5, 32], strides = [1, 1]} : vector<5x128xf32> to vector<5x32xf32>
    %207 = arith.truncf %206 : vector<5x32xf32> to vector<5x32xbf16>
    %cst_77 = arith.constant dense<0.000000e+00> : vector<8x5xf32>
    %208 = tpu.matmul %203, %205, %cst_77 {dimension_numbers = #tpu.dot_dimension_numbers<[1], [1], [0], [0], [0, 0, 1, 0], [], []>} : vector<8x32xbf16>, vector<5x32xbf16>, vector<8x5xf32> -> vector<8x5xf32>
    %cst_78 = arith.constant dense<0xFF800000> : vector<8xf32>
    %209 = vector.multi_reduction <maximumf>, %208, %cst_78 [1] : vector<8x5xf32> to vector<8xf32>
    %210 = vector.shape_cast %209 : vector<8xf32> to vector<8x1xf32>
    %211 = vector.broadcast %210 : vector<8x1xf32> to vector<8x5xf32>
    %212 = arith.subf %208, %211 : vector<8x5xf32>
    %213 = math.exp %212 : vector<8x5xf32>
    %cst_79 = arith.constant dense<0.000000e+00> : vector<8xf32>
    %214 = vector.multi_reduction <add>, %213, %cst_79 [1] : vector<8x5xf32> to vector<8xf32>
    %215 = vector.shape_cast %214 : vector<8xf32> to vector<8x1xf32>
    %216 = tpu.reciprocal %215 {approx = true} : vector<8x1xf32> -> vector<8x1xf32>
    %217 = vector.broadcast %216 : vector<8x1xf32> to vector<8x5xf32>
    %218 = arith.mulf %213, %217 : vector<8x5xf32>
    %219 = arith.truncf %218 : vector<8x5xf32> to vector<8x5xbf16>
    %cst_80 = arith.constant dense<0.000000e+00> : vector<8x32xf32>
    %220 = tpu.matmul %219, %207, %cst_80 {dimension_numbers = #tpu.dot_dimension_numbers<[1], [0], [0], [1], [0, 0, 1, 1], [], []>} : vector<8x5xbf16>, vector<5x32xbf16>, vector<8x32xf32> -> vector<8x32xf32>
    %221 = vector.extract_strided_slice %170 {offsets = [0, 64], sizes = [8, 32], strides = [1, 1]} : vector<8x128xf32> to vector<8x32xf32>
    %222 = arith.truncf %221 : vector<8x32xf32> to vector<8x32xbf16>
    %223 = vector.extract_strided_slice %181 {offsets = [0, 64], sizes = [5, 32], strides = [1, 1]} : vector<5x128xf32> to vector<5x32xf32>
    %224 = arith.truncf %223 : vector<5x32xf32> to vector<5x32xbf16>
    %225 = vector.extract_strided_slice %182 {offsets = [0, 64], sizes = [5, 32], strides = [1, 1]} : vector<5x128xf32> to vector<5x32xf32>
    %226 = arith.truncf %225 : vector<5x32xf32> to vector<5x32xbf16>
    %cst_81 = arith.constant dense<0.000000e+00> : vector<8x5xf32>
    %227 = tpu.matmul %222, %224, %cst_81 {dimension_numbers = #tpu.dot_dimension_numbers<[1], [1], [0], [0], [0, 0, 1, 0], [], []>} : vector<8x32xbf16>, vector<5x32xbf16>, vector<8x5xf32> -> vector<8x5xf32>
    %cst_82 = arith.constant dense<0xFF800000> : vector<8xf32>
    %228 = vector.multi_reduction <maximumf>, %227, %cst_82 [1] : vector<8x5xf32> to vector<8xf32>
    %229 = vector.shape_cast %228 : vector<8xf32> to vector<8x1xf32>
    %230 = vector.broadcast %229 : vector<8x1xf32> to vector<8x5xf32>
    %231 = arith.subf %227, %230 : vector<8x5xf32>
    %232 = math.exp %231 : vector<8x5xf32>
    %cst_83 = arith.constant dense<0.000000e+00> : vector<8xf32>
    %233 = vector.multi_reduction <add>, %232, %cst_83 [1] : vector<8x5xf32> to vector<8xf32>
    %234 = vector.shape_cast %233 : vector<8xf32> to vector<8x1xf32>
    %235 = tpu.reciprocal %234 {approx = true} : vector<8x1xf32> -> vector<8x1xf32>
    %236 = vector.broadcast %235 : vector<8x1xf32> to vector<8x5xf32>
    %237 = arith.mulf %232, %236 : vector<8x5xf32>
    %238 = arith.truncf %237 : vector<8x5xf32> to vector<8x5xbf16>
    %cst_84 = arith.constant dense<0.000000e+00> : vector<8x32xf32>
    %239 = tpu.matmul %238, %226, %cst_84 {dimension_numbers = #tpu.dot_dimension_numbers<[1], [0], [0], [1], [0, 0, 1, 1], [], []>} : vector<8x5xbf16>, vector<5x32xbf16>, vector<8x32xf32> -> vector<8x32xf32>
    %240 = vector.extract_strided_slice %170 {offsets = [0, 96], sizes = [8, 32], strides = [1, 1]} : vector<8x128xf32> to vector<8x32xf32>
    %241 = arith.truncf %240 : vector<8x32xf32> to vector<8x32xbf16>
    %242 = vector.extract_strided_slice %181 {offsets = [0, 96], sizes = [5, 32], strides = [1, 1]} : vector<5x128xf32> to vector<5x32xf32>
    %243 = arith.truncf %242 : vector<5x32xf32> to vector<5x32xbf16>
    %244 = vector.extract_strided_slice %182 {offsets = [0, 96], sizes = [5, 32], strides = [1, 1]} : vector<5x128xf32> to vector<5x32xf32>
    %245 = arith.truncf %244 : vector<5x32xf32> to vector<5x32xbf16>
    %cst_85 = arith.constant dense<0.000000e+00> : vector<8x5xf32>
    %246 = tpu.matmul %241, %243, %cst_85 {dimension_numbers = #tpu.dot_dimension_numbers<[1], [1], [0], [0], [0, 0, 1, 0], [], []>} : vector<8x32xbf16>, vector<5x32xbf16>, vector<8x5xf32> -> vector<8x5xf32>
    %cst_86 = arith.constant dense<0xFF800000> : vector<8xf32>
    %247 = vector.multi_reduction <maximumf>, %246, %cst_86 [1] : vector<8x5xf32> to vector<8xf32>
    %248 = vector.shape_cast %247 : vector<8xf32> to vector<8x1xf32>
    %249 = vector.broadcast %248 : vector<8x1xf32> to vector<8x5xf32>
    %250 = arith.subf %246, %249 : vector<8x5xf32>
    %251 = math.exp %250 : vector<8x5xf32>
    %cst_87 = arith.constant dense<0.000000e+00> : vector<8xf32>
    %252 = vector.multi_reduction <add>, %251, %cst_87 [1] : vector<8x5xf32> to vector<8xf32>
    %253 = vector.shape_cast %252 : vector<8xf32> to vector<8x1xf32>
    %254 = tpu.reciprocal %253 {approx = true} : vector<8x1xf32> -> vector<8x1xf32>
    %255 = vector.broadcast %254 : vector<8x1xf32> to vector<8x5xf32>
    %256 = arith.mulf %251, %255 : vector<8x5xf32>
    %257 = arith.truncf %256 : vector<8x5xf32> to vector<8x5xbf16>
    %cst_88 = arith.constant dense<0.000000e+00> : vector<8x32xf32>
    %258 = tpu.matmul %257, %245, %cst_88 {dimension_numbers = #tpu.dot_dimension_numbers<[1], [0], [0], [1], [0, 0, 1, 1], [], []>} : vector<8x5xbf16>, vector<5x32xbf16>, vector<8x32xf32> -> vector<8x32xf32>
    %259 = tpu.concatenate %201, %220, %239, %258 in 1 : vector<8x32xf32>, vector<8x32xf32>, vector<8x32xf32>, vector<8x32xf32> -> vector<8x128xf32>
    %c0_89 = arith.constant 0 : index
    %c0_90 = arith.constant 0 : index
    %c0_91 = arith.constant 0 : index
    %260 = vector.load %arg17[%c0_89, %c0_90, %c0_91] : memref<1x128x128xbf16, #tpu.memory_space<vmem>>, vector<1x128x128xbf16>
    %261 = vector.shape_cast %260 : vector<1x128x128xbf16> to vector<128x128xbf16>
    %c0_92 = arith.constant 0 : index
    %c0_93 = arith.constant 0 : index
    %c0_94 = arith.constant 0 : index
    %262 = vector.load %arg18[%c0_92, %c0_93, %c0_94] : memref<1x1x128xf32, #tpu.memory_space<vmem>>, vector<1x1x128xf32>
    %263 = vector.shape_cast %262 : vector<1x1x128xf32> to vector<1x128xf32>
    %264 = arith.truncf %259 : vector<8x128xf32> to vector<8x128xbf16>
    %cst_95 = arith.constant dense<0.000000e+00> : vector<8x128xf32>
    %265 = tpu.matmul %264, %261, %cst_95 {dimension_numbers = #tpu.dot_dimension_numbers<[1], [0], [0], [1], [0, 0, 1, 1], [], []>} : vector<8x128xbf16>, vector<128x128xbf16>, vector<8x128xf32> -> vector<8x128xf32>
    %266 = vector.broadcast %263 : vector<1x128xf32> to vector<8x128xf32>
    %267 = arith.addf %265, %266 : vector<8x128xf32>
    %268 = arith.addf %136, %267 : vector<8x128xf32>
    %c0_96 = arith.constant 0 : index
    %c0_97 = arith.constant 0 : index
    %c0_98 = arith.constant 0 : index
    %269 = vector.load %arg19[%c0_96, %c0_97, %c0_98] : memref<1x1x128xf32, #tpu.memory_space<vmem>>, vector<1x1x128xf32>
    %270 = vector.shape_cast %269 : vector<1x1x128xf32> to vector<1x128xf32>
    %c0_99 = arith.constant 0 : index
    %c0_100 = arith.constant 0 : index
    %c0_101 = arith.constant 0 : index
    %271 = vector.load %arg20[%c0_99, %c0_100, %c0_101] : memref<1x1x128xf32, #tpu.memory_space<vmem>>, vector<1x1x128xf32>
    %272 = vector.shape_cast %271 : vector<1x1x128xf32> to vector<1x128xf32>
    %cst_102 = arith.constant dense<0.000000e+00> : vector<8xf32>
    %273 = vector.multi_reduction <add>, %268, %cst_102 [1] : vector<8x128xf32> to vector<8xf32>
    %274 = vector.shape_cast %273 : vector<8xf32> to vector<8x1xf32>
    %cst_103 = arith.constant 1.280000e+02 : f32
    %275 = vector.broadcast %cst_103 : f32 to vector<8x1xf32>
    %276 = arith.divf %274, %275 : vector<8x1xf32>
    %277 = vector.broadcast %276 : vector<8x1xf32> to vector<8x128xf32>
    %278 = arith.subf %268, %277 : vector<8x128xf32>
    %279 = arith.mulf %278, %278 : vector<8x128xf32>
    %cst_104 = arith.constant dense<0.000000e+00> : vector<8xf32>
    %280 = vector.multi_reduction <add>, %279, %cst_104 [1] : vector<8x128xf32> to vector<8xf32>
    %281 = vector.shape_cast %280 : vector<8xf32> to vector<8x1xf32>
    %cst_105 = arith.constant 1.280000e+02 : f32
    %282 = vector.broadcast %cst_105 : f32 to vector<8x1xf32>
    %283 = arith.divf %281, %282 : vector<8x1xf32>
    %284 = vector.broadcast %276 : vector<8x1xf32> to vector<8x128xf32>
    %285 = arith.subf %268, %284 : vector<8x128xf32>
    %cst_106 = arith.constant 9.99999996E-13 : f32
    %286 = vector.broadcast %cst_106 : f32 to vector<8x1xf32>
    %287 = arith.addf %283, %286 : vector<8x1xf32>
    %288 = math.rsqrt %287 : vector<8x1xf32>
    %289 = vector.broadcast %288 : vector<8x1xf32> to vector<8x128xf32>
    %290 = arith.mulf %285, %289 : vector<8x128xf32>
    %291 = vector.broadcast %270 : vector<1x128xf32> to vector<8x128xf32>
    %292 = arith.mulf %290, %291 : vector<8x128xf32>
    %293 = vector.broadcast %272 : vector<1x128xf32> to vector<8x128xf32>
    %294 = arith.addf %292, %293 : vector<8x128xf32>
    %c0_107 = arith.constant 0 : index
    %c0_108 = arith.constant 0 : index
    %c0_109 = arith.constant 0 : index
    %295 = vector.load %arg21[%c0_107, %c0_108, %c0_109] : memref<1x128x256xbf16, #tpu.memory_space<vmem>>, vector<1x128x256xbf16>
    %296 = vector.shape_cast %295 : vector<1x128x256xbf16> to vector<128x256xbf16>
    %c0_110 = arith.constant 0 : index
    %c0_111 = arith.constant 0 : index
    %c0_112 = arith.constant 0 : index
    %297 = vector.load %arg22[%c0_110, %c0_111, %c0_112] : memref<1x1x256xf32, #tpu.memory_space<vmem>>, vector<1x1x256xf32>
    %298 = vector.shape_cast %297 : vector<1x1x256xf32> to vector<1x256xf32>
    %299 = arith.truncf %294 : vector<8x128xf32> to vector<8x128xbf16>
    %cst_113 = arith.constant dense<0.000000e+00> : vector<8x256xf32>
    %300 = tpu.matmul %299, %296, %cst_113 {dimension_numbers = #tpu.dot_dimension_numbers<[1], [0], [0], [1], [0, 0, 1, 1], [], []>} : vector<8x128xbf16>, vector<128x256xbf16>, vector<8x256xf32> -> vector<8x256xf32>
    %301 = vector.broadcast %298 : vector<1x256xf32> to vector<8x256xf32>
    %302 = arith.addf %300, %301 : vector<8x256xf32>
    %303 = arith.mulf %302, %302 : vector<8x256xf32>
    %304 = arith.mulf %302, %303 : vector<8x256xf32>
    %cst_114 = arith.constant 4.471500e-02 : f32
    %305 = vector.broadcast %cst_114 : f32 to vector<8x256xf32>
    %306 = arith.mulf %305, %304 : vector<8x256xf32>
    %307 = arith.addf %302, %306 : vector<8x256xf32>
    %cst_115 = arith.constant 0.797884583 : f32
    %308 = vector.broadcast %cst_115 : f32 to vector<8x256xf32>
    %309 = arith.mulf %308, %307 : vector<8x256xf32>
    %310 = math.tanh %309 : vector<8x256xf32>
    %cst_116 = arith.constant 1.000000e+00 : f32
    %311 = vector.broadcast %cst_116 : f32 to vector<8x256xf32>
    %312 = arith.addf %311, %310 : vector<8x256xf32>
    %cst_117 = arith.constant 5.000000e-01 : f32
    %313 = vector.broadcast %cst_117 : f32 to vector<8x256xf32>
    %314 = arith.mulf %313, %312 : vector<8x256xf32>
    %315 = arith.mulf %302, %314 : vector<8x256xf32>
    %c0_118 = arith.constant 0 : index
    %c0_119 = arith.constant 0 : index
    %c0_120 = arith.constant 0 : index
    %316 = vector.load %arg23[%c0_118, %c0_119, %c0_120] : memref<1x256x128xbf16, #tpu.memory_space<vmem>>, vector<1x256x128xbf16>
    %317 = vector.shape_cast %316 : vector<1x256x128xbf16> to vector<256x128xbf16>
    %c0_121 = arith.constant 0 : index
    %c0_122 = arith.constant 0 : index
    %c0_123 = arith.constant 0 : index
    %318 = vector.load %arg24[%c0_121, %c0_122, %c0_123] : memref<1x1x128xf32, #tpu.memory_space<vmem>>, vector<1x1x128xf32>
    %319 = vector.shape_cast %318 : vector<1x1x128xf32> to vector<1x128xf32>
    %320 = arith.truncf %315 : vector<8x256xf32> to vector<8x256xbf16>
    %cst_124 = arith.constant dense<0.000000e+00> : vector<8x128xf32>
    %321 = tpu.matmul %320, %317, %cst_124 {dimension_numbers = #tpu.dot_dimension_numbers<[1], [0], [0], [1], [0, 0, 1, 1], [], []>} : vector<8x256xbf16>, vector<256x128xbf16>, vector<8x128xf32> -> vector<8x128xf32>
    %322 = vector.broadcast %319 : vector<1x128xf32> to vector<8x128xf32>
    %323 = arith.addf %321, %322 : vector<8x128xf32>
    %324 = arith.addf %268, %323 : vector<8x128xf32>
    %c0_125 = arith.constant 0 : index
    %c0_126 = arith.constant 0 : index
    %325 = vector.load %arg26[%c0_125, %c0_126] : memref<8x128xf32, #tpu.memory_space<vmem>>, vector<8x128xf32>
    tpu.vector_store %arg26[%c0_125, %c0_126], %324 {strides = array<i32>} : memref<8x128xf32, #tpu.memory_space<vmem>>, vector<8x128xf32>,
    %c1_i32 = arith.constant 1 : i32
    %326 = arith.cmpi eq, %arg1, %c1_i32 : i32
    %327 = arith.extui %326 : i1 to i32
    %c0_i32_127 = arith.constant 0 : i32
    %328 = arith.cmpi ne, %327, %c0_i32_127 : i32
    scf.if %328 {
      %c0_128 = arith.constant 0 : index
      %c0_129 = arith.constant 0 : index
      %c0_130 = arith.constant 0 : index
      %329 = vector.load %arg25[%c0_128, %c0_129, %c0_130] : memref<1x8x128xf32, #tpu.memory_space<vmem>>, vector<1x8x128xf32>
      %330 = vector.shape_cast %329 : vector<1x8x128xf32> to vector<8x128xf32>
      %331 = vector.shape_cast %324 : vector<8x128xf32> to vector<1x8x128xf32>
      tpu.vector_store %arg25[%c0_128, %c0_129, %c0_130], %331 {strides = array<i32>} : memref<1x8x128xf32, #tpu.memory_space<vmem>>, vector<1x8x128xf32>,
    } else {
    }
    return
  }
  func.func @transform_0(%arg0: i32, %arg1: i32) -> (i32, i32, i32) {
    %c0_i32 = arith.constant 0 : i32
    %c0_i32_0 = arith.constant 0 : i32
    %c0_i32_1 = arith.constant 0 : i32
    return %arg0, %c0_i32, %c0_i32_0 : i32, i32, i32
  }
  func.func @transform_1(%arg0: i32, %arg1: i32) -> (i32, i32, i32) {
    %c0_i32 = arith.constant 0 : i32
    %c0_i32_0 = arith.constant 0 : i32
    %c0_i32_1 = arith.constant 0 : i32
    return %arg0, %c0_i32, %c0_i32_0 : i32, i32, i32
  }
  func.func @transform_2(%arg0: i32, %arg1: i32) -> (i32, i32, i32) {
    %c0_i32 = arith.constant 0 : i32
    %c0_i32_0 = arith.constant 0 : i32
    %c0_i32_1 = arith.constant 0 : i32
    return %arg0, %c0_i32, %c0_i32_0 : i32, i32, i32
  }
  func.func @transform_3(%arg0: i32, %arg1: i32) -> (i32, i32, i32) {
    %c0_i32 = arith.constant 0 : i32
    %c0_i32_0 = arith.constant 0 : i32
    %c0_i32_1 = arith.constant 0 : i32
    return %arg1, %c0_i32, %c0_i32_0 : i32, i32, i32
  }
  func.func @transform_4(%arg0: i32, %arg1: i32) -> (i32, i32, i32) {
    %c0_i32 = arith.constant 0 : i32
    %c0_i32_0 = arith.constant 0 : i32
    %c0_i32_1 = arith.constant 0 : i32
    return %arg1, %c0_i32, %c0_i32_0 : i32, i32, i32
  }
  func.func @transform_5(%arg0: i32, %arg1: i32) -> (i32, i32, i32) {
    %c0_i32 = arith.constant 0 : i32
    %c0_i32_0 = arith.constant 0 : i32
    %c0_i32_1 = arith.constant 0 : i32
    return %arg1, %c0_i32, %c0_i32_0 : i32, i32, i32
  }
  func.func @transform_6(%arg0: i32, %arg1: i32) -> (i32, i32, i32) {
    %c0_i32 = arith.constant 0 : i32
    %c0_i32_0 = arith.constant 0 : i32
    %c0_i32_1 = arith.constant 0 : i32
    return %arg1, %c0_i32, %c0_i32_0 : i32, i32, i32
  }
  func.func @transform_7(%arg0: i32, %arg1: i32) -> (i32, i32, i32) {
    %c0_i32 = arith.constant 0 : i32
    %c0_i32_0 = arith.constant 0 : i32
    %c0_i32_1 = arith.constant 0 : i32
    return %arg1, %c0_i32, %c0_i32_0 : i32, i32, i32
  }
  func.func @transform_8(%arg0: i32, %arg1: i32) -> (i32, i32, i32) {
    %c0_i32 = arith.constant 0 : i32
    %c0_i32_0 = arith.constant 0 : i32
    %c0_i32_1 = arith.constant 0 : i32
    return %arg1, %c0_i32, %c0_i32_0 : i32, i32, i32
  }
  func.func @transform_9(%arg0: i32, %arg1: i32) -> (i32, i32, i32) {
    %c0_i32 = arith.constant 0 : i32
    %c0_i32_0 = arith.constant 0 : i32
    %c0_i32_1 = arith.constant 0 : i32
    return %arg1, %c0_i32, %c0_i32_0 : i32, i32, i32
  }
  func.func @transform_10(%arg0: i32, %arg1: i32) -> (i32, i32, i32) {
    %c0_i32 = arith.constant 0 : i32
    %c0_i32_0 = arith.constant 0 : i32
    %c0_i32_1 = arith.constant 0 : i32
    return %arg1, %c0_i32, %c0_i32_0 : i32, i32, i32
  }
  func.func @transform_11(%arg0: i32, %arg1: i32) -> (i32, i32, i32) {
    %c0_i32 = arith.constant 0 : i32
    %c0_i32_0 = arith.constant 0 : i32
    %c0_i32_1 = arith.constant 0 : i32
    return %arg1, %c0_i32, %c0_i32_0 : i32, i32, i32
  }
  func.func @transform_12(%arg0: i32, %arg1: i32) -> (i32, i32, i32) {
    %c0_i32 = arith.constant 0 : i32
    %c0_i32_0 = arith.constant 0 : i32
    %c0_i32_1 = arith.constant 0 : i32
    return %arg1, %c0_i32, %c0_i32_0 : i32, i32, i32
  }
  func.func @transform_13(%arg0: i32, %arg1: i32) -> (i32, i32, i32) {
    %c0_i32 = arith.constant 0 : i32
    %c0_i32_0 = arith.constant 0 : i32
    %c0_i32_1 = arith.constant 0 : i32
    return %arg1, %c0_i32, %c0_i32_0 : i32, i32, i32
  }
  func.func @transform_14(%arg0: i32, %arg1: i32) -> (i32, i32, i32) {
    %c0_i32 = arith.constant 0 : i32
    %c0_i32_0 = arith.constant 0 : i32
    %c0_i32_1 = arith.constant 0 : i32
    return %arg1, %c0_i32, %c0_i32_0 : i32, i32, i32
  }
  func.func @transform_15(%arg0: i32, %arg1: i32) -> (i32, i32, i32) {
    %c0_i32 = arith.constant 0 : i32
    %c0_i32_0 = arith.constant 0 : i32
    %c0_i32_1 = arith.constant 0 : i32
    return %arg1, %c0_i32, %c0_i32_0 : i32, i32, i32
  }
  func.func @transform_16(%arg0: i32, %arg1: i32) -> (i32, i32, i32) {
    %c0_i32 = arith.constant 0 : i32
    %c0_i32_0 = arith.constant 0 : i32
    %c0_i32_1 = arith.constant 0 : i32
    return %arg1, %c0_i32, %c0_i32_0 : i32, i32, i32
  }
  func.func @transform_17(%arg0: i32, %arg1: i32) -> (i32, i32, i32) {
    %c0_i32 = arith.constant 0 : i32
    %c0_i32_0 = arith.constant 0 : i32
    %c0_i32_1 = arith.constant 0 : i32
    return %arg1, %c0_i32, %c0_i32_0 : i32, i32, i32
  }
  func.func @transform_18(%arg0: i32, %arg1: i32) -> (i32, i32, i32) {
    %c0_i32 = arith.constant 0 : i32
    %c0_i32_0 = arith.constant 0 : i32
    %c0_i32_1 = arith.constant 0 : i32
    return %arg1, %c0_i32, %c0_i32_0 : i32, i32, i32
  }
  func.func @transform_19(%arg0: i32, %arg1: i32) -> (i32, i32, i32) {
    %c0_i32 = arith.constant 0 : i32
    %c0_i32_0 = arith.constant 0 : i32
    %c0_i32_1 = arith.constant 0 : i32
    return %arg1, %c0_i32, %c0_i32_0 : i32, i32, i32
  }
  func.func @transform_20(%arg0: i32, %arg1: i32) -> (i32, i32, i32) {
    %c0_i32 = arith.constant 0 : i32
    %c0_i32_0 = arith.constant 0 : i32
    %c0_i32_1 = arith.constant 0 : i32
    return %arg1, %c0_i32, %c0_i32_0 : i32, i32, i32
  }
  func.func @transform_21(%arg0: i32, %arg1: i32) -> (i32, i32, i32) {
    %c0_i32 = arith.constant 0 : i32
    %c0_i32_0 = arith.constant 0 : i32
    %c0_i32_1 = arith.constant 0 : i32
    return %arg1, %c0_i32, %c0_i32_0 : i32, i32, i32
  }
  func.func @transform_22(%arg0: i32, %arg1: i32) -> (i32, i32, i32) {
    %c0_i32 = arith.constant 0 : i32
    %c0_i32_0 = arith.constant 0 : i32
    %c0_i32_1 = arith.constant 0 : i32
    return %arg1, %c0_i32, %c0_i32_0 : i32, i32, i32
  }
  func.func @transform_23(%arg0: i32, %arg1: i32) -> (i32, i32, i32) {
    %c0_i32 = arith.constant 0 : i32
    %c0_i32_0 = arith.constant 0 : i32
    %c0_i32_1 = arith.constant 0 : i32
    return %arg0, %c0_i32, %c0_i32_0 : i32, i32, i32
  }
}

</mosaic_0001>

<llo_original>
// kernel: _lambda_.2
$region0: #{_lambda_.2}
  #allocation0 [shape = 'u32[]', space=smem, size = 0x4, offset = 0x4, fixed_abs, tag = 'smem constant byte address 0x4 - core index']
  #allocation1 [shape = 'u32[144,128]{1,0:T(1,128)}', space=vmem, size = 0x12000, scoped, tag = 'internal scratch']
  #allocation2 [shape = 'f32[5,128]{1,0:T(8,128)}', space=vmem, size = 0x1000, scoped, tag = 'scratch operand']
  %s0 = inlined_call_operand.vmem [shape: f32[2,5,128], index: 0, kind: input, shape index: {}]
  %s1 = inlined_call_operand.vmem [shape: f32[2,1,128], index: 1, kind: input, shape index: {}]
  %s2 = inlined_call_operand.vmem [shape: f32[2,1,128], index: 2, kind: input, shape index: {}]
  %s3 = inlined_call_operand.vmem [shape: bf16[2,128,384], index: 3, kind: input, shape index: {}]
  %s4 = inlined_call_operand.vmem [shape: f32[2,1,384], index: 4, kind: input, shape index: {}]
  %s5 = inlined_call_operand.vmem [shape: bf16[2,128,128], index: 5, kind: input, shape index: {}]
  %s6 = inlined_call_operand.vmem [shape: f32[2,1,128], index: 6, kind: input, shape index: {}]
  %s7 = inlined_call_operand.hbm [shape: f32[2,1,128], index: 7, kind: input, shape index: {}]
  %s8 = inlined_call_operand.hbm [shape: f32[2,1,128], index: 8, kind: input, shape index: {}]
  %s9 = inlined_call_operand.vmem [shape: bf16[2,128,256], index: 9, kind: input, shape index: {}]
  %s10 = inlined_call_operand.vmem [shape: f32[2,1,256], index: 10, kind: input, shape index: {}]
  %s11 = inlined_call_operand.hbm [shape: bf16[2,256,128], index: 11, kind: input, shape index: {}]
  %s12 = inlined_call_operand.vmem [shape: f32[2,1,128], index: 12, kind: input, shape index: {}]
  %s13 = inlined_call_operand.vmem [shape: f32[1,128], index: 13, kind: input, shape index: {}]
  %s14 = inlined_call_operand.vmem [shape: f32[1,128], index: 14, kind: input, shape index: {}]
  %s15 = inlined_call_operand.vmem [shape: f32[2,5,128], index: 15, kind: output, shape index: {}]
  %s16 = sld [smem:[#allocation0]]
  $region113: #{_lambda_.2} parent=0
    _
  %s18 = ssub.s32 1, %s16
  %s19 = scalar_select 0, %s18, %s16
  $region1: #{_lambda_.2} parent=0
    #allocation3 [shape = 'u8[1024]{0}', space=vmem, size = 0x400, scoped, tag = 'input window, operand 7']
    #allocation4 [shape = 's32[2]{0}', space=sflag, size = 0x8, scoped, tag = 'scoped memory for _lambda_.2']
    #allocation5 [shape = 'u8[1024]{0}', space=vmem, size = 0x400, scoped, tag = 'input window, operand 8']
    #allocation6 [shape = 's32[2]{0}', space=sflag, size = 0x8, scoped, tag = 'scoped memory for _lambda_.2']
    #allocation7 [shape = 'u8[131072]{0}', space=vmem, size = 0x20000, scoped, tag = 'input window, operand 11']
    %20 = vsyncpa [#allocation4], 0
    %s21 = scalar_lea.sflag [#allocation4], 1
    %22 = vsyncpa %s21, 0
    %23 = vsyncpa [#allocation6], 0
    %s24 = scalar_lea.sflag [#allocation6], 1
    %25 = vsyncpa %s24, 0
    loop: start=0, step=1, limit=6
    $region2: #{_lambda_.2} parent=1 // loop_pre_header
      _
    $region3: #{_lambda_.2} parent=1 // loop_header
      %s27 = sphi 0, %s31
      %p28 = scmp.ge.s32.totalorder %s27, 6
      %s34 = sphi 0, %s46
      %s35 = sphi 0, %s42
      %s36 = sphi 0, %s34
      %s37 = sphi 0, %s35
      %s38 = sphi 0, %s36
      %s39 = sphi 0, %s37
      %s49 = sphi 0, %s51
      %s52 = sphi 0, %s49
      %s53 = sphi 0, %s52
      %s69 = sphi 0, %s53
      %s75 = sphi 0, %s77
      %s78 = sphi 0, %s75
      %s79 = sphi 0, %s78
      %s95 = sphi 0, %s79
      %s101 = sphi 0, %s103
      %s104 = sphi 0, %s101
      %s105 = sphi 0, %s104
      %s121 = sphi 0, %s105
      %s127 = sphi 0, %s129
      %s130 = sphi 0, %s127
      %s131 = sphi 0, %s130
      %s147 = sphi 0, %s131
      %s153 = sphi 0, %s155
      %s156 = sphi 0, %s153
      %s157 = sphi 0, %s156
      %s173 = sphi 0, %s157
      %s179 = sphi 0, %s181
      %s182 = sphi 0, %s179
      %s183 = sphi 0, %s182
      %s199 = sphi 0, %s183
      %s205 = sphi 0, %s207
      %s208 = sphi 0, %s205
      %s209 = sphi 0, %s208
      %s225 = sphi 0, %s209
      %s231 = sphi 0, %s233
      %s234 = sphi 0, %s231
      %s235 = sphi 0, %s234
      %s251 = sphi 0, %s235
      %s257 = sphi 0, %s259
      %s260 = sphi 0, %s257
      %s261 = sphi 0, %s260
      %s277 = sphi 0, %s261
      %s283 = sphi 0, %s285
      %s286 = sphi 0, %s283
      %s287 = sphi 0, %s286
      %s303 = sphi 0, %s287
      %s309 = sphi 0, %s311
      %s312 = sphi 0, %s309
      %s313 = sphi 0, %s312
      %s329 = sphi 0, %s313
      %s335 = sphi 0, %s337
      %s338 = sphi 0, %s335
      %s339 = sphi 0, %s338
      %s355 = sphi 0, %s339
      %s361 = sphi 0, %s363
      %s364 = sphi 0, %s361
      %s365 = sphi 0, %s364
      %s381 = sphi 0, %s365
      %s385 = sphi 0, %s385
      %s387 = sphi 0, %s385
      %s388 = sphi 0, %s387
      %s402 = sphi 0, %s388
      %s406 = sphi 0, %s406
      %s408 = sphi 0, %s406
      %s409 = sphi 0, %s408
      %s423 = sphi 0, %s409
      %s429 = sphi 0, %s431
      %s432 = sphi 0, %s429
      %s433 = sphi 0, %s432
      %s449 = sphi 0, %s433
    $region4: #{_lambda_.2} parent=1 // loop_header_branch
      %30 = sbr.rel (%p28) target = $region8
    $region5: #{_lambda_.2} parent=1 // loop_body
      %s32 = ssub.s32 %s27, 1
      %s33 = ssub.s32 %s27, 2
      %s40 = sadd.s32 1, %s35
      %p41 = scmp.ge.s32.totalorder %s40, 2
      %s42 = scalar_select %p41, 0, %s40
      %s43 = sadd.s32 1, %s34
      %s44 = scalar_select %p41, %s43, %s34
      %p45 = scmp.ge.s32.totalorder %s44, 2
      %s46 = scalar_select %p45, 0, %s44
      %s47 = ssub.s32 %s34, %s46
      %p48 = scmp.eq.s32.totalorder %s47, 0
      %s50 = sadd.s32 %s49, 1
      %s51 = scalar_select %p48, %s49, %s50
      %p54 = pneg %p48
      %p55 = scmp.eq.s32.totalorder %s27, 3
      %p56 = por %p54, %p55
      %p57 = scmp.ne.s32.totalorder %s49, %s52
      %p58 = scmp.eq.s32.totalorder %s27, 0
      %p59 = por %p57, %p58
      %p60 = scmp.ne.s32.totalorder %s49, %s52
      %p61 = scmp.eq.s32.totalorder %s32, 3
      %p62 = por %p60, %p61
      %p63 = scmp.ne.s32.totalorder %s52, %s53
      %p64 = scmp.eq.s32.totalorder %s32, 0
      %p65 = por %p63, %p64
      %p66 = scmp.ne.s32.totalorder %s52, %s53
      %p67 = scmp.eq.s32.totalorder %s33, 3
      %p68 = por %p66, %p67
      %p70 = scmp.ne.s32.totalorder %s53, %s69
      %p71 = scmp.eq.s32.totalorder %s33, 0
      %p72 = por %p70, %p71
      %s73 = ssub.s32 %s35, %s42
      %p74 = scmp.eq.s32.totalorder %s73, 0
      %s76 = sadd.s32 %s75, 1
      %s77 = scalar_select %p74, %s75, %s76
      %p80 = pneg %p74
      %p81 = scmp.eq.s32.totalorder %s27, 3
      %p82 = por %p80, %p81
      %p83 = scmp.ne.s32.totalorder %s75, %s78
      %p84 = scmp.eq.s32.totalorder %s27, 0
      %p85 = por %p83, %p84
      %p86 = scmp.ne.s32.totalorder %s75, %s78
      %p87 = scmp.eq.s32.totalorder %s32, 3
      %p88 = por %p86, %p87
      %p89 = scmp.ne.s32.totalorder %s78, %s79
      %p90 = scmp.eq.s32.totalorder %s32, 0
      %p91 = por %p89, %p90
      %p92 = scmp.ne.s32.totalorder %s78, %s79
      %p93 = scmp.eq.s32.totalorder %s33, 3
      %p94 = por %p92, %p93
      %p96 = scmp.ne.s32.totalorder %s79, %s95
      %p97 = scmp.eq.s32.totalorder %s33, 0
      %p98 = por %p96, %p97
      %s99 = ssub.s32 %s35, %s42
      %p100 = scmp.eq.s32.totalorder %s99, 0
      %s102 = sadd.s32 %s101, 1
      %s103 = scalar_select %p100, %s101, %s102
      %p106 = pneg %p100
      %p107 = scmp.eq.s32.totalorder %s27, 3
      %p108 = por %p106, %p107
      %p109 = scmp.ne.s32.totalorder %s101, %s104
      %p110 = scmp.eq.s32.totalorder %s27, 0
      %p111 = por %p109, %p110
      %p112 = scmp.ne.s32.totalorder %s101, %s104
      %p113 = scmp.eq.s32.totalorder %s32, 3
      %p114 = por %p112, %p113
      %p115 = scmp.ne.s32.totalorder %s104, %s105
      %p116 = scmp.eq.s32.totalorder %s32, 0
      %p117 = por %p115, %p116
      %p118 = scmp.ne.s32.totalorder %s104, %s105
      %p119 = scmp.eq.s32.totalorder %s33, 3
      %p120 = por %p118, %p119
      %p122 = scmp.ne.s32.totalorder %s105, %s121
      %p123 = scmp.eq.s32.totalorder %s33, 0
      %p124 = por %p122, %p123
      %s125 = ssub.s32 %s35, %s42
      %p126 = scmp.eq.s32.totalorder %s125, 0
      %s128 = sadd.s32 %s127, 1
      %s129 = scalar_select %p126, %s127, %s128
      %p132 = pneg %p126
      %p133 = scmp.eq.s32.totalorder %s27, 3
      %p134 = por %p132, %p133
      %p135 = scmp.ne.s32.totalorder %s127, %s130
      %p136 = scmp.eq.s32.totalorder %s27, 0
      %p137 = por %p135, %p136
      %p138 = scmp.ne.s32.totalorder %s127, %s130
      %p139 = scmp.eq.s32.totalorder %s32, 3
      %p140 = por %p138, %p139
      %p141 = scmp.ne.s32.totalorder %s130, %s131
      %p142 = scmp.eq.s32.totalorder %s32, 0
      %p143 = por %p141, %p142
      %p144 = scmp.ne.s32.totalorder %s130, %s131
      %p145 = scmp.eq.s32.totalorder %s33, 3
      %p146 = por %p144, %p145
      %p148 = scmp.ne.s32.totalorder %s131, %s147
      %p149 = scmp.eq.s32.totalorder %s33, 0
      %p150 = por %p148, %p149
      %s151 = ssub.s32 %s35, %s42
      %p152 = scmp.eq.s32.totalorder %s151, 0
      %s154 = sadd.s32 %s153, 1
      %s155 = scalar_select %p152, %s153, %s154
      %p158 = pneg %p152
      %p159 = scmp.eq.s32.totalorder %s27, 3
      %p160 = por %p158, %p159
      %p161 = scmp.ne.s32.totalorder %s153, %s156
      %p162 = scmp.eq.s32.totalorder %s27, 0
      %p163 = por %p161, %p162
      %p164 = scmp.ne.s32.totalorder %s153, %s156
      %p165 = scmp.eq.s32.totalorder %s32, 3
      %p166 = por %p164, %p165
      %p167 = scmp.ne.s32.totalorder %s156, %s157
      %p168 = scmp.eq.s32.totalorder %s32, 0
      %p169 = por %p167, %p168
      %p170 = scmp.ne.s32.totalorder %s156, %s157
      %p171 = scmp.eq.s32.totalorder %s33, 3
      %p172 = por %p170, %p171
      %p174 = scmp.ne.s32.totalorder %s157, %s173
      %p175 = scmp.eq.s32.totalorder %s33, 0
      %p176 = por %p174, %p175
      %s177 = ssub.s32 %s35, %s42
      %p178 = scmp.eq.s32.totalorder %s177, 0
      %s180 = sadd.s32 %s179, 1
      %s181 = scalar_select %p178, %s179, %s180
      %p184 = pneg %p178
      %p185 = scmp.eq.s32.totalorder %s27, 3
      %p186 = por %p184, %p185
      %p187 = scmp.ne.s32.totalorder %s179, %s182
      %p188 = scmp.eq.s32.totalorder %s27, 0
      %p189 = por %p187, %p188
      %p190 = scmp.ne.s32.totalorder %s179, %s182
      %p191 = scmp.eq.s32.totalorder %s32, 3
      %p192 = por %p190, %p191
      %p193 = scmp.ne.s32.totalorder %s182, %s183
      %p194 = scmp.eq.s32.totalorder %s32, 0
      %p195 = por %p193, %p194
      %p196 = scmp.ne.s32.totalorder %s182, %s183
      %p197 = scmp.eq.s32.totalorder %s33, 3
      %p198 = por %p196, %p197
      %p200 = scmp.ne.s32.totalorder %s183, %s199
      %p201 = scmp.eq.s32.totalorder %s33, 0
      %p202 = por %p200, %p201
      %s203 = ssub.s32 %s35, %s42
      %p204 = scmp.eq.s32.totalorder %s203, 0
      %s206 = sadd.s32 %s205, 1
      %s207 = scalar_select %p204, %s205, %s206
      %p210 = pneg %p204
      %p211 = scmp.eq.s32.totalorder %s27, 3
      %p212 = por %p210, %p211
      %p213 = scmp.ne.s32.totalorder %s205, %s208
      %p214 = scmp.eq.s32.totalorder %s27, 0
      %p215 = por %p213, %p214
      %p216 = scmp.ne.s32.totalorder %s205, %s208
      %p217 = scmp.eq.s32.totalorder %s32, 3
      %p218 = por %p216, %p217
      %p219 = scmp.ne.s32.totalorder %s208, %s209
      %p220 = scmp.eq.s32.totalorder %s32, 0
      %p221 = por %p219, %p220
      %p222 = scmp.ne.s32.totalorder %s208, %s209
      %p223 = scmp.eq.s32.totalorder %s33, 3
      %p224 = por %p222, %p223
      %p226 = scmp.ne.s32.totalorder %s209, %s225
      %p227 = scmp.eq.s32.totalorder %s33, 0
      %p228 = por %p226, %p227
      %s229 = ssub.s32 %s35, %s42
      %p230 = scmp.eq.s32.totalorder %s229, 0
      %s232 = sadd.s32 %s231, 1
      %s233 = scalar_select %p230, %s231, %s232
      %p236 = pneg %p230
      %p237 = scmp.eq.s32.totalorder %s27, 3
      %p238 = por %p236, %p237
      %p239 = scmp.ne.s32.totalorder %s231, %s234
      %p240 = scmp.eq.s32.totalorder %s27, 0
      %p241 = por %p239, %p240
      %p242 = scmp.ne.s32.totalorder %s231, %s234
      %p243 = scmp.eq.s32.totalorder %s32, 3
      %p244 = por %p242, %p243
      %p245 = scmp.ne.s32.totalorder %s234, %s235
      %p246 = scmp.eq.s32.totalorder %s32, 0
      %p247 = por %p245, %p246
      %p248 = scmp.ne.s32.totalorder %s234, %s235
      %p249 = scmp.eq.s32.totalorder %s33, 3
      %p250 = por %p248, %p249
      %p252 = scmp.ne.s32.totalorder %s235, %s251
      %p253 = scmp.eq.s32.totalorder %s33, 0
      %p254 = por %p252, %p253
      %s255 = ssub.s32 %s35, %s42
      %p256 = scmp.eq.s32.totalorder %s255, 0
      %s258 = sadd.s32 %s257, 1
      %s259 = scalar_select %p256, %s257, %s258
      %p262 = pneg %p256
      %p263 = scmp.eq.s32.totalorder %s27, 3
      %p264 = por %p262, %p263
      %p265 = scmp.ne.s32.totalorder %s257, %s260
      %p266 = scmp.eq.s32.totalorder %s27, 0
      %p267 = por %p265, %p266
      %p268 = scmp.ne.s32.totalorder %s257, %s260
      %p269 = scmp.eq.s32.totalorder %s32, 3
      %p270 = por %p268, %p269
      %p271 = scmp.ne.s32.totalorder %s260, %s261
      %p272 = scmp.eq.s32.totalorder %s32, 0
      %p273 = por %p271, %p272
      %p274 = scmp.ne.s32.totalorder %s260, %s261
      %p275 = scmp.eq.s32.totalorder %s33, 3
      %p276 = por %p274, %p275
      %p278 = scmp.ne.s32.totalorder %s261, %s277
      %p279 = scmp.eq.s32.totalorder %s33, 0
      %p280 = por %p278, %p279
      %s281 = ssub.s32 %s35, %s42
      %p282 = scmp.eq.s32.totalorder %s281, 0
      %s284 = sadd.s32 %s283, 1
      %s285 = scalar_select %p282, %s283, %s284
      %p288 = pneg %p282
      %p289 = scmp.eq.s32.totalorder %s27, 3
      %p290 = por %p288, %p289
      %p291 = scmp.ne.s32.totalorder %s283, %s286
      %p292 = scmp.eq.s32.totalorder %s27, 0
      %p293 = por %p291, %p292
      %p294 = scmp.ne.s32.totalorder %s283, %s286
      %p295 = scmp.eq.s32.totalorder %s32, 3
      %p296 = por %p294, %p295
      %p297 = scmp.ne.s32.totalorder %s286, %s287
      %p298 = scmp.eq.s32.totalorder %s32, 0
      %p299 = por %p297, %p298
      %p300 = scmp.ne.s32.totalorder %s286, %s287
      %p301 = scmp.eq.s32.totalorder %s33, 3
      %p302 = por %p300, %p301
      %p304 = scmp.ne.s32.totalorder %s287, %s303
      %p305 = scmp.eq.s32.totalorder %s33, 0
      %p306 = por %p304, %p305
      %s307 = ssub.s32 %s35, %s42
      %p308 = scmp.eq.s32.totalorder %s307, 0
      %s310 = sadd.s32 %s309, 1
      %s311 = scalar_select %p308, %s309, %s310
      %p314 = pneg %p308
      %p315 = scmp.eq.s32.totalorder %s27, 3
      %p316 = por %p314, %p315
      %p317 = scmp.ne.s32.totalorder %s309, %s312
      %p318 = scmp.eq.s32.totalorder %s27, 0
      %p319 = por %p317, %p318
      %p320 = scmp.ne.s32.totalorder %s309, %s312
      %p321 = scmp.eq.s32.totalorder %s32, 3
      %p322 = por %p320, %p321
      %p323 = scmp.ne.s32.totalorder %s312, %s313
      %p324 = scmp.eq.s32.totalorder %s32, 0
      %p325 = por %p323, %p324
      %p326 = scmp.ne.s32.totalorder %s312, %s313
      %p327 = scmp.eq.s32.totalorder %s33, 3
      %p328 = por %p326, %p327
      %p330 = scmp.ne.s32.totalorder %s313, %s329
      %p331 = scmp.eq.s32.totalorder %s33, 0
      %p332 = por %p330, %p331
      %s333 = ssub.s32 %s35, %s42
      %p334 = scmp.eq.s32.totalorder %s333, 0
      %s336 = sadd.s32 %s335, 1
      %s337 = scalar_select %p334, %s335, %s336
      %p340 = pneg %p334
      %p341 = scmp.eq.s32.totalorder %s27, 3
      %p342 = por %p340, %p341
      %p343 = scmp.ne.s32.totalorder %s335, %s338
      %p344 = scmp.eq.s32.totalorder %s27, 0
      %p345 = por %p343, %p344
      %p346 = scmp.ne.s32.totalorder %s335, %s338
      %p347 = scmp.eq.s32.totalorder %s32, 3
      %p348 = por %p346, %p347
      %p349 = scmp.ne.s32.totalorder %s338, %s339
      %p350 = scmp.eq.s32.totalorder %s32, 0
      %p351 = por %p349, %p350
      %p352 = scmp.ne.s32.totalorder %s338, %s339
      %p353 = scmp.eq.s32.totalorder %s33, 3
      %p354 = por %p352, %p353
      %p356 = scmp.ne.s32.totalorder %s339, %s355
      %p357 = scmp.eq.s32.totalorder %s33, 0
      %p358 = por %p356, %p357
      %s359 = ssub.s32 %s35, %s42
      %p360 = scmp.eq.s32.totalorder %s359, 0
      %s362 = sadd.s32 %s361, 1
      %s363 = scalar_select %p360, %s361, %s362
      %p366 = pneg %p360
      %p367 = scmp.eq.s32.totalorder %s27, 3
      %p368 = por %p366, %p367
      %p369 = scmp.ne.s32.totalorder %s361, %s364
      %p370 = scmp.eq.s32.totalorder %s27, 0
      %p371 = por %p369, %p370
      %p372 = scmp.ne.s32.totalorder %s361, %s364
      %p373 = scmp.eq.s32.totalorder %s32, 3
      %p374 = por %p372, %p373
      %p375 = scmp.ne.s32.totalorder %s364, %s365
      %p376 = scmp.eq.s32.totalorder %s32, 0
      %p377 = por %p375, %p376
      %p378 = scmp.ne.s32.totalorder %s364, %s365
      %p379 = scmp.eq.s32.totalorder %s33, 3
      %p380 = por %p378, %p379
      %p382 = scmp.ne.s32.totalorder %s365, %s381
      %p383 = scmp.eq.s32.totalorder %s33, 0
      %p384 = por %p382, %p383
      %s386 = sadd.s32 %s385, 1
      %p389 = scmp.eq.s32.totalorder %s27, 3
      %p390 = scmp.ne.s32.totalorder %s385, %s387
      %p391 = scmp.eq.s32.totalorder %s27, 0
      %p392 = por %p390, %p391
      %p393 = scmp.ne.s32.totalorder %s385, %s387
      %p394 = scmp.eq.s32.totalorder %s32, 3
      %p395 = por %p393, %p394
      %p396 = scmp.ne.s32.totalorder %s387, %s388
      %p397 = scmp.eq.s32.totalorder %s32, 0
      %p398 = por %p396, %p397
      %p399 = scmp.ne.s32.totalorder %s387, %s388
      %p400 = scmp.eq.s32.totalorder %s33, 3
      %p401 = por %p399, %p400
      %p403 = scmp.ne.s32.totalorder %s388, %s402
      %p404 = scmp.eq.s32.totalorder %s33, 0
      %p405 = por %p403, %p404
      %s407 = sadd.s32 %s406, 1
      %p410 = scmp.eq.s32.totalorder %s27, 3
      %p411 = scmp.ne.s32.totalorder %s406, %s408
      %p412 = scmp.eq.s32.totalorder %s27, 0
      %p413 = por %p411, %p412
      %p414 = scmp.ne.s32.totalorder %s406, %s408
      %p415 = scmp.eq.s32.totalorder %s32, 3
      %p416 = por %p414, %p415
      %p417 = scmp.ne.s32.totalorder %s408, %s409
      %p418 = scmp.eq.s32.totalorder %s32, 0
      %p419 = por %p417, %p418
      %p420 = scmp.ne.s32.totalorder %s408, %s409
      %p421 = scmp.eq.s32.totalorder %s33, 3
      %p422 = por %p420, %p421
      %p424 = scmp.ne.s32.totalorder %s409, %s423
      %p425 = scmp.eq.s32.totalorder %s33, 0
      %p426 = por %p424, %p425
      %s427 = ssub.s32 %s34, %s46
      %p428 = scmp.eq.s32.totalorder %s427, 0
      %s430 = sadd.s32 %s429, 1
      %s431 = scalar_select %p428, %s429, %s430
      %p434 = pneg %p428
      %p435 = scmp.eq.s32.totalorder %s27, 3
      %p436 = por %p434, %p435
      %p437 = scmp.ne.s32.totalorder %s429, %s432
      %p438 = scmp.eq.s32.totalorder %s27, 0
      %p439 = por %p437, %p438
      %p440 = scmp.ne.s32.totalorder %s429, %s432
      %p441 = scmp.eq.s32.totalorder %s32, 3
      %p442 = por %p440, %p441
      %p443 = scmp.ne.s32.totalorder %s432, %s433
      %p444 = scmp.eq.s32.totalorder %s32, 0
      %p445 = por %p443, %p444
      %p446 = scmp.ne.s32.totalorder %s432, %s433
      %p447 = scmp.eq.s32.totalorder %s33, 3
      %p448 = por %p446, %p447
      %p450 = scmp.ne.s32.totalorder %s433, %s449
      %p451 = scmp.eq.s32.totalorder %s33, 0
      %p452 = por %p450, %p451
      %p453 = scmp.le.s32.totalorder 1, %s27
      %p454 = scmp.lt.s32.totalorder %s27, 5
      %p455 = pnand %p453, %p454
      %p456 = pneg %p455
      // Predicated region
      $region9: #{_lambda_.2} parent=5 // pred_check
        _
      $region10: #{_lambda_.2} parent=5 // pred_check_branch
        %458 = sbr.rel (%p455) target = $region12
      $region11: #{_lambda_.2} parent=5 // pred_region
        %s459 = ssub.s32 %s27, 1
        // Predicated region
        $region13: #{_lambda_.2} parent=11 // pred_check
          %p460 = pneg %p398
        $region14: #{_lambda_.2} parent=11 // pred_check_branch
          %462 = sbr.rel (%p460) target = $region16
        $region15: #{_lambda_.2} parent=11 // pred_region
          _
        $region16: #{_lambda_.2} parent=11 // pred_fallthru
          _
        // Predicated region
        $region17: #{_lambda_.2} parent=11 // pred_check
          %p463 = pneg %p419
        $region18: #{_lambda_.2} parent=11 // pred_check_branch
          %465 = sbr.rel (%p463) target = $region20
        $region19: #{_lambda_.2} parent=11 // pred_region
          _
        $region20: #{_lambda_.2} parent=11 // pred_fallthru
          _
      $region12: #{_lambda_.2} parent=5 // pred_fallthru
        _
      %p466 = scmp.lt.s32.totalorder %s27, 4
      // Predicated region
      $region21: #{_lambda_.2} parent=5 // pred_check
        %p467 = pneg %p466
      $region22: #{_lambda_.2} parent=5 // pred_check_branch
        %469 = sbr.rel (%p467) target = $region24
      $region23: #{_lambda_.2} parent=5 // pred_region
        // Predicated region
        $region25: #{_lambda_.2} parent=23 // pred_check
          %p470 = pneg %p59
        $region26: #{_lambda_.2} parent=23 // pred_check_branch
          %472 = sbr.rel (%p470) target = $region28
        $region27: #{_lambda_.2} parent=23 // pred_region
          %p473 = scmp.lt.s32.totalorder %s34, 1
          %s474 = scalar_select %p473, %s34, 1
          %s475 = smul.addr %s474, 8
          %s476 = scalar_lea.vmem %s0, %s475
        $region28: #{_lambda_.2} parent=23 // pred_fallthru
          _
        // Predicated region
        $region29: #{_lambda_.2} parent=23 // pred_check
          %p477 = pneg %p85
        $region30: #{_lambda_.2} parent=23 // pred_check_branch
          %479 = sbr.rel (%p477) target = $region32
        $region31: #{_lambda_.2} parent=23 // pred_region
          %p480 = scmp.lt.s32.totalorder %s35, 1
          %s481 = scalar_select %p480, %s35, 1
          %s482 = scalar_lea.vmem %s1, %s481
        $region32: #{_lambda_.2} parent=23 // pred_fallthru
          _
        // Predicated region
        $region33: #{_lambda_.2} parent=23 // pred_check
          %p483 = pneg %p111
        $region34: #{_lambda_.2} parent=23 // pred_check_branch
          %485 = sbr.rel (%p483) target = $region36
        $region35: #{_lambda_.2} parent=23 // pred_region
          %p486 = scmp.lt.s32.totalorder %s35, 1
          %s487 = scalar_select %p486, %s35, 1
          %s488 = scalar_lea.vmem %s2, %s487
        $region36: #{_lambda_.2} parent=23 // pred_fallthru
          _
        // Predicated region
        $region37: #{_lambda_.2} parent=23 // pred_check
          %p489 = pneg %p137
        $region38: #{_lambda_.2} parent=23 // pred_check_branch
          %491 = sbr.rel (%p489) target = $region40
        $region39: #{_lambda_.2} parent=23 // pred_region
          %p492 = scmp.lt.s32.totalorder %s35, 1
          %s493 = scalar_select %p492, %s35, 1
          %s494 = smul.addr %s493, 48
          %s495 = smul.addr %s494, 4
          %s496 = scalar_lea.vmem %s3, %s495
        $region40: #{_lambda_.2} parent=23 // pred_fallthru
          _
        // Predicated region
        $region41: #{_lambda_.2} parent=23 // pred_check
          %p497 = pneg %p163
        $region42: #{_lambda_.2} parent=23 // pred_check_branch
          %499 = sbr.rel (%p497) target = $region44
        $region43: #{_lambda_.2} parent=23 // pred_region
          %p500 = scmp.lt.s32.totalorder %s35, 1
          %s501 = scalar_select %p500, %s35, 1
          %s502 = smul.addr %s501, 3
          %s503 = scalar_lea.vmem %s4, %s502
        $region44: #{_lambda_.2} parent=23 // pred_fallthru
          _
        // Predicated region
        $region45: #{_lambda_.2} parent=23 // pred_check
          %p504 = pneg %p189
        $region46: #{_lambda_.2} parent=23 // pred_check_branch
          %506 = sbr.rel (%p504) target = $region48
        $region47: #{_lambda_.2} parent=23 // pred_region
          %p507 = scmp.lt.s32.totalorder %s35, 1
          %s508 = scalar_select %p507, %s35, 1
          %s509 = smul.addr %s508, 16
          %s510 = smul.addr %s509, 4
          %s511 = scalar_lea.vmem %s5, %s510
        $region48: #{_lambda_.2} parent=23 // pred_fallthru
          _
        // Predicated region
        $region49: #{_lambda_.2} parent=23 // pred_check
          %p512 = pneg %p215
        $region50: #{_lambda_.2} parent=23 // pred_check_branch
          %514 = sbr.rel (%p512) target = $region52
        $region51: #{_lambda_.2} parent=23 // pred_region
          %p515 = scmp.lt.s32.totalorder %s35, 1
          %s516 = scalar_select %p515, %s35, 1
          %s517 = scalar_lea.vmem %s6, %s516
        $region52: #{_lambda_.2} parent=23 // pred_fallthru
          _
        // Predicated region
        $region53: #{_lambda_.2} parent=23 // pred_check
          %p518 = pneg %p241
        $region54: #{_lambda_.2} parent=23 // pred_check_branch
          %520 = sbr.rel (%p518) target = $region56
        $region55: #{_lambda_.2} parent=23 // pred_region
          %s521 = sand.u32 %s231, 1
          %s522 = scalar_lea.sflag [#allocation4], %s521
          %s523 = sand.u32 %s231, 1
          %s524 = scalar_lea.vmem [#allocation3], %s523
          %s526 = ssub.s32 16, 16
          %527 = vsyncadd %s522, %s526
          %s528 = smul.addr %s35, 16
          %s529 = scalar_lea.hbm %s7, %s528
          %s531 = sshll.u32 %s524, 4
          %s532 = int_to_ptr.vmem [resolvable:$true] %s531
          %534 = dma.hbm_to_vmem [thread:$0]  %s529, 16, %s532, %s522
        $region56: #{_lambda_.2} parent=23 // pred_fallthru
          _
        // Predicated region
        $region57: #{_lambda_.2} parent=23 // pred_check
          %p535 = pneg %p267
        $region58: #{_lambda_.2} parent=23 // pred_check_branch
          %537 = sbr.rel (%p535) target = $region60
        $region59: #{_lambda_.2} parent=23 // pred_region
          %s538 = sand.u32 %s27, 1
          %s539 = scalar_lea.sflag [#allocation6], %s538
          %s540 = sand.u32 %s257, 1
          %s541 = scalar_lea.vmem [#allocation5], %s540
          %s543 = ssub.s32 16, 16
          %544 = vsyncadd %s539, %s543
          %s545 = smul.addr %s35, 16
          %s546 = scalar_lea.hbm %s8, %s545
          %s548 = sshll.u32 %s541, 4
          %s549 = int_to_ptr.vmem [resolvable:$true] %s548
          %551 = dma.hbm_to_vmem [thread:$0]  %s546, 16, %s549, %s539
        $region60: #{_lambda_.2} parent=23 // pred_fallthru
          _
        // Predicated region
        $region61: #{_lambda_.2} parent=23 // pred_check
          %p552 = pneg %p293
        $region62: #{_lambda_.2} parent=23 // pred_check_branch
          %554 = sbr.rel (%p552) target = $region64
        $region63: #{_lambda_.2} parent=23 // pred_region
          %p555 = scmp.lt.s32.totalorder %s35, 1
          %s556 = scalar_select %p555, %s35, 1
          %s557 = smul.addr %s556, 32
          %s558 = smul.addr %s557, 4
          %s559 = scalar_lea.vmem %s9, %s558
        $region64: #{_lambda_.2} parent=23 // pred_fallthru
          _
        // Predicated region
        $region65: #{_lambda_.2} parent=23 // pred_check
          %p560 = pneg %p319
        $region66: #{_lambda_.2} parent=23 // pred_check_branch
          %562 = sbr.rel (%p560) target = $region68
        $region67: #{_lambda_.2} parent=23 // pred_region
          %p563 = scmp.lt.s32.totalorder %s35, 1
          %s564 = scalar_select %p563, %s35, 1
          %s565 = smul.addr %s564, 2
          %s566 = scalar_lea.vmem %s10, %s565
        $region68: #{_lambda_.2} parent=23 // pred_fallthru
          _
        // Predicated region
        $region69: #{_lambda_.2} parent=23 // pred_check
          %p567 = pneg %p345
        $region70: #{_lambda_.2} parent=23 // pred_check_branch
          %569 = sbr.rel (%p567) target = $region72
        $region71: #{_lambda_.2} parent=23 // pred_region
          %s570 = sand.u32 %s27, 1
          %s571 = scalar_lea.sflag [#allocation6], %s570
          %s572 = sand.u32 %s335, 1
          %s573 = smul.addr %s572, 128
          %s574 = scalar_lea.vmem [#allocation7], %s573
          %s576 = ssub.s32 2048, 2048
          %577 = vsyncadd %s571, %s576
          %s578 = smul.addr %s35, 32
          %s579 = smul.addr %s578, 64
          %s580 = scalar_lea.hbm %s11, %s579
          %s581 = sshll.u32 %s574, 4
          %s582 = int_to_ptr.vmem [resolvable:$true] %s581
          %587 = dma.hbm_to_vmem [thread:$0]  %s580, 2048, %s582, %s571, 64, 64, 4
        $region72: #{_lambda_.2} parent=23 // pred_fallthru
          _
        // Predicated region
        $region73: #{_lambda_.2} parent=23 // pred_check
          %p588 = pneg %p371
        $region74: #{_lambda_.2} parent=23 // pred_check_branch
          %590 = sbr.rel (%p588) target = $region76
        $region75: #{_lambda_.2} parent=23 // pred_region
          %p591 = scmp.lt.s32.totalorder %s35, 1
          %s592 = scalar_select %p591, %s35, 1
          %s593 = scalar_lea.vmem %s12, %s592
        $region76: #{_lambda_.2} parent=23 // pred_fallthru
          _
      $region24: #{_lambda_.2} parent=5 // pred_fallthru
        _
      %p594 = scmp.le.s32.totalorder 1, %s27
      %p595 = scmp.lt.s32.totalorder %s27, 5
      %p596 = pnand %p594, %p595
      %p597 = pneg %p596
      // Predicated region
      $region77: #{_lambda_.2} parent=5 // pred_check
        _
      $region78: #{_lambda_.2} parent=5 // pred_check_branch
        %599 = sbr.rel (%p596) target = $region80
      $region79: #{_lambda_.2} parent=5 // pred_region
        %s600 = ssub.s32 %s27, 1
        %s601 = sand.u32 %s234, 1
        %s602 = scalar_lea.sflag [#allocation4], %s601
        %s603 = sand.u32 %s234, 1
        %s604 = scalar_lea.vmem [#allocation3], %s603
        // Predicated region
        $region81: #{_lambda_.2} parent=79 // pred_check
          %p605 = pneg %p247
        $region82: #{_lambda_.2} parent=79 // pred_check_branch
          %607 = sbr.rel (%p605) target = $region84
        $region83: #{_lambda_.2} parent=79 // pred_region
          %608 = dma.done %s602, 16
        $region84: #{_lambda_.2} parent=79 // pred_fallthru
          _
        %s609 = sand.u32 %s32, 1
        %s610 = scalar_lea.sflag [#allocation6], %s609
        %s611 = sand.u32 %s260, 1
        %s612 = scalar_lea.vmem [#allocation5], %s611
        // Predicated region
        $region85: #{_lambda_.2} parent=79 // pred_check
          %p613 = pneg %p273
        $region86: #{_lambda_.2} parent=79 // pred_check_branch
          %615 = sbr.rel (%p613) target = $region88
        $region87: #{_lambda_.2} parent=79 // pred_region
          %616 = dma.done %s610, 16
        $region88: #{_lambda_.2} parent=79 // pred_fallthru
          _
        %s617 = sand.u32 %s32, 1
        %s618 = scalar_lea.sflag [#allocation6], %s617
        %s619 = sand.u32 %s338, 1
        %s620 = smul.addr %s619, 128
        %s621 = scalar_lea.vmem [#allocation7], %s620
        // Predicated region
        $region89: #{_lambda_.2} parent=79 // pred_check
          %p622 = pneg %p351
        $region90: #{_lambda_.2} parent=79 // pred_check_branch
          %624 = sbr.rel (%p622) target = $region92
        $region91: #{_lambda_.2} parent=79 // pred_region
          %625 = dma.done %s618, 2048
        $region92: #{_lambda_.2} parent=79 // pred_fallthru
          _
        %p626 = scmp.lt.s32.totalorder %s36, 1
        %s627 = scalar_select %p626, %s36, 1
        %s628 = smul.addr %s627, 8
        %s629 = scalar_lea.vmem %s0, %s628
        %p630 = pneg %p65
        %p631 = pneg %p62
        %p632 = scmp.lt.s32.totalorder %s37, 1
        %s633 = scalar_select %p632, %s37, 1
        %s634 = scalar_lea.vmem %s1, %s633
        %p635 = pneg %p91
        %p636 = pneg %p88
        %p637 = scmp.lt.s32.totalorder %s37, 1
        %s638 = scalar_select %p637, %s37, 1
        %s639 = scalar_lea.vmem %s2, %s638
        %p640 = pneg %p117
        %p641 = pneg %p114
        %p642 = scmp.lt.s32.totalorder %s37, 1
        %s643 = scalar_select %p642, %s37, 1
        %s644 = smul.addr %s643, 48
        %s645 = smul.addr %s644, 4
        %s646 = scalar_lea.vmem %s3, %s645
        %p647 = pneg %p143
        %p648 = pneg %p140
        %p649 = scmp.lt.s32.totalorder %s37, 1
        %s650 = scalar_select %p649, %s37, 1
        %s651 = smul.addr %s650, 3
        %s652 = scalar_lea.vmem %s4, %s651
        %p653 = pneg %p169
        %p654 = pneg %p166
        %p655 = scmp.lt.s32.totalorder %s37, 1
        %s656 = scalar_select %p655, %s37, 1
        %s657 = smul.addr %s656, 16
        %s658 = smul.addr %s657, 4
        %s659 = scalar_lea.vmem %s5, %s658
        %p660 = pneg %p195
        %p661 = pneg %p192
        %p662 = scmp.lt.s32.totalorder %s37, 1
        %s663 = scalar_select %p662, %s37, 1
        %s664 = scalar_lea.vmem %s6, %s663
        %p665 = pneg %p221
        %p666 = pneg %p218
        %s667 = sand.u32 %s234, 1
        %s668 = scalar_lea.sflag [#allocation4], %s667
        %s669 = sand.u32 %s234, 1
        %s670 = scalar_lea.vmem [#allocation3], %s669
        %p671 = pneg %p247
        %p672 = pneg %p244
        %s673 = sand.u32 %s32, 1
        %s674 = scalar_lea.sflag [#allocation6], %s673
        %s675 = sand.u32 %s260, 1
        %s676 = scalar_lea.vmem [#allocation5], %s675
        %p677 = pneg %p273
        %p678 = pneg %p270
        %p679 = scmp.lt.s32.totalorder %s37, 1
        %s680 = scalar_select %p679, %s37, 1
        %s681 = smul.addr %s680, 32
        %s682 = smul.addr %s681, 4
        %s683 = scalar_lea.vmem %s9, %s682
        %p684 = pneg %p299
        %p685 = pneg %p296
        %p686 = scmp.lt.s32.totalorder %s37, 1
        %s687 = scalar_select %p686, %s37, 1
        %s688 = smul.addr %s687, 2
        %s689 = scalar_lea.vmem %s10, %s688
        %p690 = pneg %p325
        %p691 = pneg %p322
        %s692 = sand.u32 %s32, 1
        %s693 = scalar_lea.sflag [#allocation6], %s692
        %s694 = sand.u32 %s338, 1
        %s695 = smul.addr %s694, 128
        %s696 = scalar_lea.vmem [#allocation7], %s695
        %p697 = pneg %p351
        %p698 = pneg %p348
        %p699 = scmp.lt.s32.totalorder %s37, 1
        %s700 = scalar_select %p699, %s37, 1
        %s701 = scalar_lea.vmem %s12, %s700
        %p702 = pneg %p377
        %p703 = pneg %p374
        %p704 = pneg %p398
        %p705 = pneg %p395
        %p706 = pneg %p419
        %p707 = pneg %p416
        %p708 = pneg %p445
        %p709 = pneg %p442
        %p710 = scmp.lt.s32.totalorder %s36, 1
        %s711 = scalar_select %p710, %s36, 1
        %s712 = smul.addr %s711, 8
        %s713 = scalar_lea.vmem %s15, %s712
        %p714 = scmp.lt.s32.totalorder %s36, 1
        %s715 = scalar_select %p714, %s36, 1
        %s716 = smul.addr %s715, 8
        %s717 = scalar_lea.vmem %s0, %s716
        %p718 = scmp.lt.s32.totalorder %s37, 1
        %s719 = scalar_select %p718, %s37, 1
        %s720 = scalar_lea.vmem %s1, %s719
        %p721 = scmp.lt.s32.totalorder %s37, 1
        %s722 = scalar_select %p721, %s37, 1
        %s723 = scalar_lea.vmem %s2, %s722
        %p724 = scmp.lt.s32.totalorder %s37, 1
        %s725 = scalar_select %p724, %s37, 1
        %s726 = smul.addr %s725, 48
        %s727 = smul.addr %s726, 4
        %s728 = scalar_lea.vmem %s3, %s727
        %p729 = scmp.lt.s32.totalorder %s37, 1
        %s730 = scalar_select %p729, %s37, 1
        %s731 = smul.addr %s730, 3
        %s732 = scalar_lea.vmem %s4, %s731
        %p733 = scmp.lt.s32.totalorder %s37, 1
        %s734 = scalar_select %p733, %s37, 1
        %s735 = smul.addr %s734, 16
        %s736 = smul.addr %s735, 4
        %s737 = scalar_lea.vmem %s5, %s736
        %p738 = scmp.lt.s32.totalorder %s37, 1
        %s739 = scalar_select %p738, %s37, 1
        %s740 = scalar_lea.vmem %s6, %s739
        %p741 = scmp.lt.s32.totalorder %s37, 1
        %s742 = scalar_select %p741, %s37, 1
        %s743 = smul.addr %s742, 32
        %s744 = smul.addr %s743, 4
        %s745 = scalar_lea.vmem %s9, %s744
        %p746 = scmp.lt.s32.totalorder %s37, 1
        %s747 = scalar_select %p746, %s37, 1
        %s748 = smul.addr %s747, 2
        %s749 = scalar_lea.vmem %s10, %s748
        %p750 = scmp.lt.s32.totalorder %s37, 1
        %s751 = scalar_select %p750, %s37, 1
        %s752 = scalar_lea.vmem %s12, %s751
        %p753 = scmp.lt.s32.totalorder %s36, 1
        %s754 = scalar_select %p753, %s36, 1
        %s755 = smul.addr %s754, 8
        %s756 = scalar_lea.vmem %s15, %s755
        %p758 = scmp.eq.s32.totalorder %s37, 0
        // Predicated region
        $region93: #{_lambda_.2} parent=79 // pred_check
          %p759 = pneg %p758
        $region94: #{_lambda_.2} parent=79 // pred_check_branch
          %761 = sbr.rel (%p759) target = $region96
        $region95: #{_lambda_.2} parent=79 // pred_region
          %v762 = vld [vmem:[%s717] sm:$0x1f]
          %763 = vst [vmem:[#allocation2] sm:$0x1f] %v762
        $region96: #{_lambda_.2} parent=79 // pred_fallthru
          _
        %v764 = vld [vmem:[#allocation2] sm:$0x1f]
        %v765 = vld [vmem:[%s720] sm:$0x1]
        %v766 = vld [vmem:[%s723] sm:$0x1]
        %vm767 = vcmask 1044480
        %v768 = vsel %vm767, %v764, 0.0
        %769 = vadd.xlane.f32.xlu0 %v768
        %v770 = vpop.xlane.xlu0 %769
        %v771 = vrcp.pop 128.0
        %v772 = vmul.f32 %v770, %v771
        %v773 = vsub.f32 %v764, %v772
        %v774 = vmul.f32 %v773, %v773
        %v775 = vsel %vm767, %v774, 0.0
        %776 = vadd.xlane.f32.xlu0 %v775
        %v777 = vpop.xlane.xlu0 %776
        %v778 = vmul.f32 %v777, %v771
        %v779 = vadd.f32 %v778, 1e-06
        %v780 = vrsqrt.pop %v779
        %v781 = vmul.f32 %v773, %v780
        %v783 = vlaneseq
        %v784 = vshrl.u32 %v783, 7
        %v785 = vsub.s32 0, %v784
        %v786 = vrot.slane %v765, %v785
        %v788 = vmul.f32 %v781, %v786
        %v790 = vlaneseq
        %v791 = vshrl.u32 %v790, 7
        %v792 = vsub.s32 0, %v791
        %v793 = vrot.slane %v766, %v792
        %v795 = vadd.f32 %v788, %v793
        %v796 = vld [vmem:[%s728] sm:$0xff]
        %v797 = vld [vmem:[%s728 + $0x8] sm:$0xf]
        %v798 = vld [vmem:[%s728 + $0xc] sm:$0xff]
        %v799 = vld [vmem:[%s728 + $0x14] sm:$0xf]
        %v800 = vld [vmem:[%s728 + $0x18] sm:$0xff]
        %v801 = vld [vmem:[%s728 + $0x20] sm:$0xf]
        %v802 = vld [vmem:[%s728 + $0x24] sm:$0xff]
        %v803 = vld [vmem:[%s728 + $0x2c] sm:$0xf]
        %v804 = vld [vmem:[%s728 + $0x30] sm:$0xff]
        %v805 = vld [vmem:[%s728 + $0x38] sm:$0xf]
        %v806 = vld [vmem:[%s728 + $0x3c] sm:$0xff]
        %v807 = vld [vmem:[%s728 + $0x44] sm:$0xf]
        %v808 = vld [vmem:[%s728 + $0x48] sm:$0xff]
        %v809 = vld [vmem:[%s728 + $0x50] sm:$0xf]
        %v810 = vld [vmem:[%s728 + $0x54] sm:$0xff]
        %v811 = vld [vmem:[%s728 + $0x5c] sm:$0xf]
        %v812 = vld [vmem:[%s728 + $0x60] sm:$0xff]
        %v813 = vld [vmem:[%s728 + $0x68] sm:$0xf]
        %v814 = vld [vmem:[%s728 + $0x6c] sm:$0xff]
        %v815 = vld [vmem:[%s728 + $0x74] sm:$0xf]
        %v816 = vld [vmem:[%s728 + $0x78] sm:$0xff]
        %v817 = vld [vmem:[%s728 + $0x80] sm:$0xf]
        %v818 = vld [vmem:[%s728 + $0x84] sm:$0xff]
        %v819 = vld [vmem:[%s728 + $0x8c] sm:$0xf]
        %v820 = vld [vmem:[%s728 + $0x90] sm:$0xff]
        %v821 = vld [vmem:[%s728 + $0x98] sm:$0xf]
        %v822 = vld [vmem:[%s728 + $0x9c] sm:$0xff]
        %v823 = vld [vmem:[%s728 + $0xa4] sm:$0xf]
        %v824 = vld [vmem:[%s728 + $0xa8] sm:$0xff]
        %v825 = vld [vmem:[%s728 + $0xb0] sm:$0xf]
        %v826 = vld [vmem:[%s728 + $0xb4] sm:$0xff]
        %v827 = vld [vmem:[%s728 + $0xbc] sm:$0xf]
        %v828 = vld [vmem:[%s732] sm:$0x7]
        %v829 = vpack.c.bf16 %v795, %v795
        %v831 = vlaneseq
        %v832 = vshrl.u32 %v831, 7
        %v833 = vsub.s32 0, %v832
        %v834 = vrot.slane %v828, %v833
        %v835 = vlaneseq
        %v836 = vshrl.u32 %v835, 7
        %v837 = vsub.s32 1, %v836
        %v838 = vrot.slane %v828, %v837
        %v839 = vlaneseq
        %v840 = vshrl.u32 %v839, 7
        %v841 = vsub.s32 2, %v840
        %v842 = vrot.slane %v828, %v841
        %v878 = vunpack.c.l.b16 %v796
        %v879 = vunpack.c.h.b16 %v796
        %v880 = vunpack.c.l.b16 %v797
        %v881 = vunpack.c.l.b16 %v798
        %v882 = vunpack.c.h.b16 %v798
        %v883 = vunpack.c.l.b16 %v799
        %v884 = vunpack.c.l.b16 %v800
        %v885 = vunpack.c.h.b16 %v800
        %v886 = vunpack.c.l.b16 %v801
        %v887 = vunpack.c.l.b16 %v802
        %v888 = vunpack.c.h.b16 %v802
        %v889 = vunpack.c.l.b16 %v803
        %v890 = vunpack.c.l.b16 %v804
        %v891 = vunpack.c.h.b16 %v804
        %v892 = vunpack.c.l.b16 %v805
        %v893 = vunpack.c.l.b16 %v806
        %v894 = vunpack.c.h.b16 %v806
        %v895 = vunpack.c.l.b16 %v807
        %v896 = vunpack.c.l.b16 %v808
        %v897 = vunpack.c.h.b16 %v808
        %v898 = vunpack.c.l.b16 %v809
        %v899 = vunpack.c.l.b16 %v810
        %v900 = vunpack.c.h.b16 %v810
        %v901 = vunpack.c.l.b16 %v811
        %v902 = vunpack.c.l.b16 %v812
        %v903 = vunpack.c.h.b16 %v812
        %v904 = vunpack.c.l.b16 %v813
        %v905 = vunpack.c.l.b16 %v814
        %v906 = vunpack.c.h.b16 %v814
        %v907 = vunpack.c.l.b16 %v815
        %v908 = vunpack.c.l.b16 %v816
        %v909 = vunpack.c.h.b16 %v816
        %v910 = vunpack.c.l.b16 %v817
        %v911 = vunpack.c.l.b16 %v818
        %v912 = vunpack.c.h.b16 %v818
        %v913 = vunpack.c.l.b16 %v819
        %v914 = vunpack.c.l.b16 %v820
        %v915 = vunpack.c.h.b16 %v820
        %v916 = vunpack.c.l.b16 %v821
        %v917 = vunpack.c.l.b16 %v822
        %v918 = vunpack.c.h.b16 %v822
        %v919 = vunpack.c.l.b16 %v823
        %v920 = vunpack.c.l.b16 %v824
        %v921 = vunpack.c.h.b16 %v824
        %v922 = vunpack.c.l.b16 %v825
        %v923 = vunpack.c.l.b16 %v826
        %v924 = vunpack.c.h.b16 %v826
        %v925 = vunpack.c.l.b16 %v827
        %v926 = vpack.c.b16 %v881, %v878
        %v927 = vpack.c.b16 %v882, %v879
        %v928 = vpack.c.b16 %v883, %v880
        %v929 = vpack.c.b16 %v887, %v884
        %v930 = vpack.c.b16 %v888, %v885
        %v931 = vpack.c.b16 %v889, %v886
        %v932 = vpack.c.b16 %v893, %v890
        %v933 = vpack.c.b16 %v894, %v891
        %v934 = vpack.c.b16 %v895, %v892
        %v935 = vpack.c.b16 %v899, %v896
        %v936 = vpack.c.b16 %v900, %v897
        %v937 = vpack.c.b16 %v901, %v898
        %v938 = vpack.c.b16 %v905, %v902
        %v939 = vpack.c.b16 %v906, %v903
        %v940 = vpack.c.b16 %v907, %v904
        %v941 = vpack.c.b16 %v911, %v908
        %v942 = vpack.c.b16 %v912, %v909
        %v943 = vpack.c.b16 %v913, %v910
        %v944 = vpack.c.b16 %v917, %v914
        %v945 = vpack.c.b16 %v918, %v915
        %v946 = vpack.c.b16 %v919, %v916
        %v947 = vpack.c.b16 %v923, %v920
        %v948 = vpack.c.b16 %v924, %v921
        %v949 = vpack.c.b16 %v925, %v922
        %974 = vmatprep.subr.bf16.mxu0 %v927
        %975 = vmatpush1.bf16.msra.mxu0 %v926
        %976 = vmatprep.subr.bf16.mxu0 %v930
        %977 = vmatpush1.bf16.msra.mxu0 %v929
        %978 = vmatprep.subr.bf16.mxu0 %v933
        %979 = vmatpush1.bf16.msra.mxu0 %v932
        %980 = vmatprep.subr.bf16.mxu0 %v936
        %981 = vmatpush1.bf16.msra.mxu0 %v935
        %982 = vmatprep.subr.bf16.mxu0 %v939
        %983 = vmatpush1.bf16.msra.mxu0 %v938
        %984 = vmatprep.subr.bf16.mxu0 %v942
        %985 = vmatpush1.bf16.msra.mxu0 %v941
        %986 = vmatprep.subr.bf16.mxu0 %v945
        %987 = vmatpush1.bf16.msra.mxu0 %v944
        %988 = vmatprep.subr.bf16.mxu0 %v948
        %989 = vmatpush1.bf16.msra.mxu0 %v947
        %990 = vmatprep.subr.bf16.mxu0 0
        %991 = vmatpush1.bf16.msra.mxu0 0
        %992 = vmatprep.subr.bf16.mxu0 0
        %993 = vmatpush1.bf16.msra.mxu0 0
        %994 = vmatprep.subr.bf16.mxu0 0
        %995 = vmatpush1.bf16.msra.mxu0 0
        %996 = vmatprep.subr.bf16.mxu0 0
        %997 = vmatpush1.bf16.msra.mxu0 0
        %998 = vmatprep.subr.bf16.mxu0 0
        %999 = vmatpush1.bf16.msra.mxu0 0
        %1000 = vmatprep.subr.bf16.mxu0 0
        %1001 = vmatpush1.bf16.msra.mxu0 0
        %1002 = vmatprep.subr.bf16.mxu0 0
        %1003 = vmatpush1.bf16.msra.mxu0 0
        %1004 = vmatprep.subr.bf16.mxu0 0
        %1005 = vmatpush1.bf16.msra.mxu0 0
        %1006 = vmatprep.mubr.bf16.mxu0 0
        %1007 = vmatmul.mubr.bf16.gmra.mrb[0].mxu0 %v829
        %v1008 = vpop.f32.mrb[0].mxu0
        %v1009 = vadd.f32 %v834, %v1008
        %v1010 = vpop.f32.mrb[0].mxu0
        %v1011 = vadd.f32 %v838, %v1010
        %v1012 = vpop.f32.mrb[0].mxu0
        %v1013 = vpop.f32.mrb[0].mxu0
        %1014 = vdwg.mxu0
        %1015 = vmatprep.subr.bf16.mxu0 0
        %1016 = vmatpush1.bf16.msra.mxu0 %v928
        %1017 = vmatprep.subr.bf16.mxu0 0
        %1018 = vmatpush1.bf16.msra.mxu0 %v931
        %1019 = vmatprep.subr.bf16.mxu0 0
        %1020 = vmatpush1.bf16.msra.mxu0 %v934
        %1021 = vmatprep.subr.bf16.mxu0 0
        %1022 = vmatpush1.bf16.msra.mxu0 %v937
        %1023 = vmatprep.subr.bf16.mxu0 0
        %1024 = vmatpush1.bf16.msra.mxu0 %v940
        %1025 = vmatprep.subr.bf16.mxu0 0
        %1026 = vmatpush1.bf16.msra.mxu0 %v943
        %1027 = vmatprep.subr.bf16.mxu0 0
        %1028 = vmatpush1.bf16.msra.mxu0 %v946
        %1029 = vmatprep.subr.bf16.mxu0 0
        %1030 = vmatpush1.bf16.msra.mxu0 %v949
        %1031 = vmatprep.subr.bf16.mxu0 0
        %1032 = vmatpush1.bf16.msra.mxu0 0
        %1033 = vmatprep.subr.bf16.mxu0 0
        %1034 = vmatpush1.bf16.msra.mxu0 0
        %1035 = vmatprep.subr.bf16.mxu0 0
        %1036 = vmatpush1.bf16.msra.mxu0 0
        %1037 = vmatprep.subr.bf16.mxu0 0
        %1038 = vmatpush1.bf16.msra.mxu0 0
        %1039 = vmatprep.subr.bf16.mxu0 0
        %1040 = vmatpush1.bf16.msra.mxu0 0
        %1041 = vmatprep.subr.bf16.mxu0 0
        %1042 = vmatpush1.bf16.msra.mxu0 0
        %1043 = vmatprep.subr.bf16.mxu0 0
        %1044 = vmatpush1.bf16.msra.mxu0 0
        %1045 = vmatprep.subr.bf16.mxu0 0
        %1046 = vmatpush1.bf16.msra.mxu0 0
        %1047 = vmatprep.mubr.bf16.mxu0 0
        %1048 = vmatmul.mubr.bf16.gmra.mrb[0].mxu0 %v829
        %v1049 = vpop.f32.mrb[0].mxu0
        %v1050 = vadd.f32 %v842, %v1049
        %v1051 = vpop.f32.mrb[0].mxu0
        %v1052 = vpop.f32.mrb[0].mxu0
        %v1053 = vpop.f32.mrb[0].mxu0
        %1054 = vdwg.mxu0
        %v1055 = vpack.c.bf16 %v1009, %v1009
        %v1056 = vpack.c.bf16 %v1011, %v1011
        %v1057 = vpack.c.bf16 %v1050, %v1050
        %vm1058 = vcmask 261120
        %v1060 = vsel %vm1058, %v1055, 0
        %v1063 = vsel %vm1058, %v1056, 0
        %1065 = vmatprep.subr.bf16.mxu0 0
        %1066 = vmatpush1.bf16.xpose.msra.mxu0 %v1063
        %1067 = vmatprep.subr.bf16.mxu0 0
        %1068 = vmatpush1.bf16.xpose.msra.mxu0 0
        %1069 = vmatprep.subr.bf16.mxu0 0
        %1070 = vmatpush1.bf16.xpose.msra.mxu0 0
        %1071 = vmatprep.subr.bf16.mxu0 0
        %1072 = vmatpush1.bf16.xpose.msra.mxu0 0
        %1073 = vmatprep.subr.bf16.mxu0 0
        %1074 = vmatpush1.bf16.xpose.msra.mxu0 0
        %1075 = vmatprep.subr.bf16.mxu0 0
        %1076 = vmatpush1.bf16.xpose.msra.mxu0 0
        %1077 = vmatprep.subr.bf16.mxu0 0
        %1078 = vmatpush1.bf16.xpose.msra.mxu0 0
        %1079 = vmatprep.subr.bf16.mxu0 0
        %1080 = vmatpush1.bf16.xpose.msra.mxu0 0
        %1081 = vmatprep.subr.bf16.mxu0 0
        %1082 = vmatpush1.bf16.xpose.msra.mxu0 0
        %1083 = vmatprep.subr.bf16.mxu0 0
        %1084 = vmatpush1.bf16.xpose.msra.mxu0 0
        %1085 = vmatprep.subr.bf16.mxu0 0
        %1086 = vmatpush1.bf16.xpose.msra.mxu0 0
        %1087 = vmatprep.subr.bf16.mxu0 0
        %1088 = vmatpush1.bf16.xpose.msra.mxu0 0
        %1089 = vmatprep.subr.bf16.mxu0 0
        %1090 = vmatpush1.bf16.xpose.msra.mxu0 0
        %1091 = vmatprep.subr.bf16.mxu0 0
        %1092 = vmatpush1.bf16.xpose.msra.mxu0 0
        %1093 = vmatprep.subr.bf16.mxu0 0
        %1094 = vmatpush1.bf16.xpose.msra.mxu0 0
        %1095 = vmatprep.subr.bf16.mxu0 0
        %1096 = vmatpush1.bf16.xpose.msra.mxu0 0
        %1097 = vmatprep.mubr.bf16.mxu0 0
        %1098 = vmatmul.mubr.bf16.gmra.mrb[0].mxu0 %v1060
        %v1099 = vpop.f32.mrb[0].mxu0
        %v1100 = vadd.f32 0.0, %v1099
        %v1101 = vpop.f32.mrb[0].mxu0
        %v1102 = vpop.f32.mrb[0].mxu0
        %v1103 = vpop.f32.mrb[0].mxu0
        %1104 = vdwg.mxu0
        %vm1105 = vcmask 36864
        %v1106 = vsel %vm1105, %v1100, -inf
        %1107 = vmax.xlane.f32.xlu0 %v1106
        %v1108 = vpop.xlane.xlu0 %1107
        %v1109 = vsub.f32 %v1100, %v1108
        %v1110 = vmul.f32 %v1109, 1.442695
        %v1111 = vpow.pop %v1110
        %v1112 = vsel %vm1105, %v1111, 0.0
        %1113 = vadd.xlane.f32.xlu0 %v1112
        %v1114 = vpop.xlane.xlu0 %1113
        %v1115 = vrcp.pop %v1114
        %v1116 = vmul.f32 %v1111, %v1115
        %v1117 = vpack.c.bf16 %v1116, %v1116
        %vm1118 = vcmask 39936
        %v1120 = vsel %vm1118, %v1117, 0
        %vm1122 = vcmask 1041408
        %vm1123 = vcmask 1042432
        %v1124 = vsel %vm1122, 4294967295, 65535
        %v1125 = vsel %vm1123, %v1124, 0
        %v1127 = vand.u32 %v1057, %v1125
        %1129 = vmatprep.subr.bf16.mxu0 0
        %1130 = vmatpush1.bf16.msra.mxu0 %v1127
        %1131 = vmatprep.subr.bf16.mxu0 0
        %1132 = vmatpush1.bf16.msra.mxu0 0
        %1133 = vmatprep.subr.bf16.mxu0 0
        %1134 = vmatpush1.bf16.msra.mxu0 0
        %1135 = vmatprep.subr.bf16.mxu0 0
        %1136 = vmatpush1.bf16.msra.mxu0 0
        %1137 = vmatprep.subr.bf16.mxu0 0
        %1138 = vmatpush1.bf16.msra.mxu0 0
        %1139 = vmatprep.subr.bf16.mxu0 0
        %1140 = vmatpush1.bf16.msra.mxu0 0
        %1141 = vmatprep.subr.bf16.mxu0 0
        %1142 = vmatpush1.bf16.msra.mxu0 0
        %1143 = vmatprep.subr.bf16.mxu0 0
        %1144 = vmatpush1.bf16.msra.mxu0 0
        %1145 = vmatprep.subr.bf16.mxu0 0
        %1146 = vmatpush1.bf16.msra.mxu0 0
        %1147 = vmatprep.subr.bf16.mxu0 0
        %1148 = vmatpush1.bf16.msra.mxu0 0
        %1149 = vmatprep.subr.bf16.mxu0 0
        %1150 = vmatpush1.bf16.msra.mxu0 0
        %1151 = vmatprep.subr.bf16.mxu0 0
        %1152 = vmatpush1.bf16.msra.mxu0 0
        %1153 = vmatprep.subr.bf16.mxu0 0
        %1154 = vmatpush1.bf16.msra.mxu0 0
        %1155 = vmatprep.subr.bf16.mxu0 0
        %1156 = vmatpush1.bf16.msra.mxu0 0
        %1157 = vmatprep.subr.bf16.mxu0 0
        %1158 = vmatpush1.bf16.msra.mxu0 0
        %1159 = vmatprep.subr.bf16.mxu0 0
        %1160 = vmatpush1.bf16.msra.mxu0 0
        %1161 = vmatprep.mubr.bf16.mxu0 0
        %1162 = vmatmul.mubr.bf16.gmra.mrb[0].mxu0 %v1120
        %v1163 = vpop.f32.mrb[0].mxu0
        %v1164 = vadd.f32 0.0, %v1163
        %v1165 = vpop.f32.mrb[0].mxu0
        %v1166 = vpop.f32.mrb[0].mxu0
        %v1167 = vpop.f32.mrb[0].mxu0
        %1168 = vdwg.mxu0
        %1170 = vrot.lane.b32.xlu0 %v1055, 96
        %v1171 = vpop.permute.xlu0 %1170
        %1173 = vrot.lane.b32.xlu0 %v1056, 96
        %v1174 = vpop.permute.xlu0 %1173
        %v1176 = vsel %vm1058, %v1171, 0
        %v1179 = vsel %vm1058, %v1174, 0
        %1181 = vmatprep.subr.bf16.mxu0 0
        %1182 = vmatpush1.bf16.xpose.msra.mxu0 %v1179
        %1183 = vmatprep.subr.bf16.mxu0 0
        %1184 = vmatpush1.bf16.xpose.msra.mxu0 0
        %1185 = vmatprep.subr.bf16.mxu0 0
        %1186 = vmatpush1.bf16.xpose.msra.mxu0 0
        %1187 = vmatprep.subr.bf16.mxu0 0
        %1188 = vmatpush1.bf16.xpose.msra.mxu0 0
        %1189 = vmatprep.subr.bf16.mxu0 0
        %1190 = vmatpush1.bf16.xpose.msra.mxu0 0
        %1191 = vmatprep.subr.bf16.mxu0 0
        %1192 = vmatpush1.bf16.xpose.msra.mxu0 0
        %1193 = vmatprep.subr.bf16.mxu0 0
        %1194 = vmatpush1.bf16.xpose.msra.mxu0 0
        %1195 = vmatprep.subr.bf16.mxu0 0
        %1196 = vmatpush1.bf16.xpose.msra.mxu0 0
        %1197 = vmatprep.subr.bf16.mxu0 0
        %1198 = vmatpush1.bf16.xpose.msra.mxu0 0
        %1199 = vmatprep.subr.bf16.mxu0 0
        %1200 = vmatpush1.bf16.xpose.msra.mxu0 0
        %1201 = vmatprep.subr.bf16.mxu0 0
        %1202 = vmatpush1.bf16.xpose.msra.mxu0 0
        %1203 = vmatprep.subr.bf16.mxu0 0
        %1204 = vmatpush1.bf16.xpose.msra.mxu0 0
        %1205 = vmatprep.subr.bf16.mxu0 0
        %1206 = vmatpush1.bf16.xpose.msra.mxu0 0
        %1207 = vmatprep.subr.bf16.mxu0 0
        %1208 = vmatpush1.bf16.xpose.msra.mxu0 0
        %1209 = vmatprep.subr.bf16.mxu0 0
        %1210 = vmatpush1.bf16.xpose.msra.mxu0 0
        %1211 = vmatprep.subr.bf16.mxu0 0
        %1212 = vmatpush1.bf16.xpose.msra.mxu0 0
        %1213 = vmatprep.mubr.bf16.mxu0 0
        %1214 = vmatmul.mubr.bf16.gmra.mrb[0].mxu0 %v1176
        %v1215 = vpop.f32.mrb[0].mxu0
        %v1216 = vadd.f32 0.0, %v1215
        %v1217 = vpop.f32.mrb[0].mxu0
        %v1218 = vpop.f32.mrb[0].mxu0
        %v1219 = vpop.f32.mrb[0].mxu0
        %1220 = vdwg.mxu0
        %v1221 = vsel %vm1105, %v1216, -inf
        %1222 = vmax.xlane.f32.xlu0 %v1221
        %v1223 = vpop.xlane.xlu0 %1222
        %v1224 = vsub.f32 %v1216, %v1223
        %v1225 = vmul.f32 %v1224, 1.442695
        %v1226 = vpow.pop %v1225
        %v1227 = vsel %vm1105, %v1226, 0.0
        %1228 = vadd.xlane.f32.xlu0 %v1227
        %v1229 = vpop.xlane.xlu0 %1228
        %v1230 = vrcp.pop %v1229
        %v1231 = vmul.f32 %v1226, %v1230
        %v1232 = vpack.c.bf16 %v1231, %v1231
        %1234 = vrot.lane.b32.xlu0 %v1057, 96
        %v1235 = vpop.permute.xlu0 %1234
        %v1237 = vsel %vm1118, %v1232, 0
        %v1240 = vand.u32 %v1235, %v1125
        %1242 = vmatprep.subr.bf16.mxu0 0
        %1243 = vmatpush1.bf16.msra.mxu0 %v1240
        %1244 = vmatprep.subr.bf16.mxu0 0
        %1245 = vmatpush1.bf16.msra.mxu0 0
        %1246 = vmatprep.subr.bf16.mxu0 0
        %1247 = vmatpush1.bf16.msra.mxu0 0
        %1248 = vmatprep.subr.bf16.mxu0 0
        %1249 = vmatpush1.bf16.msra.mxu0 0
        %1250 = vmatprep.subr.bf16.mxu0 0
        %1251 = vmatpush1.bf16.msra.mxu0 0
        %1252 = vmatprep.subr.bf16.mxu0 0
        %1253 = vmatpush1.bf16.msra.mxu0 0
        %1254 = vmatprep.subr.bf16.mxu0 0
        %1255 = vmatpush1.bf16.msra.mxu0 0
        %1256 = vmatprep.subr.bf16.mxu0 0
        %1257 = vmatpush1.bf16.msra.mxu0 0
        %1258 = vmatprep.subr.bf16.mxu0 0
        %1259 = vmatpush1.bf16.msra.mxu0 0
        %1260 = vmatprep.subr.bf16.mxu0 0
        %1261 = vmatpush1.bf16.msra.mxu0 0
        %1262 = vmatprep.subr.bf16.mxu0 0
        %1263 = vmatpush1.bf16.msra.mxu0 0
        %1264 = vmatprep.subr.bf16.mxu0 0
        %1265 = vmatpush1.bf16.msra.mxu0 0
        %1266 = vmatprep.subr.bf16.mxu0 0
        %1267 = vmatpush1.bf16.msra.mxu0 0
        %1268 = vmatprep.subr.bf16.mxu0 0
        %1269 = vmatpush1.bf16.msra.mxu0 0
        %1270 = vmatprep.subr.bf16.mxu0 0
        %1271 = vmatpush1.bf16.msra.mxu0 0
        %1272 = vmatprep.subr.bf16.mxu0 0
        %1273 = vmatpush1.bf16.msra.mxu0 0
        %1274 = vmatprep.mubr.bf16.mxu0 0
        %1275 = vmatmul.mubr.bf16.gmra.mrb[0].mxu0 %v1237
        %v1276 = vpop.f32.mrb[0].mxu0
        %v1277 = vadd.f32 0.0, %v1276
        %v1278 = vpop.f32.mrb[0].mxu0
        %v1279 = vpop.f32.mrb[0].mxu0
        %v1280 = vpop.f32.mrb[0].mxu0
        %1281 = vdwg.mxu0
        %1282 = vrot.lane.b32.xlu0 %v1055, 64
        %v1283 = vpop.permute.xlu0 %1282
        %1284 = vrot.lane.b32.xlu0 %v1056, 64
        %v1285 = vpop.permute.xlu0 %1284
        %v1287 = vsel %vm1058, %v1283, 0
        %v1290 = vsel %vm1058, %v1285, 0
        %1292 = vmatprep.subr.bf16.mxu0 0
        %1293 = vmatpush1.bf16.xpose.msra.mxu0 %v1290
        %1294 = vmatprep.subr.bf16.mxu0 0
        %1295 = vmatpush1.bf16.xpose.msra.mxu0 0
        %1296 = vmatprep.subr.bf16.mxu0 0
        %1297 = vmatpush1.bf16.xpose.msra.mxu0 0
        %1298 = vmatprep.subr.bf16.mxu0 0
        %1299 = vmatpush1.bf16.xpose.msra.mxu0 0
        %1300 = vmatprep.subr.bf16.mxu0 0
        %1301 = vmatpush1.bf16.xpose.msra.mxu0 0
        %1302 = vmatprep.subr.bf16.mxu0 0
        %1303 = vmatpush1.bf16.xpose.msra.mxu0 0
        %1304 = vmatprep.subr.bf16.mxu0 0
        %1305 = vmatpush1.bf16.xpose.msra.mxu0 0
        %1306 = vmatprep.subr.bf16.mxu0 0
        %1307 = vmatpush1.bf16.xpose.msra.mxu0 0
        %1308 = vmatprep.subr.bf16.mxu0 0
        %1309 = vmatpush1.bf16.xpose.msra.mxu0 0
        %1310 = vmatprep.subr.bf16.mxu0 0
        %1311 = vmatpush1.bf16.xpose.msra.mxu0 0
        %1312 = vmatprep.subr.bf16.mxu0 0
        %1313 = vmatpush1.bf16.xpose.msra.mxu0 0
        %1314 = vmatprep.subr.bf16.mxu0 0
        %1315 = vmatpush1.bf16.xpose.msra.mxu0 0
        %1316 = vmatprep.subr.bf16.mxu0 0
        %1317 = vmatpush1.bf16.xpose.msra.mxu0 0
        %1318 = vmatprep.subr.bf16.mxu0 0
        %1319 = vmatpush1.bf16.xpose.msra.mxu0 0
        %1320 = vmatprep.subr.bf16.mxu0 0
        %1321 = vmatpush1.bf16.xpose.msra.mxu0 0
        %1322 = vmatprep.subr.bf16.mxu0 0
        %1323 = vmatpush1.bf16.xpose.msra.mxu0 0
        %1324 = vmatprep.mubr.bf16.mxu0 0
        %1325 = vmatmul.mubr.bf16.gmra.mrb[0].mxu0 %v1287
        %v1326 = vpop.f32.mrb[0].mxu0
        %v1327 = vadd.f32 0.0, %v1326
        %v1328 = vpop.f32.mrb[0].mxu0
        %v1329 = vpop.f32.mrb[0].mxu0
        %v1330 = vpop.f32.mrb[0].mxu0
        %1331 = vdwg.mxu0
        %v1332 = vsel %vm1105, %v1327, -inf
        %1333 = vmax.xlane.f32.xlu0 %v1332
        %v1334 = vpop.xlane.xlu0 %1333
        %v1335 = vsub.f32 %v1327, %v1334
        %v1336 = vmul.f32 %v1335, 1.442695
        %v1337 = vpow.pop %v1336
        %v1338 = vsel %vm1105, %v1337, 0.0
        %1339 = vadd.xlane.f32.xlu0 %v1338
        %v1340 = vpop.xlane.xlu0 %1339
        %v1341 = vrcp.pop %v1340
        %v1342 = vmul.f32 %v1337, %v1341
        %v1343 = vpack.c.bf16 %v1342, %v1342
        %1344 = vrot.lane.b32.xlu0 %v1057, 64
        %v1345 = vpop.permute.xlu0 %1344
        %v1347 = vsel %vm1118, %v1343, 0
        %v1350 = vand.u32 %v1345, %v1125
        %1352 = vmatprep.subr.bf16.mxu0 0
        %1353 = vmatpush1.bf16.msra.mxu0 %v1350
        %1354 = vmatprep.subr.bf16.mxu0 0
        %1355 = vmatpush1.bf16.msra.mxu0 0
        %1356 = vmatprep.subr.bf16.mxu0 0
        %1357 = vmatpush1.bf16.msra.mxu0 0
        %1358 = vmatprep.subr.bf16.mxu0 0
        %1359 = vmatpush1.bf16.msra.mxu0 0
        %1360 = vmatprep.subr.bf16.mxu0 0
        %1361 = vmatpush1.bf16.msra.mxu0 0
        %1362 = vmatprep.subr.bf16.mxu0 0
        %1363 = vmatpush1.bf16.msra.mxu0 0
        %1364 = vmatprep.subr.bf16.mxu0 0
        %1365 = vmatpush1.bf16.msra.mxu0 0
        %1366 = vmatprep.subr.bf16.mxu0 0
        %1367 = vmatpush1.bf16.msra.mxu0 0
        %1368 = vmatprep.subr.bf16.mxu0 0
        %1369 = vmatpush1.bf16.msra.mxu0 0
        %1370 = vmatprep.subr.bf16.mxu0 0
        %1371 = vmatpush1.bf16.msra.mxu0 0
        %1372 = vmatprep.subr.bf16.mxu0 0
        %1373 = vmatpush1.bf16.msra.mxu0 0
        %1374 = vmatprep.subr.bf16.mxu0 0
        %1375 = vmatpush1.bf16.msra.mxu0 0
        %1376 = vmatprep.subr.bf16.mxu0 0
        %1377 = vmatpush1.bf16.msra.mxu0 0
        %1378 = vmatprep.subr.bf16.mxu0 0
        %1379 = vmatpush1.bf16.msra.mxu0 0
        %1380 = vmatprep.subr.bf16.mxu0 0
        %1381 = vmatpush1.bf16.msra.mxu0 0
        %1382 = vmatprep.subr.bf16.mxu0 0
        %1383 = vmatpush1.bf16.msra.mxu0 0
        %1384 = vmatprep.mubr.bf16.mxu0 0
        %1385 = vmatmul.mubr.bf16.gmra.mrb[0].mxu0 %v1347
        %v1386 = vpop.f32.mrb[0].mxu0
        %v1387 = vadd.f32 0.0, %v1386
        %v1388 = vpop.f32.mrb[0].mxu0
        %v1389 = vpop.f32.mrb[0].mxu0
        %v1390 = vpop.f32.mrb[0].mxu0
        %1391 = vdwg.mxu0
        %1392 = vrot.lane.b32.xlu0 %v1055, 32
        %v1393 = vpop.permute.xlu0 %1392
        %1394 = vrot.lane.b32.xlu0 %v1056, 32
        %v1395 = vpop.permute.xlu0 %1394
        %v1397 = vsel %vm1058, %v1393, 0
        %v1400 = vsel %vm1058, %v1395, 0
        %1402 = vmatprep.subr.bf16.mxu0 0
        %1403 = vmatpush1.bf16.xpose.msra.mxu0 %v1400
        %1404 = vmatprep.subr.bf16.mxu0 0
        %1405 = vmatpush1.bf16.xpose.msra.mxu0 0
        %1406 = vmatprep.subr.bf16.mxu0 0
        %1407 = vmatpush1.bf16.xpose.msra.mxu0 0
        %1408 = vmatprep.subr.bf16.mxu0 0
        %1409 = vmatpush1.bf16.xpose.msra.mxu0 0
        %1410 = vmatprep.subr.bf16.mxu0 0
        %1411 = vmatpush1.bf16.xpose.msra.mxu0 0
        %1412 = vmatprep.subr.bf16.mxu0 0
        %1413 = vmatpush1.bf16.xpose.msra.mxu0 0
        %1414 = vmatprep.subr.bf16.mxu0 0
        %1415 = vmatpush1.bf16.xpose.msra.mxu0 0
        %1416 = vmatprep.subr.bf16.mxu0 0
        %1417 = vmatpush1.bf16.xpose.msra.mxu0 0
        %1418 = vmatprep.subr.bf16.mxu0 0
        %1419 = vmatpush1.bf16.xpose.msra.mxu0 0
        %1420 = vmatprep.subr.bf16.mxu0 0
        %1421 = vmatpush1.bf16.xpose.msra.mxu0 0
        %1422 = vmatprep.subr.bf16.mxu0 0
        %1423 = vmatpush1.bf16.xpose.msra.mxu0 0
        %1424 = vmatprep.subr.bf16.mxu0 0
        %1425 = vmatpush1.bf16.xpose.msra.mxu0 0
        %1426 = vmatprep.subr.bf16.mxu0 0
        %1427 = vmatpush1.bf16.xpose.msra.mxu0 0
        %1428 = vmatprep.subr.bf16.mxu0 0
        %1429 = vmatpush1.bf16.xpose.msra.mxu0 0
        %1430 = vmatprep.subr.bf16.mxu0 0
        %1431 = vmatpush1.bf16.xpose.msra.mxu0 0
        %1432 = vmatprep.subr.bf16.mxu0 0
        %1433 = vmatpush1.bf16.xpose.msra.mxu0 0
        %1434 = vmatprep.mubr.bf16.mxu0 0
        %1435 = vmatmul.mubr.bf16.gmra.mrb[0].mxu0 %v1397
        %v1436 = vpop.f32.mrb[0].mxu0
        %v1437 = vadd.f32 0.0, %v1436
        %v1438 = vpop.f32.mrb[0].mxu0
        %v1439 = vpop.f32.mrb[0].mxu0
        %v1440 = vpop.f32.mrb[0].mxu0
        %1441 = vdwg.mxu0
        %v1442 = vsel %vm1105, %v1437, -inf
        %1443 = vmax.xlane.f32.xlu0 %v1442
        %v1444 = vpop.xlane.xlu0 %1443
        %v1445 = vsub.f32 %v1437, %v1444
        %v1446 = vmul.f32 %v1445, 1.442695
        %v1447 = vpow.pop %v1446
        %v1448 = vsel %vm1105, %v1447, 0.0
        %1449 = vadd.xlane.f32.xlu0 %v1448
        %v1450 = vpop.xlane.xlu0 %1449
        %v1451 = vrcp.pop %v1450
        %v1452 = vmul.f32 %v1447, %v1451
        %v1453 = vpack.c.bf16 %v1452, %v1452
        %1454 = vrot.lane.b32.xlu0 %v1057, 32
        %v1455 = vpop.permute.xlu0 %1454
        %v1457 = vsel %vm1118, %v1453, 0
        %v1460 = vand.u32 %v1455, %v1125
        %1462 = vmatprep.subr.bf16.mxu0 0
        %1463 = vmatpush1.bf16.msra.mxu0 %v1460
        %1464 = vmatprep.subr.bf16.mxu0 0
        %1465 = vmatpush1.bf16.msra.mxu0 0
        %1466 = vmatprep.subr.bf16.mxu0 0
        %1467 = vmatpush1.bf16.msra.mxu0 0
        %1468 = vmatprep.subr.bf16.mxu0 0
        %1469 = vmatpush1.bf16.msra.mxu0 0
        %1470 = vmatprep.subr.bf16.mxu0 0
        %1471 = vmatpush1.bf16.msra.mxu0 0
        %1472 = vmatprep.subr.bf16.mxu0 0
        %1473 = vmatpush1.bf16.msra.mxu0 0
        %1474 = vmatprep.subr.bf16.mxu0 0
        %1475 = vmatpush1.bf16.msra.mxu0 0
        %1476 = vmatprep.subr.bf16.mxu0 0
        %1477 = vmatpush1.bf16.msra.mxu0 0
        %1478 = vmatprep.subr.bf16.mxu0 0
        %1479 = vmatpush1.bf16.msra.mxu0 0
        %1480 = vmatprep.subr.bf16.mxu0 0
        %1481 = vmatpush1.bf16.msra.mxu0 0
        %1482 = vmatprep.subr.bf16.mxu0 0
        %1483 = vmatpush1.bf16.msra.mxu0 0
        %1484 = vmatprep.subr.bf16.mxu0 0
        %1485 = vmatpush1.bf16.msra.mxu0 0
        %1486 = vmatprep.subr.bf16.mxu0 0
        %1487 = vmatpush1.bf16.msra.mxu0 0
        %1488 = vmatprep.subr.bf16.mxu0 0
        %1489 = vmatpush1.bf16.msra.mxu0 0
        %1490 = vmatprep.subr.bf16.mxu0 0
        %1491 = vmatpush1.bf16.msra.mxu0 0
        %1492 = vmatprep.subr.bf16.mxu0 0
        %1493 = vmatpush1.bf16.msra.mxu0 0
        %1494 = vmatprep.mubr.bf16.mxu0 0
        %1495 = vmatmul.mubr.bf16.gmra.mrb[0].mxu0 %v1457
        %v1496 = vpop.f32.mrb[0].mxu0
        %v1497 = vadd.f32 0.0, %v1496
        %v1498 = vpop.f32.mrb[0].mxu0
        %v1499 = vpop.f32.mrb[0].mxu0
        %v1500 = vpop.f32.mrb[0].mxu0
        %1501 = vdwg.mxu0
        %1503 = vrot.lane.b32.xlu0 %v1277, 32
        %v1504 = vpop.permute.xlu0 %1503
        %1507 = vrot.lane.b32.xlu0 %v1387, 64
        %v1508 = vpop.permute.xlu0 %1507
        %1511 = vrot.lane.b32.xlu0 %v1497, 96
        %v1512 = vpop.permute.xlu0 %1511
        %v1514 = vsel %vm1058, %v1164, %v1504
        %vm1515 = vcmask 523264
        %v1516 = vsel %vm1515, %v1514, %v1508
        %vm1517 = vcmask 785408
        %v1518 = vsel %vm1517, %v1516, %v1512
        %v1519 = vld [vmem:[%s737] sm:$0xf]
        %v1520 = vld [vmem:[%s737 + $0x4] sm:$0xf]
        %v1521 = vld [vmem:[%s737 + $0x8] sm:$0xf]
        %v1522 = vld [vmem:[%s737 + $0xc] sm:$0xf]
        %v1523 = vld [vmem:[%s737 + $0x10] sm:$0xf]
        %v1524 = vld [vmem:[%s737 + $0x14] sm:$0xf]
        %v1525 = vld [vmem:[%s737 + $0x18] sm:$0xf]
        %v1526 = vld [vmem:[%s737 + $0x1c] sm:$0xf]
        %v1527 = vld [vmem:[%s737 + $0x20] sm:$0xf]
        %v1528 = vld [vmem:[%s737 + $0x24] sm:$0xf]
        %v1529 = vld [vmem:[%s737 + $0x28] sm:$0xf]
        %v1530 = vld [vmem:[%s737 + $0x2c] sm:$0xf]
        %v1531 = vld [vmem:[%s737 + $0x30] sm:$0xf]
        %v1532 = vld [vmem:[%s737 + $0x34] sm:$0xf]
        %v1533 = vld [vmem:[%s737 + $0x38] sm:$0xf]
        %v1534 = vld [vmem:[%s737 + $0x3c] sm:$0xf]
        %v1535 = vld [vmem:[%s740] sm:$0x1]
        %v1536 = vpack.c.bf16 %v1518, %v1518
        %v1538 = vlaneseq
        %v1539 = vshrl.u32 %v1538, 7
        %v1540 = vsub.s32 0, %v1539
        %v1541 = vrot.slane %v1535, %v1540
        %v1559 = vunpack.c.l.b16 %v1519
        %v1560 = vunpack.c.l.b16 %v1520
        %v1561 = vunpack.c.l.b16 %v1521
        %v1562 = vunpack.c.l.b16 %v1522
        %v1563 = vunpack.c.l.b16 %v1523
        %v1564 = vunpack.c.l.b16 %v1524
        %v1565 = vunpack.c.l.b16 %v1525
        %v1566 = vunpack.c.l.b16 %v1526
        %v1567 = vunpack.c.l.b16 %v1527
        %v1568 = vunpack.c.l.b16 %v1528
        %v1569 = vunpack.c.l.b16 %v1529
        %v1570 = vunpack.c.l.b16 %v1530
        %v1571 = vunpack.c.l.b16 %v1531
        %v1572 = vunpack.c.l.b16 %v1532
        %v1573 = vunpack.c.l.b16 %v1533
        %v1574 = vunpack.c.l.b16 %v1534
        %v1575 = vpack.c.b16 %v1560, %v1559
        %v1576 = vpack.c.b16 %v1562, %v1561
        %v1577 = vpack.c.b16 %v1564, %v1563
        %v1578 = vpack.c.b16 %v1566, %v1565
        %v1579 = vpack.c.b16 %v1568, %v1567
        %v1580 = vpack.c.b16 %v1570, %v1569
        %v1581 = vpack.c.b16 %v1572, %v1571
        %v1582 = vpack.c.b16 %v1574, %v1573
        %1591 = vmatprep.subr.bf16.mxu0 0
        %1592 = vmatpush1.bf16.msra.mxu0 %v1575
        %1593 = vmatprep.subr.bf16.mxu0 0
        %1594 = vmatpush1.bf16.msra.mxu0 %v1576
        %1595 = vmatprep.subr.bf16.mxu0 0
        %1596 = vmatpush1.bf16.msra.mxu0 %v1577
        %1597 = vmatprep.subr.bf16.mxu0 0
        %1598 = vmatpush1.bf16.msra.mxu0 %v1578
        %1599 = vmatprep.subr.bf16.mxu0 0
        %1600 = vmatpush1.bf16.msra.mxu0 %v1579
        %1601 = vmatprep.subr.bf16.mxu0 0
        %1602 = vmatpush1.bf16.msra.mxu0 %v1580
        %1603 = vmatprep.subr.bf16.mxu0 0
        %1604 = vmatpush1.bf16.msra.mxu0 %v1581
        %1605 = vmatprep.subr.bf16.mxu0 0
        %1606 = vmatpush1.bf16.msra.mxu0 %v1582
        %1607 = vmatprep.subr.bf16.mxu0 0
        %1608 = vmatpush1.bf16.msra.mxu0 0
        %1609 = vmatprep.subr.bf16.mxu0 0
        %1610 = vmatpush1.bf16.msra.mxu0 0
        %1611 = vmatprep.subr.bf16.mxu0 0
        %1612 = vmatpush1.bf16.msra.mxu0 0
        %1613 = vmatprep.subr.bf16.mxu0 0
        %1614 = vmatpush1.bf16.msra.mxu0 0
        %1615 = vmatprep.subr.bf16.mxu0 0
        %1616 = vmatpush1.bf16.msra.mxu0 0
        %1617 = vmatprep.subr.bf16.mxu0 0
        %1618 = vmatpush1.bf16.msra.mxu0 0
        %1619 = vmatprep.subr.bf16.mxu0 0
        %1620 = vmatpush1.bf16.msra.mxu0 0
        %1621 = vmatprep.subr.bf16.mxu0 0
        %1622 = vmatpush1.bf16.msra.mxu0 0
        %1623 = vmatprep.mubr.bf16.mxu0 0
        %1624 = vmatmul.mubr.bf16.gmra.mrb[0].mxu0 %v1536
        %v1625 = vpop.f32.mrb[0].mxu0
        %v1626 = vadd.f32 %v1541, %v1625
        %v1627 = vpop.f32.mrb[0].mxu0
        %v1628 = vpop.f32.mrb[0].mxu0
        %v1629 = vpop.f32.mrb[0].mxu0
        %1630 = vdwg.mxu0
        %v1631 = vadd.f32 %v764, %v1626
        %v1632 = vld [vmem:[%s604] sm:$0x1]
        %v1633 = vld [vmem:[%s612] sm:$0x1]
        %v1634 = vsel %vm767, %v1631, 0.0
        %1635 = vadd.xlane.f32.xlu0 %v1634
        %v1636 = vpop.xlane.xlu0 %1635
        %v1637 = vmul.f32 %v1636, %v771
        %v1638 = vsub.f32 %v1631, %v1637
        %v1639 = vmul.f32 %v1638, %v1638
        %v1640 = vsel %vm767, %v1639, 0.0
        %1641 = vadd.xlane.f32.xlu0 %v1640
        %v1642 = vpop.xlane.xlu0 %1641
        %v1643 = vmul.f32 %v1642, %v771
        %v1644 = vadd.f32 %v1643, 1e-06
        %v1645 = vrsqrt.pop %v1644
        %v1646 = vmul.f32 %v1638, %v1645
        %v1648 = vlaneseq
        %v1649 = vshrl.u32 %v1648, 7
        %v1650 = vsub.s32 0, %v1649
        %v1651 = vrot.slane %v1632, %v1650
        %v1653 = vmul.f32 %v1646, %v1651
        %v1655 = vlaneseq
        %v1656 = vshrl.u32 %v1655, 7
        %v1657 = vsub.s32 0, %v1656
        %v1658 = vrot.slane %v1633, %v1657
        %v1660 = vadd.f32 %v1653, %v1658
        %v1661 = vld [vmem:[%s745] sm:$0xff]
        %v1662 = vld [vmem:[%s745 + $0x8] sm:$0xff]
        %v1663 = vld [vmem:[%s745 + $0x10] sm:$0xff]
        %v1664 = vld [vmem:[%s745 + $0x18] sm:$0xff]
        %v1665 = vld [vmem:[%s745 + $0x20] sm:$0xff]
        %v1666 = vld [vmem:[%s745 + $0x28] sm:$0xff]
        %v1667 = vld [vmem:[%s745 + $0x30] sm:$0xff]
        %v1668 = vld [vmem:[%s745 + $0x38] sm:$0xff]
        %v1669 = vld [vmem:[%s745 + $0x40] sm:$0xff]
        %v1670 = vld [vmem:[%s745 + $0x48] sm:$0xff]
        %v1671 = vld [vmem:[%s745 + $0x50] sm:$0xff]
        %v1672 = vld [vmem:[%s745 + $0x58] sm:$0xff]
        %v1673 = vld [vmem:[%s745 + $0x60] sm:$0xff]
        %v1674 = vld [vmem:[%s745 + $0x68] sm:$0xff]
        %v1675 = vld [vmem:[%s745 + $0x70] sm:$0xff]
        %v1676 = vld [vmem:[%s745 + $0x78] sm:$0xff]
        %v1677 = vld [vmem:[%s749] sm:$0x3]
        %v1678 = vpack.c.bf16 %v1660, %v1660
        %v1680 = vlaneseq
        %v1681 = vshrl.u32 %v1680, 7
        %v1682 = vsub.s32 0, %v1681
        %v1683 = vrot.slane %v1677, %v1682
        %v1684 = vlaneseq
        %v1685 = vshrl.u32 %v1684, 7
        %v1686 = vsub.s32 1, %v1685
        %v1687 = vrot.slane %v1677, %v1686
        %v1706 = vunpack.c.l.b16 %v1661
        %v1707 = vunpack.c.h.b16 %v1661
        %v1708 = vunpack.c.l.b16 %v1662
        %v1709 = vunpack.c.h.b16 %v1662
        %v1710 = vunpack.c.l.b16 %v1663
        %v1711 = vunpack.c.h.b16 %v1663
        %v1712 = vunpack.c.l.b16 %v1664
        %v1713 = vunpack.c.h.b16 %v1664
        %v1714 = vunpack.c.l.b16 %v1665
        %v1715 = vunpack.c.h.b16 %v1665
        %v1716 = vunpack.c.l.b16 %v1666
        %v1717 = vunpack.c.h.b16 %v1666
        %v1718 = vunpack.c.l.b16 %v1667
        %v1719 = vunpack.c.h.b16 %v1667
        %v1720 = vunpack.c.l.b16 %v1668
        %v1721 = vunpack.c.h.b16 %v1668
        %v1722 = vunpack.c.l.b16 %v1669
        %v1723 = vunpack.c.h.b16 %v1669
        %v1724 = vunpack.c.l.b16 %v1670
        %v1725 = vunpack.c.h.b16 %v1670
        %v1726 = vunpack.c.l.b16 %v1671
        %v1727 = vunpack.c.h.b16 %v1671
        %v1728 = vunpack.c.l.b16 %v1672
        %v1729 = vunpack.c.h.b16 %v1672
        %v1730 = vunpack.c.l.b16 %v1673
        %v1731 = vunpack.c.h.b16 %v1673
        %v1732 = vunpack.c.l.b16 %v1674
        %v1733 = vunpack.c.h.b16 %v1674
        %v1734 = vunpack.c.l.b16 %v1675
        %v1735 = vunpack.c.h.b16 %v1675
        %v1736 = vunpack.c.l.b16 %v1676
        %v1737 = vunpack.c.h.b16 %v1676
        %v1738 = vpack.c.b16 %v1708, %v1706
        %v1739 = vpack.c.b16 %v1709, %v1707
        %v1740 = vpack.c.b16 %v1712, %v1710
        %v1741 = vpack.c.b16 %v1713, %v1711
        %v1742 = vpack.c.b16 %v1716, %v1714
        %v1743 = vpack.c.b16 %v1717, %v1715
        %v1744 = vpack.c.b16 %v1720, %v1718
        %v1745 = vpack.c.b16 %v1721, %v1719
        %v1746 = vpack.c.b16 %v1724, %v1722
        %v1747 = vpack.c.b16 %v1725, %v1723
        %v1748 = vpack.c.b16 %v1728, %v1726
        %v1749 = vpack.c.b16 %v1729, %v1727
        %v1750 = vpack.c.b16 %v1732, %v1730
        %v1751 = vpack.c.b16 %v1733, %v1731
        %v1752 = vpack.c.b16 %v1736, %v1734
        %v1753 = vpack.c.b16 %v1737, %v1735
        %1770 = vmatprep.subr.bf16.mxu0 %v1739
        %1771 = vmatpush1.bf16.msra.mxu0 %v1738
        %1772 = vmatprep.subr.bf16.mxu0 %v1741
        %1773 = vmatpush1.bf16.msra.mxu0 %v1740
        %1774 = vmatprep.subr.bf16.mxu0 %v1743
        %1775 = vmatpush1.bf16.msra.mxu0 %v1742
        %1776 = vmatprep.subr.bf16.mxu0 %v1745
        %1777 = vmatpush1.bf16.msra.mxu0 %v1744
        %1778 = vmatprep.subr.bf16.mxu0 %v1747
        %1779 = vmatpush1.bf16.msra.mxu0 %v1746
        %1780 = vmatprep.subr.bf16.mxu0 %v1749
        %1781 = vmatpush1.bf16.msra.mxu0 %v1748
        %1782 = vmatprep.subr.bf16.mxu0 %v1751
        %1783 = vmatpush1.bf16.msra.mxu0 %v1750
        %1784 = vmatprep.subr.bf16.mxu0 %v1753
        %1785 = vmatpush1.bf16.msra.mxu0 %v1752
        %1786 = vmatprep.subr.bf16.mxu0 0
        %1787 = vmatpush1.bf16.msra.mxu0 0
        %1788 = vmatprep.subr.bf16.mxu0 0
        %1789 = vmatpush1.bf16.msra.mxu0 0
        %1790 = vmatprep.subr.bf16.mxu0 0
        %1791 = vmatpush1.bf16.msra.mxu0 0
        %1792 = vmatprep.subr.bf16.mxu0 0
        %1793 = vmatpush1.bf16.msra.mxu0 0
        %1794 = vmatprep.subr.bf16.mxu0 0
        %1795 = vmatpush1.bf16.msra.mxu0 0
        %1796 = vmatprep.subr.bf16.mxu0 0
        %1797 = vmatpush1.bf16.msra.mxu0 0
        %1798 = vmatprep.subr.bf16.mxu0 0
        %1799 = vmatpush1.bf16.msra.mxu0 0
        %1800 = vmatprep.subr.bf16.mxu0 0
        %1801 = vmatpush1.bf16.msra.mxu0 0
        %1802 = vmatprep.mubr.bf16.mxu0 0
        %1803 = vmatmul.mubr.bf16.gmra.mrb[0].mxu0 %v1678
        %v1804 = vpop.f32.mrb[0].mxu0
        %v1805 = vadd.f32 %v1683, %v1804
        %v1806 = vpop.f32.mrb[0].mxu0
        %v1807 = vadd.f32 %v1687, %v1806
        %v1808 = vpop.f32.mrb[0].mxu0
        %v1809 = vpop.f32.mrb[0].mxu0
        %1810 = vdwg.mxu0
        %v1811 = vmul.f32 %v1805, %v1805
        %v1812 = vmul.f32 %v1807, %v1807
        %v1813 = vmul.f32 %v1805, %v1811
        %v1814 = vmul.f32 %v1807, %v1812
        %v1815 = vmul.f32 %v1813, 0.044715
        %v1816 = vmul.f32 %v1814, 0.044715
        %v1817 = vadd.f32 %v1805, %v1815
        %v1818 = vadd.f32 %v1807, %v1816
        %v1819 = vmul.f32 %v1817, 0.7978846
        %v1820 = vmul.f32 %v1818, 0.7978846
        %v1821 = vtanh.pop %v1819
        %v1822 = vtanh.pop %v1820
        %v1823 = vadd.f32 %v1821, 1.0
        %v1824 = vadd.f32 %v1822, 1.0
        %v1825 = vmul.f32 %v1823, 0.5
        %v1826 = vmul.f32 %v1824, 0.5
        %v1827 = vmul.f32 %v1805, %v1825
        %v1828 = vmul.f32 %v1807, %v1826
        %v1829 = vld [vmem:[%s621] sm:$0xf]
        %v1830 = vld [vmem:[%s621 + $0x4] sm:$0xf]
        %v1831 = vld [vmem:[%s621 + $0x8] sm:$0xf]
        %v1832 = vld [vmem:[%s621 + $0xc] sm:$0xf]
        %v1833 = vld [vmem:[%s621 + $0x10] sm:$0xf]
        %v1834 = vld [vmem:[%s621 + $0x14] sm:$0xf]
        %v1835 = vld [vmem:[%s621 + $0x18] sm:$0xf]
        %v1836 = vld [vmem:[%s621 + $0x1c] sm:$0xf]
        %v1837 = vld [vmem:[%s621 + $0x20] sm:$0xf]
        %v1838 = vld [vmem:[%s621 + $0x24] sm:$0xf]
        %v1839 = vld [vmem:[%s621 + $0x28] sm:$0xf]
        %v1840 = vld [vmem:[%s621 + $0x2c] sm:$0xf]
        %v1841 = vld [vmem:[%s621 + $0x30] sm:$0xf]
        %v1842 = vld [vmem:[%s621 + $0x34] sm:$0xf]
        %v1843 = vld [vmem:[%s621 + $0x38] sm:$0xf]
        %v1844 = vld [vmem:[%s621 + $0x3c] sm:$0xf]
        %v1845 = vld [vmem:[%s621 + $0x40] sm:$0xf]
        %v1846 = vld [vmem:[%s621 + $0x44] sm:$0xf]
        %v1847 = vld [vmem:[%s621 + $0x48] sm:$0xf]
        %v1848 = vld [vmem:[%s621 + $0x4c] sm:$0xf]
        %v1849 = vld [vmem:[%s621 + $0x50] sm:$0xf]
        %v1850 = vld [vmem:[%s621 + $0x54] sm:$0xf]
        %v1851 = vld [vmem:[%s621 + $0x58] sm:$0xf]
        %v1852 = vld [vmem:[%s621 + $0x5c] sm:$0xf]
        %v1853 = vld [vmem:[%s621 + $0x60] sm:$0xf]
        %v1854 = vld [vmem:[%s621 + $0x64] sm:$0xf]
        %v1855 = vld [vmem:[%s621 + $0x68] sm:$0xf]
        %v1856 = vld [vmem:[%s621 + $0x6c] sm:$0xf]
        %v1857 = vld [vmem:[%s621 + $0x70] sm:$0xf]
        %v1858 = vld [vmem:[%s621 + $0x74] sm:$0xf]
        %v1859 = vld [vmem:[%s621 + $0x78] sm:$0xf]
        %v1860 = vld [vmem:[%s621 + $0x7c] sm:$0xf]
        %v1861 = vld [vmem:[%s752] sm:$0x1]
        %v1862 = vpack.c.bf16 %v1827, %v1827
        %v1863 = vpack.c.bf16 %v1828, %v1828
        %v1865 = vlaneseq
        %v1866 = vshrl.u32 %v1865, 7
        %v1867 = vsub.s32 0, %v1866
        %v1868 = vrot.slane %v1861, %v1867
        %v1902 = vunpack.c.l.b16 %v1829
        %v1903 = vunpack.c.l.b16 %v1830
        %v1904 = vunpack.c.l.b16 %v1831
        %v1905 = vunpack.c.l.b16 %v1832
        %v1906 = vunpack.c.l.b16 %v1833
        %v1907 = vunpack.c.l.b16 %v1834
        %v1908 = vunpack.c.l.b16 %v1835
        %v1909 = vunpack.c.l.b16 %v1836
        %v1910 = vunpack.c.l.b16 %v1837
        %v1911 = vunpack.c.l.b16 %v1838
        %v1912 = vunpack.c.l.b16 %v1839
        %v1913 = vunpack.c.l.b16 %v1840
        %v1914 = vunpack.c.l.b16 %v1841
        %v1915 = vunpack.c.l.b16 %v1842
        %v1916 = vunpack.c.l.b16 %v1843
        %v1917 = vunpack.c.l.b16 %v1844
        %v1918 = vunpack.c.l.b16 %v1845
        %v1919 = vunpack.c.l.b16 %v1846
        %v1920 = vunpack.c.l.b16 %v1847
        %v1921 = vunpack.c.l.b16 %v1848
        %v1922 = vunpack.c.l.b16 %v1849
        %v1923 = vunpack.c.l.b16 %v1850
        %v1924 = vunpack.c.l.b16 %v1851
        %v1925 = vunpack.c.l.b16 %v1852
        %v1926 = vunpack.c.l.b16 %v1853
        %v1927 = vunpack.c.l.b16 %v1854
        %v1928 = vunpack.c.l.b16 %v1855
        %v1929 = vunpack.c.l.b16 %v1856
        %v1930 = vunpack.c.l.b16 %v1857
        %v1931 = vunpack.c.l.b16 %v1858
        %v1932 = vunpack.c.l.b16 %v1859
        %v1933 = vunpack.c.l.b16 %v1860
        %v1934 = vpack.c.b16 %v1903, %v1902
        %v1935 = vpack.c.b16 %v1905, %v1904
        %v1936 = vpack.c.b16 %v1907, %v1906
        %v1937 = vpack.c.b16 %v1909, %v1908
        %v1938 = vpack.c.b16 %v1911, %v1910
        %v1939 = vpack.c.b16 %v1913, %v1912
        %v1940 = vpack.c.b16 %v1915, %v1914
        %v1941 = vpack.c.b16 %v1917, %v1916
        %v1942 = vpack.c.b16 %v1919, %v1918
        %v1943 = vpack.c.b16 %v1921, %v1920
        %v1944 = vpack.c.b16 %v1923, %v1922
        %v1945 = vpack.c.b16 %v1925, %v1924
        %v1946 = vpack.c.b16 %v1927, %v1926
        %v1947 = vpack.c.b16 %v1929, %v1928
        %v1948 = vpack.c.b16 %v1931, %v1930
        %v1949 = vpack.c.b16 %v1933, %v1932
        %1966 = vmatprep.subr.bf16.mxu0 0
        %1967 = vmatpush1.bf16.msra.mxu0 %v1934
        %1968 = vmatprep.subr.bf16.mxu0 0
        %1969 = vmatpush1.bf16.msra.mxu0 %v1935
        %1970 = vmatprep.subr.bf16.mxu0 0
        %1971 = vmatpush1.bf16.msra.mxu0 %v1936
        %1972 = vmatprep.subr.bf16.mxu0 0
        %1973 = vmatpush1.bf16.msra.mxu0 %v1937
        %1974 = vmatprep.subr.bf16.mxu0 0
        %1975 = vmatpush1.bf16.msra.mxu0 %v1938
        %1976 = vmatprep.subr.bf16.mxu0 0
        %1977 = vmatpush1.bf16.msra.mxu0 %v1939
        %1978 = vmatprep.subr.bf16.mxu0 0
        %1979 = vmatpush1.bf16.msra.mxu0 %v1940
        %1980 = vmatprep.subr.bf16.mxu0 0
        %1981 = vmatpush1.bf16.msra.mxu0 %v1941
        %1982 = vmatprep.subr.bf16.mxu0 0
        %1983 = vmatpush1.bf16.msra.mxu0 %v1942
        %1984 = vmatprep.subr.bf16.mxu0 0
        %1985 = vmatpush1.bf16.msra.mxu0 %v1943
        %1986 = vmatprep.subr.bf16.mxu0 0
        %1987 = vmatpush1.bf16.msra.mxu0 %v1944
        %1988 = vmatprep.subr.bf16.mxu0 0
        %1989 = vmatpush1.bf16.msra.mxu0 %v1945
        %1990 = vmatprep.subr.bf16.mxu0 0
        %1991 = vmatpush1.bf16.msra.mxu0 %v1946
        %1992 = vmatprep.subr.bf16.mxu0 0
        %1993 = vmatpush1.bf16.msra.mxu0 %v1947
        %1994 = vmatprep.subr.bf16.mxu0 0
        %1995 = vmatpush1.bf16.msra.mxu0 %v1948
        %1996 = vmatprep.subr.bf16.mxu0 0
        %1997 = vmatpush1.bf16.msra.mxu0 %v1949
        %1998 = vmatprep.mubr.bf16.mxu0 %v1863
        %1999 = vmatmul.mubr.bf16.gmra.mrb[0].mxu0 %v1862
        %v2000 = vpop.f32.mrb[0].mxu0
        %v2001 = vadd.f32 %v1868, %v2000
        %v2002 = vpop.f32.mrb[0].mxu0
        %v2003 = vpop.f32.mrb[0].mxu0
        %v2004 = vpop.f32.mrb[0].mxu0
        %2005 = vdwg.mxu0
        %v2006 = vadd.f32 %v1631, %v2001
        %2007 = vst [vmem:[#allocation2] sm:$0x1f] %v2006
        %p2008 = scmp.eq.s32.totalorder %s37, 1
        // Predicated region
        $region97: #{_lambda_.2} parent=79 // pred_check
          %p2009 = pneg %p2008
        $region98: #{_lambda_.2} parent=79 // pred_check_branch
          %2011 = sbr.rel (%p2009) target = $region100
        $region99: #{_lambda_.2} parent=79 // pred_region
          %v2012 = vld [vmem:[%s13] sm:$0x1]
          %v2013 = vld [vmem:[%s14] sm:$0x1]
          %v2014 = vsel %vm767, %v2006, 0.0
          %2015 = vadd.xlane.f32.xlu0 %v2014
          %v2016 = vpop.xlane.xlu0 %2015
          %v2017 = vmul.f32 %v2016, %v771
          %v2018 = vsub.f32 %v2006, %v2017
          %v2019 = vmul.f32 %v2018, %v2018
          %v2020 = vsel %vm767, %v2019, 0.0
          %2021 = vadd.xlane.f32.xlu0 %v2020
          %v2022 = vpop.xlane.xlu0 %2021
          %v2023 = vmul.f32 %v2022, %v771
          %v2024 = vadd.f32 %v2023, 1e-06
          %v2025 = vrsqrt.pop %v2024
          %v2026 = vmul.f32 %v2018, %v2025
          %v2028 = vlaneseq
          %v2029 = vshrl.u32 %v2028, 7
          %v2030 = vsub.s32 0, %v2029
          %v2031 = vrot.slane %v2012, %v2030
          %v2033 = vmul.f32 %v2026, %v2031
          %v2035 = vlaneseq
          %v2036 = vshrl.u32 %v2035, 7
          %v2037 = vsub.s32 0, %v2036
          %v2038 = vrot.slane %v2013, %v2037
          %v2040 = vadd.f32 %v2033, %v2038
          %2041 = vst [vmem:[%s756] sm:$0x1f] %v2040
        $region100: #{_lambda_.2} parent=79 // pred_fallthru
          _
        %p2042 = scmp.lt.s32.totalorder %s36, 1
        %s2043 = scalar_select %p2042, %s36, 1
        %s2044 = smul.addr %s2043, 8
        %s2045 = scalar_lea.vmem %s15, %s2044
        // Predicated region
        $region101: #{_lambda_.2} parent=79 // pred_check
          %p2046 = pneg %p442
        $region102: #{_lambda_.2} parent=79 // pred_check_branch
          %2048 = sbr.rel (%p2046) target = $region104
        $region103: #{_lambda_.2} parent=79 // pred_region
          _
        $region104: #{_lambda_.2} parent=79 // pred_fallthru
          _
      $region80: #{_lambda_.2} parent=5 // pred_fallthru
        _
      %p2049 = scmp.le.s32.totalorder 2, %s27
      // Predicated region
      $region105: #{_lambda_.2} parent=5 // pred_check
        %p2050 = pneg %p2049
      $region106: #{_lambda_.2} parent=5 // pred_check_branch
        %2052 = sbr.rel (%p2050) target = $region108
      $region107: #{_lambda_.2} parent=5 // pred_region
        %s2053 = ssub.s32 %s27, 2
        // Predicated region
        $region109: #{_lambda_.2} parent=107 // pred_check
          %p2054 = pneg %p448
        $region110: #{_lambda_.2} parent=107 // pred_check_branch
          %2056 = sbr.rel (%p2054) target = $region112
        $region111: #{_lambda_.2} parent=107 // pred_region
          %p2057 = scmp.lt.s32.totalorder %s38, 1
          %s2058 = scalar_select %p2057, %s38, 1
          %s2059 = smul.addr %s2058, 8
          %s2060 = scalar_lea.vmem %s15, %s2059
        $region112: #{_lambda_.2} parent=107 // pred_fallthru
          _
      $region108: #{_lambda_.2} parent=5 // pred_fallthru
        _
    $region6: #{_lambda_.2} parent=1 // loop_footer
      %s31 = sadd.s32 1, %s27
    $region7: #{_lambda_.2} parent=1 // loop_footer_branch
      %26 = sbr.rel target = $region3
    $region8: #{_lambda_.2} parent=1 // loop_exit
      _
    %2061 = vsyncpa [#allocation4], 1
    %s2062 = scalar_lea.sflag [#allocation4], 1
    %2063 = vsyncpa %s2062, 1
    %2064 = vsyncpa [#allocation6], 1
    %s2065 = scalar_lea.sflag [#allocation6], 1
    %2066 = vsyncpa %s2065, 1

// kernel: _lambda_.3
$region0: #{_lambda_.3}
  #allocation0 [shape = 'u32[]', space=smem, size = 0x4, offset = 0x4, fixed_abs, tag = 'smem constant byte address 0x4 - core index']
  #allocation1 [shape = 'u32[144,128]{1,0:T(1,128)}', space=vmem, size = 0x12000, scoped, tag = 'internal scratch']
  #allocation2 [shape = 'f32[8,128]{1,0:T(8,128)}', space=vmem, size = 0x1000, scoped, tag = 'scratch operand']
  %s0 = inlined_call_operand.vmem [shape: f32[2,8,128], index: 0, kind: input, shape index: {}]
  %s1 = inlined_call_operand.vmem [shape: f32[2,1,8], index: 1, kind: input, shape index: {}]
  %s2 = inlined_call_operand.vmem [shape: f32[2,5,128], index: 2, kind: input, shape index: {}]
  %s3 = inlined_call_operand.vmem [shape: f32[2,1,128], index: 3, kind: input, shape index: {}]
  %s4 = inlined_call_operand.vmem [shape: f32[2,1,128], index: 4, kind: input, shape index: {}]
  %s5 = inlined_call_operand.vmem [shape: bf16[2,128,384], index: 5, kind: input, shape index: {}]
  %s6 = inlined_call_operand.vmem [shape: f32[2,1,384], index: 6, kind: input, shape index: {}]
  %s7 = inlined_call_operand.hbm [shape: bf16[2,128,128], index: 7, kind: input, shape index: {}]
  %s8 = inlined_call_operand.vmem [shape: f32[2,1,128], index: 8, kind: input, shape index: {}]
  %s9 = inlined_call_operand.vmem [shape: f32[2,1,128], index: 9, kind: input, shape index: {}]
  %s10 = inlined_call_operand.vmem [shape: f32[2,1,128], index: 10, kind: input, shape index: {}]
  %s11 = inlined_call_operand.hbm [shape: bf16[2,128,128], index: 11, kind: input, shape index: {}]
  %s12 = inlined_call_operand.vmem [shape: f32[2,1,128], index: 12, kind: input, shape index: {}]
  %s13 = inlined_call_operand.vmem [shape: bf16[2,128,256], index: 13, kind: input, shape index: {}]
  %s14 = inlined_call_operand.vmem [shape: f32[2,1,256], index: 14, kind: input, shape index: {}]
  %s15 = inlined_call_operand.hbm [shape: bf16[2,128,128], index: 15, kind: input, shape index: {}]
  %s16 = inlined_call_operand.vmem [shape: f32[2,1,128], index: 16, kind: input, shape index: {}]
  %s17 = inlined_call_operand.vmem [shape: f32[2,1,128], index: 17, kind: input, shape index: {}]
  %s18 = inlined_call_operand.vmem [shape: f32[2,1,128], index: 18, kind: input, shape index: {}]
  %s19 = inlined_call_operand.vmem [shape: bf16[2,128,256], index: 19, kind: input, shape index: {}]
  %s20 = inlined_call_operand.vmem [shape: f32[2,1,256], index: 20, kind: input, shape index: {}]
  %s21 = inlined_call_operand.vmem [shape: bf16[2,256,128], index: 21, kind: input, shape index: {}]
  %s22 = inlined_call_operand.vmem [shape: f32[2,1,128], index: 22, kind: input, shape index: {}]
  %s23 = inlined_call_operand.vmem [shape: f32[2,8,128], index: 23, kind: output, shape index: {}]
  %s24 = sld [smem:[#allocation0]]
  $region145: #{_lambda_.3} parent=0
    _
  %s26 = ssub.s32 1, %s24
  %s27 = scalar_select 0, %s26, %s24
  $region1: #{_lambda_.3} parent=0
    #allocation3 [shape = 'u8[65536]{0}', space=vmem, size = 0x10000, scoped, tag = 'input window, operand 7']
    #allocation4 [shape = 's32[2]{0}', space=sflag, size = 0x8, scoped, tag = 'scoped memory for _lambda_.3']
    #allocation5 [shape = 'u8[65536]{0}', space=vmem, size = 0x10000, scoped, tag = 'input window, operand 11']
    #allocation6 [shape = 's32[2]{0}', space=sflag, size = 0x8, scoped, tag = 'scoped memory for _lambda_.3']
    #allocation7 [shape = 'u8[65536]{0}', space=vmem, size = 0x10000, scoped, tag = 'input window, operand 15']
    %28 = vsyncpa [#allocation4], 0
    %s29 = scalar_lea.sflag [#allocation4], 1
    %30 = vsyncpa %s29, 0
    %31 = vsyncpa [#allocation6], 0
    %s32 = scalar_lea.sflag [#allocation6], 1
    %33 = vsyncpa %s32, 0
    loop: start=0, step=1, limit=6
    $region2: #{_lambda_.3} parent=1 // loop_pre_header
      _
    $region3: #{_lambda_.3} parent=1 // loop_header
      %s35 = sphi 0, %s39
      %p36 = scmp.ge.s32.totalorder %s35, 6
      %s42 = sphi 0, %s54
      %s43 = sphi 0, %s50
      %s44 = sphi 0, %s42
      %s45 = sphi 0, %s43
      %s46 = sphi 0, %s44
      %s47 = sphi 0, %s45
      %s57 = sphi 0, %s59
      %s60 = sphi 0, %s57
      %s61 = sphi 0, %s60
      %s77 = sphi 0, %s61
      %s83 = sphi 0, %s85
      %s86 = sphi 0, %s83
      %s87 = sphi 0, %s86
      %s103 = sphi 0, %s87
      %s109 = sphi 0, %s111
      %s112 = sphi 0, %s109
      %s113 = sphi 0, %s112
      %s129 = sphi 0, %s113
      %s135 = sphi 0, %s137
      %s138 = sphi 0, %s135
      %s139 = sphi 0, %s138
      %s155 = sphi 0, %s139
      %s161 = sphi 0, %s163
      %s164 = sphi 0, %s161
      %s165 = sphi 0, %s164
      %s181 = sphi 0, %s165
      %s187 = sphi 0, %s189
      %s190 = sphi 0, %s187
      %s191 = sphi 0, %s190
      %s207 = sphi 0, %s191
      %s213 = sphi 0, %s215
      %s216 = sphi 0, %s213
      %s217 = sphi 0, %s216
      %s233 = sphi 0, %s217
      %s239 = sphi 0, %s241
      %s242 = sphi 0, %s239
      %s243 = sphi 0, %s242
      %s259 = sphi 0, %s243
      %s265 = sphi 0, %s267
      %s268 = sphi 0, %s265
      %s269 = sphi 0, %s268
      %s285 = sphi 0, %s269
      %s291 = sphi 0, %s293
      %s294 = sphi 0, %s291
      %s295 = sphi 0, %s294
      %s311 = sphi 0, %s295
      %s317 = sphi 0, %s319
      %s320 = sphi 0, %s317
      %s321 = sphi 0, %s320
      %s337 = sphi 0, %s321
      %s343 = sphi 0, %s345
      %s346 = sphi 0, %s343
      %s347 = sphi 0, %s346
      %s363 = sphi 0, %s347
      %s369 = sphi 0, %s371
      %s372 = sphi 0, %s369
      %s373 = sphi 0, %s372
      %s389 = sphi 0, %s373
      %s395 = sphi 0, %s397
      %s398 = sphi 0, %s395
      %s399 = sphi 0, %s398
      %s415 = sphi 0, %s399
      %s421 = sphi 0, %s423
      %s424 = sphi 0, %s421
      %s425 = sphi 0, %s424
      %s441 = sphi 0, %s425
      %s447 = sphi 0, %s449
      %s450 = sphi 0, %s447
      %s451 = sphi 0, %s450
      %s467 = sphi 0, %s451
      %s473 = sphi 0, %s475
      %s476 = sphi 0, %s473
      %s477 = sphi 0, %s476
      %s493 = sphi 0, %s477
      %s499 = sphi 0, %s501
      %s502 = sphi 0, %s499
      %s503 = sphi 0, %s502
      %s519 = sphi 0, %s503
      %s525 = sphi 0, %s527
      %s528 = sphi 0, %s525
      %s529 = sphi 0, %s528
      %s545 = sphi 0, %s529
      %s551 = sphi 0, %s553
      %s554 = sphi 0, %s551
      %s555 = sphi 0, %s554
      %s571 = sphi 0, %s555
      %s577 = sphi 0, %s579
      %s580 = sphi 0, %s577
      %s581 = sphi 0, %s580
      %s597 = sphi 0, %s581
      %s603 = sphi 0, %s605
      %s606 = sphi 0, %s603
      %s607 = sphi 0, %s606
      %s623 = sphi 0, %s607
      %s629 = sphi 0, %s631
      %s632 = sphi 0, %s629
      %s633 = sphi 0, %s632
      %s649 = sphi 0, %s633
      %s655 = sphi 0, %s657
      %s658 = sphi 0, %s655
      %s659 = sphi 0, %s658
      %s675 = sphi 0, %s659
    $region4: #{_lambda_.3} parent=1 // loop_header_branch
      %38 = sbr.rel (%p36) target = $region8
    $region5: #{_lambda_.3} parent=1 // loop_body
      %s40 = ssub.s32 %s35, 1
      %s41 = ssub.s32 %s35, 2
      %s48 = sadd.s32 1, %s43
      %p49 = scmp.ge.s32.totalorder %s48, 2
      %s50 = scalar_select %p49, 0, %s48
      %s51 = sadd.s32 1, %s42
      %s52 = scalar_select %p49, %s51, %s42
      %p53 = scmp.ge.s32.totalorder %s52, 2
      %s54 = scalar_select %p53, 0, %s52
      %s55 = ssub.s32 %s42, %s54
      %p56 = scmp.eq.s32.totalorder %s55, 0
      %s58 = sadd.s32 %s57, 1
      %s59 = scalar_select %p56, %s57, %s58
      %p62 = pneg %p56
      %p63 = scmp.eq.s32.totalorder %s35, 3
      %p64 = por %p62, %p63
      %p65 = scmp.ne.s32.totalorder %s57, %s60
      %p66 = scmp.eq.s32.totalorder %s35, 0
      %p67 = por %p65, %p66
      %p68 = scmp.ne.s32.totalorder %s57, %s60
      %p69 = scmp.eq.s32.totalorder %s40, 3
      %p70 = por %p68, %p69
      %p71 = scmp.ne.s32.totalorder %s60, %s61
      %p72 = scmp.eq.s32.totalorder %s40, 0
      %p73 = por %p71, %p72
      %p74 = scmp.ne.s32.totalorder %s60, %s61
      %p75 = scmp.eq.s32.totalorder %s41, 3
      %p76 = por %p74, %p75
      %p78 = scmp.ne.s32.totalorder %s61, %s77
      %p79 = scmp.eq.s32.totalorder %s41, 0
      %p80 = por %p78, %p79
      %s81 = ssub.s32 %s42, %s54
      %p82 = scmp.eq.s32.totalorder %s81, 0
      %s84 = sadd.s32 %s83, 1
      %s85 = scalar_select %p82, %s83, %s84
      %p88 = pneg %p82
      %p89 = scmp.eq.s32.totalorder %s35, 3
      %p90 = por %p88, %p89
      %p91 = scmp.ne.s32.totalorder %s83, %s86
      %p92 = scmp.eq.s32.totalorder %s35, 0
      %p93 = por %p91, %p92
      %p94 = scmp.ne.s32.totalorder %s83, %s86
      %p95 = scmp.eq.s32.totalorder %s40, 3
      %p96 = por %p94, %p95
      %p97 = scmp.ne.s32.totalorder %s86, %s87
      %p98 = scmp.eq.s32.totalorder %s40, 0
      %p99 = por %p97, %p98
      %p100 = scmp.ne.s32.totalorder %s86, %s87
      %p101 = scmp.eq.s32.totalorder %s41, 3
      %p102 = por %p100, %p101
      %p104 = scmp.ne.s32.totalorder %s87, %s103
      %p105 = scmp.eq.s32.totalorder %s41, 0
      %p106 = por %p104, %p105
      %s107 = ssub.s32 %s42, %s54
      %p108 = scmp.eq.s32.totalorder %s107, 0
      %s110 = sadd.s32 %s109, 1
      %s111 = scalar_select %p108, %s109, %s110
      %p114 = pneg %p108
      %p115 = scmp.eq.s32.totalorder %s35, 3
      %p116 = por %p114, %p115
      %p117 = scmp.ne.s32.totalorder %s109, %s112
      %p118 = scmp.eq.s32.totalorder %s35, 0
      %p119 = por %p117, %p118
      %p120 = scmp.ne.s32.totalorder %s109, %s112
      %p121 = scmp.eq.s32.totalorder %s40, 3
      %p122 = por %p120, %p121
      %p123 = scmp.ne.s32.totalorder %s112, %s113
      %p124 = scmp.eq.s32.totalorder %s40, 0
      %p125 = por %p123, %p124
      %p126 = scmp.ne.s32.totalorder %s112, %s113
      %p127 = scmp.eq.s32.totalorder %s41, 3
      %p128 = por %p126, %p127
      %p130 = scmp.ne.s32.totalorder %s113, %s129
      %p131 = scmp.eq.s32.totalorder %s41, 0
      %p132 = por %p130, %p131
      %s133 = ssub.s32 %s43, %s50
      %p134 = scmp.eq.s32.totalorder %s133, 0
      %s136 = sadd.s32 %s135, 1
      %s137 = scalar_select %p134, %s135, %s136
      %p140 = pneg %p134
      %p141 = scmp.eq.s32.totalorder %s35, 3
      %p142 = por %p140, %p141
      %p143 = scmp.ne.s32.totalorder %s135, %s138
      %p144 = scmp.eq.s32.totalorder %s35, 0
      %p145 = por %p143, %p144
      %p146 = scmp.ne.s32.totalorder %s135, %s138
      %p147 = scmp.eq.s32.totalorder %s40, 3
      %p148 = por %p146, %p147
      %p149 = scmp.ne.s32.totalorder %s138, %s139
      %p150 = scmp.eq.s32.totalorder %s40, 0
      %p151 = por %p149, %p150
      %p152 = scmp.ne.s32.totalorder %s138, %s139
      %p153 = scmp.eq.s32.totalorder %s41, 3
      %p154 = por %p152, %p153
      %p156 = scmp.ne.s32.totalorder %s139, %s155
      %p157 = scmp.eq.s32.totalorder %s41, 0
      %p158 = por %p156, %p157
      %s159 = ssub.s32 %s43, %s50
      %p160 = scmp.eq.s32.totalorder %s159, 0
      %s162 = sadd.s32 %s161, 1
      %s163 = scalar_select %p160, %s161, %s162
      %p166 = pneg %p160
      %p167 = scmp.eq.s32.totalorder %s35, 3
      %p168 = por %p166, %p167
      %p169 = scmp.ne.s32.totalorder %s161, %s164
      %p170 = scmp.eq.s32.totalorder %s35, 0
      %p171 = por %p169, %p170
      %p172 = scmp.ne.s32.totalorder %s161, %s164
      %p173 = scmp.eq.s32.totalorder %s40, 3
      %p174 = por %p172, %p173
      %p175 = scmp.ne.s32.totalorder %s164, %s165
      %p176 = scmp.eq.s32.totalorder %s40, 0
      %p177 = por %p175, %p176
      %p178 = scmp.ne.s32.totalorder %s164, %s165
      %p179 = scmp.eq.s32.totalorder %s41, 3
      %p180 = por %p178, %p179
      %p182 = scmp.ne.s32.totalorder %s165, %s181
      %p183 = scmp.eq.s32.totalorder %s41, 0
      %p184 = por %p182, %p183
      %s185 = ssub.s32 %s43, %s50
      %p186 = scmp.eq.s32.totalorder %s185, 0
      %s188 = sadd.s32 %s187, 1
      %s189 = scalar_select %p186, %s187, %s188
      %p192 = pneg %p186
      %p193 = scmp.eq.s32.totalorder %s35, 3
      %p194 = por %p192, %p193
      %p195 = scmp.ne.s32.totalorder %s187, %s190
      %p196 = scmp.eq.s32.totalorder %s35, 0
      %p197 = por %p195, %p196
      %p198 = scmp.ne.s32.totalorder %s187, %s190
      %p199 = scmp.eq.s32.totalorder %s40, 3
      %p200 = por %p198, %p199
      %p201 = scmp.ne.s32.totalorder %s190, %s191
      %p202 = scmp.eq.s32.totalorder %s40, 0
      %p203 = por %p201, %p202
      %p204 = scmp.ne.s32.totalorder %s190, %s191
      %p205 = scmp.eq.s32.totalorder %s41, 3
      %p206 = por %p204, %p205
      %p208 = scmp.ne.s32.totalorder %s191, %s207
      %p209 = scmp.eq.s32.totalorder %s41, 0
      %p210 = por %p208, %p209
      %s211 = ssub.s32 %s43, %s50
      %p212 = scmp.eq.s32.totalorder %s211, 0
      %s214 = sadd.s32 %s213, 1
      %s215 = scalar_select %p212, %s213, %s214
      %p218 = pneg %p212
      %p219 = scmp.eq.s32.totalorder %s35, 3
      %p220 = por %p218, %p219
      %p221 = scmp.ne.s32.totalorder %s213, %s216
      %p222 = scmp.eq.s32.totalorder %s35, 0
      %p223 = por %p221, %p222
      %p224 = scmp.ne.s32.totalorder %s213, %s216
      %p225 = scmp.eq.s32.totalorder %s40, 3
      %p226 = por %p224, %p225
      %p227 = scmp.ne.s32.totalorder %s216, %s217
      %p228 = scmp.eq.s32.totalorder %s40, 0
      %p229 = por %p227, %p228
      %p230 = scmp.ne.s32.totalorder %s216, %s217
      %p231 = scmp.eq.s32.totalorder %s41, 3
      %p232 = por %p230, %p231
      %p234 = scmp.ne.s32.totalorder %s217, %s233
      %p235 = scmp.eq.s32.totalorder %s41, 0
      %p236 = por %p234, %p235
      %s237 = ssub.s32 %s43, %s50
      %p238 = scmp.eq.s32.totalorder %s237, 0
      %s240 = sadd.s32 %s239, 1
      %s241 = scalar_select %p238, %s239, %s240
      %p244 = pneg %p238
      %p245 = scmp.eq.s32.totalorder %s35, 3
      %p246 = por %p244, %p245
      %p247 = scmp.ne.s32.totalorder %s239, %s242
      %p248 = scmp.eq.s32.totalorder %s35, 0
      %p249 = por %p247, %p248
      %p250 = scmp.ne.s32.totalorder %s239, %s242
      %p251 = scmp.eq.s32.totalorder %s40, 3
      %p252 = por %p250, %p251
      %p253 = scmp.ne.s32.totalorder %s242, %s243
      %p254 = scmp.eq.s32.totalorder %s40, 0
      %p255 = por %p253, %p254
      %p256 = scmp.ne.s32.totalorder %s242, %s243
      %p257 = scmp.eq.s32.totalorder %s41, 3
      %p258 = por %p256, %p257
      %p260 = scmp.ne.s32.totalorder %s243, %s259
      %p261 = scmp.eq.s32.totalorder %s41, 0
      %p262 = por %p260, %p261
      %s263 = ssub.s32 %s43, %s50
      %p264 = scmp.eq.s32.totalorder %s263, 0
      %s266 = sadd.s32 %s265, 1
      %s267 = scalar_select %p264, %s265, %s266
      %p270 = pneg %p264
      %p271 = scmp.eq.s32.totalorder %s35, 3
      %p272 = por %p270, %p271
      %p273 = scmp.ne.s32.totalorder %s265, %s268
      %p274 = scmp.eq.s32.totalorder %s35, 0
      %p275 = por %p273, %p274
      %p276 = scmp.ne.s32.totalorder %s265, %s268
      %p277 = scmp.eq.s32.totalorder %s40, 3
      %p278 = por %p276, %p277
      %p279 = scmp.ne.s32.totalorder %s268, %s269
      %p280 = scmp.eq.s32.totalorder %s40, 0
      %p281 = por %p279, %p280
      %p282 = scmp.ne.s32.totalorder %s268, %s269
      %p283 = scmp.eq.s32.totalorder %s41, 3
      %p284 = por %p282, %p283
      %p286 = scmp.ne.s32.totalorder %s269, %s285
      %p287 = scmp.eq.s32.totalorder %s41, 0
      %p288 = por %p286, %p287
      %s289 = ssub.s32 %s43, %s50
      %p290 = scmp.eq.s32.totalorder %s289, 0
      %s292 = sadd.s32 %s291, 1
      %s293 = scalar_select %p290, %s291, %s292
      %p296 = pneg %p290
      %p297 = scmp.eq.s32.totalorder %s35, 3
      %p298 = por %p296, %p297
      %p299 = scmp.ne.s32.totalorder %s291, %s294
      %p300 = scmp.eq.s32.totalorder %s35, 0
      %p301 = por %p299, %p300
      %p302 = scmp.ne.s32.totalorder %s291, %s294
      %p303 = scmp.eq.s32.totalorder %s40, 3
      %p304 = por %p302, %p303
      %p305 = scmp.ne.s32.totalorder %s294, %s295
      %p306 = scmp.eq.s32.totalorder %s40, 0
      %p307 = por %p305, %p306
      %p308 = scmp.ne.s32.totalorder %s294, %s295
      %p309 = scmp.eq.s32.totalorder %s41, 3
      %p310 = por %p308, %p309
      %p312 = scmp.ne.s32.totalorder %s295, %s311
      %p313 = scmp.eq.s32.totalorder %s41, 0
      %p314 = por %p312, %p313
      %s315 = ssub.s32 %s43, %s50
      %p316 = scmp.eq.s32.totalorder %s315, 0
      %s318 = sadd.s32 %s317, 1
      %s319 = scalar_select %p316, %s317, %s318
      %p322 = pneg %p316
      %p323 = scmp.eq.s32.totalorder %s35, 3
      %p324 = por %p322, %p323
      %p325 = scmp.ne.s32.totalorder %s317, %s320
      %p326 = scmp.eq.s32.totalorder %s35, 0
      %p327 = por %p325, %p326
      %p328 = scmp.ne.s32.totalorder %s317, %s320
      %p329 = scmp.eq.s32.totalorder %s40, 3
      %p330 = por %p328, %p329
      %p331 = scmp.ne.s32.totalorder %s320, %s321
      %p332 = scmp.eq.s32.totalorder %s40, 0
      %p333 = por %p331, %p332
      %p334 = scmp.ne.s32.totalorder %s320, %s321
      %p335 = scmp.eq.s32.totalorder %s41, 3
      %p336 = por %p334, %p335
      %p338 = scmp.ne.s32.totalorder %s321, %s337
      %p339 = scmp.eq.s32.totalorder %s41, 0
      %p340 = por %p338, %p339
      %s341 = ssub.s32 %s43, %s50
      %p342 = scmp.eq.s32.totalorder %s341, 0
      %s344 = sadd.s32 %s343, 1
      %s345 = scalar_select %p342, %s343, %s344
      %p348 = pneg %p342
      %p349 = scmp.eq.s32.totalorder %s35, 3
      %p350 = por %p348, %p349
      %p351 = scmp.ne.s32.totalorder %s343, %s346
      %p352 = scmp.eq.s32.totalorder %s35, 0
      %p353 = por %p351, %p352
      %p354 = scmp.ne.s32.totalorder %s343, %s346
      %p355 = scmp.eq.s32.totalorder %s40, 3
      %p356 = por %p354, %p355
      %p357 = scmp.ne.s32.totalorder %s346, %s347
      %p358 = scmp.eq.s32.totalorder %s40, 0
      %p359 = por %p357, %p358
      %p360 = scmp.ne.s32.totalorder %s346, %s347
      %p361 = scmp.eq.s32.totalorder %s41, 3
      %p362 = por %p360, %p361
      %p364 = scmp.ne.s32.totalorder %s347, %s363
      %p365 = scmp.eq.s32.totalorder %s41, 0
      %p366 = por %p364, %p365
      %s367 = ssub.s32 %s43, %s50
      %p368 = scmp.eq.s32.totalorder %s367, 0
      %s370 = sadd.s32 %s369, 1
      %s371 = scalar_select %p368, %s369, %s370
      %p374 = pneg %p368
      %p375 = scmp.eq.s32.totalorder %s35, 3
      %p376 = por %p374, %p375
      %p377 = scmp.ne.s32.totalorder %s369, %s372
      %p378 = scmp.eq.s32.totalorder %s35, 0
      %p379 = por %p377, %p378
      %p380 = scmp.ne.s32.totalorder %s369, %s372
      %p381 = scmp.eq.s32.totalorder %s40, 3
      %p382 = por %p380, %p381
      %p383 = scmp.ne.s32.totalorder %s372, %s373
      %p384 = scmp.eq.s32.totalorder %s40, 0
      %p385 = por %p383, %p384
      %p386 = scmp.ne.s32.totalorder %s372, %s373
      %p387 = scmp.eq.s32.totalorder %s41, 3
      %p388 = por %p386, %p387
      %p390 = scmp.ne.s32.totalorder %s373, %s389
      %p391 = scmp.eq.s32.totalorder %s41, 0
      %p392 = por %p390, %p391
      %s393 = ssub.s32 %s43, %s50
      %p394 = scmp.eq.s32.totalorder %s393, 0
      %s396 = sadd.s32 %s395, 1
      %s397 = scalar_select %p394, %s395, %s396
      %p400 = pneg %p394
      %p401 = scmp.eq.s32.totalorder %s35, 3
      %p402 = por %p400, %p401
      %p403 = scmp.ne.s32.totalorder %s395, %s398
      %p404 = scmp.eq.s32.totalorder %s35, 0
      %p405 = por %p403, %p404
      %p406 = scmp.ne.s32.totalorder %s395, %s398
      %p407 = scmp.eq.s32.totalorder %s40, 3
      %p408 = por %p406, %p407
      %p409 = scmp.ne.s32.totalorder %s398, %s399
      %p410 = scmp.eq.s32.totalorder %s40, 0
      %p411 = por %p409, %p410
      %p412 = scmp.ne.s32.totalorder %s398, %s399
      %p413 = scmp.eq.s32.totalorder %s41, 3
      %p414 = por %p412, %p413
      %p416 = scmp.ne.s32.totalorder %s399, %s415
      %p417 = scmp.eq.s32.totalorder %s41, 0
      %p418 = por %p416, %p417
      %s419 = ssub.s32 %s43, %s50
      %p420 = scmp.eq.s32.totalorder %s419, 0
      %s422 = sadd.s32 %s421, 1
      %s423 = scalar_select %p420, %s421, %s422
      %p426 = pneg %p420
      %p427 = scmp.eq.s32.totalorder %s35, 3
      %p428 = por %p426, %p427
      %p429 = scmp.ne.s32.totalorder %s421, %s424
      %p430 = scmp.eq.s32.totalorder %s35, 0
      %p431 = por %p429, %p430
      %p432 = scmp.ne.s32.totalorder %s421, %s424
      %p433 = scmp.eq.s32.totalorder %s40, 3
      %p434 = por %p432, %p433
      %p435 = scmp.ne.s32.totalorder %s424, %s425
      %p436 = scmp.eq.s32.totalorder %s40, 0
      %p437 = por %p435, %p436
      %p438 = scmp.ne.s32.totalorder %s424, %s425
      %p439 = scmp.eq.s32.totalorder %s41, 3
      %p440 = por %p438, %p439
      %p442 = scmp.ne.s32.totalorder %s425, %s441
      %p443 = scmp.eq.s32.totalorder %s41, 0
      %p444 = por %p442, %p443
      %s445 = ssub.s32 %s43, %s50
      %p446 = scmp.eq.s32.totalorder %s445, 0
      %s448 = sadd.s32 %s447, 1
      %s449 = scalar_select %p446, %s447, %s448
      %p452 = pneg %p446
      %p453 = scmp.eq.s32.totalorder %s35, 3
      %p454 = por %p452, %p453
      %p455 = scmp.ne.s32.totalorder %s447, %s450
      %p456 = scmp.eq.s32.totalorder %s35, 0
      %p457 = por %p455, %p456
      %p458 = scmp.ne.s32.totalorder %s447, %s450
      %p459 = scmp.eq.s32.totalorder %s40, 3
      %p460 = por %p458, %p459
      %p461 = scmp.ne.s32.totalorder %s450, %s451
      %p462 = scmp.eq.s32.totalorder %s40, 0
      %p463 = por %p461, %p462
      %p464 = scmp.ne.s32.totalorder %s450, %s451
      %p465 = scmp.eq.s32.totalorder %s41, 3
      %p466 = por %p464, %p465
      %p468 = scmp.ne.s32.totalorder %s451, %s467
      %p469 = scmp.eq.s32.totalorder %s41, 0
      %p470 = por %p468, %p469
      %s471 = ssub.s32 %s43, %s50
      %p472 = scmp.eq.s32.totalorder %s471, 0
      %s474 = sadd.s32 %s473, 1
      %s475 = scalar_select %p472, %s473, %s474
      %p478 = pneg %p472
      %p479 = scmp.eq.s32.totalorder %s35, 3
      %p480 = por %p478, %p479
      %p481 = scmp.ne.s32.totalorder %s473, %s476
      %p482 = scmp.eq.s32.totalorder %s35, 0
      %p483 = por %p481, %p482
      %p484 = scmp.ne.s32.totalorder %s473, %s476
      %p485 = scmp.eq.s32.totalorder %s40, 3
      %p486 = por %p484, %p485
      %p487 = scmp.ne.s32.totalorder %s476, %s477
      %p488 = scmp.eq.s32.totalorder %s40, 0
      %p489 = por %p487, %p488
      %p490 = scmp.ne.s32.totalorder %s476, %s477
      %p491 = scmp.eq.s32.totalorder %s41, 3
      %p492 = por %p490, %p491
      %p494 = scmp.ne.s32.totalorder %s477, %s493
      %p495 = scmp.eq.s32.totalorder %s41, 0
      %p496 = por %p494, %p495
      %s497 = ssub.s32 %s43, %s50
      %p498 = scmp.eq.s32.totalorder %s497, 0
      %s500 = sadd.s32 %s499, 1
      %s501 = scalar_select %p498, %s499, %s500
      %p504 = pneg %p498
      %p505 = scmp.eq.s32.totalorder %s35, 3
      %p506 = por %p504, %p505
      %p507 = scmp.ne.s32.totalorder %s499, %s502
      %p508 = scmp.eq.s32.totalorder %s35, 0
      %p509 = por %p507, %p508
      %p510 = scmp.ne.s32.totalorder %s499, %s502
      %p511 = scmp.eq.s32.totalorder %s40, 3
      %p512 = por %p510, %p511
      %p513 = scmp.ne.s32.totalorder %s502, %s503
      %p514 = scmp.eq.s32.totalorder %s40, 0
      %p515 = por %p513, %p514
      %p516 = scmp.ne.s32.totalorder %s502, %s503
      %p517 = scmp.eq.s32.totalorder %s41, 3
      %p518 = por %p516, %p517
      %p520 = scmp.ne.s32.totalorder %s503, %s519
      %p521 = scmp.eq.s32.totalorder %s41, 0
      %p522 = por %p520, %p521
      %s523 = ssub.s32 %s43, %s50
      %p524 = scmp.eq.s32.totalorder %s523, 0
      %s526 = sadd.s32 %s525, 1
      %s527 = scalar_select %p524, %s525, %s526
      %p530 = pneg %p524
      %p531 = scmp.eq.s32.totalorder %s35, 3
      %p532 = por %p530, %p531
      %p533 = scmp.ne.s32.totalorder %s525, %s528
      %p534 = scmp.eq.s32.totalorder %s35, 0
      %p535 = por %p533, %p534
      %p536 = scmp.ne.s32.totalorder %s525, %s528
      %p537 = scmp.eq.s32.totalorder %s40, 3
      %p538 = por %p536, %p537
      %p539 = scmp.ne.s32.totalorder %s528, %s529
      %p540 = scmp.eq.s32.totalorder %s40, 0
      %p541 = por %p539, %p540
      %p542 = scmp.ne.s32.totalorder %s528, %s529
      %p543 = scmp.eq.s32.totalorder %s41, 3
      %p544 = por %p542, %p543
      %p546 = scmp.ne.s32.totalorder %s529, %s545
      %p547 = scmp.eq.s32.totalorder %s41, 0
      %p548 = por %p546, %p547
      %s549 = ssub.s32 %s43, %s50
      %p550 = scmp.eq.s32.totalorder %s549, 0
      %s552 = sadd.s32 %s551, 1
      %s553 = scalar_select %p550, %s551, %s552
      %p556 = pneg %p550
      %p557 = scmp.eq.s32.totalorder %s35, 3
      %p558 = por %p556, %p557
      %p559 = scmp.ne.s32.totalorder %s551, %s554
      %p560 = scmp.eq.s32.totalorder %s35, 0
      %p561 = por %p559, %p560
      %p562 = scmp.ne.s32.totalorder %s551, %s554
      %p563 = scmp.eq.s32.totalorder %s40, 3
      %p564 = por %p562, %p563
      %p565 = scmp.ne.s32.totalorder %s554, %s555
      %p566 = scmp.eq.s32.totalorder %s40, 0
      %p567 = por %p565, %p566
      %p568 = scmp.ne.s32.totalorder %s554, %s555
      %p569 = scmp.eq.s32.totalorder %s41, 3
      %p570 = por %p568, %p569
      %p572 = scmp.ne.s32.totalorder %s555, %s571
      %p573 = scmp.eq.s32.totalorder %s41, 0
      %p574 = por %p572, %p573
      %s575 = ssub.s32 %s43, %s50
      %p576 = scmp.eq.s32.totalorder %s575, 0
      %s578 = sadd.s32 %s577, 1
      %s579 = scalar_select %p576, %s577, %s578
      %p582 = pneg %p576
      %p583 = scmp.eq.s32.totalorder %s35, 3
      %p584 = por %p582, %p583
      %p585 = scmp.ne.s32.totalorder %s577, %s580
      %p586 = scmp.eq.s32.totalorder %s35, 0
      %p587 = por %p585, %p586
      %p588 = scmp.ne.s32.totalorder %s577, %s580
      %p589 = scmp.eq.s32.totalorder %s40, 3
      %p590 = por %p588, %p589
      %p591 = scmp.ne.s32.totalorder %s580, %s581
      %p592 = scmp.eq.s32.totalorder %s40, 0
      %p593 = por %p591, %p592
      %p594 = scmp.ne.s32.totalorder %s580, %s581
      %p595 = scmp.eq.s32.totalorder %s41, 3
      %p596 = por %p594, %p595
      %p598 = scmp.ne.s32.totalorder %s581, %s597
      %p599 = scmp.eq.s32.totalorder %s41, 0
      %p600 = por %p598, %p599
      %s601 = ssub.s32 %s43, %s50
      %p602 = scmp.eq.s32.totalorder %s601, 0
      %s604 = sadd.s32 %s603, 1
      %s605 = scalar_select %p602, %s603, %s604
      %p608 = pneg %p602
      %p609 = scmp.eq.s32.totalorder %s35, 3
      %p610 = por %p608, %p609
      %p611 = scmp.ne.s32.totalorder %s603, %s606
      %p612 = scmp.eq.s32.totalorder %s35, 0
      %p613 = por %p611, %p612
      %p614 = scmp.ne.s32.totalorder %s603, %s606
      %p615 = scmp.eq.s32.totalorder %s40, 3
      %p616 = por %p614, %p615
      %p617 = scmp.ne.s32.totalorder %s606, %s607
      %p618 = scmp.eq.s32.totalorder %s40, 0
      %p619 = por %p617, %p618
      %p620 = scmp.ne.s32.totalorder %s606, %s607
      %p621 = scmp.eq.s32.totalorder %s41, 3
      %p622 = por %p620, %p621
      %p624 = scmp.ne.s32.totalorder %s607, %s623
      %p625 = scmp.eq.s32.totalorder %s41, 0
      %p626 = por %p624, %p625
      %s627 = ssub.s32 %s43, %s50
      %p628 = scmp.eq.s32.totalorder %s627, 0
      %s630 = sadd.s32 %s629, 1
      %s631 = scalar_select %p628, %s629, %s630
      %p634 = pneg %p628
      %p635 = scmp.eq.s32.totalorder %s35, 3
      %p636 = por %p634, %p635
      %p637 = scmp.ne.s32.totalorder %s629, %s632
      %p638 = scmp.eq.s32.totalorder %s35, 0
      %p639 = por %p637, %p638
      %p640 = scmp.ne.s32.totalorder %s629, %s632
      %p641 = scmp.eq.s32.totalorder %s40, 3
      %p642 = por %p640, %p641
      %p643 = scmp.ne.s32.totalorder %s632, %s633
      %p644 = scmp.eq.s32.totalorder %s40, 0
      %p645 = por %p643, %p644
      %p646 = scmp.ne.s32.totalorder %s632, %s633
      %p647 = scmp.eq.s32.totalorder %s41, 3
      %p648 = por %p646, %p647
      %p650 = scmp.ne.s32.totalorder %s633, %s649
      %p651 = scmp.eq.s32.totalorder %s41, 0
      %p652 = por %p650, %p651
      %s653 = ssub.s32 %s42, %s54
      %p654 = scmp.eq.s32.totalorder %s653, 0
      %s656 = sadd.s32 %s655, 1
      %s657 = scalar_select %p654, %s655, %s656
      %p660 = pneg %p654
      %p661 = scmp.eq.s32.totalorder %s35, 3
      %p662 = por %p660, %p661
      %p663 = scmp.ne.s32.totalorder %s655, %s658
      %p664 = scmp.eq.s32.totalorder %s35, 0
      %p665 = por %p663, %p664
      %p666 = scmp.ne.s32.totalorder %s655, %s658
      %p667 = scmp.eq.s32.totalorder %s40, 3
      %p668 = por %p666, %p667
      %p669 = scmp.ne.s32.totalorder %s658, %s659
      %p670 = scmp.eq.s32.totalorder %s40, 0
      %p671 = por %p669, %p670
      %p672 = scmp.ne.s32.totalorder %s658, %s659
      %p673 = scmp.eq.s32.totalorder %s41, 3
      %p674 = por %p672, %p673
      %p676 = scmp.ne.s32.totalorder %s659, %s675
      %p677 = scmp.eq.s32.totalorder %s41, 0
      %p678 = por %p676, %p677
      %p679 = scmp.le.s32.totalorder 1, %s35
      %p680 = scmp.lt.s32.totalorder %s35, 5
      %p681 = pnand %p679, %p680
      %p682 = pneg %p681
      // Predicated region
      $region9: #{_lambda_.3} parent=5 // pred_check
        _
      $region10: #{_lambda_.3} parent=5 // pred_check_branch
        %684 = sbr.rel (%p681) target = $region12
      $region11: #{_lambda_.3} parent=5 // pred_region
        %s685 = ssub.s32 %s35, 1
      $region12: #{_lambda_.3} parent=5 // pred_fallthru
        _
      %p686 = scmp.lt.s32.totalorder %s35, 4
      // Predicated region
      $region13: #{_lambda_.3} parent=5 // pred_check
        %p687 = pneg %p686
      $region14: #{_lambda_.3} parent=5 // pred_check_branch
        %689 = sbr.rel (%p687) target = $region16
      $region15: #{_lambda_.3} parent=5 // pred_region
        // Predicated region
        $region17: #{_lambda_.3} parent=15 // pred_check
          %p690 = pneg %p67
        $region18: #{_lambda_.3} parent=15 // pred_check_branch
          %692 = sbr.rel (%p690) target = $region20
        $region19: #{_lambda_.3} parent=15 // pred_region
          %p693 = scmp.lt.s32.totalorder %s42, 1
          %s694 = scalar_select %p693, %s42, 1
          %s695 = smul.addr %s694, 8
          %s696 = scalar_lea.vmem %s0, %s695
        $region20: #{_lambda_.3} parent=15 // pred_fallthru
          _
        // Predicated region
        $region21: #{_lambda_.3} parent=15 // pred_check
          %p697 = pneg %p93
        $region22: #{_lambda_.3} parent=15 // pred_check_branch
          %699 = sbr.rel (%p697) target = $region24
        $region23: #{_lambda_.3} parent=15 // pred_region
          %p700 = scmp.lt.s32.totalorder %s42, 1
          %s701 = scalar_select %p700, %s42, 1
          %s702 = scalar_lea.vmem %s1, %s701
        $region24: #{_lambda_.3} parent=15 // pred_fallthru
          _
        // Predicated region
        $region25: #{_lambda_.3} parent=15 // pred_check
          %p703 = pneg %p119
        $region26: #{_lambda_.3} parent=15 // pred_check_branch
          %705 = sbr.rel (%p703) target = $region28
        $region27: #{_lambda_.3} parent=15 // pred_region
          %p706 = scmp.lt.s32.totalorder %s42, 1
          %s707 = scalar_select %p706, %s42, 1
          %s708 = smul.addr %s707, 8
          %s709 = scalar_lea.vmem %s2, %s708
        $region28: #{_lambda_.3} parent=15 // pred_fallthru
          _
        // Predicated region
        $region29: #{_lambda_.3} parent=15 // pred_check
          %p710 = pneg %p145
        $region30: #{_lambda_.3} parent=15 // pred_check_branch
          %712 = sbr.rel (%p710) target = $region32
        $region31: #{_lambda_.3} parent=15 // pred_region
          %p713 = scmp.lt.s32.totalorder %s43, 1
          %s714 = scalar_select %p713, %s43, 1
          %s715 = scalar_lea.vmem %s3, %s714
        $region32: #{_lambda_.3} parent=15 // pred_fallthru
          _
        // Predicated region
        $region33: #{_lambda_.3} parent=15 // pred_check
          %p716 = pneg %p171
        $region34: #{_lambda_.3} parent=15 // pred_check_branch
          %718 = sbr.rel (%p716) target = $region36
        $region35: #{_lambda_.3} parent=15 // pred_region
          %p719 = scmp.lt.s32.totalorder %s43, 1
          %s720 = scalar_select %p719, %s43, 1
          %s721 = scalar_lea.vmem %s4, %s720
        $region36: #{_lambda_.3} parent=15 // pred_fallthru
          _
        // Predicated region
        $region37: #{_lambda_.3} parent=15 // pred_check
          %p722 = pneg %p197
        $region38: #{_lambda_.3} parent=15 // pred_check_branch
          %724 = sbr.rel (%p722) target = $region40
        $region39: #{_lambda_.3} parent=15 // pred_region
          %p725 = scmp.lt.s32.totalorder %s43, 1
          %s726 = scalar_select %p725, %s43, 1
          %s727 = smul.addr %s726, 48
          %s728 = smul.addr %s727, 4
          %s729 = scalar_lea.vmem %s5, %s728
        $region40: #{_lambda_.3} parent=15 // pred_fallthru
          _
        // Predicated region
        $region41: #{_lambda_.3} parent=15 // pred_check
          %p730 = pneg %p223
        $region42: #{_lambda_.3} parent=15 // pred_check_branch
          %732 = sbr.rel (%p730) target = $region44
        $region43: #{_lambda_.3} parent=15 // pred_region
          %p733 = scmp.lt.s32.totalorder %s43, 1
          %s734 = scalar_select %p733, %s43, 1
          %s735 = smul.addr %s734, 3
          %s736 = scalar_lea.vmem %s6, %s735
        $region44: #{_lambda_.3} parent=15 // pred_fallthru
          _
        // Predicated region
        $region45: #{_lambda_.3} parent=15 // pred_check
          %p737 = pneg %p249
        $region46: #{_lambda_.3} parent=15 // pred_check_branch
          %739 = sbr.rel (%p737) target = $region48
        $region47: #{_lambda_.3} parent=15 // pred_region
          %s740 = sand.u32 %s239, 1
          %s741 = scalar_lea.sflag [#allocation4], %s740
          %s742 = sand.u32 %s239, 1
          %s743 = smul.addr %s742, 64
          %s744 = scalar_lea.vmem [#allocation3], %s743
          %s746 = ssub.s32 1024, 1024
          %747 = vsyncadd %s741, %s746
          %s748 = smul.addr %s43, 16
          %s749 = smul.addr %s748, 64
          %s750 = scalar_lea.hbm %s7, %s749
          %s751 = sshll.u32 %s744, 4
          %s752 = int_to_ptr.vmem [resolvable:$true] %s751
          %757 = dma.hbm_to_vmem [thread:$0]  %s750, 1024, %s752, %s741, 64, 64, 4
        $region48: #{_lambda_.3} parent=15 // pred_fallthru
          _
        // Predicated region
        $region49: #{_lambda_.3} parent=15 // pred_check
          %p758 = pneg %p275
        $region50: #{_lambda_.3} parent=15 // pred_check_branch
          %760 = sbr.rel (%p758) target = $region52
        $region51: #{_lambda_.3} parent=15 // pred_region
          %p761 = scmp.lt.s32.totalorder %s43, 1
          %s762 = scalar_select %p761, %s43, 1
          %s763 = scalar_lea.vmem %s8, %s762
        $region52: #{_lambda_.3} parent=15 // pred_fallthru
          _
        // Predicated region
        $region53: #{_lambda_.3} parent=15 // pred_check
          %p764 = pneg %p301
        $region54: #{_lambda_.3} parent=15 // pred_check_branch
          %766 = sbr.rel (%p764) target = $region56
        $region55: #{_lambda_.3} parent=15 // pred_region
          %p767 = scmp.lt.s32.totalorder %s43, 1
          %s768 = scalar_select %p767, %s43, 1
          %s769 = scalar_lea.vmem %s9, %s768
        $region56: #{_lambda_.3} parent=15 // pred_fallthru
          _
        // Predicated region
        $region57: #{_lambda_.3} parent=15 // pred_check
          %p770 = pneg %p327
        $region58: #{_lambda_.3} parent=15 // pred_check_branch
          %772 = sbr.rel (%p770) target = $region60
        $region59: #{_lambda_.3} parent=15 // pred_region
          %p773 = scmp.lt.s32.totalorder %s43, 1
          %s774 = scalar_select %p773, %s43, 1
          %s775 = scalar_lea.vmem %s10, %s774
        $region60: #{_lambda_.3} parent=15 // pred_fallthru
          _
        // Predicated region
        $region61: #{_lambda_.3} parent=15 // pred_check
          %p776 = pneg %p353
        $region62: #{_lambda_.3} parent=15 // pred_check_branch
          %778 = sbr.rel (%p776) target = $region64
        $region63: #{_lambda_.3} parent=15 // pred_region
          %s779 = sand.u32 %s35, 1
          %s780 = scalar_lea.sflag [#allocation6], %s779
          %s781 = sand.u32 %s343, 1
          %s782 = smul.addr %s781, 64
          %s783 = scalar_lea.vmem [#allocation5], %s782
          %s785 = ssub.s32 1024, 1024
          %786 = vsyncadd %s780, %s785
          %s787 = smul.addr %s43, 16
          %s788 = smul.addr %s787, 64
          %s789 = scalar_lea.hbm %s11, %s788
          %s790 = sshll.u32 %s783, 4
          %s791 = int_to_ptr.vmem [resolvable:$true] %s790
          %796 = dma.hbm_to_vmem [thread:$0]  %s789, 1024, %s791, %s780, 64, 64, 4
        $region64: #{_lambda_.3} parent=15 // pred_fallthru
          _
        // Predicated region
        $region65: #{_lambda_.3} parent=15 // pred_check
          %p797 = pneg %p379
        $region66: #{_lambda_.3} parent=15 // pred_check_branch
          %799 = sbr.rel (%p797) target = $region68
        $region67: #{_lambda_.3} parent=15 // pred_region
          %p800 = scmp.lt.s32.totalorder %s43, 1
          %s801 = scalar_select %p800, %s43, 1
          %s802 = scalar_lea.vmem %s12, %s801
        $region68: #{_lambda_.3} parent=15 // pred_fallthru
          _
        // Predicated region
        $region69: #{_lambda_.3} parent=15 // pred_check
          %p803 = pneg %p405
        $region70: #{_lambda_.3} parent=15 // pred_check_branch
          %805 = sbr.rel (%p803) target = $region72
        $region71: #{_lambda_.3} parent=15 // pred_region
          %p806 = scmp.lt.s32.totalorder %s43, 1
          %s807 = scalar_select %p806, %s43, 1
          %s808 = smul.addr %s807, 32
          %s809 = smul.addr %s808, 4
          %s810 = scalar_lea.vmem %s13, %s809
        $region72: #{_lambda_.3} parent=15 // pred_fallthru
          _
        // Predicated region
        $region73: #{_lambda_.3} parent=15 // pred_check
          %p811 = pneg %p431
        $region74: #{_lambda_.3} parent=15 // pred_check_branch
          %813 = sbr.rel (%p811) target = $region76
        $region75: #{_lambda_.3} parent=15 // pred_region
          %p814 = scmp.lt.s32.totalorder %s43, 1
          %s815 = scalar_select %p814, %s43, 1
          %s816 = smul.addr %s815, 2
          %s817 = scalar_lea.vmem %s14, %s816
        $region76: #{_lambda_.3} parent=15 // pred_fallthru
          _
        // Predicated region
        $region77: #{_lambda_.3} parent=15 // pred_check
          %p818 = pneg %p457
        $region78: #{_lambda_.3} parent=15 // pred_check_branch
          %820 = sbr.rel (%p818) target = $region80
        $region79: #{_lambda_.3} parent=15 // pred_region
          %s821 = sand.u32 %s35, 1
          %s822 = scalar_lea.sflag [#allocation6], %s821
          %s823 = sand.u32 %s447, 1
          %s824 = smul.addr %s823, 64
          %s825 = scalar_lea.vmem [#allocation7], %s824
          %s827 = ssub.s32 1024, 1024
          %828 = vsyncadd %s822, %s827
          %s829 = smul.addr %s43, 16
          %s830 = smul.addr %s829, 64
          %s831 = scalar_lea.hbm %s15, %s830
          %s832 = sshll.u32 %s825, 4
          %s833 = int_to_ptr.vmem [resolvable:$true] %s832
          %838 = dma.hbm_to_vmem [thread:$0]  %s831, 1024, %s833, %s822, 64, 64, 4
        $region80: #{_lambda_.3} parent=15 // pred_fallthru
          _
        // Predicated region
        $region81: #{_lambda_.3} parent=15 // pred_check
          %p839 = pneg %p483
        $region82: #{_lambda_.3} parent=15 // pred_check_branch
          %841 = sbr.rel (%p839) target = $region84
        $region83: #{_lambda_.3} parent=15 // pred_region
          %p842 = scmp.lt.s32.totalorder %s43, 1
          %s843 = scalar_select %p842, %s43, 1
          %s844 = scalar_lea.vmem %s16, %s843
        $region84: #{_lambda_.3} parent=15 // pred_fallthru
          _
        // Predicated region
        $region85: #{_lambda_.3} parent=15 // pred_check
          %p845 = pneg %p509
        $region86: #{_lambda_.3} parent=15 // pred_check_branch
          %847 = sbr.rel (%p845) target = $region88
        $region87: #{_lambda_.3} parent=15 // pred_region
          %p848 = scmp.lt.s32.totalorder %s43, 1
          %s849 = scalar_select %p848, %s43, 1
          %s850 = scalar_lea.vmem %s17, %s849
        $region88: #{_lambda_.3} parent=15 // pred_fallthru
          _
        // Predicated region
        $region89: #{_lambda_.3} parent=15 // pred_check
          %p851 = pneg %p535
        $region90: #{_lambda_.3} parent=15 // pred_check_branch
          %853 = sbr.rel (%p851) target = $region92
        $region91: #{_lambda_.3} parent=15 // pred_region
          %p854 = scmp.lt.s32.totalorder %s43, 1
          %s855 = scalar_select %p854, %s43, 1
          %s856 = scalar_lea.vmem %s18, %s855
        $region92: #{_lambda_.3} parent=15 // pred_fallthru
          _
        // Predicated region
        $region93: #{_lambda_.3} parent=15 // pred_check
          %p857 = pneg %p561
        $region94: #{_lambda_.3} parent=15 // pred_check_branch
          %859 = sbr.rel (%p857) target = $region96
        $region95: #{_lambda_.3} parent=15 // pred_region
          %p860 = scmp.lt.s32.totalorder %s43, 1
          %s861 = scalar_select %p860, %s43, 1
          %s862 = smul.addr %s861, 32
          %s863 = smul.addr %s862, 4
          %s864 = scalar_lea.vmem %s19, %s863
        $region96: #{_lambda_.3} parent=15 // pred_fallthru
          _
        // Predicated region
        $region97: #{_lambda_.3} parent=15 // pred_check
          %p865 = pneg %p587
        $region98: #{_lambda_.3} parent=15 // pred_check_branch
          %867 = sbr.rel (%p865) target = $region100
        $region99: #{_lambda_.3} parent=15 // pred_region
          %p868 = scmp.lt.s32.totalorder %s43, 1
          %s869 = scalar_select %p868, %s43, 1
          %s870 = smul.addr %s869, 2
          %s871 = scalar_lea.vmem %s20, %s870
        $region100: #{_lambda_.3} parent=15 // pred_fallthru
          _
        // Predicated region
        $region101: #{_lambda_.3} parent=15 // pred_check
          %p872 = pneg %p613
        $region102: #{_lambda_.3} parent=15 // pred_check_branch
          %874 = sbr.rel (%p872) target = $region104
        $region103: #{_lambda_.3} parent=15 // pred_region
          %p875 = scmp.lt.s32.totalorder %s43, 1
          %s876 = scalar_select %p875, %s43, 1
          %s877 = smul.addr %s876, 32
          %s878 = smul.addr %s877, 4
          %s879 = scalar_lea.vmem %s21, %s878
        $region104: #{_lambda_.3} parent=15 // pred_fallthru
          _
        // Predicated region
        $region105: #{_lambda_.3} parent=15 // pred_check
          %p880 = pneg %p639
        $region106: #{_lambda_.3} parent=15 // pred_check_branch
          %882 = sbr.rel (%p880) target = $region108
        $region107: #{_lambda_.3} parent=15 // pred_region
          %p883 = scmp.lt.s32.totalorder %s43, 1
          %s884 = scalar_select %p883, %s43, 1
          %s885 = scalar_lea.vmem %s22, %s884
        $region108: #{_lambda_.3} parent=15 // pred_fallthru
          _
      $region16: #{_lambda_.3} parent=5 // pred_fallthru
        _
      %p886 = scmp.le.s32.totalorder 1, %s35
      %p887 = scmp.lt.s32.totalorder %s35, 5
      %p888 = pnand %p886, %p887
      %p889 = pneg %p888
      // Predicated region
      $region109: #{_lambda_.3} parent=5 // pred_check
        _
      $region110: #{_lambda_.3} parent=5 // pred_check_branch
        %891 = sbr.rel (%p888) target = $region112
      $region111: #{_lambda_.3} parent=5 // pred_region
        %s892 = ssub.s32 %s35, 1
        %s893 = sand.u32 %s242, 1
        %s894 = scalar_lea.sflag [#allocation4], %s893
        %s895 = sand.u32 %s242, 1
        %s896 = smul.addr %s895, 64
        %s897 = scalar_lea.vmem [#allocation3], %s896
        // Predicated region
        $region113: #{_lambda_.3} parent=111 // pred_check
          %p898 = pneg %p255
        $region114: #{_lambda_.3} parent=111 // pred_check_branch
          %900 = sbr.rel (%p898) target = $region116
        $region115: #{_lambda_.3} parent=111 // pred_region
          %901 = dma.done %s894, 1024
        $region116: #{_lambda_.3} parent=111 // pred_fallthru
          _
        %s902 = sand.u32 %s40, 1
        %s903 = scalar_lea.sflag [#allocation6], %s902
        %s904 = sand.u32 %s346, 1
        %s905 = smul.addr %s904, 64
        %s906 = scalar_lea.vmem [#allocation5], %s905
        // Predicated region
        $region117: #{_lambda_.3} parent=111 // pred_check
          %p907 = pneg %p359
        $region118: #{_lambda_.3} parent=111 // pred_check_branch
          %909 = sbr.rel (%p907) target = $region120
        $region119: #{_lambda_.3} parent=111 // pred_region
          %910 = dma.done %s903, 1024
        $region120: #{_lambda_.3} parent=111 // pred_fallthru
          _
        %s911 = sand.u32 %s40, 1
        %s912 = scalar_lea.sflag [#allocation6], %s911
        %s913 = sand.u32 %s450, 1
        %s914 = smul.addr %s913, 64
        %s915 = scalar_lea.vmem [#allocation7], %s914
        // Predicated region
        $region121: #{_lambda_.3} parent=111 // pred_check
          %p916 = pneg %p463
        $region122: #{_lambda_.3} parent=111 // pred_check_branch
          %918 = sbr.rel (%p916) target = $region124
        $region123: #{_lambda_.3} parent=111 // pred_region
          %919 = dma.done %s912, 1024
        $region124: #{_lambda_.3} parent=111 // pred_fallthru
          _
        %p920 = scmp.lt.s32.totalorder %s44, 1
        %s921 = scalar_select %p920, %s44, 1
        %s922 = smul.addr %s921, 8
        %s923 = scalar_lea.vmem %s0, %s922
        %p924 = pneg %p73
        %p925 = pneg %p70
        %p926 = scmp.lt.s32.totalorder %s44, 1
        %s927 = scalar_select %p926, %s44, 1
        %s928 = scalar_lea.vmem %s1, %s927
        %p929 = pneg %p99
        %p930 = pneg %p96
        %p931 = scmp.lt.s32.totalorder %s44, 1
        %s932 = scalar_select %p931, %s44, 1
        %s933 = smul.addr %s932, 8
        %s934 = scalar_lea.vmem %s2, %s933
        %p935 = pneg %p125
        %p936 = pneg %p122
        %p937 = scmp.lt.s32.totalorder %s45, 1
        %s938 = scalar_select %p937, %s45, 1
        %s939 = scalar_lea.vmem %s3, %s938
        %p940 = pneg %p151
        %p941 = pneg %p148
        %p942 = scmp.lt.s32.totalorder %s45, 1
        %s943 = scalar_select %p942, %s45, 1
        %s944 = scalar_lea.vmem %s4, %s943
        %p945 = pneg %p177
        %p946 = pneg %p174
        %p947 = scmp.lt.s32.totalorder %s45, 1
        %s948 = scalar_select %p947, %s45, 1
        %s949 = smul.addr %s948, 48
        %s950 = smul.addr %s949, 4
        %s951 = scalar_lea.vmem %s5, %s950
        %p952 = pneg %p203
        %p953 = pneg %p200
        %p954 = scmp.lt.s32.totalorder %s45, 1
        %s955 = scalar_select %p954, %s45, 1
        %s956 = smul.addr %s955, 3
        %s957 = scalar_lea.vmem %s6, %s956
        %p958 = pneg %p229
        %p959 = pneg %p226
        %s960 = sand.u32 %s242, 1
        %s961 = scalar_lea.sflag [#allocation4], %s960
        %s962 = sand.u32 %s242, 1
        %s963 = smul.addr %s962, 64
        %s964 = scalar_lea.vmem [#allocation3], %s963
        %p965 = pneg %p255
        %p966 = pneg %p252
        %p967 = scmp.lt.s32.totalorder %s45, 1
        %s968 = scalar_select %p967, %s45, 1
        %s969 = scalar_lea.vmem %s8, %s968
        %p970 = pneg %p281
        %p971 = pneg %p278
        %p972 = scmp.lt.s32.totalorder %s45, 1
        %s973 = scalar_select %p972, %s45, 1
        %s974 = scalar_lea.vmem %s9, %s973
        %p975 = pneg %p307
        %p976 = pneg %p304
        %p977 = scmp.lt.s32.totalorder %s45, 1
        %s978 = scalar_select %p977, %s45, 1
        %s979 = scalar_lea.vmem %s10, %s978
        %p980 = pneg %p333
        %p981 = pneg %p330
        %s982 = sand.u32 %s40, 1
        %s983 = scalar_lea.sflag [#allocation6], %s982
        %s984 = sand.u32 %s346, 1
        %s985 = smul.addr %s984, 64
        %s986 = scalar_lea.vmem [#allocation5], %s985
        %p987 = pneg %p359
        %p988 = pneg %p356
        %p989 = scmp.lt.s32.totalorder %s45, 1
        %s990 = scalar_select %p989, %s45, 1
        %s991 = scalar_lea.vmem %s12, %s990
        %p992 = pneg %p385
        %p993 = pneg %p382
        %p994 = scmp.lt.s32.totalorder %s45, 1
        %s995 = scalar_select %p994, %s45, 1
        %s996 = smul.addr %s995, 32
        %s997 = smul.addr %s996, 4
        %s998 = scalar_lea.vmem %s13, %s997
        %p999 = pneg %p411
        %p1000 = pneg %p408
        %p1001 = scmp.lt.s32.totalorder %s45, 1
        %s1002 = scalar_select %p1001, %s45, 1
        %s1003 = smul.addr %s1002, 2
        %s1004 = scalar_lea.vmem %s14, %s1003
        %p1005 = pneg %p437
        %p1006 = pneg %p434
        %s1007 = sand.u32 %s40, 1
        %s1008 = scalar_lea.sflag [#allocation6], %s1007
        %s1009 = sand.u32 %s450, 1
        %s1010 = smul.addr %s1009, 64
        %s1011 = scalar_lea.vmem [#allocation7], %s1010
        %p1012 = pneg %p463
        %p1013 = pneg %p460
        %p1014 = scmp.lt.s32.totalorder %s45, 1
        %s1015 = scalar_select %p1014, %s45, 1
        %s1016 = scalar_lea.vmem %s16, %s1015
        %p1017 = pneg %p489
        %p1018 = pneg %p486
        %p1019 = scmp.lt.s32.totalorder %s45, 1
        %s1020 = scalar_select %p1019, %s45, 1
        %s1021 = scalar_lea.vmem %s17, %s1020
        %p1022 = pneg %p515
        %p1023 = pneg %p512
        %p1024 = scmp.lt.s32.totalorder %s45, 1
        %s1025 = scalar_select %p1024, %s45, 1
        %s1026 = scalar_lea.vmem %s18, %s1025
        %p1027 = pneg %p541
        %p1028 = pneg %p538
        %p1029 = scmp.lt.s32.totalorder %s45, 1
        %s1030 = scalar_select %p1029, %s45, 1
        %s1031 = smul.addr %s1030, 32
        %s1032 = smul.addr %s1031, 4
        %s1033 = scalar_lea.vmem %s19, %s1032
        %p1034 = pneg %p567
        %p1035 = pneg %p564
        %p1036 = scmp.lt.s32.totalorder %s45, 1
        %s1037 = scalar_select %p1036, %s45, 1
        %s1038 = smul.addr %s1037, 2
        %s1039 = scalar_lea.vmem %s20, %s1038
        %p1040 = pneg %p593
        %p1041 = pneg %p590
        %p1042 = scmp.lt.s32.totalorder %s45, 1
        %s1043 = scalar_select %p1042, %s45, 1
        %s1044 = smul.addr %s1043, 32
        %s1045 = smul.addr %s1044, 4
        %s1046 = scalar_lea.vmem %s21, %s1045
        %p1047 = pneg %p619
        %p1048 = pneg %p616
        %p1049 = scmp.lt.s32.totalorder %s45, 1
        %s1050 = scalar_select %p1049, %s45, 1
        %s1051 = scalar_lea.vmem %s22, %s1050
        %p1052 = pneg %p645
        %p1053 = pneg %p642
        %p1054 = pneg %p671
        %p1055 = pneg %p668
        %p1056 = scmp.lt.s32.totalorder %s44, 1
        %s1057 = scalar_select %p1056, %s44, 1
        %s1058 = smul.addr %s1057, 8
        %s1059 = scalar_lea.vmem %s23, %s1058
        %p1060 = scmp.lt.s32.totalorder %s44, 1
        %s1061 = scalar_select %p1060, %s44, 1
        %s1062 = smul.addr %s1061, 8
        %s1063 = scalar_lea.vmem %s0, %s1062
        %p1064 = scmp.lt.s32.totalorder %s44, 1
        %s1065 = scalar_select %p1064, %s44, 1
        %s1066 = scalar_lea.vmem %s1, %s1065
        %p1067 = scmp.lt.s32.totalorder %s44, 1
        %s1068 = scalar_select %p1067, %s44, 1
        %s1069 = smul.addr %s1068, 8
        %s1070 = scalar_lea.vmem %s2, %s1069
        %p1071 = scmp.lt.s32.totalorder %s45, 1
        %s1072 = scalar_select %p1071, %s45, 1
        %s1073 = scalar_lea.vmem %s3, %s1072
        %p1074 = scmp.lt.s32.totalorder %s45, 1
        %s1075 = scalar_select %p1074, %s45, 1
        %s1076 = scalar_lea.vmem %s4, %s1075
        %p1077 = scmp.lt.s32.totalorder %s45, 1
        %s1078 = scalar_select %p1077, %s45, 1
        %s1079 = smul.addr %s1078, 48
        %s1080 = smul.addr %s1079, 4
        %s1081 = scalar_lea.vmem %s5, %s1080
        %p1082 = scmp.lt.s32.totalorder %s45, 1
        %s1083 = scalar_select %p1082, %s45, 1
        %s1084 = smul.addr %s1083, 3
        %s1085 = scalar_lea.vmem %s6, %s1084
        %p1086 = scmp.lt.s32.totalorder %s45, 1
        %s1087 = scalar_select %p1086, %s45, 1
        %s1088 = scalar_lea.vmem %s8, %s1087
        %p1089 = scmp.lt.s32.totalorder %s45, 1
        %s1090 = scalar_select %p1089, %s45, 1
        %s1091 = scalar_lea.vmem %s9, %s1090
        %p1092 = scmp.lt.s32.totalorder %s45, 1
        %s1093 = scalar_select %p1092, %s45, 1
        %s1094 = scalar_lea.vmem %s10, %s1093
        %p1095 = scmp.lt.s32.totalorder %s45, 1
        %s1096 = scalar_select %p1095, %s45, 1
        %s1097 = scalar_lea.vmem %s12, %s1096
        %p1098 = scmp.lt.s32.totalorder %s45, 1
        %s1099 = scalar_select %p1098, %s45, 1
        %s1100 = smul.addr %s1099, 32
        %s1101 = smul.addr %s1100, 4
        %s1102 = scalar_lea.vmem %s13, %s1101
        %p1103 = scmp.lt.s32.totalorder %s45, 1
        %s1104 = scalar_select %p1103, %s45, 1
        %s1105 = smul.addr %s1104, 2
        %s1106 = scalar_lea.vmem %s14, %s1105
        %p1107 = scmp.lt.s32.totalorder %s45, 1
        %s1108 = scalar_select %p1107, %s45, 1
        %s1109 = scalar_lea.vmem %s16, %s1108
        %p1110 = scmp.lt.s32.totalorder %s45, 1
        %s1111 = scalar_select %p1110, %s45, 1
        %s1112 = scalar_lea.vmem %s17, %s1111
        %p1113 = scmp.lt.s32.totalorder %s45, 1
        %s1114 = scalar_select %p1113, %s45, 1
        %s1115 = scalar_lea.vmem %s18, %s1114
        %p1116 = scmp.lt.s32.totalorder %s45, 1
        %s1117 = scalar_select %p1116, %s45, 1
        %s1118 = smul.addr %s1117, 32
        %s1119 = smul.addr %s1118, 4
        %s1120 = scalar_lea.vmem %s19, %s1119
        %p1121 = scmp.lt.s32.totalorder %s45, 1
        %s1122 = scalar_select %p1121, %s45, 1
        %s1123 = smul.addr %s1122, 2
        %s1124 = scalar_lea.vmem %s20, %s1123
        %p1125 = scmp.lt.s32.totalorder %s45, 1
        %s1126 = scalar_select %p1125, %s45, 1
        %s1127 = smul.addr %s1126, 32
        %s1128 = smul.addr %s1127, 4
        %s1129 = scalar_lea.vmem %s21, %s1128
        %p1130 = scmp.lt.s32.totalorder %s45, 1
        %s1131 = scalar_select %p1130, %s45, 1
        %s1132 = scalar_lea.vmem %s22, %s1131
        %p1133 = scmp.lt.s32.totalorder %s44, 1
        %s1134 = scalar_select %p1133, %s44, 1
        %s1135 = smul.addr %s1134, 8
        %s1136 = scalar_lea.vmem %s23, %s1135
        %p1138 = scmp.eq.s32.totalorder %s45, 0
        // Predicated region
        $region125: #{_lambda_.3} parent=111 // pred_check
          %p1139 = pneg %p1138
        $region126: #{_lambda_.3} parent=111 // pred_check_branch
          %1141 = sbr.rel (%p1139) target = $region128
        $region127: #{_lambda_.3} parent=111 // pred_region
          %v1142 = vld [vmem:[%s1063] sm:$0xff]
          %1143 = vst [vmem:[#allocation2] sm:$0xff] %v1142
        $region128: #{_lambda_.3} parent=111 // pred_fallthru
          _
        %v1144 = vld [vmem:[#allocation2] sm:$0xff]
        %v1145 = vld [vmem:[%s1066] sm:$0x1]
        %v1146 = vld [vmem:[%s1073] sm:$0x1]
        %v1147 = vld [vmem:[%s1076] sm:$0x1]
        %1148 = vadd.xlane.f32.xlu0 %v1144
        %v1149 = vpop.xlane.xlu0 %1148
        %v1150 = vrcp.pop 128.0
        %v1151 = vmul.f32 %v1149, %v1150
        %v1152 = vsub.f32 %v1144, %v1151
        %v1153 = vmul.f32 %v1152, %v1152
        %1154 = vadd.xlane.f32.xlu0 %v1153
        %v1155 = vpop.xlane.xlu0 %1154
        %v1156 = vmul.f32 %v1155, %v1150
        %v1157 = vadd.f32 %v1156, 1e-12
        %v1158 = vrsqrt.pop %v1157
        %v1159 = vmul.f32 %v1152, %v1158
        %v1161 = vlaneseq
        %v1162 = vshrl.u32 %v1161, 7
        %v1163 = vsub.s32 0, %v1162
        %v1164 = vrot.slane %v1146, %v1163
        %v1166 = vmul.f32 %v1159, %v1164
        %v1168 = vlaneseq
        %v1169 = vshrl.u32 %v1168, 7
        %v1170 = vsub.s32 0, %v1169
        %v1171 = vrot.slane %v1147, %v1170
        %v1173 = vadd.f32 %v1166, %v1171
        %v1174 = vld [vmem:[%s1081] sm:$0xff]
        %v1175 = vld [vmem:[%s1081 + $0x8] sm:$0xf]
        %v1176 = vld [vmem:[%s1081 + $0xc] sm:$0xff]
        %v1177 = vld [vmem:[%s1081 + $0x14] sm:$0xf]
        %v1178 = vld [vmem:[%s1081 + $0x18] sm:$0xff]
        %v1179 = vld [vmem:[%s1081 + $0x20] sm:$0xf]
        %v1180 = vld [vmem:[%s1081 + $0x24] sm:$0xff]
        %v1181 = vld [vmem:[%s1081 + $0x2c] sm:$0xf]
        %v1182 = vld [vmem:[%s1081 + $0x30] sm:$0xff]
        %v1183 = vld [vmem:[%s1081 + $0x38] sm:$0xf]
        %v1184 = vld [vmem:[%s1081 + $0x3c] sm:$0xff]
        %v1185 = vld [vmem:[%s1081 + $0x44] sm:$0xf]
        %v1186 = vld [vmem:[%s1081 + $0x48] sm:$0xff]
        %v1187 = vld [vmem:[%s1081 + $0x50] sm:$0xf]
        %v1188 = vld [vmem:[%s1081 + $0x54] sm:$0xff]
        %v1189 = vld [vmem:[%s1081 + $0x5c] sm:$0xf]
        %v1190 = vld [vmem:[%s1081 + $0x60] sm:$0xff]
        %v1191 = vld [vmem:[%s1081 + $0x68] sm:$0xf]
        %v1192 = vld [vmem:[%s1081 + $0x6c] sm:$0xff]
        %v1193 = vld [vmem:[%s1081 + $0x74] sm:$0xf]
        %v1194 = vld [vmem:[%s1081 + $0x78] sm:$0xff]
        %v1195 = vld [vmem:[%s1081 + $0x80] sm:$0xf]
        %v1196 = vld [vmem:[%s1081 + $0x84] sm:$0xff]
        %v1197 = vld [vmem:[%s1081 + $0x8c] sm:$0xf]
        %v1198 = vld [vmem:[%s1081 + $0x90] sm:$0xff]
        %v1199 = vld [vmem:[%s1081 + $0x98] sm:$0xf]
        %v1200 = vld [vmem:[%s1081 + $0x9c] sm:$0xff]
        %v1201 = vld [vmem:[%s1081 + $0xa4] sm:$0xf]
        %v1202 = vld [vmem:[%s1081 + $0xa8] sm:$0xff]
        %v1203 = vld [vmem:[%s1081 + $0xb0] sm:$0xf]
        %v1204 = vld [vmem:[%s1081 + $0xb4] sm:$0xff]
        %v1205 = vld [vmem:[%s1081 + $0xbc] sm:$0xf]
        %v1206 = vld [vmem:[%s1085] sm:$0x7]
        %v1207 = vpack.c.bf16 %v1173, %v1173
        %v1209 = vlaneseq
        %v1210 = vshrl.u32 %v1209, 7
        %v1211 = vsub.s32 0, %v1210
        %v1212 = vrot.slane %v1206, %v1211
        %v1213 = vlaneseq
        %v1214 = vshrl.u32 %v1213, 7
        %v1215 = vsub.s32 1, %v1214
        %v1216 = vrot.slane %v1206, %v1215
        %v1217 = vlaneseq
        %v1218 = vshrl.u32 %v1217, 7
        %v1219 = vsub.s32 2, %v1218
        %v1220 = vrot.slane %v1206, %v1219
        %v1256 = vunpack.c.l.b16 %v1174
        %v1257 = vunpack.c.h.b16 %v1174
        %v1258 = vunpack.c.l.b16 %v1175
        %v1259 = vunpack.c.l.b16 %v1176
        %v1260 = vunpack.c.h.b16 %v1176
        %v1261 = vunpack.c.l.b16 %v1177
        %v1262 = vunpack.c.l.b16 %v1178
        %v1263 = vunpack.c.h.b16 %v1178
        %v1264 = vunpack.c.l.b16 %v1179
        %v1265 = vunpack.c.l.b16 %v1180
        %v1266 = vunpack.c.h.b16 %v1180
        %v1267 = vunpack.c.l.b16 %v1181
        %v1268 = vunpack.c.l.b16 %v1182
        %v1269 = vunpack.c.h.b16 %v1182
        %v1270 = vunpack.c.l.b16 %v1183
        %v1271 = vunpack.c.l.b16 %v1184
        %v1272 = vunpack.c.h.b16 %v1184
        %v1273 = vunpack.c.l.b16 %v1185
        %v1274 = vunpack.c.l.b16 %v1186
        %v1275 = vunpack.c.h.b16 %v1186
        %v1276 = vunpack.c.l.b16 %v1187
        %v1277 = vunpack.c.l.b16 %v1188
        %v1278 = vunpack.c.h.b16 %v1188
        %v1279 = vunpack.c.l.b16 %v1189
        %v1280 = vunpack.c.l.b16 %v1190
        %v1281 = vunpack.c.h.b16 %v1190
        %v1282 = vunpack.c.l.b16 %v1191
        %v1283 = vunpack.c.l.b16 %v1192
        %v1284 = vunpack.c.h.b16 %v1192
        %v1285 = vunpack.c.l.b16 %v1193
        %v1286 = vunpack.c.l.b16 %v1194
        %v1287 = vunpack.c.h.b16 %v1194
        %v1288 = vunpack.c.l.b16 %v1195
        %v1289 = vunpack.c.l.b16 %v1196
        %v1290 = vunpack.c.h.b16 %v1196
        %v1291 = vunpack.c.l.b16 %v1197
        %v1292 = vunpack.c.l.b16 %v1198
        %v1293 = vunpack.c.h.b16 %v1198
        %v1294 = vunpack.c.l.b16 %v1199
        %v1295 = vunpack.c.l.b16 %v1200
        %v1296 = vunpack.c.h.b16 %v1200
        %v1297 = vunpack.c.l.b16 %v1201
        %v1298 = vunpack.c.l.b16 %v1202
        %v1299 = vunpack.c.h.b16 %v1202
        %v1300 = vunpack.c.l.b16 %v1203
        %v1301 = vunpack.c.l.b16 %v1204
        %v1302 = vunpack.c.h.b16 %v1204
        %v1303 = vunpack.c.l.b16 %v1205
        %v1304 = vpack.c.b16 %v1259, %v1256
        %v1305 = vpack.c.b16 %v1260, %v1257
        %v1306 = vpack.c.b16 %v1261, %v1258
        %v1307 = vpack.c.b16 %v1265, %v1262
        %v1308 = vpack.c.b16 %v1266, %v1263
        %v1309 = vpack.c.b16 %v1267, %v1264
        %v1310 = vpack.c.b16 %v1271, %v1268
        %v1311 = vpack.c.b16 %v1272, %v1269
        %v1312 = vpack.c.b16 %v1273, %v1270
        %v1313 = vpack.c.b16 %v1277, %v1274
        %v1314 = vpack.c.b16 %v1278, %v1275
        %v1315 = vpack.c.b16 %v1279, %v1276
        %v1316 = vpack.c.b16 %v1283, %v1280
        %v1317 = vpack.c.b16 %v1284, %v1281
        %v1318 = vpack.c.b16 %v1285, %v1282
        %v1319 = vpack.c.b16 %v1289, %v1286
        %v1320 = vpack.c.b16 %v1290, %v1287
        %v1321 = vpack.c.b16 %v1291, %v1288
        %v1322 = vpack.c.b16 %v1295, %v1292
        %v1323 = vpack.c.b16 %v1296, %v1293
        %v1324 = vpack.c.b16 %v1297, %v1294
        %v1325 = vpack.c.b16 %v1301, %v1298
        %v1326 = vpack.c.b16 %v1302, %v1299
        %v1327 = vpack.c.b16 %v1303, %v1300
        %1352 = vmatprep.subr.bf16.mxu0 %v1305
        %1353 = vmatpush1.bf16.msra.mxu0 %v1304
        %1354 = vmatprep.subr.bf16.mxu0 %v1308
        %1355 = vmatpush1.bf16.msra.mxu0 %v1307
        %1356 = vmatprep.subr.bf16.mxu0 %v1311
        %1357 = vmatpush1.bf16.msra.mxu0 %v1310
        %1358 = vmatprep.subr.bf16.mxu0 %v1314
        %1359 = vmatpush1.bf16.msra.mxu0 %v1313
        %1360 = vmatprep.subr.bf16.mxu0 %v1317
        %1361 = vmatpush1.bf16.msra.mxu0 %v1316
        %1362 = vmatprep.subr.bf16.mxu0 %v1320
        %1363 = vmatpush1.bf16.msra.mxu0 %v1319
        %1364 = vmatprep.subr.bf16.mxu0 %v1323
        %1365 = vmatpush1.bf16.msra.mxu0 %v1322
        %1366 = vmatprep.subr.bf16.mxu0 %v1326
        %1367 = vmatpush1.bf16.msra.mxu0 %v1325
        %1368 = vmatprep.subr.bf16.mxu0 0
        %1369 = vmatpush1.bf16.msra.mxu0 0
        %1370 = vmatprep.subr.bf16.mxu0 0
        %1371 = vmatpush1.bf16.msra.mxu0 0
        %1372 = vmatprep.subr.bf16.mxu0 0
        %1373 = vmatpush1.bf16.msra.mxu0 0
        %1374 = vmatprep.subr.bf16.mxu0 0
        %1375 = vmatpush1.bf16.msra.mxu0 0
        %1376 = vmatprep.subr.bf16.mxu0 0
        %1377 = vmatpush1.bf16.msra.mxu0 0
        %1378 = vmatprep.subr.bf16.mxu0 0
        %1379 = vmatpush1.bf16.msra.mxu0 0
        %1380 = vmatprep.subr.bf16.mxu0 0
        %1381 = vmatpush1.bf16.msra.mxu0 0
        %1382 = vmatprep.subr.bf16.mxu0 0
        %1383 = vmatpush1.bf16.msra.mxu0 0
        %1384 = vmatprep.mubr.bf16.mxu0 0
        %1385 = vmatmul.mubr.bf16.gmra.mrb[0].mxu0 %v1207
        %v1386 = vpop.f32.mrb[0].mxu0
        %v1387 = vadd.f32 %v1212, %v1386
        %v1388 = vpop.f32.mrb[0].mxu0
        %v1389 = vadd.f32 %v1216, %v1388
        %v1390 = vpop.f32.mrb[0].mxu0
        %v1391 = vpop.f32.mrb[0].mxu0
        %1392 = vdwg.mxu0
        %1393 = vmatprep.subr.bf16.mxu0 0
        %1394 = vmatpush1.bf16.msra.mxu0 %v1306
        %1395 = vmatprep.subr.bf16.mxu0 0
        %1396 = vmatpush1.bf16.msra.mxu0 %v1309
        %1397 = vmatprep.subr.bf16.mxu0 0
        %1398 = vmatpush1.bf16.msra.mxu0 %v1312
        %1399 = vmatprep.subr.bf16.mxu0 0
        %1400 = vmatpush1.bf16.msra.mxu0 %v1315
        %1401 = vmatprep.subr.bf16.mxu0 0
        %1402 = vmatpush1.bf16.msra.mxu0 %v1318
        %1403 = vmatprep.subr.bf16.mxu0 0
        %1404 = vmatpush1.bf16.msra.mxu0 %v1321
        %1405 = vmatprep.subr.bf16.mxu0 0
        %1406 = vmatpush1.bf16.msra.mxu0 %v1324
        %1407 = vmatprep.subr.bf16.mxu0 0
        %1408 = vmatpush1.bf16.msra.mxu0 %v1327
        %1409 = vmatprep.subr.bf16.mxu0 0
        %1410 = vmatpush1.bf16.msra.mxu0 0
        %1411 = vmatprep.subr.bf16.mxu0 0
        %1412 = vmatpush1.bf16.msra.mxu0 0
        %1413 = vmatprep.subr.bf16.mxu0 0
        %1414 = vmatpush1.bf16.msra.mxu0 0
        %1415 = vmatprep.subr.bf16.mxu0 0
        %1416 = vmatpush1.bf16.msra.mxu0 0
        %1417 = vmatprep.subr.bf16.mxu0 0
        %1418 = vmatpush1.bf16.msra.mxu0 0
        %1419 = vmatprep.subr.bf16.mxu0 0
        %1420 = vmatpush1.bf16.msra.mxu0 0
        %1421 = vmatprep.subr.bf16.mxu0 0
        %1422 = vmatpush1.bf16.msra.mxu0 0
        %1423 = vmatprep.subr.bf16.mxu0 0
        %1424 = vmatpush1.bf16.msra.mxu0 0
        %1425 = vmatprep.mubr.bf16.mxu0 0
        %1426 = vmatmul.mubr.bf16.gmra.mrb[0].mxu0 %v1207
        %v1427 = vpop.f32.mrb[0].mxu0
        %v1428 = vadd.f32 %v1220, %v1427
        %v1429 = vpop.f32.mrb[0].mxu0
        %v1430 = vpop.f32.mrb[0].mxu0
        %v1431 = vpop.f32.mrb[0].mxu0
        %1432 = vdwg.mxu0
        %v1433 = vpack.c.bf16 %v1387, %v1387
        %v1434 = vpack.c.bf16 %v1389, %v1389
        %v1435 = vpack.c.bf16 %v1428, %v1428
        %v1437 = vlaneseq
        %v1438 = vshrl.u32 %v1437, 7
        %v1439 = vsub.s32 0, %v1438
        %v1440 = vrot.slane %v1145, %v1439
        %vm1442 = vcmask 261120
        %v1444 = vsel %vm1442, %v1433, 0
        %v1447 = vsel %vm1442, %v1434, 0
        %1449 = vmatprep.subr.bf16.mxu0 0
        %1450 = vmatpush1.bf16.xpose.msra.mxu0 %v1447
        %1451 = vmatprep.subr.bf16.mxu0 0
        %1452 = vmatpush1.bf16.xpose.msra.mxu0 0
        %1453 = vmatprep.subr.bf16.mxu0 0
        %1454 = vmatpush1.bf16.xpose.msra.mxu0 0
        %1455 = vmatprep.subr.bf16.mxu0 0
        %1456 = vmatpush1.bf16.xpose.msra.mxu0 0
        %1457 = vmatprep.subr.bf16.mxu0 0
        %1458 = vmatpush1.bf16.xpose.msra.mxu0 0
        %1459 = vmatprep.subr.bf16.mxu0 0
        %1460 = vmatpush1.bf16.xpose.msra.mxu0 0
        %1461 = vmatprep.subr.bf16.mxu0 0
        %1462 = vmatpush1.bf16.xpose.msra.mxu0 0
        %1463 = vmatprep.subr.bf16.mxu0 0
        %1464 = vmatpush1.bf16.xpose.msra.mxu0 0
        %1465 = vmatprep.subr.bf16.mxu0 0
        %1466 = vmatpush1.bf16.xpose.msra.mxu0 0
        %1467 = vmatprep.subr.bf16.mxu0 0
        %1468 = vmatpush1.bf16.xpose.msra.mxu0 0
        %1469 = vmatprep.subr.bf16.mxu0 0
        %1470 = vmatpush1.bf16.xpose.msra.mxu0 0
        %1471 = vmatprep.subr.bf16.mxu0 0
        %1472 = vmatpush1.bf16.xpose.msra.mxu0 0
        %1473 = vmatprep.subr.bf16.mxu0 0
        %1474 = vmatpush1.bf16.xpose.msra.mxu0 0
        %1475 = vmatprep.subr.bf16.mxu0 0
        %1476 = vmatpush1.bf16.xpose.msra.mxu0 0
        %1477 = vmatprep.subr.bf16.mxu0 0
        %1478 = vmatpush1.bf16.xpose.msra.mxu0 0
        %1479 = vmatprep.subr.bf16.mxu0 0
        %1480 = vmatpush1.bf16.xpose.msra.mxu0 0
        %1481 = vmatprep.mubr.bf16.mxu0 0
        %1482 = vmatmul.mubr.bf16.gmra.mrb[0].mxu0 %v1444
        %v1483 = vpop.f32.mrb[0].mxu0
        %v1484 = vadd.f32 %v1440, %v1483
        %v1485 = vpop.f32.mrb[0].mxu0
        %v1486 = vpop.f32.mrb[0].mxu0
        %v1487 = vpop.f32.mrb[0].mxu0
        %1488 = vdwg.mxu0
        %vm1489 = vcmask 64512
        %v1490 = vsel %vm1489, %v1484, -inf
        %1491 = vmax.xlane.f32.xlu0 %v1490
        %v1492 = vpop.xlane.xlu0 %1491
        %v1493 = vsub.f32 %v1484, %v1492
        %v1494 = vmul.f32 %v1493, 1.442695
        %v1495 = vpow.pop %v1494
        %v1496 = vsel %vm1489, %v1495, 0.0
        %1497 = vadd.xlane.f32.xlu0 %v1496
        %v1498 = vpop.xlane.xlu0 %1497
        %v1499 = vrcp.pop %v1498
        %v1500 = vmul.f32 %v1495, %v1499
        %v1501 = vpack.c.bf16 %v1500, %v1500
        %v1503 = vsel %vm1489, %v1501, 0
        %vm1505 = vcmask 1043456
        %v1507 = vsel %vm1505, %v1435, 0
        %1509 = vmatprep.subr.bf16.mxu0 0
        %1510 = vmatpush1.bf16.msra.mxu0 %v1507
        %1511 = vmatprep.subr.bf16.mxu0 0
        %1512 = vmatpush1.bf16.msra.mxu0 0
        %1513 = vmatprep.subr.bf16.mxu0 0
        %1514 = vmatpush1.bf16.msra.mxu0 0
        %1515 = vmatprep.subr.bf16.mxu0 0
        %1516 = vmatpush1.bf16.msra.mxu0 0
        %1517 = vmatprep.subr.bf16.mxu0 0
        %1518 = vmatpush1.bf16.msra.mxu0 0
        %1519 = vmatprep.subr.bf16.mxu0 0
        %1520 = vmatpush1.bf16.msra.mxu0 0
        %1521 = vmatprep.subr.bf16.mxu0 0
        %1522 = vmatpush1.bf16.msra.mxu0 0
        %1523 = vmatprep.subr.bf16.mxu0 0
        %1524 = vmatpush1.bf16.msra.mxu0 0
        %1525 = vmatprep.subr.bf16.mxu0 0
        %1526 = vmatpush1.bf16.msra.mxu0 0
        %1527 = vmatprep.subr.bf16.mxu0 0
        %1528 = vmatpush1.bf16.msra.mxu0 0
        %1529 = vmatprep.subr.bf16.mxu0 0
        %1530 = vmatpush1.bf16.msra.mxu0 0
        %1531 = vmatprep.subr.bf16.mxu0 0
        %1532 = vmatpush1.bf16.msra.mxu0 0
        %1533 = vmatprep.subr.bf16.mxu0 0
        %1534 = vmatpush1.bf16.msra.mxu0 0
        %1535 = vmatprep.subr.bf16.mxu0 0
        %1536 = vmatpush1.bf16.msra.mxu0 0
        %1537 = vmatprep.subr.bf16.mxu0 0
        %1538 = vmatpush1.bf16.msra.mxu0 0
        %1539 = vmatprep.subr.bf16.mxu0 0
        %1540 = vmatpush1.bf16.msra.mxu0 0
        %1541 = vmatprep.mubr.bf16.mxu0 0
        %1542 = vmatmul.mubr.bf16.gmra.mrb[0].mxu0 %v1503
        %v1543 = vpop.f32.mrb[0].mxu0
        %v1544 = vadd.f32 0.0, %v1543
        %v1545 = vpop.f32.mrb[0].mxu0
        %v1546 = vpop.f32.mrb[0].mxu0
        %v1547 = vpop.f32.mrb[0].mxu0
        %1548 = vdwg.mxu0
        %1550 = vrot.lane.b32.xlu0 %v1433, 96
        %v1551 = vpop.permute.xlu0 %1550
        %1553 = vrot.lane.b32.xlu0 %v1434, 96
        %v1554 = vpop.permute.xlu0 %1553
        %v1556 = vsel %vm1442, %v1551, 0
        %v1559 = vsel %vm1442, %v1554, 0
        %1561 = vmatprep.subr.bf16.mxu0 0
        %1562 = vmatpush1.bf16.xpose.msra.mxu0 %v1559
        %1563 = vmatprep.subr.bf16.mxu0 0
        %1564 = vmatpush1.bf16.xpose.msra.mxu0 0
        %1565 = vmatprep.subr.bf16.mxu0 0
        %1566 = vmatpush1.bf16.xpose.msra.mxu0 0
        %1567 = vmatprep.subr.bf16.mxu0 0
        %1568 = vmatpush1.bf16.xpose.msra.mxu0 0
        %1569 = vmatprep.subr.bf16.mxu0 0
        %1570 = vmatpush1.bf16.xpose.msra.mxu0 0
        %1571 = vmatprep.subr.bf16.mxu0 0
        %1572 = vmatpush1.bf16.xpose.msra.mxu0 0
        %1573 = vmatprep.subr.bf16.mxu0 0
        %1574 = vmatpush1.bf16.xpose.msra.mxu0 0
        %1575 = vmatprep.subr.bf16.mxu0 0
        %1576 = vmatpush1.bf16.xpose.msra.mxu0 0
        %1577 = vmatprep.subr.bf16.mxu0 0
        %1578 = vmatpush1.bf16.xpose.msra.mxu0 0
        %1579 = vmatprep.subr.bf16.mxu0 0
        %1580 = vmatpush1.bf16.xpose.msra.mxu0 0
        %1581 = vmatprep.subr.bf16.mxu0 0
        %1582 = vmatpush1.bf16.xpose.msra.mxu0 0
        %1583 = vmatprep.subr.bf16.mxu0 0
        %1584 = vmatpush1.bf16.xpose.msra.mxu0 0
        %1585 = vmatprep.subr.bf16.mxu0 0
        %1586 = vmatpush1.bf16.xpose.msra.mxu0 0
        %1587 = vmatprep.subr.bf16.mxu0 0
        %1588 = vmatpush1.bf16.xpose.msra.mxu0 0
        %1589 = vmatprep.subr.bf16.mxu0 0
        %1590 = vmatpush1.bf16.xpose.msra.mxu0 0
        %1591 = vmatprep.subr.bf16.mxu0 0
        %1592 = vmatpush1.bf16.xpose.msra.mxu0 0
        %1593 = vmatprep.mubr.bf16.mxu0 0
        %1594 = vmatmul.mubr.bf16.gmra.mrb[0].mxu0 %v1556
        %v1595 = vpop.f32.mrb[0].mxu0
        %v1596 = vadd.f32 %v1440, %v1595
        %v1597 = vpop.f32.mrb[0].mxu0
        %v1598 = vpop.f32.mrb[0].mxu0
        %v1599 = vpop.f32.mrb[0].mxu0
        %1600 = vdwg.mxu0
        %v1601 = vsel %vm1489, %v1596, -inf
        %1602 = vmax.xlane.f32.xlu0 %v1601
        %v1603 = vpop.xlane.xlu0 %1602
        %v1604 = vsub.f32 %v1596, %v1603
        %v1605 = vmul.f32 %v1604, 1.442695
        %v1606 = vpow.pop %v1605
        %v1607 = vsel %vm1489, %v1606, 0.0
        %1608 = vadd.xlane.f32.xlu0 %v1607
        %v1609 = vpop.xlane.xlu0 %1608
        %v1610 = vrcp.pop %v1609
        %v1611 = vmul.f32 %v1606, %v1610
        %v1612 = vpack.c.bf16 %v1611, %v1611
        %1614 = vrot.lane.b32.xlu0 %v1435, 96
        %v1615 = vpop.permute.xlu0 %1614
        %v1617 = vsel %vm1489, %v1612, 0
        %v1620 = vsel %vm1505, %v1615, 0
        %1622 = vmatprep.subr.bf16.mxu0 0
        %1623 = vmatpush1.bf16.msra.mxu0 %v1620
        %1624 = vmatprep.subr.bf16.mxu0 0
        %1625 = vmatpush1.bf16.msra.mxu0 0
        %1626 = vmatprep.subr.bf16.mxu0 0
        %1627 = vmatpush1.bf16.msra.mxu0 0
        %1628 = vmatprep.subr.bf16.mxu0 0
        %1629 = vmatpush1.bf16.msra.mxu0 0
        %1630 = vmatprep.subr.bf16.mxu0 0
        %1631 = vmatpush1.bf16.msra.mxu0 0
        %1632 = vmatprep.subr.bf16.mxu0 0
        %1633 = vmatpush1.bf16.msra.mxu0 0
        %1634 = vmatprep.subr.bf16.mxu0 0
        %1635 = vmatpush1.bf16.msra.mxu0 0
        %1636 = vmatprep.subr.bf16.mxu0 0
        %1637 = vmatpush1.bf16.msra.mxu0 0
        %1638 = vmatprep.subr.bf16.mxu0 0
        %1639 = vmatpush1.bf16.msra.mxu0 0
        %1640 = vmatprep.subr.bf16.mxu0 0
        %1641 = vmatpush1.bf16.msra.mxu0 0
        %1642 = vmatprep.subr.bf16.mxu0 0
        %1643 = vmatpush1.bf16.msra.mxu0 0
        %1644 = vmatprep.subr.bf16.mxu0 0
        %1645 = vmatpush1.bf16.msra.mxu0 0
        %1646 = vmatprep.subr.bf16.mxu0 0
        %1647 = vmatpush1.bf16.msra.mxu0 0
        %1648 = vmatprep.subr.bf16.mxu0 0
        %1649 = vmatpush1.bf16.msra.mxu0 0
        %1650 = vmatprep.subr.bf16.mxu0 0
        %1651 = vmatpush1.bf16.msra.mxu0 0
        %1652 = vmatprep.subr.bf16.mxu0 0
        %1653 = vmatpush1.bf16.msra.mxu0 0
        %1654 = vmatprep.mubr.bf16.mxu0 0
        %1655 = vmatmul.mubr.bf16.gmra.mrb[0].mxu0 %v1617
        %v1656 = vpop.f32.mrb[0].mxu0
        %v1657 = vadd.f32 0.0, %v1656
        %v1658 = vpop.f32.mrb[0].mxu0
        %v1659 = vpop.f32.mrb[0].mxu0
        %v1660 = vpop.f32.mrb[0].mxu0
        %1661 = vdwg.mxu0
        %1662 = vrot.lane.b32.xlu0 %v1433, 64
        %v1663 = vpop.permute.xlu0 %1662
        %1664 = vrot.lane.b32.xlu0 %v1434, 64
        %v1665 = vpop.permute.xlu0 %1664
        %v1667 = vsel %vm1442, %v1663, 0
        %v1670 = vsel %vm1442, %v1665, 0
        %1672 = vmatprep.subr.bf16.mxu0 0
        %1673 = vmatpush1.bf16.xpose.msra.mxu0 %v1670
        %1674 = vmatprep.subr.bf16.mxu0 0
        %1675 = vmatpush1.bf16.xpose.msra.mxu0 0
        %1676 = vmatprep.subr.bf16.mxu0 0
        %1677 = vmatpush1.bf16.xpose.msra.mxu0 0
        %1678 = vmatprep.subr.bf16.mxu0 0
        %1679 = vmatpush1.bf16.xpose.msra.mxu0 0
        %1680 = vmatprep.subr.bf16.mxu0 0
        %1681 = vmatpush1.bf16.xpose.msra.mxu0 0
        %1682 = vmatprep.subr.bf16.mxu0 0
        %1683 = vmatpush1.bf16.xpose.msra.mxu0 0
        %1684 = vmatprep.subr.bf16.mxu0 0
        %1685 = vmatpush1.bf16.xpose.msra.mxu0 0
        %1686 = vmatprep.subr.bf16.mxu0 0
        %1687 = vmatpush1.bf16.xpose.msra.mxu0 0
        %1688 = vmatprep.subr.bf16.mxu0 0
        %1689 = vmatpush1.bf16.xpose.msra.mxu0 0
        %1690 = vmatprep.subr.bf16.mxu0 0
        %1691 = vmatpush1.bf16.xpose.msra.mxu0 0
        %1692 = vmatprep.subr.bf16.mxu0 0
        %1693 = vmatpush1.bf16.xpose.msra.mxu0 0
        %1694 = vmatprep.subr.bf16.mxu0 0
        %1695 = vmatpush1.bf16.xpose.msra.mxu0 0
        %1696 = vmatprep.subr.bf16.mxu0 0
        %1697 = vmatpush1.bf16.xpose.msra.mxu0 0
        %1698 = vmatprep.subr.bf16.mxu0 0
        %1699 = vmatpush1.bf16.xpose.msra.mxu0 0
        %1700 = vmatprep.subr.bf16.mxu0 0
        %1701 = vmatpush1.bf16.xpose.msra.mxu0 0
        %1702 = vmatprep.subr.bf16.mxu0 0
        %1703 = vmatpush1.bf16.xpose.msra.mxu0 0
        %1704 = vmatprep.mubr.bf16.mxu0 0
        %1705 = vmatmul.mubr.bf16.gmra.mrb[0].mxu0 %v1667
        %v1706 = vpop.f32.mrb[0].mxu0
        %v1707 = vadd.f32 %v1440, %v1706
        %v1708 = vpop.f32.mrb[0].mxu0
        %v1709 = vpop.f32.mrb[0].mxu0
        %v1710 = vpop.f32.mrb[0].mxu0
        %1711 = vdwg.mxu0
        %v1712 = vsel %vm1489, %v1707, -inf
        %1713 = vmax.xlane.f32.xlu0 %v1712
        %v1714 = vpop.xlane.xlu0 %1713
        %v1715 = vsub.f32 %v1707, %v1714
        %v1716 = vmul.f32 %v1715, 1.442695
        %v1717 = vpow.pop %v1716
        %v1718 = vsel %vm1489, %v1717, 0.0
        %1719 = vadd.xlane.f32.xlu0 %v1718
        %v1720 = vpop.xlane.xlu0 %1719
        %v1721 = vrcp.pop %v1720
        %v1722 = vmul.f32 %v1717, %v1721
        %v1723 = vpack.c.bf16 %v1722, %v1722
        %1724 = vrot.lane.b32.xlu0 %v1435, 64
        %v1725 = vpop.permute.xlu0 %1724
        %v1727 = vsel %vm1489, %v1723, 0
        %v1730 = vsel %vm1505, %v1725, 0
        %1732 = vmatprep.subr.bf16.mxu0 0
        %1733 = vmatpush1.bf16.msra.mxu0 %v1730
        %1734 = vmatprep.subr.bf16.mxu0 0
        %1735 = vmatpush1.bf16.msra.mxu0 0
        %1736 = vmatprep.subr.bf16.mxu0 0
        %1737 = vmatpush1.bf16.msra.mxu0 0
        %1738 = vmatprep.subr.bf16.mxu0 0
        %1739 = vmatpush1.bf16.msra.mxu0 0
        %1740 = vmatprep.subr.bf16.mxu0 0
        %1741 = vmatpush1.bf16.msra.mxu0 0
        %1742 = vmatprep.subr.bf16.mxu0 0
        %1743 = vmatpush1.bf16.msra.mxu0 0
        %1744 = vmatprep.subr.bf16.mxu0 0
        %1745 = vmatpush1.bf16.msra.mxu0 0
        %1746 = vmatprep.subr.bf16.mxu0 0
        %1747 = vmatpush1.bf16.msra.mxu0 0
        %1748 = vmatprep.subr.bf16.mxu0 0
        %1749 = vmatpush1.bf16.msra.mxu0 0
        %1750 = vmatprep.subr.bf16.mxu0 0
        %1751 = vmatpush1.bf16.msra.mxu0 0
        %1752 = vmatprep.subr.bf16.mxu0 0
        %1753 = vmatpush1.bf16.msra.mxu0 0
        %1754 = vmatprep.subr.bf16.mxu0 0
        %1755 = vmatpush1.bf16.msra.mxu0 0
        %1756 = vmatprep.subr.bf16.mxu0 0
        %1757 = vmatpush1.bf16.msra.mxu0 0
        %1758 = vmatprep.subr.bf16.mxu0 0
        %1759 = vmatpush1.bf16.msra.mxu0 0
        %1760 = vmatprep.subr.bf16.mxu0 0
        %1761 = vmatpush1.bf16.msra.mxu0 0
        %1762 = vmatprep.subr.bf16.mxu0 0
        %1763 = vmatpush1.bf16.msra.mxu0 0
        %1764 = vmatprep.mubr.bf16.mxu0 0
        %1765 = vmatmul.mubr.bf16.gmra.mrb[0].mxu0 %v1727
        %v1766 = vpop.f32.mrb[0].mxu0
        %v1767 = vadd.f32 0.0, %v1766
        %v1768 = vpop.f32.mrb[0].mxu0
        %v1769 = vpop.f32.mrb[0].mxu0
        %v1770 = vpop.f32.mrb[0].mxu0
        %1771 = vdwg.mxu0
        %1772 = vrot.lane.b32.xlu0 %v1433, 32
        %v1773 = vpop.permute.xlu0 %1772
        %1774 = vrot.lane.b32.xlu0 %v1434, 32
        %v1775 = vpop.permute.xlu0 %1774
        %v1777 = vsel %vm1442, %v1773, 0
        %v1780 = vsel %vm1442, %v1775, 0
        %1782 = vmatprep.subr.bf16.mxu0 0
        %1783 = vmatpush1.bf16.xpose.msra.mxu0 %v1780
        %1784 = vmatprep.subr.bf16.mxu0 0
        %1785 = vmatpush1.bf16.xpose.msra.mxu0 0
        %1786 = vmatprep.subr.bf16.mxu0 0
        %1787 = vmatpush1.bf16.xpose.msra.mxu0 0
        %1788 = vmatprep.subr.bf16.mxu0 0
        %1789 = vmatpush1.bf16.xpose.msra.mxu0 0
        %1790 = vmatprep.subr.bf16.mxu0 0
        %1791 = vmatpush1.bf16.xpose.msra.mxu0 0
        %1792 = vmatprep.subr.bf16.mxu0 0
        %1793 = vmatpush1.bf16.xpose.msra.mxu0 0
        %1794 = vmatprep.subr.bf16.mxu0 0
        %1795 = vmatpush1.bf16.xpose.msra.mxu0 0
        %1796 = vmatprep.subr.bf16.mxu0 0
        %1797 = vmatpush1.bf16.xpose.msra.mxu0 0
        %1798 = vmatprep.subr.bf16.mxu0 0
        %1799 = vmatpush1.bf16.xpose.msra.mxu0 0
        %1800 = vmatprep.subr.bf16.mxu0 0
        %1801 = vmatpush1.bf16.xpose.msra.mxu0 0
        %1802 = vmatprep.subr.bf16.mxu0 0
        %1803 = vmatpush1.bf16.xpose.msra.mxu0 0
        %1804 = vmatprep.subr.bf16.mxu0 0
        %1805 = vmatpush1.bf16.xpose.msra.mxu0 0
        %1806 = vmatprep.subr.bf16.mxu0 0
        %1807 = vmatpush1.bf16.xpose.msra.mxu0 0
        %1808 = vmatprep.subr.bf16.mxu0 0
        %1809 = vmatpush1.bf16.xpose.msra.mxu0 0
        %1810 = vmatprep.subr.bf16.mxu0 0
        %1811 = vmatpush1.bf16.xpose.msra.mxu0 0
        %1812 = vmatprep.subr.bf16.mxu0 0
        %1813 = vmatpush1.bf16.xpose.msra.mxu0 0
        %1814 = vmatprep.mubr.bf16.mxu0 0
        %1815 = vmatmul.mubr.bf16.gmra.mrb[0].mxu0 %v1777
        %v1816 = vpop.f32.mrb[0].mxu0
        %v1817 = vadd.f32 %v1440, %v1816
        %v1818 = vpop.f32.mrb[0].mxu0
        %v1819 = vpop.f32.mrb[0].mxu0
        %v1820 = vpop.f32.mrb[0].mxu0
        %1821 = vdwg.mxu0
        %v1822 = vsel %vm1489, %v1817, -inf
        %1823 = vmax.xlane.f32.xlu0 %v1822
        %v1824 = vpop.xlane.xlu0 %1823
        %v1825 = vsub.f32 %v1817, %v1824
        %v1826 = vmul.f32 %v1825, 1.442695
        %v1827 = vpow.pop %v1826
        %v1828 = vsel %vm1489, %v1827, 0.0
        %1829 = vadd.xlane.f32.xlu0 %v1828
        %v1830 = vpop.xlane.xlu0 %1829
        %v1831 = vrcp.pop %v1830
        %v1832 = vmul.f32 %v1827, %v1831
        %v1833 = vpack.c.bf16 %v1832, %v1832
        %1834 = vrot.lane.b32.xlu0 %v1435, 32
        %v1835 = vpop.permute.xlu0 %1834
        %v1837 = vsel %vm1489, %v1833, 0
        %v1840 = vsel %vm1505, %v1835, 0
        %1842 = vmatprep.subr.bf16.mxu0 0
        %1843 = vmatpush1.bf16.msra.mxu0 %v1840
        %1844 = vmatprep.subr.bf16.mxu0 0
        %1845 = vmatpush1.bf16.msra.mxu0 0
        %1846 = vmatprep.subr.bf16.mxu0 0
        %1847 = vmatpush1.bf16.msra.mxu0 0
        %1848 = vmatprep.subr.bf16.mxu0 0
        %1849 = vmatpush1.bf16.msra.mxu0 0
        %1850 = vmatprep.subr.bf16.mxu0 0
        %1851 = vmatpush1.bf16.msra.mxu0 0
        %1852 = vmatprep.subr.bf16.mxu0 0
        %1853 = vmatpush1.bf16.msra.mxu0 0
        %1854 = vmatprep.subr.bf16.mxu0 0
        %1855 = vmatpush1.bf16.msra.mxu0 0
        %1856 = vmatprep.subr.bf16.mxu0 0
        %1857 = vmatpush1.bf16.msra.mxu0 0
        %1858 = vmatprep.subr.bf16.mxu0 0
        %1859 = vmatpush1.bf16.msra.mxu0 0
        %1860 = vmatprep.subr.bf16.mxu0 0
        %1861 = vmatpush1.bf16.msra.mxu0 0
        %1862 = vmatprep.subr.bf16.mxu0 0
        %1863 = vmatpush1.bf16.msra.mxu0 0
        %1864 = vmatprep.subr.bf16.mxu0 0
        %1865 = vmatpush1.bf16.msra.mxu0 0
        %1866 = vmatprep.subr.bf16.mxu0 0
        %1867 = vmatpush1.bf16.msra.mxu0 0
        %1868 = vmatprep.subr.bf16.mxu0 0
        %1869 = vmatpush1.bf16.msra.mxu0 0
        %1870 = vmatprep.subr.bf16.mxu0 0
        %1871 = vmatpush1.bf16.msra.mxu0 0
        %1872 = vmatprep.subr.bf16.mxu0 0
        %1873 = vmatpush1.bf16.msra.mxu0 0
        %1874 = vmatprep.mubr.bf16.mxu0 0
        %1875 = vmatmul.mubr.bf16.gmra.mrb[0].mxu0 %v1837
        %v1876 = vpop.f32.mrb[0].mxu0
        %v1877 = vadd.f32 0.0, %v1876
        %v1878 = vpop.f32.mrb[0].mxu0
        %v1879 = vpop.f32.mrb[0].mxu0
        %v1880 = vpop.f32.mrb[0].mxu0
        %1881 = vdwg.mxu0
        %1883 = vrot.lane.b32.xlu0 %v1657, 32
        %v1884 = vpop.permute.xlu0 %1883
        %1887 = vrot.lane.b32.xlu0 %v1767, 64
        %v1888 = vpop.permute.xlu0 %1887
        %1891 = vrot.lane.b32.xlu0 %v1877, 96
        %v1892 = vpop.permute.xlu0 %1891
        %v1894 = vsel %vm1442, %v1544, %v1884
        %vm1895 = vcmask 523264
        %v1896 = vsel %vm1895, %v1894, %v1888
        %vm1897 = vcmask 785408
        %v1898 = vsel %vm1897, %v1896, %v1892
        %v1899 = vld [vmem:[%s897] sm:$0xf]
        %v1900 = vld [vmem:[%s897 + $0x4] sm:$0xf]
        %v1901 = vld [vmem:[%s897 + $0x8] sm:$0xf]
        %v1902 = vld [vmem:[%s897 + $0xc] sm:$0xf]
        %v1903 = vld [vmem:[%s897 + $0x10] sm:$0xf]
        %v1904 = vld [vmem:[%s897 + $0x14] sm:$0xf]
        %v1905 = vld [vmem:[%s897 + $0x18] sm:$0xf]
        %v1906 = vld [vmem:[%s897 + $0x1c] sm:$0xf]
        %v1907 = vld [vmem:[%s897 + $0x20] sm:$0xf]
        %v1908 = vld [vmem:[%s897 + $0x24] sm:$0xf]
        %v1909 = vld [vmem:[%s897 + $0x28] sm:$0xf]
        %v1910 = vld [vmem:[%s897 + $0x2c] sm:$0xf]
        %v1911 = vld [vmem:[%s897 + $0x30] sm:$0xf]
        %v1912 = vld [vmem:[%s897 + $0x34] sm:$0xf]
        %v1913 = vld [vmem:[%s897 + $0x38] sm:$0xf]
        %v1914 = vld [vmem:[%s897 + $0x3c] sm:$0xf]
        %v1915 = vld [vmem:[%s1088] sm:$0x1]
        %v1916 = vpack.c.bf16 %v1898, %v1898
        %v1918 = vlaneseq
        %v1919 = vshrl.u32 %v1918, 7
        %v1920 = vsub.s32 0, %v1919
        %v1921 = vrot.slane %v1915, %v1920
        %v1939 = vunpack.c.l.b16 %v1899
        %v1940 = vunpack.c.l.b16 %v1900
        %v1941 = vunpack.c.l.b16 %v1901
        %v1942 = vunpack.c.l.b16 %v1902
        %v1943 = vunpack.c.l.b16 %v1903
        %v1944 = vunpack.c.l.b16 %v1904
        %v1945 = vunpack.c.l.b16 %v1905
        %v1946 = vunpack.c.l.b16 %v1906
        %v1947 = vunpack.c.l.b16 %v1907
        %v1948 = vunpack.c.l.b16 %v1908
        %v1949 = vunpack.c.l.b16 %v1909
        %v1950 = vunpack.c.l.b16 %v1910
        %v1951 = vunpack.c.l.b16 %v1911
        %v1952 = vunpack.c.l.b16 %v1912
        %v1953 = vunpack.c.l.b16 %v1913
        %v1954 = vunpack.c.l.b16 %v1914
        %v1955 = vpack.c.b16 %v1940, %v1939
        %v1956 = vpack.c.b16 %v1942, %v1941
        %v1957 = vpack.c.b16 %v1944, %v1943
        %v1958 = vpack.c.b16 %v1946, %v1945
        %v1959 = vpack.c.b16 %v1948, %v1947
        %v1960 = vpack.c.b16 %v1950, %v1949
        %v1961 = vpack.c.b16 %v1952, %v1951
        %v1962 = vpack.c.b16 %v1954, %v1953
        %1971 = vmatprep.subr.bf16.mxu0 0
        %1972 = vmatpush1.bf16.msra.mxu0 %v1955
        %1973 = vmatprep.subr.bf16.mxu0 0
        %1974 = vmatpush1.bf16.msra.mxu0 %v1956
        %1975 = vmatprep.subr.bf16.mxu0 0
        %1976 = vmatpush1.bf16.msra.mxu0 %v1957
        %1977 = vmatprep.subr.bf16.mxu0 0
        %1978 = vmatpush1.bf16.msra.mxu0 %v1958
        %1979 = vmatprep.subr.bf16.mxu0 0
        %1980 = vmatpush1.bf16.msra.mxu0 %v1959
        %1981 = vmatprep.subr.bf16.mxu0 0
        %1982 = vmatpush1.bf16.msra.mxu0 %v1960
        %1983 = vmatprep.subr.bf16.mxu0 0
        %1984 = vmatpush1.bf16.msra.mxu0 %v1961
        %1985 = vmatprep.subr.bf16.mxu0 0
        %1986 = vmatpush1.bf16.msra.mxu0 %v1962
        %1987 = vmatprep.subr.bf16.mxu0 0
        %1988 = vmatpush1.bf16.msra.mxu0 0
        %1989 = vmatprep.subr.bf16.mxu0 0
        %1990 = vmatpush1.bf16.msra.mxu0 0
        %1991 = vmatprep.subr.bf16.mxu0 0
        %1992 = vmatpush1.bf16.msra.mxu0 0
        %1993 = vmatprep.subr.bf16.mxu0 0
        %1994 = vmatpush1.bf16.msra.mxu0 0
        %1995 = vmatprep.subr.bf16.mxu0 0
        %1996 = vmatpush1.bf16.msra.mxu0 0
        %1997 = vmatprep.subr.bf16.mxu0 0
        %1998 = vmatpush1.bf16.msra.mxu0 0
        %1999 = vmatprep.subr.bf16.mxu0 0
        %2000 = vmatpush1.bf16.msra.mxu0 0
        %2001 = vmatprep.subr.bf16.mxu0 0
        %2002 = vmatpush1.bf16.msra.mxu0 0
        %2003 = vmatprep.mubr.bf16.mxu0 0
        %2004 = vmatmul.mubr.bf16.gmra.mrb[0].mxu0 %v1916
        %v2005 = vpop.f32.mrb[0].mxu0
        %v2006 = vadd.f32 %v1921, %v2005
        %v2007 = vpop.f32.mrb[0].mxu0
        %v2008 = vpop.f32.mrb[0].mxu0
        %v2009 = vpop.f32.mrb[0].mxu0
        %2010 = vdwg.mxu0
        %v2011 = vadd.f32 %v1144, %v2006
        %v2012 = vld [vmem:[%s1091] sm:$0x1]
        %v2013 = vld [vmem:[%s1094] sm:$0x1]
        %2014 = vadd.xlane.f32.xlu0 %v2011
        %v2015 = vpop.xlane.xlu0 %2014
        %v2016 = vmul.f32 %v2015, %v1150
        %v2017 = vsub.f32 %v2011, %v2016
        %v2018 = vmul.f32 %v2017, %v2017
        %2019 = vadd.xlane.f32.xlu0 %v2018
        %v2020 = vpop.xlane.xlu0 %2019
        %v2021 = vmul.f32 %v2020, %v1150
        %v2022 = vadd.f32 %v2021, 1e-12
        %v2023 = vrsqrt.pop %v2022
        %v2024 = vmul.f32 %v2017, %v2023
        %v2026 = vlaneseq
        %v2027 = vshrl.u32 %v2026, 7
        %v2028 = vsub.s32 0, %v2027
        %v2029 = vrot.slane %v2012, %v2028
        %v2031 = vmul.f32 %v2024, %v2029
        %v2033 = vlaneseq
        %v2034 = vshrl.u32 %v2033, 7
        %v2035 = vsub.s32 0, %v2034
        %v2036 = vrot.slane %v2013, %v2035
        %v2038 = vadd.f32 %v2031, %v2036
        %v2039 = vld [vmem:[%s906] sm:$0xf]
        %v2040 = vld [vmem:[%s906 + $0x4] sm:$0xf]
        %v2041 = vld [vmem:[%s906 + $0x8] sm:$0xf]
        %v2042 = vld [vmem:[%s906 + $0xc] sm:$0xf]
        %v2043 = vld [vmem:[%s906 + $0x10] sm:$0xf]
        %v2044 = vld [vmem:[%s906 + $0x14] sm:$0xf]
        %v2045 = vld [vmem:[%s906 + $0x18] sm:$0xf]
        %v2046 = vld [vmem:[%s906 + $0x1c] sm:$0xf]
        %v2047 = vld [vmem:[%s906 + $0x20] sm:$0xf]
        %v2048 = vld [vmem:[%s906 + $0x24] sm:$0xf]
        %v2049 = vld [vmem:[%s906 + $0x28] sm:$0xf]
        %v2050 = vld [vmem:[%s906 + $0x2c] sm:$0xf]
        %v2051 = vld [vmem:[%s906 + $0x30] sm:$0xf]
        %v2052 = vld [vmem:[%s906 + $0x34] sm:$0xf]
        %v2053 = vld [vmem:[%s906 + $0x38] sm:$0xf]
        %v2054 = vld [vmem:[%s906 + $0x3c] sm:$0xf]
        %v2055 = vld [vmem:[%s1097] sm:$0x1]
        %v2056 = vpack.c.bf16 %v2038, %v2038
        %v2058 = vlaneseq
        %v2059 = vshrl.u32 %v2058, 7
        %v2060 = vsub.s32 0, %v2059
        %v2061 = vrot.slane %v2055, %v2060
        %v2079 = vunpack.c.l.b16 %v2039
        %v2080 = vunpack.c.l.b16 %v2040
        %v2081 = vunpack.c.l.b16 %v2041
        %v2082 = vunpack.c.l.b16 %v2042
        %v2083 = vunpack.c.l.b16 %v2043
        %v2084 = vunpack.c.l.b16 %v2044
        %v2085 = vunpack.c.l.b16 %v2045
        %v2086 = vunpack.c.l.b16 %v2046
        %v2087 = vunpack.c.l.b16 %v2047
        %v2088 = vunpack.c.l.b16 %v2048
        %v2089 = vunpack.c.l.b16 %v2049
        %v2090 = vunpack.c.l.b16 %v2050
        %v2091 = vunpack.c.l.b16 %v2051
        %v2092 = vunpack.c.l.b16 %v2052
        %v2093 = vunpack.c.l.b16 %v2053
        %v2094 = vunpack.c.l.b16 %v2054
        %v2095 = vpack.c.b16 %v2080, %v2079
        %v2096 = vpack.c.b16 %v2082, %v2081
        %v2097 = vpack.c.b16 %v2084, %v2083
        %v2098 = vpack.c.b16 %v2086, %v2085
        %v2099 = vpack.c.b16 %v2088, %v2087
        %v2100 = vpack.c.b16 %v2090, %v2089
        %v2101 = vpack.c.b16 %v2092, %v2091
        %v2102 = vpack.c.b16 %v2094, %v2093
        %2111 = vmatprep.subr.bf16.mxu0 0
        %2112 = vmatpush1.bf16.msra.mxu0 %v2095
        %2113 = vmatprep.subr.bf16.mxu0 0
        %2114 = vmatpush1.bf16.msra.mxu0 %v2096
        %2115 = vmatprep.subr.bf16.mxu0 0
        %2116 = vmatpush1.bf16.msra.mxu0 %v2097
        %2117 = vmatprep.subr.bf16.mxu0 0
        %2118 = vmatpush1.bf16.msra.mxu0 %v2098
        %2119 = vmatprep.subr.bf16.mxu0 0
        %2120 = vmatpush1.bf16.msra.mxu0 %v2099
        %2121 = vmatprep.subr.bf16.mxu0 0
        %2122 = vmatpush1.bf16.msra.mxu0 %v2100
        %2123 = vmatprep.subr.bf16.mxu0 0
        %2124 = vmatpush1.bf16.msra.mxu0 %v2101
        %2125 = vmatprep.subr.bf16.mxu0 0
        %2126 = vmatpush1.bf16.msra.mxu0 %v2102
        %2127 = vmatprep.subr.bf16.mxu0 0
        %2128 = vmatpush1.bf16.msra.mxu0 0
        %2129 = vmatprep.subr.bf16.mxu0 0
        %2130 = vmatpush1.bf16.msra.mxu0 0
        %2131 = vmatprep.subr.bf16.mxu0 0
        %2132 = vmatpush1.bf16.msra.mxu0 0
        %2133 = vmatprep.subr.bf16.mxu0 0
        %2134 = vmatpush1.bf16.msra.mxu0 0
        %2135 = vmatprep.subr.bf16.mxu0 0
        %2136 = vmatpush1.bf16.msra.mxu0 0
        %2137 = vmatprep.subr.bf16.mxu0 0
        %2138 = vmatpush1.bf16.msra.mxu0 0
        %2139 = vmatprep.subr.bf16.mxu0 0
        %2140 = vmatpush1.bf16.msra.mxu0 0
        %2141 = vmatprep.subr.bf16.mxu0 0
        %2142 = vmatpush1.bf16.msra.mxu0 0
        %2143 = vmatprep.mubr.bf16.mxu0 0
        %2144 = vmatmul.mubr.bf16.gmra.mrb[0].mxu0 %v2056
        %v2145 = vpop.f32.mrb[0].mxu0
        %v2146 = vadd.f32 %v2061, %v2145
        %v2147 = vpop.f32.mrb[0].mxu0
        %v2148 = vpop.f32.mrb[0].mxu0
        %v2149 = vpop.f32.mrb[0].mxu0
        %2150 = vdwg.mxu0
        %v2151 = vld [vmem:[%s1070] sm:$0x1f]
        %v2152 = vld [vmem:[%s1102] sm:$0xff]
        %v2153 = vld [vmem:[%s1102 + $0x8] sm:$0xff]
        %v2154 = vld [vmem:[%s1102 + $0x10] sm:$0xff]
        %v2155 = vld [vmem:[%s1102 + $0x18] sm:$0xff]
        %v2156 = vld [vmem:[%s1102 + $0x20] sm:$0xff]
        %v2157 = vld [vmem:[%s1102 + $0x28] sm:$0xff]
        %v2158 = vld [vmem:[%s1102 + $0x30] sm:$0xff]
        %v2159 = vld [vmem:[%s1102 + $0x38] sm:$0xff]
        %v2160 = vld [vmem:[%s1102 + $0x40] sm:$0xff]
        %v2161 = vld [vmem:[%s1102 + $0x48] sm:$0xff]
        %v2162 = vld [vmem:[%s1102 + $0x50] sm:$0xff]
        %v2163 = vld [vmem:[%s1102 + $0x58] sm:$0xff]
        %v2164 = vld [vmem:[%s1102 + $0x60] sm:$0xff]
        %v2165 = vld [vmem:[%s1102 + $0x68] sm:$0xff]
        %v2166 = vld [vmem:[%s1102 + $0x70] sm:$0xff]
        %v2167 = vld [vmem:[%s1102 + $0x78] sm:$0xff]
        %v2168 = vld [vmem:[%s1106] sm:$0x3]
        %v2169 = vpack.c.bf16 %v2151, %v2151
        %v2171 = vlaneseq
        %v2172 = vshrl.u32 %v2171, 7
        %v2173 = vsub.s32 0, %v2172
        %v2174 = vrot.slane %v2168, %v2173
        %v2175 = vlaneseq
        %v2176 = vshrl.u32 %v2175, 7
        %v2177 = vsub.s32 1, %v2176
        %v2178 = vrot.slane %v2168, %v2177
        %v2197 = vunpack.c.l.b16 %v2152
        %v2198 = vunpack.c.h.b16 %v2152
        %v2199 = vunpack.c.l.b16 %v2153
        %v2200 = vunpack.c.h.b16 %v2153
        %v2201 = vunpack.c.l.b16 %v2154
        %v2202 = vunpack.c.h.b16 %v2154
        %v2203 = vunpack.c.l.b16 %v2155
        %v2204 = vunpack.c.h.b16 %v2155
        %v2205 = vunpack.c.l.b16 %v2156
        %v2206 = vunpack.c.h.b16 %v2156
        %v2207 = vunpack.c.l.b16 %v2157
        %v2208 = vunpack.c.h.b16 %v2157
        %v2209 = vunpack.c.l.b16 %v2158
        %v2210 = vunpack.c.h.b16 %v2158
        %v2211 = vunpack.c.l.b16 %v2159
        %v2212 = vunpack.c.h.b16 %v2159
        %v2213 = vunpack.c.l.b16 %v2160
        %v2214 = vunpack.c.h.b16 %v2160
        %v2215 = vunpack.c.l.b16 %v2161
        %v2216 = vunpack.c.h.b16 %v2161
        %v2217 = vunpack.c.l.b16 %v2162
        %v2218 = vunpack.c.h.b16 %v2162
        %v2219 = vunpack.c.l.b16 %v2163
        %v2220 = vunpack.c.h.b16 %v2163
        %v2221 = vunpack.c.l.b16 %v2164
        %v2222 = vunpack.c.h.b16 %v2164
        %v2223 = vunpack.c.l.b16 %v2165
        %v2224 = vunpack.c.h.b16 %v2165
        %v2225 = vunpack.c.l.b16 %v2166
        %v2226 = vunpack.c.h.b16 %v2166
        %v2227 = vunpack.c.l.b16 %v2167
        %v2228 = vunpack.c.h.b16 %v2167
        %v2229 = vpack.c.b16 %v2199, %v2197
        %v2230 = vpack.c.b16 %v2200, %v2198
        %v2231 = vpack.c.b16 %v2203, %v2201
        %v2232 = vpack.c.b16 %v2204, %v2202
        %v2233 = vpack.c.b16 %v2207, %v2205
        %v2234 = vpack.c.b16 %v2208, %v2206
        %v2235 = vpack.c.b16 %v2211, %v2209
        %v2236 = vpack.c.b16 %v2212, %v2210
        %v2237 = vpack.c.b16 %v2215, %v2213
        %v2238 = vpack.c.b16 %v2216, %v2214
        %v2239 = vpack.c.b16 %v2219, %v2217
        %v2240 = vpack.c.b16 %v2220, %v2218
        %v2241 = vpack.c.b16 %v2223, %v2221
        %v2242 = vpack.c.b16 %v2224, %v2222
        %v2243 = vpack.c.b16 %v2227, %v2225
        %v2244 = vpack.c.b16 %v2228, %v2226
        %2261 = vmatprep.subr.bf16.mxu0 %v2230
        %2262 = vmatpush1.bf16.msra.mxu0 %v2229
        %2263 = vmatprep.subr.bf16.mxu0 %v2232
        %2264 = vmatpush1.bf16.msra.mxu0 %v2231
        %2265 = vmatprep.subr.bf16.mxu0 %v2234
        %2266 = vmatpush1.bf16.msra.mxu0 %v2233
        %2267 = vmatprep.subr.bf16.mxu0 %v2236
        %2268 = vmatpush1.bf16.msra.mxu0 %v2235
        %2269 = vmatprep.subr.bf16.mxu0 %v2238
        %2270 = vmatpush1.bf16.msra.mxu0 %v2237
        %2271 = vmatprep.subr.bf16.mxu0 %v2240
        %2272 = vmatpush1.bf16.msra.mxu0 %v2239
        %2273 = vmatprep.subr.bf16.mxu0 %v2242
        %2274 = vmatpush1.bf16.msra.mxu0 %v2241
        %2275 = vmatprep.subr.bf16.mxu0 %v2244
        %2276 = vmatpush1.bf16.msra.mxu0 %v2243
        %2277 = vmatprep.subr.bf16.mxu0 0
        %2278 = vmatpush1.bf16.msra.mxu0 0
        %2279 = vmatprep.subr.bf16.mxu0 0
        %2280 = vmatpush1.bf16.msra.mxu0 0
        %2281 = vmatprep.subr.bf16.mxu0 0
        %2282 = vmatpush1.bf16.msra.mxu0 0
        %2283 = vmatprep.subr.bf16.mxu0 0
        %2284 = vmatpush1.bf16.msra.mxu0 0
        %2285 = vmatprep.subr.bf16.mxu0 0
        %2286 = vmatpush1.bf16.msra.mxu0 0
        %2287 = vmatprep.subr.bf16.mxu0 0
        %2288 = vmatpush1.bf16.msra.mxu0 0
        %2289 = vmatprep.subr.bf16.mxu0 0
        %2290 = vmatpush1.bf16.msra.mxu0 0
        %2291 = vmatprep.subr.bf16.mxu0 0
        %2292 = vmatpush1.bf16.msra.mxu0 0
        %2293 = vmatprep.mubr.bf16.mxu0 0
        %2294 = vmatmul.mubr.bf16.gmra.mrb[0].mxu0 %v2169
        %v2295 = vpop.f32.mrb[0].mxu0
        %v2296 = vadd.f32 %v2174, %v2295
        %v2297 = vpop.f32.mrb[0].mxu0
        %v2298 = vadd.f32 %v2178, %v2297
        %v2299 = vpop.f32.mrb[0].mxu0
        %v2300 = vpop.f32.mrb[0].mxu0
        %2301 = vdwg.mxu0
        %v2302 = vpack.c.bf16 %v2146, %v2146
        %v2303 = vpack.c.bf16 %v2296, %v2296
        %v2304 = vpack.c.bf16 %v2298, %v2298
        %v2306 = vsel %vm1442, %v2302, 0
        %v2309 = vsel %vm1442, %v2303, 0
        %2311 = vmatprep.subr.bf16.mxu0 0
        %2312 = vmatpush1.bf16.xpose.msra.mxu0 %v2309
        %2313 = vmatprep.subr.bf16.mxu0 0
        %2314 = vmatpush1.bf16.xpose.msra.mxu0 0
        %2315 = vmatprep.subr.bf16.mxu0 0
        %2316 = vmatpush1.bf16.xpose.msra.mxu0 0
        %2317 = vmatprep.subr.bf16.mxu0 0
        %2318 = vmatpush1.bf16.xpose.msra.mxu0 0
        %2319 = vmatprep.subr.bf16.mxu0 0
        %2320 = vmatpush1.bf16.xpose.msra.mxu0 0
        %2321 = vmatprep.subr.bf16.mxu0 0
        %2322 = vmatpush1.bf16.xpose.msra.mxu0 0
        %2323 = vmatprep.subr.bf16.mxu0 0
        %2324 = vmatpush1.bf16.xpose.msra.mxu0 0
        %2325 = vmatprep.subr.bf16.mxu0 0
        %2326 = vmatpush1.bf16.xpose.msra.mxu0 0
        %2327 = vmatprep.subr.bf16.mxu0 0
        %2328 = vmatpush1.bf16.xpose.msra.mxu0 0
        %2329 = vmatprep.subr.bf16.mxu0 0
        %2330 = vmatpush1.bf16.xpose.msra.mxu0 0
        %2331 = vmatprep.subr.bf16.mxu0 0
        %2332 = vmatpush1.bf16.xpose.msra.mxu0 0
        %2333 = vmatprep.subr.bf16.mxu0 0
        %2334 = vmatpush1.bf16.xpose.msra.mxu0 0
        %2335 = vmatprep.subr.bf16.mxu0 0
        %2336 = vmatpush1.bf16.xpose.msra.mxu0 0
        %2337 = vmatprep.subr.bf16.mxu0 0
        %2338 = vmatpush1.bf16.xpose.msra.mxu0 0
        %2339 = vmatprep.subr.bf16.mxu0 0
        %2340 = vmatpush1.bf16.xpose.msra.mxu0 0
        %2341 = vmatprep.subr.bf16.mxu0 0
        %2342 = vmatpush1.bf16.xpose.msra.mxu0 0
        %2343 = vmatprep.mubr.bf16.mxu0 0
        %2344 = vmatmul.mubr.bf16.gmra.mrb[0].mxu0 %v2306
        %v2345 = vpop.f32.mrb[0].mxu0
        %v2346 = vadd.f32 0.0, %v2345
        %v2347 = vpop.f32.mrb[0].mxu0
        %v2348 = vpop.f32.mrb[0].mxu0
        %v2349 = vpop.f32.mrb[0].mxu0
        %2350 = vdwg.mxu0
        %vm2351 = vcmask 39936
        %v2352 = vsel %vm2351, %v2346, -inf
        %2353 = vmax.xlane.f32.xlu0 %v2352
        %v2354 = vpop.xlane.xlu0 %2353
        %v2355 = vsub.f32 %v2346, %v2354
        %v2356 = vmul.f32 %v2355, 1.442695
        %v2357 = vpow.pop %v2356
        %v2358 = vsel %vm2351, %v2357, 0.0
        %2359 = vadd.xlane.f32.xlu0 %v2358
        %v2360 = vpop.xlane.xlu0 %2359
        %v2361 = vrcp.pop %v2360
        %v2362 = vmul.f32 %v2357, %v2361
        %v2363 = vpack.c.bf16 %v2362, %v2362
        %v2365 = vsel %vm2351, %v2363, 0
        %vm2367 = vcmask 1041408
        %vm2368 = vcmask 1042432
        %v2369 = vsel %vm2367, 4294967295, 65535
        %v2370 = vsel %vm2368, %v2369, 0
        %v2372 = vand.u32 %v2304, %v2370
        %2374 = vmatprep.subr.bf16.mxu0 0
        %2375 = vmatpush1.bf16.msra.mxu0 %v2372
        %2376 = vmatprep.subr.bf16.mxu0 0
        %2377 = vmatpush1.bf16.msra.mxu0 0
        %2378 = vmatprep.subr.bf16.mxu0 0
        %2379 = vmatpush1.bf16.msra.mxu0 0
        %2380 = vmatprep.subr.bf16.mxu0 0
        %2381 = vmatpush1.bf16.msra.mxu0 0
        %2382 = vmatprep.subr.bf16.mxu0 0
        %2383 = vmatpush1.bf16.msra.mxu0 0
        %2384 = vmatprep.subr.bf16.mxu0 0
        %2385 = vmatpush1.bf16.msra.mxu0 0
        %2386 = vmatprep.subr.bf16.mxu0 0
        %2387 = vmatpush1.bf16.msra.mxu0 0
        %2388 = vmatprep.subr.bf16.mxu0 0
        %2389 = vmatpush1.bf16.msra.mxu0 0
        %2390 = vmatprep.subr.bf16.mxu0 0
        %2391 = vmatpush1.bf16.msra.mxu0 0
        %2392 = vmatprep.subr.bf16.mxu0 0
        %2393 = vmatpush1.bf16.msra.mxu0 0
        %2394 = vmatprep.subr.bf16.mxu0 0
        %2395 = vmatpush1.bf16.msra.mxu0 0
        %2396 = vmatprep.subr.bf16.mxu0 0
        %2397 = vmatpush1.bf16.msra.mxu0 0
        %2398 = vmatprep.subr.bf16.mxu0 0
        %2399 = vmatpush1.bf16.msra.mxu0 0
        %2400 = vmatprep.subr.bf16.mxu0 0
        %2401 = vmatpush1.bf16.msra.mxu0 0
        %2402 = vmatprep.subr.bf16.mxu0 0
        %2403 = vmatpush1.bf16.msra.mxu0 0
        %2404 = vmatprep.subr.bf16.mxu0 0
        %2405 = vmatpush1.bf16.msra.mxu0 0
        %2406 = vmatprep.mubr.bf16.mxu0 0
        %2407 = vmatmul.mubr.bf16.gmra.mrb[0].mxu0 %v2365
        %v2408 = vpop.f32.mrb[0].mxu0
        %v2409 = vadd.f32 0.0, %v2408
        %v2410 = vpop.f32.mrb[0].mxu0
        %v2411 = vpop.f32.mrb[0].mxu0
        %v2412 = vpop.f32.mrb[0].mxu0
        %2413 = vdwg.mxu0
        %2415 = vrot.lane.b32.xlu0 %v2302, 96
        %v2416 = vpop.permute.xlu0 %2415
        %2418 = vrot.lane.b32.xlu0 %v2303, 96
        %v2419 = vpop.permute.xlu0 %2418
        %v2421 = vsel %vm1442, %v2416, 0
        %v2424 = vsel %vm1442, %v2419, 0
        %2426 = vmatprep.subr.bf16.mxu0 0
        %2427 = vmatpush1.bf16.xpose.msra.mxu0 %v2424
        %2428 = vmatprep.subr.bf16.mxu0 0
        %2429 = vmatpush1.bf16.xpose.msra.mxu0 0
        %2430 = vmatprep.subr.bf16.mxu0 0
        %2431 = vmatpush1.bf16.xpose.msra.mxu0 0
        %2432 = vmatprep.subr.bf16.mxu0 0
        %2433 = vmatpush1.bf16.xpose.msra.mxu0 0
        %2434 = vmatprep.subr.bf16.mxu0 0
        %2435 = vmatpush1.bf16.xpose.msra.mxu0 0
        %2436 = vmatprep.subr.bf16.mxu0 0
        %2437 = vmatpush1.bf16.xpose.msra.mxu0 0
        %2438 = vmatprep.subr.bf16.mxu0 0
        %2439 = vmatpush1.bf16.xpose.msra.mxu0 0
        %2440 = vmatprep.subr.bf16.mxu0 0
        %2441 = vmatpush1.bf16.xpose.msra.mxu0 0
        %2442 = vmatprep.subr.bf16.mxu0 0
        %2443 = vmatpush1.bf16.xpose.msra.mxu0 0
        %2444 = vmatprep.subr.bf16.mxu0 0
        %2445 = vmatpush1.bf16.xpose.msra.mxu0 0
        %2446 = vmatprep.subr.bf16.mxu0 0
        %2447 = vmatpush1.bf16.xpose.msra.mxu0 0
        %2448 = vmatprep.subr.bf16.mxu0 0
        %2449 = vmatpush1.bf16.xpose.msra.mxu0 0
        %2450 = vmatprep.subr.bf16.mxu0 0
        %2451 = vmatpush1.bf16.xpose.msra.mxu0 0
        %2452 = vmatprep.subr.bf16.mxu0 0
        %2453 = vmatpush1.bf16.xpose.msra.mxu0 0
        %2454 = vmatprep.subr.bf16.mxu0 0
        %2455 = vmatpush1.bf16.xpose.msra.mxu0 0
        %2456 = vmatprep.subr.bf16.mxu0 0
        %2457 = vmatpush1.bf16.xpose.msra.mxu0 0
        %2458 = vmatprep.mubr.bf16.mxu0 0
        %2459 = vmatmul.mubr.bf16.gmra.mrb[0].mxu0 %v2421
        %v2460 = vpop.f32.mrb[0].mxu0
        %v2461 = vadd.f32 0.0, %v2460
        %v2462 = vpop.f32.mrb[0].mxu0
        %v2463 = vpop.f32.mrb[0].mxu0
        %v2464 = vpop.f32.mrb[0].mxu0
        %2465 = vdwg.mxu0
        %v2466 = vsel %vm2351, %v2461, -inf
        %2467 = vmax.xlane.f32.xlu0 %v2466
        %v2468 = vpop.xlane.xlu0 %2467
        %v2469 = vsub.f32 %v2461, %v2468
        %v2470 = vmul.f32 %v2469, 1.442695
        %v2471 = vpow.pop %v2470
        %v2472 = vsel %vm2351, %v2471, 0.0
        %2473 = vadd.xlane.f32.xlu0 %v2472
        %v2474 = vpop.xlane.xlu0 %2473
        %v2475 = vrcp.pop %v2474
        %v2476 = vmul.f32 %v2471, %v2475
        %v2477 = vpack.c.bf16 %v2476, %v2476
        %2479 = vrot.lane.b32.xlu0 %v2304, 96
        %v2480 = vpop.permute.xlu0 %2479
        %v2482 = vsel %vm2351, %v2477, 0
        %v2485 = vand.u32 %v2480, %v2370
        %2487 = vmatprep.subr.bf16.mxu0 0
        %2488 = vmatpush1.bf16.msra.mxu0 %v2485
        %2489 = vmatprep.subr.bf16.mxu0 0
        %2490 = vmatpush1.bf16.msra.mxu0 0
        %2491 = vmatprep.subr.bf16.mxu0 0
        %2492 = vmatpush1.bf16.msra.mxu0 0
        %2493 = vmatprep.subr.bf16.mxu0 0
        %2494 = vmatpush1.bf16.msra.mxu0 0
        %2495 = vmatprep.subr.bf16.mxu0 0
        %2496 = vmatpush1.bf16.msra.mxu0 0
        %2497 = vmatprep.subr.bf16.mxu0 0
        %2498 = vmatpush1.bf16.msra.mxu0 0
        %2499 = vmatprep.subr.bf16.mxu0 0
        %2500 = vmatpush1.bf16.msra.mxu0 0
        %2501 = vmatprep.subr.bf16.mxu0 0
        %2502 = vmatpush1.bf16.msra.mxu0 0
        %2503 = vmatprep.subr.bf16.mxu0 0
        %2504 = vmatpush1.bf16.msra.mxu0 0
        %2505 = vmatprep.subr.bf16.mxu0 0
        %2506 = vmatpush1.bf16.msra.mxu0 0
        %2507 = vmatprep.subr.bf16.mxu0 0
        %2508 = vmatpush1.bf16.msra.mxu0 0
        %2509 = vmatprep.subr.bf16.mxu0 0
        %2510 = vmatpush1.bf16.msra.mxu0 0
        %2511 = vmatprep.subr.bf16.mxu0 0
        %2512 = vmatpush1.bf16.msra.mxu0 0
        %2513 = vmatprep.subr.bf16.mxu0 0
        %2514 = vmatpush1.bf16.msra.mxu0 0
        %2515 = vmatprep.subr.bf16.mxu0 0
        %2516 = vmatpush1.bf16.msra.mxu0 0
        %2517 = vmatprep.subr.bf16.mxu0 0
        %2518 = vmatpush1.bf16.msra.mxu0 0
        %2519 = vmatprep.mubr.bf16.mxu0 0
        %2520 = vmatmul.mubr.bf16.gmra.mrb[0].mxu0 %v2482
        %v2521 = vpop.f32.mrb[0].mxu0
        %v2522 = vadd.f32 0.0, %v2521
        %v2523 = vpop.f32.mrb[0].mxu0
        %v2524 = vpop.f32.mrb[0].mxu0
        %v2525 = vpop.f32.mrb[0].mxu0
        %2526 = vdwg.mxu0
        %2527 = vrot.lane.b32.xlu0 %v2302, 64
        %v2528 = vpop.permute.xlu0 %2527
        %2529 = vrot.lane.b32.xlu0 %v2303, 64
        %v2530 = vpop.permute.xlu0 %2529
        %v2532 = vsel %vm1442, %v2528, 0
        %v2535 = vsel %vm1442, %v2530, 0
        %2537 = vmatprep.subr.bf16.mxu0 0
        %2538 = vmatpush1.bf16.xpose.msra.mxu0 %v2535
        %2539 = vmatprep.subr.bf16.mxu0 0
        %2540 = vmatpush1.bf16.xpose.msra.mxu0 0
        %2541 = vmatprep.subr.bf16.mxu0 0
        %2542 = vmatpush1.bf16.xpose.msra.mxu0 0
        %2543 = vmatprep.subr.bf16.mxu0 0
        %2544 = vmatpush1.bf16.xpose.msra.mxu0 0
        %2545 = vmatprep.subr.bf16.mxu0 0
        %2546 = vmatpush1.bf16.xpose.msra.mxu0 0
        %2547 = vmatprep.subr.bf16.mxu0 0
        %2548 = vmatpush1.bf16.xpose.msra.mxu0 0
        %2549 = vmatprep.subr.bf16.mxu0 0
        %2550 = vmatpush1.bf16.xpose.msra.mxu0 0
        %2551 = vmatprep.subr.bf16.mxu0 0
        %2552 = vmatpush1.bf16.xpose.msra.mxu0 0
        %2553 = vmatprep.subr.bf16.mxu0 0
        %2554 = vmatpush1.bf16.xpose.msra.mxu0 0
        %2555 = vmatprep.subr.bf16.mxu0 0
        %2556 = vmatpush1.bf16.xpose.msra.mxu0 0
        %2557 = vmatprep.subr.bf16.mxu0 0
        %2558 = vmatpush1.bf16.xpose.msra.mxu0 0
        %2559 = vmatprep.subr.bf16.mxu0 0
        %2560 = vmatpush1.bf16.xpose.msra.mxu0 0
        %2561 = vmatprep.subr.bf16.mxu0 0
        %2562 = vmatpush1.bf16.xpose.msra.mxu0 0
        %2563 = vmatprep.subr.bf16.mxu0 0
        %2564 = vmatpush1.bf16.xpose.msra.mxu0 0
        %2565 = vmatprep.subr.bf16.mxu0 0
        %2566 = vmatpush1.bf16.xpose.msra.mxu0 0
        %2567 = vmatprep.subr.bf16.mxu0 0
        %2568 = vmatpush1.bf16.xpose.msra.mxu0 0
        %2569 = vmatprep.mubr.bf16.mxu0 0
        %2570 = vmatmul.mubr.bf16.gmra.mrb[0].mxu0 %v2532
        %v2571 = vpop.f32.mrb[0].mxu0
        %v2572 = vadd.f32 0.0, %v2571
        %v2573 = vpop.f32.mrb[0].mxu0
        %v2574 = vpop.f32.mrb[0].mxu0
        %v2575 = vpop.f32.mrb[0].mxu0
        %2576 = vdwg.mxu0
        %v2577 = vsel %vm2351, %v2572, -inf
        %2578 = vmax.xlane.f32.xlu0 %v2577
        %v2579 = vpop.xlane.xlu0 %2578
        %v2580 = vsub.f32 %v2572, %v2579
        %v2581 = vmul.f32 %v2580, 1.442695
        %v2582 = vpow.pop %v2581
        %v2583 = vsel %vm2351, %v2582, 0.0
        %2584 = vadd.xlane.f32.xlu0 %v2583
        %v2585 = vpop.xlane.xlu0 %2584
        %v2586 = vrcp.pop %v2585
        %v2587 = vmul.f32 %v2582, %v2586
        %v2588 = vpack.c.bf16 %v2587, %v2587
        %2589 = vrot.lane.b32.xlu0 %v2304, 64
        %v2590 = vpop.permute.xlu0 %2589
        %v2592 = vsel %vm2351, %v2588, 0
        %v2595 = vand.u32 %v2590, %v2370
        %2597 = vmatprep.subr.bf16.mxu0 0
        %2598 = vmatpush1.bf16.msra.mxu0 %v2595
        %2599 = vmatprep.subr.bf16.mxu0 0
        %2600 = vmatpush1.bf16.msra.mxu0 0
        %2601 = vmatprep.subr.bf16.mxu0 0
        %2602 = vmatpush1.bf16.msra.mxu0 0
        %2603 = vmatprep.subr.bf16.mxu0 0
        %2604 = vmatpush1.bf16.msra.mxu0 0
        %2605 = vmatprep.subr.bf16.mxu0 0
        %2606 = vmatpush1.bf16.msra.mxu0 0
        %2607 = vmatprep.subr.bf16.mxu0 0
        %2608 = vmatpush1.bf16.msra.mxu0 0
        %2609 = vmatprep.subr.bf16.mxu0 0
        %2610 = vmatpush1.bf16.msra.mxu0 0
        %2611 = vmatprep.subr.bf16.mxu0 0
        %2612 = vmatpush1.bf16.msra.mxu0 0
        %2613 = vmatprep.subr.bf16.mxu0 0
        %2614 = vmatpush1.bf16.msra.mxu0 0
        %2615 = vmatprep.subr.bf16.mxu0 0
        %2616 = vmatpush1.bf16.msra.mxu0 0
        %2617 = vmatprep.subr.bf16.mxu0 0
        %2618 = vmatpush1.bf16.msra.mxu0 0
        %2619 = vmatprep.subr.bf16.mxu0 0
        %2620 = vmatpush1.bf16.msra.mxu0 0
        %2621 = vmatprep.subr.bf16.mxu0 0
        %2622 = vmatpush1.bf16.msra.mxu0 0
        %2623 = vmatprep.subr.bf16.mxu0 0
        %2624 = vmatpush1.bf16.msra.mxu0 0
        %2625 = vmatprep.subr.bf16.mxu0 0
        %2626 = vmatpush1.bf16.msra.mxu0 0
        %2627 = vmatprep.subr.bf16.mxu0 0
        %2628 = vmatpush1.bf16.msra.mxu0 0
        %2629 = vmatprep.mubr.bf16.mxu0 0
        %2630 = vmatmul.mubr.bf16.gmra.mrb[0].mxu0 %v2592
        %v2631 = vpop.f32.mrb[0].mxu0
        %v2632 = vadd.f32 0.0, %v2631
        %v2633 = vpop.f32.mrb[0].mxu0
        %v2634 = vpop.f32.mrb[0].mxu0
        %v2635 = vpop.f32.mrb[0].mxu0
        %2636 = vdwg.mxu0
        %2637 = vrot.lane.b32.xlu0 %v2302, 32
        %v2638 = vpop.permute.xlu0 %2637
        %2639 = vrot.lane.b32.xlu0 %v2303, 32
        %v2640 = vpop.permute.xlu0 %2639
        %v2642 = vsel %vm1442, %v2638, 0
        %v2645 = vsel %vm1442, %v2640, 0
        %2647 = vmatprep.subr.bf16.mxu0 0
        %2648 = vmatpush1.bf16.xpose.msra.mxu0 %v2645
        %2649 = vmatprep.subr.bf16.mxu0 0
        %2650 = vmatpush1.bf16.xpose.msra.mxu0 0
        %2651 = vmatprep.subr.bf16.mxu0 0
        %2652 = vmatpush1.bf16.xpose.msra.mxu0 0
        %2653 = vmatprep.subr.bf16.mxu0 0
        %2654 = vmatpush1.bf16.xpose.msra.mxu0 0
        %2655 = vmatprep.subr.bf16.mxu0 0
        %2656 = vmatpush1.bf16.xpose.msra.mxu0 0
        %2657 = vmatprep.subr.bf16.mxu0 0
        %2658 = vmatpush1.bf16.xpose.msra.mxu0 0
        %2659 = vmatprep.subr.bf16.mxu0 0
        %2660 = vmatpush1.bf16.xpose.msra.mxu0 0
        %2661 = vmatprep.subr.bf16.mxu0 0
        %2662 = vmatpush1.bf16.xpose.msra.mxu0 0
        %2663 = vmatprep.subr.bf16.mxu0 0
        %2664 = vmatpush1.bf16.xpose.msra.mxu0 0
        %2665 = vmatprep.subr.bf16.mxu0 0
        %2666 = vmatpush1.bf16.xpose.msra.mxu0 0
        %2667 = vmatprep.subr.bf16.mxu0 0
        %2668 = vmatpush1.bf16.xpose.msra.mxu0 0
        %2669 = vmatprep.subr.bf16.mxu0 0
        %2670 = vmatpush1.bf16.xpose.msra.mxu0 0
        %2671 = vmatprep.subr.bf16.mxu0 0
        %2672 = vmatpush1.bf16.xpose.msra.mxu0 0
        %2673 = vmatprep.subr.bf16.mxu0 0
        %2674 = vmatpush1.bf16.xpose.msra.mxu0 0
        %2675 = vmatprep.subr.bf16.mxu0 0
        %2676 = vmatpush1.bf16.xpose.msra.mxu0 0
        %2677 = vmatprep.subr.bf16.mxu0 0
        %2678 = vmatpush1.bf16.xpose.msra.mxu0 0
        %2679 = vmatprep.mubr.bf16.mxu0 0
        %2680 = vmatmul.mubr.bf16.gmra.mrb[0].mxu0 %v2642
        %v2681 = vpop.f32.mrb[0].mxu0
        %v2682 = vadd.f32 0.0, %v2681
        %v2683 = vpop.f32.mrb[0].mxu0
        %v2684 = vpop.f32.mrb[0].mxu0
        %v2685 = vpop.f32.mrb[0].mxu0
        %2686 = vdwg.mxu0
        %v2687 = vsel %vm2351, %v2682, -inf
        %2688 = vmax.xlane.f32.xlu0 %v2687
        %v2689 = vpop.xlane.xlu0 %2688
        %v2690 = vsub.f32 %v2682, %v2689
        %v2691 = vmul.f32 %v2690, 1.442695
        %v2692 = vpow.pop %v2691
        %v2693 = vsel %vm2351, %v2692, 0.0
        %2694 = vadd.xlane.f32.xlu0 %v2693
        %v2695 = vpop.xlane.xlu0 %2694
        %v2696 = vrcp.pop %v2695
        %v2697 = vmul.f32 %v2692, %v2696
        %v2698 = vpack.c.bf16 %v2697, %v2697
        %2699 = vrot.lane.b32.xlu0 %v2304, 32
        %v2700 = vpop.permute.xlu0 %2699
        %v2702 = vsel %vm2351, %v2698, 0
        %v2705 = vand.u32 %v2700, %v2370
        %2707 = vmatprep.subr.bf16.mxu0 0
        %2708 = vmatpush1.bf16.msra.mxu0 %v2705
        %2709 = vmatprep.subr.bf16.mxu0 0
        %2710 = vmatpush1.bf16.msra.mxu0 0
        %2711 = vmatprep.subr.bf16.mxu0 0
        %2712 = vmatpush1.bf16.msra.mxu0 0
        %2713 = vmatprep.subr.bf16.mxu0 0
        %2714 = vmatpush1.bf16.msra.mxu0 0
        %2715 = vmatprep.subr.bf16.mxu0 0
        %2716 = vmatpush1.bf16.msra.mxu0 0
        %2717 = vmatprep.subr.bf16.mxu0 0
        %2718 = vmatpush1.bf16.msra.mxu0 0
        %2719 = vmatprep.subr.bf16.mxu0 0
        %2720 = vmatpush1.bf16.msra.mxu0 0
        %2721 = vmatprep.subr.bf16.mxu0 0
        %2722 = vmatpush1.bf16.msra.mxu0 0
        %2723 = vmatprep.subr.bf16.mxu0 0
        %2724 = vmatpush1.bf16.msra.mxu0 0
        %2725 = vmatprep.subr.bf16.mxu0 0
        %2726 = vmatpush1.bf16.msra.mxu0 0
        %2727 = vmatprep.subr.bf16.mxu0 0
        %2728 = vmatpush1.bf16.msra.mxu0 0
        %2729 = vmatprep.subr.bf16.mxu0 0
        %2730 = vmatpush1.bf16.msra.mxu0 0
        %2731 = vmatprep.subr.bf16.mxu0 0
        %2732 = vmatpush1.bf16.msra.mxu0 0
        %2733 = vmatprep.subr.bf16.mxu0 0
        %2734 = vmatpush1.bf16.msra.mxu0 0
        %2735 = vmatprep.subr.bf16.mxu0 0
        %2736 = vmatpush1.bf16.msra.mxu0 0
        %2737 = vmatprep.subr.bf16.mxu0 0
        %2738 = vmatpush1.bf16.msra.mxu0 0
        %2739 = vmatprep.mubr.bf16.mxu0 0
        %2740 = vmatmul.mubr.bf16.gmra.mrb[0].mxu0 %v2702
        %v2741 = vpop.f32.mrb[0].mxu0
        %v2742 = vadd.f32 0.0, %v2741
        %v2743 = vpop.f32.mrb[0].mxu0
        %v2744 = vpop.f32.mrb[0].mxu0
        %v2745 = vpop.f32.mrb[0].mxu0
        %2746 = vdwg.mxu0
        %2748 = vrot.lane.b32.xlu0 %v2522, 32
        %v2749 = vpop.permute.xlu0 %2748
        %2752 = vrot.lane.b32.xlu0 %v2632, 64
        %v2753 = vpop.permute.xlu0 %2752
        %2756 = vrot.lane.b32.xlu0 %v2742, 96
        %v2757 = vpop.permute.xlu0 %2756
        %v2759 = vsel %vm1442, %v2409, %v2749
        %v2760 = vsel %vm1895, %v2759, %v2753
        %v2761 = vsel %vm1897, %v2760, %v2757
        %v2762 = vld [vmem:[%s915] sm:$0xf]
        %v2763 = vld [vmem:[%s915 + $0x4] sm:$0xf]
        %v2764 = vld [vmem:[%s915 + $0x8] sm:$0xf]
        %v2765 = vld [vmem:[%s915 + $0xc] sm:$0xf]
        %v2766 = vld [vmem:[%s915 + $0x10] sm:$0xf]
        %v2767 = vld [vmem:[%s915 + $0x14] sm:$0xf]
        %v2768 = vld [vmem:[%s915 + $0x18] sm:$0xf]
        %v2769 = vld [vmem:[%s915 + $0x1c] sm:$0xf]
        %v2770 = vld [vmem:[%s915 + $0x20] sm:$0xf]
        %v2771 = vld [vmem:[%s915 + $0x24] sm:$0xf]
        %v2772 = vld [vmem:[%s915 + $0x28] sm:$0xf]
        %v2773 = vld [vmem:[%s915 + $0x2c] sm:$0xf]
        %v2774 = vld [vmem:[%s915 + $0x30] sm:$0xf]
        %v2775 = vld [vmem:[%s915 + $0x34] sm:$0xf]
        %v2776 = vld [vmem:[%s915 + $0x38] sm:$0xf]
        %v2777 = vld [vmem:[%s915 + $0x3c] sm:$0xf]
        %v2778 = vld [vmem:[%s1109] sm:$0x1]
        %v2779 = vpack.c.bf16 %v2761, %v2761
        %v2781 = vlaneseq
        %v2782 = vshrl.u32 %v2781, 7
        %v2783 = vsub.s32 0, %v2782
        %v2784 = vrot.slane %v2778, %v2783
        %v2802 = vunpack.c.l.b16 %v2762
        %v2803 = vunpack.c.l.b16 %v2763
        %v2804 = vunpack.c.l.b16 %v2764
        %v2805 = vunpack.c.l.b16 %v2765
        %v2806 = vunpack.c.l.b16 %v2766
        %v2807 = vunpack.c.l.b16 %v2767
        %v2808 = vunpack.c.l.b16 %v2768
        %v2809 = vunpack.c.l.b16 %v2769
        %v2810 = vunpack.c.l.b16 %v2770
        %v2811 = vunpack.c.l.b16 %v2771
        %v2812 = vunpack.c.l.b16 %v2772
        %v2813 = vunpack.c.l.b16 %v2773
        %v2814 = vunpack.c.l.b16 %v2774
        %v2815 = vunpack.c.l.b16 %v2775
        %v2816 = vunpack.c.l.b16 %v2776
        %v2817 = vunpack.c.l.b16 %v2777
        %v2818 = vpack.c.b16 %v2803, %v2802
        %v2819 = vpack.c.b16 %v2805, %v2804
        %v2820 = vpack.c.b16 %v2807, %v2806
        %v2821 = vpack.c.b16 %v2809, %v2808
        %v2822 = vpack.c.b16 %v2811, %v2810
        %v2823 = vpack.c.b16 %v2813, %v2812
        %v2824 = vpack.c.b16 %v2815, %v2814
        %v2825 = vpack.c.b16 %v2817, %v2816
        %2834 = vmatprep.subr.bf16.mxu0 0
        %2835 = vmatpush1.bf16.msra.mxu0 %v2818
        %2836 = vmatprep.subr.bf16.mxu0 0
        %2837 = vmatpush1.bf16.msra.mxu0 %v2819
        %2838 = vmatprep.subr.bf16.mxu0 0
        %2839 = vmatpush1.bf16.msra.mxu0 %v2820
        %2840 = vmatprep.subr.bf16.mxu0 0
        %2841 = vmatpush1.bf16.msra.mxu0 %v2821
        %2842 = vmatprep.subr.bf16.mxu0 0
        %2843 = vmatpush1.bf16.msra.mxu0 %v2822
        %2844 = vmatprep.subr.bf16.mxu0 0
        %2845 = vmatpush1.bf16.msra.mxu0 %v2823
        %2846 = vmatprep.subr.bf16.mxu0 0
        %2847 = vmatpush1.bf16.msra.mxu0 %v2824
        %2848 = vmatprep.subr.bf16.mxu0 0
        %2849 = vmatpush1.bf16.msra.mxu0 %v2825
        %2850 = vmatprep.subr.bf16.mxu0 0
        %2851 = vmatpush1.bf16.msra.mxu0 0
        %2852 = vmatprep.subr.bf16.mxu0 0
        %2853 = vmatpush1.bf16.msra.mxu0 0
        %2854 = vmatprep.subr.bf16.mxu0 0
        %2855 = vmatpush1.bf16.msra.mxu0 0
        %2856 = vmatprep.subr.bf16.mxu0 0
        %2857 = vmatpush1.bf16.msra.mxu0 0
        %2858 = vmatprep.subr.bf16.mxu0 0
        %2859 = vmatpush1.bf16.msra.mxu0 0
        %2860 = vmatprep.subr.bf16.mxu0 0
        %2861 = vmatpush1.bf16.msra.mxu0 0
        %2862 = vmatprep.subr.bf16.mxu0 0
        %2863 = vmatpush1.bf16.msra.mxu0 0
        %2864 = vmatprep.subr.bf16.mxu0 0
        %2865 = vmatpush1.bf16.msra.mxu0 0
        %2866 = vmatprep.mubr.bf16.mxu0 0
        %2867 = vmatmul.mubr.bf16.gmra.mrb[0].mxu0 %v2779
        %v2868 = vpop.f32.mrb[0].mxu0
        %v2869 = vadd.f32 %v2784, %v2868
        %v2870 = vpop.f32.mrb[0].mxu0
        %v2871 = vpop.f32.mrb[0].mxu0
        %v2872 = vpop.f32.mrb[0].mxu0
        %2873 = vdwg.mxu0
        %v2874 = vadd.f32 %v2011, %v2869
        %v2875 = vld [vmem:[%s1112] sm:$0x1]
        %v2876 = vld [vmem:[%s1115] sm:$0x1]
        %2877 = vadd.xlane.f32.xlu0 %v2874
        %v2878 = vpop.xlane.xlu0 %2877
        %v2879 = vmul.f32 %v2878, %v1150
        %v2880 = vsub.f32 %v2874, %v2879
        %v2881 = vmul.f32 %v2880, %v2880
        %2882 = vadd.xlane.f32.xlu0 %v2881
        %v2883 = vpop.xlane.xlu0 %2882
        %v2884 = vmul.f32 %v2883, %v1150
        %v2885 = vadd.f32 %v2884, 1e-12
        %v2886 = vrsqrt.pop %v2885
        %v2887 = vmul.f32 %v2880, %v2886
        %v2889 = vlaneseq
        %v2890 = vshrl.u32 %v2889, 7
        %v2891 = vsub.s32 0, %v2890
        %v2892 = vrot.slane %v2875, %v2891
        %v2894 = vmul.f32 %v2887, %v2892
        %v2896 = vlaneseq
        %v2897 = vshrl.u32 %v2896, 7
        %v2898 = vsub.s32 0, %v2897
        %v2899 = vrot.slane %v2876, %v2898
        %v2901 = vadd.f32 %v2894, %v2899
        %v2902 = vld [vmem:[%s1120] sm:$0xff]
        %v2903 = vld [vmem:[%s1120 + $0x8] sm:$0xff]
        %v2904 = vld [vmem:[%s1120 + $0x10] sm:$0xff]
        %v2905 = vld [vmem:[%s1120 + $0x18] sm:$0xff]
        %v2906 = vld [vmem:[%s1120 + $0x20] sm:$0xff]
        %v2907 = vld [vmem:[%s1120 + $0x28] sm:$0xff]
        %v2908 = vld [vmem:[%s1120 + $0x30] sm:$0xff]
        %v2909 = vld [vmem:[%s1120 + $0x38] sm:$0xff]
        %v2910 = vld [vmem:[%s1120 + $0x40] sm:$0xff]
        %v2911 = vld [vmem:[%s1120 + $0x48] sm:$0xff]
        %v2912 = vld [vmem:[%s1120 + $0x50] sm:$0xff]
        %v2913 = vld [vmem:[%s1120 + $0x58] sm:$0xff]
        %v2914 = vld [vmem:[%s1120 + $0x60] sm:$0xff]
        %v2915 = vld [vmem:[%s1120 + $0x68] sm:$0xff]
        %v2916 = vld [vmem:[%s1120 + $0x70] sm:$0xff]
        %v2917 = vld [vmem:[%s1120 + $0x78] sm:$0xff]
        %v2918 = vld [vmem:[%s1124] sm:$0x3]
        %v2919 = vpack.c.bf16 %v2901, %v2901
        %v2921 = vlaneseq
        %v2922 = vshrl.u32 %v2921, 7
        %v2923 = vsub.s32 0, %v2922
        %v2924 = vrot.slane %v2918, %v2923
        %v2925 = vlaneseq
        %v2926 = vshrl.u32 %v2925, 7
        %v2927 = vsub.s32 1, %v2926
        %v2928 = vrot.slane %v2918, %v2927
        %v2947 = vunpack.c.l.b16 %v2902
        %v2948 = vunpack.c.h.b16 %v2902
        %v2949 = vunpack.c.l.b16 %v2903
        %v2950 = vunpack.c.h.b16 %v2903
        %v2951 = vunpack.c.l.b16 %v2904
        %v2952 = vunpack.c.h.b16 %v2904
        %v2953 = vunpack.c.l.b16 %v2905
        %v2954 = vunpack.c.h.b16 %v2905
        %v2955 = vunpack.c.l.b16 %v2906
        %v2956 = vunpack.c.h.b16 %v2906
        %v2957 = vunpack.c.l.b16 %v2907
        %v2958 = vunpack.c.h.b16 %v2907
        %v2959 = vunpack.c.l.b16 %v2908
        %v2960 = vunpack.c.h.b16 %v2908
        %v2961 = vunpack.c.l.b16 %v2909
        %v2962 = vunpack.c.h.b16 %v2909
        %v2963 = vunpack.c.l.b16 %v2910
        %v2964 = vunpack.c.h.b16 %v2910
        %v2965 = vunpack.c.l.b16 %v2911
        %v2966 = vunpack.c.h.b16 %v2911
        %v2967 = vunpack.c.l.b16 %v2912
        %v2968 = vunpack.c.h.b16 %v2912
        %v2969 = vunpack.c.l.b16 %v2913
        %v2970 = vunpack.c.h.b16 %v2913
        %v2971 = vunpack.c.l.b16 %v2914
        %v2972 = vunpack.c.h.b16 %v2914
        %v2973 = vunpack.c.l.b16 %v2915
        %v2974 = vunpack.c.h.b16 %v2915
        %v2975 = vunpack.c.l.b16 %v2916
        %v2976 = vunpack.c.h.b16 %v2916
        %v2977 = vunpack.c.l.b16 %v2917
        %v2978 = vunpack.c.h.b16 %v2917
        %v2979 = vpack.c.b16 %v2949, %v2947
        %v2980 = vpack.c.b16 %v2950, %v2948
        %v2981 = vpack.c.b16 %v2953, %v2951
        %v2982 = vpack.c.b16 %v2954, %v2952
        %v2983 = vpack.c.b16 %v2957, %v2955
        %v2984 = vpack.c.b16 %v2958, %v2956
        %v2985 = vpack.c.b16 %v2961, %v2959
        %v2986 = vpack.c.b16 %v2962, %v2960
        %v2987 = vpack.c.b16 %v2965, %v2963
        %v2988 = vpack.c.b16 %v2966, %v2964
        %v2989 = vpack.c.b16 %v2969, %v2967
        %v2990 = vpack.c.b16 %v2970, %v2968
        %v2991 = vpack.c.b16 %v2973, %v2971
        %v2992 = vpack.c.b16 %v2974, %v2972
        %v2993 = vpack.c.b16 %v2977, %v2975
        %v2994 = vpack.c.b16 %v2978, %v2976
        %3011 = vmatprep.subr.bf16.mxu0 %v2980
        %3012 = vmatpush1.bf16.msra.mxu0 %v2979
        %3013 = vmatprep.subr.bf16.mxu0 %v2982
        %3014 = vmatpush1.bf16.msra.mxu0 %v2981
        %3015 = vmatprep.subr.bf16.mxu0 %v2984
        %3016 = vmatpush1.bf16.msra.mxu0 %v2983
        %3017 = vmatprep.subr.bf16.mxu0 %v2986
        %3018 = vmatpush1.bf16.msra.mxu0 %v2985
        %3019 = vmatprep.subr.bf16.mxu0 %v2988
        %3020 = vmatpush1.bf16.msra.mxu0 %v2987
        %3021 = vmatprep.subr.bf16.mxu0 %v2990
        %3022 = vmatpush1.bf16.msra.mxu0 %v2989
        %3023 = vmatprep.subr.bf16.mxu0 %v2992
        %3024 = vmatpush1.bf16.msra.mxu0 %v2991
        %3025 = vmatprep.subr.bf16.mxu0 %v2994
        %3026 = vmatpush1.bf16.msra.mxu0 %v2993
        %3027 = vmatprep.subr.bf16.mxu0 0
        %3028 = vmatpush1.bf16.msra.mxu0 0
        %3029 = vmatprep.subr.bf16.mxu0 0
        %3030 = vmatpush1.bf16.msra.mxu0 0
        %3031 = vmatprep.subr.bf16.mxu0 0
        %3032 = vmatpush1.bf16.msra.mxu0 0
        %3033 = vmatprep.subr.bf16.mxu0 0
        %3034 = vmatpush1.bf16.msra.mxu0 0
        %3035 = vmatprep.subr.bf16.mxu0 0
        %3036 = vmatpush1.bf16.msra.mxu0 0
        %3037 = vmatprep.subr.bf16.mxu0 0
        %3038 = vmatpush1.bf16.msra.mxu0 0
        %3039 = vmatprep.subr.bf16.mxu0 0
        %3040 = vmatpush1.bf16.msra.mxu0 0
        %3041 = vmatprep.subr.bf16.mxu0 0
        %3042 = vmatpush1.bf16.msra.mxu0 0
        %3043 = vmatprep.mubr.bf16.mxu0 0
        %3044 = vmatmul.mubr.bf16.gmra.mrb[0].mxu0 %v2919
        %v3045 = vpop.f32.mrb[0].mxu0
        %v3046 = vadd.f32 %v2924, %v3045
        %v3047 = vpop.f32.mrb[0].mxu0
        %v3048 = vadd.f32 %v2928, %v3047
        %v3049 = vpop.f32.mrb[0].mxu0
        %v3050 = vpop.f32.mrb[0].mxu0
        %3051 = vdwg.mxu0
        %v3052 = vmul.f32 %v3046, %v3046
        %v3053 = vmul.f32 %v3048, %v3048
        %v3054 = vmul.f32 %v3046, %v3052
        %v3055 = vmul.f32 %v3048, %v3053
        %v3056 = vmul.f32 %v3054, 0.044715
        %v3057 = vmul.f32 %v3055, 0.044715
        %v3058 = vadd.f32 %v3046, %v3056
        %v3059 = vadd.f32 %v3048, %v3057
        %v3060 = vmul.f32 %v3058, 0.7978846
        %v3061 = vmul.f32 %v3059, 0.7978846
        %v3062 = vtanh.pop %v3060
        %v3063 = vtanh.pop %v3061
        %v3064 = vadd.f32 %v3062, 1.0
        %v3065 = vadd.f32 %v3063, 1.0
        %v3066 = vmul.f32 %v3064, 0.5
        %v3067 = vmul.f32 %v3065, 0.5
        %v3068 = vmul.f32 %v3046, %v3066
        %v3069 = vmul.f32 %v3048, %v3067
        %v3070 = vld [vmem:[%s1129] sm:$0xf]
        %v3071 = vld [vmem:[%s1129 + $0x4] sm:$0xf]
        %v3072 = vld [vmem:[%s1129 + $0x8] sm:$0xf]
        %v3073 = vld [vmem:[%s1129 + $0xc] sm:$0xf]
        %v3074 = vld [vmem:[%s1129 + $0x10] sm:$0xf]
        %v3075 = vld [vmem:[%s1129 + $0x14] sm:$0xf]
        %v3076 = vld [vmem:[%s1129 + $0x18] sm:$0xf]
        %v3077 = vld [vmem:[%s1129 + $0x1c] sm:$0xf]
        %v3078 = vld [vmem:[%s1129 + $0x20] sm:$0xf]
        %v3079 = vld [vmem:[%s1129 + $0x24] sm:$0xf]
        %v3080 = vld [vmem:[%s1129 + $0x28] sm:$0xf]
        %v3081 = vld [vmem:[%s1129 + $0x2c] sm:$0xf]
        %v3082 = vld [vmem:[%s1129 + $0x30] sm:$0xf]
        %v3083 = vld [vmem:[%s1129 + $0x34] sm:$0xf]
        %v3084 = vld [vmem:[%s1129 + $0x38] sm:$0xf]
        %v3085 = vld [vmem:[%s1129 + $0x3c] sm:$0xf]
        %v3086 = vld [vmem:[%s1129 + $0x40] sm:$0xf]
        %v3087 = vld [vmem:[%s1129 + $0x44] sm:$0xf]
        %v3088 = vld [vmem:[%s1129 + $0x48] sm:$0xf]
        %v3089 = vld [vmem:[%s1129 + $0x4c] sm:$0xf]
        %v3090 = vld [vmem:[%s1129 + $0x50] sm:$0xf]
        %v3091 = vld [vmem:[%s1129 + $0x54] sm:$0xf]
        %v3092 = vld [vmem:[%s1129 + $0x58] sm:$0xf]
        %v3093 = vld [vmem:[%s1129 + $0x5c] sm:$0xf]
        %v3094 = vld [vmem:[%s1129 + $0x60] sm:$0xf]
        %v3095 = vld [vmem:[%s1129 + $0x64] sm:$0xf]
        %v3096 = vld [vmem:[%s1129 + $0x68] sm:$0xf]
        %v3097 = vld [vmem:[%s1129 + $0x6c] sm:$0xf]
        %v3098 = vld [vmem:[%s1129 + $0x70] sm:$0xf]
        %v3099 = vld [vmem:[%s1129 + $0x74] sm:$0xf]
        %v3100 = vld [vmem:[%s1129 + $0x78] sm:$0xf]
        %v3101 = vld [vmem:[%s1129 + $0x7c] sm:$0xf]
        %v3102 = vld [vmem:[%s1132] sm:$0x1]
        %v3103 = vpack.c.bf16 %v3068, %v3068
        %v3104 = vpack.c.bf16 %v3069, %v3069
        %v3106 = vlaneseq
        %v3107 = vshrl.u32 %v3106, 7
        %v3108 = vsub.s32 0, %v3107
        %v3109 = vrot.slane %v3102, %v3108
        %v3143 = vunpack.c.l.b16 %v3070
        %v3144 = vunpack.c.l.b16 %v3071
        %v3145 = vunpack.c.l.b16 %v3072
        %v3146 = vunpack.c.l.b16 %v3073
        %v3147 = vunpack.c.l.b16 %v3074
        %v3148 = vunpack.c.l.b16 %v3075
        %v3149 = vunpack.c.l.b16 %v3076
        %v3150 = vunpack.c.l.b16 %v3077
        %v3151 = vunpack.c.l.b16 %v3078
        %v3152 = vunpack.c.l.b16 %v3079
        %v3153 = vunpack.c.l.b16 %v3080
        %v3154 = vunpack.c.l.b16 %v3081
        %v3155 = vunpack.c.l.b16 %v3082
        %v3156 = vunpack.c.l.b16 %v3083
        %v3157 = vunpack.c.l.b16 %v3084
        %v3158 = vunpack.c.l.b16 %v3085
        %v3159 = vunpack.c.l.b16 %v3086
        %v3160 = vunpack.c.l.b16 %v3087
        %v3161 = vunpack.c.l.b16 %v3088
        %v3162 = vunpack.c.l.b16 %v3089
        %v3163 = vunpack.c.l.b16 %v3090
        %v3164 = vunpack.c.l.b16 %v3091
        %v3165 = vunpack.c.l.b16 %v3092
        %v3166 = vunpack.c.l.b16 %v3093
        %v3167 = vunpack.c.l.b16 %v3094
        %v3168 = vunpack.c.l.b16 %v3095
        %v3169 = vunpack.c.l.b16 %v3096
        %v3170 = vunpack.c.l.b16 %v3097
        %v3171 = vunpack.c.l.b16 %v3098
        %v3172 = vunpack.c.l.b16 %v3099
        %v3173 = vunpack.c.l.b16 %v3100
        %v3174 = vunpack.c.l.b16 %v3101
        %v3175 = vpack.c.b16 %v3144, %v3143
        %v3176 = vpack.c.b16 %v3146, %v3145
        %v3177 = vpack.c.b16 %v3148, %v3147
        %v3178 = vpack.c.b16 %v3150, %v3149
        %v3179 = vpack.c.b16 %v3152, %v3151
        %v3180 = vpack.c.b16 %v3154, %v3153
        %v3181 = vpack.c.b16 %v3156, %v3155
        %v3182 = vpack.c.b16 %v3158, %v3157
        %v3183 = vpack.c.b16 %v3160, %v3159
        %v3184 = vpack.c.b16 %v3162, %v3161
        %v3185 = vpack.c.b16 %v3164, %v3163
        %v3186 = vpack.c.b16 %v3166, %v3165
        %v3187 = vpack.c.b16 %v3168, %v3167
        %v3188 = vpack.c.b16 %v3170, %v3169
        %v3189 = vpack.c.b16 %v3172, %v3171
        %v3190 = vpack.c.b16 %v3174, %v3173
        %3207 = vmatprep.subr.bf16.mxu0 0
        %3208 = vmatpush1.bf16.msra.mxu0 %v3175
        %3209 = vmatprep.subr.bf16.mxu0 0
        %3210 = vmatpush1.bf16.msra.mxu0 %v3176
        %3211 = vmatprep.subr.bf16.mxu0 0
        %3212 = vmatpush1.bf16.msra.mxu0 %v3177
        %3213 = vmatprep.subr.bf16.mxu0 0
        %3214 = vmatpush1.bf16.msra.mxu0 %v3178
        %3215 = vmatprep.subr.bf16.mxu0 0
        %3216 = vmatpush1.bf16.msra.mxu0 %v3179
        %3217 = vmatprep.subr.bf16.mxu0 0
        %3218 = vmatpush1.bf16.msra.mxu0 %v3180
        %3219 = vmatprep.subr.bf16.mxu0 0
        %3220 = vmatpush1.bf16.msra.mxu0 %v3181
        %3221 = vmatprep.subr.bf16.mxu0 0
        %3222 = vmatpush1.bf16.msra.mxu0 %v3182
        %3223 = vmatprep.subr.bf16.mxu0 0
        %3224 = vmatpush1.bf16.msra.mxu0 %v3183
        %3225 = vmatprep.subr.bf16.mxu0 0
        %3226 = vmatpush1.bf16.msra.mxu0 %v3184
        %3227 = vmatprep.subr.bf16.mxu0 0
        %3228 = vmatpush1.bf16.msra.mxu0 %v3185
        %3229 = vmatprep.subr.bf16.mxu0 0
        %3230 = vmatpush1.bf16.msra.mxu0 %v3186
        %3231 = vmatprep.subr.bf16.mxu0 0
        %3232 = vmatpush1.bf16.msra.mxu0 %v3187
        %3233 = vmatprep.subr.bf16.mxu0 0
        %3234 = vmatpush1.bf16.msra.mxu0 %v3188
        %3235 = vmatprep.subr.bf16.mxu0 0
        %3236 = vmatpush1.bf16.msra.mxu0 %v3189
        %3237 = vmatprep.subr.bf16.mxu0 0
        %3238 = vmatpush1.bf16.msra.mxu0 %v3190
        %3239 = vmatprep.mubr.bf16.mxu0 %v3104
        %3240 = vmatmul.mubr.bf16.gmra.mrb[0].mxu0 %v3103
        %v3241 = vpop.f32.mrb[0].mxu0
        %v3242 = vadd.f32 %v3109, %v3241
        %v3243 = vpop.f32.mrb[0].mxu0
        %v3244 = vpop.f32.mrb[0].mxu0
        %v3245 = vpop.f32.mrb[0].mxu0
        %3246 = vdwg.mxu0
        %v3247 = vadd.f32 %v2874, %v3242
        %3248 = vst [vmem:[#allocation2] sm:$0xff] %v3247
        %p3249 = scmp.eq.s32.totalorder %s45, 1
        // Predicated region
        $region129: #{_lambda_.3} parent=111 // pred_check
          %p3250 = pneg %p3249
        $region130: #{_lambda_.3} parent=111 // pred_check_branch
          %3252 = sbr.rel (%p3250) target = $region132
        $region131: #{_lambda_.3} parent=111 // pred_region
          %3253 = vst [vmem:[%s1136] sm:$0xff] %v3247
        $region132: #{_lambda_.3} parent=111 // pred_fallthru
          _
        %p3254 = scmp.lt.s32.totalorder %s44, 1
        %s3255 = scalar_select %p3254, %s44, 1
        %s3256 = smul.addr %s3255, 8
        %s3257 = scalar_lea.vmem %s23, %s3256
        // Predicated region
        $region133: #{_lambda_.3} parent=111 // pred_check
          %p3258 = pneg %p668
        $region134: #{_lambda_.3} parent=111 // pred_check_branch
          %3260 = sbr.rel (%p3258) target = $region136
        $region135: #{_lambda_.3} parent=111 // pred_region
          _
        $region136: #{_lambda_.3} parent=111 // pred_fallthru
          _
      $region112: #{_lambda_.3} parent=5 // pred_fallthru
        _
      %p3261 = scmp.le.s32.totalorder 2, %s35
      // Predicated region
      $region137: #{_lambda_.3} parent=5 // pred_check
        %p3262 = pneg %p3261
      $region138: #{_lambda_.3} parent=5 // pred_check_branch
        %3264 = sbr.rel (%p3262) target = $region140
      $region139: #{_lambda_.3} parent=5 // pred_region
        %s3265 = ssub.s32 %s35, 2
        // Predicated region
        $region141: #{_lambda_.3} parent=139 // pred_check
          %p3266 = pneg %p674
        $region142: #{_lambda_.3} parent=139 // pred_check_branch
          %3268 = sbr.rel (%p3266) target = $region144
        $region143: #{_lambda_.3} parent=139 // pred_region
          %p3269 = scmp.lt.s32.totalorder %s46, 1
          %s3270 = scalar_select %p3269, %s46, 1
          %s3271 = smul.addr %s3270, 8
          %s3272 = scalar_lea.vmem %s23, %s3271
        $region144: #{_lambda_.3} parent=139 // pred_fallthru
          _
      $region140: #{_lambda_.3} parent=5 // pred_fallthru
        _
    $region6: #{_lambda_.3} parent=1 // loop_footer
      %s39 = sadd.s32 1, %s35
    $region7: #{_lambda_.3} parent=1 // loop_footer_branch
      %34 = sbr.rel target = $region3
    $region8: #{_lambda_.3} parent=1 // loop_exit
      _
    %3273 = vsyncpa [#allocation4], 1
    %s3274 = scalar_lea.sflag [#allocation4], 1
    %3275 = vsyncpa %s3274, 1
    %3276 = vsyncpa [#allocation6], 1
    %s3277 = scalar_lea.sflag [#allocation6], 1
    %3278 = vsyncpa %s3277, 1

</llo_original>
